<compile_context>
chip_gen: v5e
topology: v5e:2x2
jax: 0.10.0
libtpu: 0.0.40
codegen_flags: <defaults>
</compile_context>

<pallas_src>
import jax
import jax.numpy as jnp
from jax.experimental import pallas as pl
from jax.experimental.pallas import tpu as pltpu


def _convnet_fused_kernel(x_ref, cw_ref, cb_ref, fcw_ref, fcb_ref, out_ref,
                          feat_ref):
    # x_ref:    (28, 28, TB) f32   raw images, batch on the lane axis
    # cw_ref:   (3, 9)  f32 SMEM   conv weights [out_ch, ki*3 + kj]
    # cb_ref:   (3,)    f32 SMEM   conv bias
    # fcw_ref:  (10, 576) f32      FC weights widened with zero columns so the
    #                              stride-3 pooled-column selection is free
    # fcb_ref:  (10, 1) f32        FC bias
    # out_ref:  (10, TB) f32       log-probs (class-major, batch on lanes)
    # feat_ref: (576, TB) f32 VMEM scratch: flattened pooled features

    # ---- hoist SMEM scalars (read once) ----
    w = [[cw_ref[c, t] for t in range(9)] for c in range(3)]
    b = [cb_ref[c] for c in range(3)]

    # ---- hoist the column (kj) shift: 3 shifted slabs instead of 9 window
    #      copies; later row accesses are free leading-dim slices ----
    xs = [x_ref[:, kj:kj + 26, :] for kj in range(3)]          # each (28, 26, TB)

    # ---- strip-wise 3x3 conv + 3x3/stride-3 pool + relu per row group ----
    for py in range(8):
        # The 5 input rows this pooled row group touches, per column shift.
        rows = [[xs[kj][3 * py + r] for kj in range(3)] for r in range(5)]
        for c in range(3):
            rowmax = None
            for rr in range(3):                         # conv row inside group
                acc = None
                for ki in range(3):
                    for kj in range(3):
                        term = rows[rr + ki][kj] * w[c][ki * 3 + kj]
                        acc = term if acc is None else acc + term
                rowmax = acc if rowmax is None else jnp.maximum(rowmax, acc)
            # Column pooling: shifted-window max over the small (26, TB) strip.
            # The stride-3 pooled-column *selection* is folded into the
            # zero-widened FC weights, so no gather is needed here.
            winmax = jnp.maximum(jnp.maximum(rowmax[0:24, :], rowmax[1:25, :]),
                                 rowmax[2:26, :])               # (24, TB)
            act = jnp.maximum(winmax + b[c], 0.0)               # bias once, relu
            start = c * 192 + py * 24
            feat_ref[start:start + 24, :] = act                 # sublane-aligned

    # ---- FC + log_softmax: one MXU matmul, class axis on sublanes ----
    logits = jnp.dot(fcw_ref[...], feat_ref[...],
                     preferred_element_type=jnp.float32) + fcb_ref[...]
    m = jnp.max(logits, axis=0, keepdims=True)
    s = logits - m
    lse = jnp.log(jnp.sum(jnp.exp(s), axis=0, keepdims=True))
    out_ref[...] = s - lse


def _round_up(a, m):
    return ((a + m - 1) // m) * m


def convnet_forward(x, conv_w, conv_b, fc_w, fc_b, *, tb=512):
    # x: (N, 1, 28, 28); conv_w: (3, 1, 3, 3); conv_b: (3,)
    # fc_w: (10, 192); fc_b: (10,)
    n = x.shape[0]

    # Batch tile: multiple of 128 (lane width), never larger than the padded
    # batch; when the grid would be a single step, halve the tile so the
    # "parallel" axis can shard across v7x's two TensorCores.
    n128 = _round_up(n, 128)
    tb_eff = min(_round_up(tb, 128), n128)
    if n128 // tb_eff < 2 and tb_eff > 128:
        tb_eff = max(128, _round_up(tb_eff // 2, 128))
    n_pad = _round_up(n, tb_eff)

    # Layout plumbing (no inflation): batch -> lane axis, pad batch to a tile.
    xt = jnp.transpose(x[:, 0].astype(jnp.float32), (1, 2, 0))     # (28, 28, N)
    xt = jnp.pad(xt, ((0, 0), (0, 0), (0, n_pad - n)))

    cw = conv_w.reshape(3, 9).astype(jnp.float32)                  # SMEM scalars
    cb = conv_b.astype(jnp.float32)

    # Widen FC weights: PyTorch feature (c, py, px) -> wide column
    # c*192 + py*24 + 3*px, zeros elsewhere (stride-3 pooled-column pick).
    fcw4 = fc_w.astype(jnp.float32).reshape(10, 3, 8, 8)           # [o, c, py, px]
    wide = jnp.zeros((10, 3, 8, 24), jnp.float32).at[:, :, :, 0:24:3].set(fcw4)
    fcw_wide = wide.reshape(10, 576)
    fcb_col = fc_b.astype(jnp.float32).reshape(10, 1)

    out = pl.pallas_call(
        _convnet_fused_kernel,
        out_shape=jax.ShapeDtypeStruct((10, n_pad), jnp.float32),
        grid=(n_pad // tb_eff,),
        in_specs=[
            pl.BlockSpec((28, 28, tb_eff), lambda i: (0, 0, i)),
            pl.BlockSpec(memory_space=pltpu.MemorySpace.SMEM),
            pl.BlockSpec(memory_space=pltpu.MemorySpace.SMEM),
            pl.BlockSpec((10, 576), lambda i: (0, 0)),
            pl.BlockSpec((10, 1), lambda i: (0, 0)),
        ],
        out_specs=pl.BlockSpec((10, tb_eff), lambda i: (0, i)),
        scratch_shapes=[pltpu.VMEM((576, tb_eff), jnp.float32)],
        compiler_params=pltpu.CompilerParams(
            dimension_semantics=("parallel",),
            vmem_limit_bytes=32 * 1024 * 1024),
    )(xt, cw, cb, fcw_wide, fcb_col)

    return out[:, :n].T                                            # (N, 10)


def convnet_reference(x, conv_w, conv_b, fc_w, fc_b):
    # Pure-JAX reference for sanity checking.
    conv = jax.lax.conv_general_dilated(
        x, conv_w, window_strides=(1, 1), padding="VALID",
        dimension_numbers=("NCHW", "OIHW", "NCHW"))
    conv = conv + conv_b.reshape(1, 3, 1, 1)
    pooled = jax.lax.reduce_window(
        conv, -jnp.inf, jax.lax.max, (1, 1, 3, 3), (1, 1, 3, 3), "VALID")
    act = jnp.maximum(pooled, 0.0)
    feat = act.reshape(x.shape[0], 192)
    logits = feat @ fc_w.T + fc_b
    return jax.nn.log_softmax(logits, axis=1)


if __name__ == "__main__":
    key = jax.random.PRNGKey(0)
    k1, k2, k3, k4, kx = jax.random.split(key, 5)

    # Deterministic synthetic params (PyTorch-style uniform fan-in bounds).
    conv_bound = 1.0 / 3.0                       # fan_in = 1*3*3 = 9
    fc_bound = 1.0 / (192.0 ** 0.5)              # fan_in = 192
    conv_w = jax.random.uniform(k1, (3, 1, 3, 3), jnp.float32,
                                -conv_bound, conv_bound)
    conv_b = jax.random.uniform(k2, (3,), jnp.float32, -conv_bound, conv_bound)
    fc_w = jax.random.uniform(k3, (10, 192), jnp.float32, -fc_bound, fc_bound)
    fc_b = jax.random.uniform(k4, (10,), jnp.float32, -fc_bound, fc_bound)

    # Input: batch=2, MNIST-shaped (1, 28, 28) -- required so flatten == 192.
    x = jax.random.normal(kx, (2, 1, 28, 28), jnp.float32)

    out = convnet_forward(x, conv_w, conv_b, fc_w, fc_b)
    out = jax.block_until_ready(out)

    ref = convnet_reference(x, conv_w, conv_b, fc_w, fc_b)
    assert out.shape == (2, 10)
    assert jnp.allclose(out, ref, atol=1e-3, rtol=1e-3)

    print("KERNEL_OK")
</pallas_src>

<mosaic_0001>
module attributes {stable_mosaic.version = 11 : i64} {
  func.func @_convnet_fused_kernel(%arg0: i32, %arg1: memref<28x28x128xf32, #tpu.memory_space<vmem>>, %arg2: memref<3x9xf32, #tpu.memory_space<smem>>, %arg3: memref<3xf32, #tpu.memory_space<smem>>, %arg4: memref<10x576xf32, #tpu.memory_space<vmem>>, %arg5: memref<10x1xf32, #tpu.memory_space<vmem>>, %arg6: memref<10x128xf32, #tpu.memory_space<vmem>>, %arg7: memref<576x128xf32, #tpu.memory_space<vmem>>) attributes {dimension_semantics = [#tpu.dimension_semantics<parallel>], iteration_bounds = array<i64: 1>, scalar_prefetch = 0 : i64, scratch_operands = 1 : i64, tpu.core_type = #tpu.core_type<tc>, window_params = [{transform_indices = @transform_0, window_bounds = array<i64: 28, 28, 128>}, {transform_indices = @transform_1, window_bounds = array<i64: 3, 9>}, {transform_indices = @transform_2, window_bounds = array<i64: 3>}, {pipeline_mode = #tpu.pipeline_mode<synchronous>, transform_indices = @transform_3, window_bounds = array<i64: 10, 576>}, {pipeline_mode = #tpu.pipeline_mode<synchronous>, transform_indices = @transform_4, window_bounds = array<i64: 10, 1>}, {transform_indices = @transform_5, window_bounds = array<i64: 10, 128>}]} {
    %c0 = arith.constant 0 : index
    %c0_0 = arith.constant 0 : index
    %0 = memref.load %arg2[%c0, %c0_0] : memref<3x9xf32, #tpu.memory_space<smem>>
    %c0_1 = arith.constant 0 : index
    %c1 = arith.constant 1 : index
    %1 = memref.load %arg2[%c0_1, %c1] : memref<3x9xf32, #tpu.memory_space<smem>>
    %c0_2 = arith.constant 0 : index
    %c2 = arith.constant 2 : index
    %2 = memref.load %arg2[%c0_2, %c2] : memref<3x9xf32, #tpu.memory_space<smem>>
    %c0_3 = arith.constant 0 : index
    %c3 = arith.constant 3 : index
    %3 = memref.load %arg2[%c0_3, %c3] : memref<3x9xf32, #tpu.memory_space<smem>>
    %c0_4 = arith.constant 0 : index
    %c4 = arith.constant 4 : index
    %4 = memref.load %arg2[%c0_4, %c4] : memref<3x9xf32, #tpu.memory_space<smem>>
    %c0_5 = arith.constant 0 : index
    %c5 = arith.constant 5 : index
    %5 = memref.load %arg2[%c0_5, %c5] : memref<3x9xf32, #tpu.memory_space<smem>>
    %c0_6 = arith.constant 0 : index
    %c6 = arith.constant 6 : index
    %6 = memref.load %arg2[%c0_6, %c6] : memref<3x9xf32, #tpu.memory_space<smem>>
    %c0_7 = arith.constant 0 : index
    %c7 = arith.constant 7 : index
    %7 = memref.load %arg2[%c0_7, %c7] : memref<3x9xf32, #tpu.memory_space<smem>>
    %c0_8 = arith.constant 0 : index
    %c8 = arith.constant 8 : index
    %8 = memref.load %arg2[%c0_8, %c8] : memref<3x9xf32, #tpu.memory_space<smem>>
    %c1_9 = arith.constant 1 : index
    %c0_10 = arith.constant 0 : index
    %9 = memref.load %arg2[%c1_9, %c0_10] : memref<3x9xf32, #tpu.memory_space<smem>>
    %c1_11 = arith.constant 1 : index
    %c1_12 = arith.constant 1 : index
    %10 = memref.load %arg2[%c1_11, %c1_12] : memref<3x9xf32, #tpu.memory_space<smem>>
    %c1_13 = arith.constant 1 : index
    %c2_14 = arith.constant 2 : index
    %11 = memref.load %arg2[%c1_13, %c2_14] : memref<3x9xf32, #tpu.memory_space<smem>>
    %c1_15 = arith.constant 1 : index
    %c3_16 = arith.constant 3 : index
    %12 = memref.load %arg2[%c1_15, %c3_16] : memref<3x9xf32, #tpu.memory_space<smem>>
    %c1_17 = arith.constant 1 : index
    %c4_18 = arith.constant 4 : index
    %13 = memref.load %arg2[%c1_17, %c4_18] : memref<3x9xf32, #tpu.memory_space<smem>>
    %c1_19 = arith.constant 1 : index
    %c5_20 = arith.constant 5 : index
    %14 = memref.load %arg2[%c1_19, %c5_20] : memref<3x9xf32, #tpu.memory_space<smem>>
    %c1_21 = arith.constant 1 : index
    %c6_22 = arith.constant 6 : index
    %15 = memref.load %arg2[%c1_21, %c6_22] : memref<3x9xf32, #tpu.memory_space<smem>>
    %c1_23 = arith.constant 1 : index
    %c7_24 = arith.constant 7 : index
    %16 = memref.load %arg2[%c1_23, %c7_24] : memref<3x9xf32, #tpu.memory_space<smem>>
    %c1_25 = arith.constant 1 : index
    %c8_26 = arith.constant 8 : index
    %17 = memref.load %arg2[%c1_25, %c8_26] : memref<3x9xf32, #tpu.memory_space<smem>>
    %c2_27 = arith.constant 2 : index
    %c0_28 = arith.constant 0 : index
    %18 = memref.load %arg2[%c2_27, %c0_28] : memref<3x9xf32, #tpu.memory_space<smem>>
    %c2_29 = arith.constant 2 : index
    %c1_30 = arith.constant 1 : index
    %19 = memref.load %arg2[%c2_29, %c1_30] : memref<3x9xf32, #tpu.memory_space<smem>>
    %c2_31 = arith.constant 2 : index
    %c2_32 = arith.constant 2 : index
    %20 = memref.load %arg2[%c2_31, %c2_32] : memref<3x9xf32, #tpu.memory_space<smem>>
    %c2_33 = arith.constant 2 : index
    %c3_34 = arith.constant 3 : index
    %21 = memref.load %arg2[%c2_33, %c3_34] : memref<3x9xf32, #tpu.memory_space<smem>>
    %c2_35 = arith.constant 2 : index
    %c4_36 = arith.constant 4 : index
    %22 = memref.load %arg2[%c2_35, %c4_36] : memref<3x9xf32, #tpu.memory_space<smem>>
    %c2_37 = arith.constant 2 : index
    %c5_38 = arith.constant 5 : index
    %23 = memref.load %arg2[%c2_37, %c5_38] : memref<3x9xf32, #tpu.memory_space<smem>>
    %c2_39 = arith.constant 2 : index
    %c6_40 = arith.constant 6 : index
    %24 = memref.load %arg2[%c2_39, %c6_40] : memref<3x9xf32, #tpu.memory_space<smem>>
    %c2_41 = arith.constant 2 : index
    %c7_42 = arith.constant 7 : index
    %25 = memref.load %arg2[%c2_41, %c7_42] : memref<3x9xf32, #tpu.memory_space<smem>>
    %c2_43 = arith.constant 2 : index
    %c8_44 = arith.constant 8 : index
    %26 = memref.load %arg2[%c2_43, %c8_44] : memref<3x9xf32, #tpu.memory_space<smem>>
    %c0_45 = arith.constant 0 : index
    %27 = memref.load %arg3[%c0_45] : memref<3xf32, #tpu.memory_space<smem>>
    %c1_46 = arith.constant 1 : index
    %28 = memref.load %arg3[%c1_46] : memref<3xf32, #tpu.memory_space<smem>>
    %c2_47 = arith.constant 2 : index
    %29 = memref.load %arg3[%c2_47] : memref<3xf32, #tpu.memory_space<smem>>
    %c0_48 = arith.constant 0 : index
    %c0_49 = arith.constant 0 : index
    %c0_50 = arith.constant 0 : index
    %30 = vector.load %arg1[%c0_48, %c0_49, %c0_50] : memref<28x28x128xf32, #tpu.memory_space<vmem>>, vector<28x26x128xf32>
    %c0_51 = arith.constant 0 : index
    %c1_52 = arith.constant 1 : index
    %c0_53 = arith.constant 0 : index
    %31 = vector.load %arg1[%c0_51, %c1_52, %c0_53] : memref<28x28x128xf32, #tpu.memory_space<vmem>>, vector<28x26x128xf32>
    %c0_54 = arith.constant 0 : index
    %c2_55 = arith.constant 2 : index
    %c0_56 = arith.constant 0 : index
    %32 = vector.load %arg1[%c0_54, %c2_55, %c0_56] : memref<28x28x128xf32, #tpu.memory_space<vmem>>, vector<28x26x128xf32>
    %33 = vector.extract_strided_slice %30 {offsets = [0, 0, 0], sizes = [1, 26, 128], strides = [1, 1, 1]} : vector<28x26x128xf32> to vector<1x26x128xf32>
    %34 = vector.shape_cast %33 : vector<1x26x128xf32> to vector<26x128xf32>
    %35 = vector.extract_strided_slice %31 {offsets = [0, 0, 0], sizes = [1, 26, 128], strides = [1, 1, 1]} : vector<28x26x128xf32> to vector<1x26x128xf32>
    %36 = vector.shape_cast %35 : vector<1x26x128xf32> to vector<26x128xf32>
    %37 = vector.extract_strided_slice %32 {offsets = [0, 0, 0], sizes = [1, 26, 128], strides = [1, 1, 1]} : vector<28x26x128xf32> to vector<1x26x128xf32>
    %38 = vector.shape_cast %37 : vector<1x26x128xf32> to vector<26x128xf32>
    %39 = vector.extract_strided_slice %30 {offsets = [1, 0, 0], sizes = [1, 26, 128], strides = [1, 1, 1]} : vector<28x26x128xf32> to vector<1x26x128xf32>
    %40 = vector.shape_cast %39 : vector<1x26x128xf32> to vector<26x128xf32>
    %41 = vector.extract_strided_slice %31 {offsets = [1, 0, 0], sizes = [1, 26, 128], strides = [1, 1, 1]} : vector<28x26x128xf32> to vector<1x26x128xf32>
    %42 = vector.shape_cast %41 : vector<1x26x128xf32> to vector<26x128xf32>
    %43 = vector.extract_strided_slice %32 {offsets = [1, 0, 0], sizes = [1, 26, 128], strides = [1, 1, 1]} : vector<28x26x128xf32> to vector<1x26x128xf32>
    %44 = vector.shape_cast %43 : vector<1x26x128xf32> to vector<26x128xf32>
    %45 = vector.extract_strided_slice %30 {offsets = [2, 0, 0], sizes = [1, 26, 128], strides = [1, 1, 1]} : vector<28x26x128xf32> to vector<1x26x128xf32>
    %46 = vector.shape_cast %45 : vector<1x26x128xf32> to vector<26x128xf32>
    %47 = vector.extract_strided_slice %31 {offsets = [2, 0, 0], sizes = [1, 26, 128], strides = [1, 1, 1]} : vector<28x26x128xf32> to vector<1x26x128xf32>
    %48 = vector.shape_cast %47 : vector<1x26x128xf32> to vector<26x128xf32>
    %49 = vector.extract_strided_slice %32 {offsets = [2, 0, 0], sizes = [1, 26, 128], strides = [1, 1, 1]} : vector<28x26x128xf32> to vector<1x26x128xf32>
    %50 = vector.shape_cast %49 : vector<1x26x128xf32> to vector<26x128xf32>
    %51 = vector.extract_strided_slice %30 {offsets = [3, 0, 0], sizes = [1, 26, 128], strides = [1, 1, 1]} : vector<28x26x128xf32> to vector<1x26x128xf32>
    %52 = vector.shape_cast %51 : vector<1x26x128xf32> to vector<26x128xf32>
    %53 = vector.extract_strided_slice %31 {offsets = [3, 0, 0], sizes = [1, 26, 128], strides = [1, 1, 1]} : vector<28x26x128xf32> to vector<1x26x128xf32>
    %54 = vector.shape_cast %53 : vector<1x26x128xf32> to vector<26x128xf32>
    %55 = vector.extract_strided_slice %32 {offsets = [3, 0, 0], sizes = [1, 26, 128], strides = [1, 1, 1]} : vector<28x26x128xf32> to vector<1x26x128xf32>
    %56 = vector.shape_cast %55 : vector<1x26x128xf32> to vector<26x128xf32>
    %57 = vector.extract_strided_slice %30 {offsets = [4, 0, 0], sizes = [1, 26, 128], strides = [1, 1, 1]} : vector<28x26x128xf32> to vector<1x26x128xf32>
    %58 = vector.shape_cast %57 : vector<1x26x128xf32> to vector<26x128xf32>
    %59 = vector.extract_strided_slice %31 {offsets = [4, 0, 0], sizes = [1, 26, 128], strides = [1, 1, 1]} : vector<28x26x128xf32> to vector<1x26x128xf32>
    %60 = vector.shape_cast %59 : vector<1x26x128xf32> to vector<26x128xf32>
    %61 = vector.extract_strided_slice %32 {offsets = [4, 0, 0], sizes = [1, 26, 128], strides = [1, 1, 1]} : vector<28x26x128xf32> to vector<1x26x128xf32>
    %62 = vector.shape_cast %61 : vector<1x26x128xf32> to vector<26x128xf32>
    %63 = vector.broadcast %0 : f32 to vector<26x128xf32>
    %64 = arith.mulf %34, %63 : vector<26x128xf32>
    %65 = vector.broadcast %1 : f32 to vector<26x128xf32>
    %66 = arith.mulf %36, %65 : vector<26x128xf32>
    %67 = arith.addf %64, %66 : vector<26x128xf32>
    %68 = vector.broadcast %2 : f32 to vector<26x128xf32>
    %69 = arith.mulf %38, %68 : vector<26x128xf32>
    %70 = arith.addf %67, %69 : vector<26x128xf32>
    %71 = vector.broadcast %3 : f32 to vector<26x128xf32>
    %72 = arith.mulf %40, %71 : vector<26x128xf32>
    %73 = arith.addf %70, %72 : vector<26x128xf32>
    %74 = vector.broadcast %4 : f32 to vector<26x128xf32>
    %75 = arith.mulf %42, %74 : vector<26x128xf32>
    %76 = arith.addf %73, %75 : vector<26x128xf32>
    %77 = vector.broadcast %5 : f32 to vector<26x128xf32>
    %78 = arith.mulf %44, %77 : vector<26x128xf32>
    %79 = arith.addf %76, %78 : vector<26x128xf32>
    %80 = vector.broadcast %6 : f32 to vector<26x128xf32>
    %81 = arith.mulf %46, %80 : vector<26x128xf32>
    %82 = arith.addf %79, %81 : vector<26x128xf32>
    %83 = vector.broadcast %7 : f32 to vector<26x128xf32>
    %84 = arith.mulf %48, %83 : vector<26x128xf32>
    %85 = arith.addf %82, %84 : vector<26x128xf32>
    %86 = vector.broadcast %8 : f32 to vector<26x128xf32>
    %87 = arith.mulf %50, %86 : vector<26x128xf32>
    %88 = arith.addf %85, %87 : vector<26x128xf32>
    %89 = vector.broadcast %0 : f32 to vector<26x128xf32>
    %90 = arith.mulf %40, %89 : vector<26x128xf32>
    %91 = vector.broadcast %1 : f32 to vector<26x128xf32>
    %92 = arith.mulf %42, %91 : vector<26x128xf32>
    %93 = arith.addf %90, %92 : vector<26x128xf32>
    %94 = vector.broadcast %2 : f32 to vector<26x128xf32>
    %95 = arith.mulf %44, %94 : vector<26x128xf32>
    %96 = arith.addf %93, %95 : vector<26x128xf32>
    %97 = vector.broadcast %3 : f32 to vector<26x128xf32>
    %98 = arith.mulf %46, %97 : vector<26x128xf32>
    %99 = arith.addf %96, %98 : vector<26x128xf32>
    %100 = vector.broadcast %4 : f32 to vector<26x128xf32>
    %101 = arith.mulf %48, %100 : vector<26x128xf32>
    %102 = arith.addf %99, %101 : vector<26x128xf32>
    %103 = vector.broadcast %5 : f32 to vector<26x128xf32>
    %104 = arith.mulf %50, %103 : vector<26x128xf32>
    %105 = arith.addf %102, %104 : vector<26x128xf32>
    %106 = vector.broadcast %6 : f32 to vector<26x128xf32>
    %107 = arith.mulf %52, %106 : vector<26x128xf32>
    %108 = arith.addf %105, %107 : vector<26x128xf32>
    %109 = vector.broadcast %7 : f32 to vector<26x128xf32>
    %110 = arith.mulf %54, %109 : vector<26x128xf32>
    %111 = arith.addf %108, %110 : vector<26x128xf32>
    %112 = vector.broadcast %8 : f32 to vector<26x128xf32>
    %113 = arith.mulf %56, %112 : vector<26x128xf32>
    %114 = arith.addf %111, %113 : vector<26x128xf32>
    %115 = arith.maximumf %88, %114 : vector<26x128xf32>
    %116 = vector.broadcast %0 : f32 to vector<26x128xf32>
    %117 = arith.mulf %46, %116 : vector<26x128xf32>
    %118 = vector.broadcast %1 : f32 to vector<26x128xf32>
    %119 = arith.mulf %48, %118 : vector<26x128xf32>
    %120 = arith.addf %117, %119 : vector<26x128xf32>
    %121 = vector.broadcast %2 : f32 to vector<26x128xf32>
    %122 = arith.mulf %50, %121 : vector<26x128xf32>
    %123 = arith.addf %120, %122 : vector<26x128xf32>
    %124 = vector.broadcast %3 : f32 to vector<26x128xf32>
    %125 = arith.mulf %52, %124 : vector<26x128xf32>
    %126 = arith.addf %123, %125 : vector<26x128xf32>
    %127 = vector.broadcast %4 : f32 to vector<26x128xf32>
    %128 = arith.mulf %54, %127 : vector<26x128xf32>
    %129 = arith.addf %126, %128 : vector<26x128xf32>
    %130 = vector.broadcast %5 : f32 to vector<26x128xf32>
    %131 = arith.mulf %56, %130 : vector<26x128xf32>
    %132 = arith.addf %129, %131 : vector<26x128xf32>
    %133 = vector.broadcast %6 : f32 to vector<26x128xf32>
    %134 = arith.mulf %58, %133 : vector<26x128xf32>
    %135 = arith.addf %132, %134 : vector<26x128xf32>
    %136 = vector.broadcast %7 : f32 to vector<26x128xf32>
    %137 = arith.mulf %60, %136 : vector<26x128xf32>
    %138 = arith.addf %135, %137 : vector<26x128xf32>
    %139 = vector.broadcast %8 : f32 to vector<26x128xf32>
    %140 = arith.mulf %62, %139 : vector<26x128xf32>
    %141 = arith.addf %138, %140 : vector<26x128xf32>
    %142 = arith.maximumf %115, %141 : vector<26x128xf32>
    %143 = vector.extract_strided_slice %142 {offsets = [0, 0], sizes = [24, 128], strides = [1, 1]} : vector<26x128xf32> to vector<24x128xf32>
    %144 = vector.extract_strided_slice %142 {offsets = [1, 0], sizes = [24, 128], strides = [1, 1]} : vector<26x128xf32> to vector<24x128xf32>
    %145 = arith.maximumf %143, %144 : vector<24x128xf32>
    %146 = vector.extract_strided_slice %142 {offsets = [2, 0], sizes = [24, 128], strides = [1, 1]} : vector<26x128xf32> to vector<24x128xf32>
    %147 = arith.maximumf %145, %146 : vector<24x128xf32>
    %148 = vector.broadcast %27 : f32 to vector<24x128xf32>
    %149 = arith.addf %147, %148 : vector<24x128xf32>
    %cst = arith.constant 0.000000e+00 : f32
    %150 = vector.broadcast %cst : f32 to vector<24x128xf32>
    %151 = arith.maximumf %149, %150 : vector<24x128xf32>
    %c0_57 = arith.constant 0 : index
    %c0_58 = arith.constant 0 : index
    %152 = vector.load %arg7[%c0_57, %c0_58] : memref<576x128xf32, #tpu.memory_space<vmem>>, vector<24x128xf32>
    tpu.vector_store %arg7[%c0_57, %c0_58], %151 {strides = array<i32>} : memref<576x128xf32, #tpu.memory_space<vmem>>, vector<24x128xf32>,
    %153 = vector.broadcast %9 : f32 to vector<26x128xf32>
    %154 = arith.mulf %34, %153 : vector<26x128xf32>
    %155 = vector.broadcast %10 : f32 to vector<26x128xf32>
    %156 = arith.mulf %36, %155 : vector<26x128xf32>
    %157 = arith.addf %154, %156 : vector<26x128xf32>
    %158 = vector.broadcast %11 : f32 to vector<26x128xf32>
    %159 = arith.mulf %38, %158 : vector<26x128xf32>
    %160 = arith.addf %157, %159 : vector<26x128xf32>
    %161 = vector.broadcast %12 : f32 to vector<26x128xf32>
    %162 = arith.mulf %40, %161 : vector<26x128xf32>
    %163 = arith.addf %160, %162 : vector<26x128xf32>
    %164 = vector.broadcast %13 : f32 to vector<26x128xf32>
    %165 = arith.mulf %42, %164 : vector<26x128xf32>
    %166 = arith.addf %163, %165 : vector<26x128xf32>
    %167 = vector.broadcast %14 : f32 to vector<26x128xf32>
    %168 = arith.mulf %44, %167 : vector<26x128xf32>
    %169 = arith.addf %166, %168 : vector<26x128xf32>
    %170 = vector.broadcast %15 : f32 to vector<26x128xf32>
    %171 = arith.mulf %46, %170 : vector<26x128xf32>
    %172 = arith.addf %169, %171 : vector<26x128xf32>
    %173 = vector.broadcast %16 : f32 to vector<26x128xf32>
    %174 = arith.mulf %48, %173 : vector<26x128xf32>
    %175 = arith.addf %172, %174 : vector<26x128xf32>
    %176 = vector.broadcast %17 : f32 to vector<26x128xf32>
    %177 = arith.mulf %50, %176 : vector<26x128xf32>
    %178 = arith.addf %175, %177 : vector<26x128xf32>
    %179 = vector.broadcast %9 : f32 to vector<26x128xf32>
    %180 = arith.mulf %40, %179 : vector<26x128xf32>
    %181 = vector.broadcast %10 : f32 to vector<26x128xf32>
    %182 = arith.mulf %42, %181 : vector<26x128xf32>
    %183 = arith.addf %180, %182 : vector<26x128xf32>
    %184 = vector.broadcast %11 : f32 to vector<26x128xf32>
    %185 = arith.mulf %44, %184 : vector<26x128xf32>
    %186 = arith.addf %183, %185 : vector<26x128xf32>
    %187 = vector.broadcast %12 : f32 to vector<26x128xf32>
    %188 = arith.mulf %46, %187 : vector<26x128xf32>
    %189 = arith.addf %186, %188 : vector<26x128xf32>
    %190 = vector.broadcast %13 : f32 to vector<26x128xf32>
    %191 = arith.mulf %48, %190 : vector<26x128xf32>
    %192 = arith.addf %189, %191 : vector<26x128xf32>
    %193 = vector.broadcast %14 : f32 to vector<26x128xf32>
    %194 = arith.mulf %50, %193 : vector<26x128xf32>
    %195 = arith.addf %192, %194 : vector<26x128xf32>
    %196 = vector.broadcast %15 : f32 to vector<26x128xf32>
    %197 = arith.mulf %52, %196 : vector<26x128xf32>
    %198 = arith.addf %195, %197 : vector<26x128xf32>
    %199 = vector.broadcast %16 : f32 to vector<26x128xf32>
    %200 = arith.mulf %54, %199 : vector<26x128xf32>
    %201 = arith.addf %198, %200 : vector<26x128xf32>
    %202 = vector.broadcast %17 : f32 to vector<26x128xf32>
    %203 = arith.mulf %56, %202 : vector<26x128xf32>
    %204 = arith.addf %201, %203 : vector<26x128xf32>
    %205 = arith.maximumf %178, %204 : vector<26x128xf32>
    %206 = vector.broadcast %9 : f32 to vector<26x128xf32>
    %207 = arith.mulf %46, %206 : vector<26x128xf32>
    %208 = vector.broadcast %10 : f32 to vector<26x128xf32>
    %209 = arith.mulf %48, %208 : vector<26x128xf32>
    %210 = arith.addf %207, %209 : vector<26x128xf32>
    %211 = vector.broadcast %11 : f32 to vector<26x128xf32>
    %212 = arith.mulf %50, %211 : vector<26x128xf32>
    %213 = arith.addf %210, %212 : vector<26x128xf32>
    %214 = vector.broadcast %12 : f32 to vector<26x128xf32>
    %215 = arith.mulf %52, %214 : vector<26x128xf32>
    %216 = arith.addf %213, %215 : vector<26x128xf32>
    %217 = vector.broadcast %13 : f32 to vector<26x128xf32>
    %218 = arith.mulf %54, %217 : vector<26x128xf32>
    %219 = arith.addf %216, %218 : vector<26x128xf32>
    %220 = vector.broadcast %14 : f32 to vector<26x128xf32>
    %221 = arith.mulf %56, %220 : vector<26x128xf32>
    %222 = arith.addf %219, %221 : vector<26x128xf32>
    %223 = vector.broadcast %15 : f32 to vector<26x128xf32>
    %224 = arith.mulf %58, %223 : vector<26x128xf32>
    %225 = arith.addf %222, %224 : vector<26x128xf32>
    %226 = vector.broadcast %16 : f32 to vector<26x128xf32>
    %227 = arith.mulf %60, %226 : vector<26x128xf32>
    %228 = arith.addf %225, %227 : vector<26x128xf32>
    %229 = vector.broadcast %17 : f32 to vector<26x128xf32>
    %230 = arith.mulf %62, %229 : vector<26x128xf32>
    %231 = arith.addf %228, %230 : vector<26x128xf32>
    %232 = arith.maximumf %205, %231 : vector<26x128xf32>
    %233 = vector.extract_strided_slice %232 {offsets = [0, 0], sizes = [24, 128], strides = [1, 1]} : vector<26x128xf32> to vector<24x128xf32>
    %234 = vector.extract_strided_slice %232 {offsets = [1, 0], sizes = [24, 128], strides = [1, 1]} : vector<26x128xf32> to vector<24x128xf32>
    %235 = arith.maximumf %233, %234 : vector<24x128xf32>
    %236 = vector.extract_strided_slice %232 {offsets = [2, 0], sizes = [24, 128], strides = [1, 1]} : vector<26x128xf32> to vector<24x128xf32>
    %237 = arith.maximumf %235, %236 : vector<24x128xf32>
    %238 = vector.broadcast %28 : f32 to vector<24x128xf32>
    %239 = arith.addf %237, %238 : vector<24x128xf32>
    %cst_59 = arith.constant 0.000000e+00 : f32
    %240 = vector.broadcast %cst_59 : f32 to vector<24x128xf32>
    %241 = arith.maximumf %239, %240 : vector<24x128xf32>
    %c192 = arith.constant 192 : index
    %c0_60 = arith.constant 0 : index
    %242 = vector.load %arg7[%c192, %c0_60] : memref<576x128xf32, #tpu.memory_space<vmem>>, vector<24x128xf32>
    tpu.vector_store %arg7[%c192, %c0_60], %241 {strides = array<i32>} : memref<576x128xf32, #tpu.memory_space<vmem>>, vector<24x128xf32>,
    %243 = vector.broadcast %18 : f32 to vector<26x128xf32>
    %244 = arith.mulf %34, %243 : vector<26x128xf32>
    %245 = vector.broadcast %19 : f32 to vector<26x128xf32>
    %246 = arith.mulf %36, %245 : vector<26x128xf32>
    %247 = arith.addf %244, %246 : vector<26x128xf32>
    %248 = vector.broadcast %20 : f32 to vector<26x128xf32>
    %249 = arith.mulf %38, %248 : vector<26x128xf32>
    %250 = arith.addf %247, %249 : vector<26x128xf32>
    %251 = vector.broadcast %21 : f32 to vector<26x128xf32>
    %252 = arith.mulf %40, %251 : vector<26x128xf32>
    %253 = arith.addf %250, %252 : vector<26x128xf32>
    %254 = vector.broadcast %22 : f32 to vector<26x128xf32>
    %255 = arith.mulf %42, %254 : vector<26x128xf32>
    %256 = arith.addf %253, %255 : vector<26x128xf32>
    %257 = vector.broadcast %23 : f32 to vector<26x128xf32>
    %258 = arith.mulf %44, %257 : vector<26x128xf32>
    %259 = arith.addf %256, %258 : vector<26x128xf32>
    %260 = vector.broadcast %24 : f32 to vector<26x128xf32>
    %261 = arith.mulf %46, %260 : vector<26x128xf32>
    %262 = arith.addf %259, %261 : vector<26x128xf32>
    %263 = vector.broadcast %25 : f32 to vector<26x128xf32>
    %264 = arith.mulf %48, %263 : vector<26x128xf32>
    %265 = arith.addf %262, %264 : vector<26x128xf32>
    %266 = vector.broadcast %26 : f32 to vector<26x128xf32>
    %267 = arith.mulf %50, %266 : vector<26x128xf32>
    %268 = arith.addf %265, %267 : vector<26x128xf32>
    %269 = vector.broadcast %18 : f32 to vector<26x128xf32>
    %270 = arith.mulf %40, %269 : vector<26x128xf32>
    %271 = vector.broadcast %19 : f32 to vector<26x128xf32>
    %272 = arith.mulf %42, %271 : vector<26x128xf32>
    %273 = arith.addf %270, %272 : vector<26x128xf32>
    %274 = vector.broadcast %20 : f32 to vector<26x128xf32>
    %275 = arith.mulf %44, %274 : vector<26x128xf32>
    %276 = arith.addf %273, %275 : vector<26x128xf32>
    %277 = vector.broadcast %21 : f32 to vector<26x128xf32>
    %278 = arith.mulf %46, %277 : vector<26x128xf32>
    %279 = arith.addf %276, %278 : vector<26x128xf32>
    %280 = vector.broadcast %22 : f32 to vector<26x128xf32>
    %281 = arith.mulf %48, %280 : vector<26x128xf32>
    %282 = arith.addf %279, %281 : vector<26x128xf32>
    %283 = vector.broadcast %23 : f32 to vector<26x128xf32>
    %284 = arith.mulf %50, %283 : vector<26x128xf32>
    %285 = arith.addf %282, %284 : vector<26x128xf32>
    %286 = vector.broadcast %24 : f32 to vector<26x128xf32>
    %287 = arith.mulf %52, %286 : vector<26x128xf32>
    %288 = arith.addf %285, %287 : vector<26x128xf32>
    %289 = vector.broadcast %25 : f32 to vector<26x128xf32>
    %290 = arith.mulf %54, %289 : vector<26x128xf32>
    %291 = arith.addf %288, %290 : vector<26x128xf32>
    %292 = vector.broadcast %26 : f32 to vector<26x128xf32>
    %293 = arith.mulf %56, %292 : vector<26x128xf32>
    %294 = arith.addf %291, %293 : vector<26x128xf32>
    %295 = arith.maximumf %268, %294 : vector<26x128xf32>
    %296 = vector.broadcast %18 : f32 to vector<26x128xf32>
    %297 = arith.mulf %46, %296 : vector<26x128xf32>
    %298 = vector.broadcast %19 : f32 to vector<26x128xf32>
    %299 = arith.mulf %48, %298 : vector<26x128xf32>
    %300 = arith.addf %297, %299 : vector<26x128xf32>
    %301 = vector.broadcast %20 : f32 to vector<26x128xf32>
    %302 = arith.mulf %50, %301 : vector<26x128xf32>
    %303 = arith.addf %300, %302 : vector<26x128xf32>
    %304 = vector.broadcast %21 : f32 to vector<26x128xf32>
    %305 = arith.mulf %52, %304 : vector<26x128xf32>
    %306 = arith.addf %303, %305 : vector<26x128xf32>
    %307 = vector.broadcast %22 : f32 to vector<26x128xf32>
    %308 = arith.mulf %54, %307 : vector<26x128xf32>
    %309 = arith.addf %306, %308 : vector<26x128xf32>
    %310 = vector.broadcast %23 : f32 to vector<26x128xf32>
    %311 = arith.mulf %56, %310 : vector<26x128xf32>
    %312 = arith.addf %309, %311 : vector<26x128xf32>
    %313 = vector.broadcast %24 : f32 to vector<26x128xf32>
    %314 = arith.mulf %58, %313 : vector<26x128xf32>
    %315 = arith.addf %312, %314 : vector<26x128xf32>
    %316 = vector.broadcast %25 : f32 to vector<26x128xf32>
    %317 = arith.mulf %60, %316 : vector<26x128xf32>
    %318 = arith.addf %315, %317 : vector<26x128xf32>
    %319 = vector.broadcast %26 : f32 to vector<26x128xf32>
    %320 = arith.mulf %62, %319 : vector<26x128xf32>
    %321 = arith.addf %318, %320 : vector<26x128xf32>
    %322 = arith.maximumf %295, %321 : vector<26x128xf32>
    %323 = vector.extract_strided_slice %322 {offsets = [0, 0], sizes = [24, 128], strides = [1, 1]} : vector<26x128xf32> to vector<24x128xf32>
    %324 = vector.extract_strided_slice %322 {offsets = [1, 0], sizes = [24, 128], strides = [1, 1]} : vector<26x128xf32> to vector<24x128xf32>
    %325 = arith.maximumf %323, %324 : vector<24x128xf32>
    %326 = vector.extract_strided_slice %322 {offsets = [2, 0], sizes = [24, 128], strides = [1, 1]} : vector<26x128xf32> to vector<24x128xf32>
    %327 = arith.maximumf %325, %326 : vector<24x128xf32>
    %328 = vector.broadcast %29 : f32 to vector<24x128xf32>
    %329 = arith.addf %327, %328 : vector<24x128xf32>
    %cst_61 = arith.constant 0.000000e+00 : f32
    %330 = vector.broadcast %cst_61 : f32 to vector<24x128xf32>
    %331 = arith.maximumf %329, %330 : vector<24x128xf32>
    %c384 = arith.constant 384 : index
    %c0_62 = arith.constant 0 : index
    %332 = vector.load %arg7[%c384, %c0_62] : memref<576x128xf32, #tpu.memory_space<vmem>>, vector<24x128xf32>
    tpu.vector_store %arg7[%c384, %c0_62], %331 {strides = array<i32>} : memref<576x128xf32, #tpu.memory_space<vmem>>, vector<24x128xf32>,
    %333 = vector.extract_strided_slice %30 {offsets = [3, 0, 0], sizes = [1, 26, 128], strides = [1, 1, 1]} : vector<28x26x128xf32> to vector<1x26x128xf32>
    %334 = vector.shape_cast %333 : vector<1x26x128xf32> to vector<26x128xf32>
    %335 = vector.extract_strided_slice %31 {offsets = [3, 0, 0], sizes = [1, 26, 128], strides = [1, 1, 1]} : vector<28x26x128xf32> to vector<1x26x128xf32>
    %336 = vector.shape_cast %335 : vector<1x26x128xf32> to vector<26x128xf32>
    %337 = vector.extract_strided_slice %32 {offsets = [3, 0, 0], sizes = [1, 26, 128], strides = [1, 1, 1]} : vector<28x26x128xf32> to vector<1x26x128xf32>
    %338 = vector.shape_cast %337 : vector<1x26x128xf32> to vector<26x128xf32>
    %339 = vector.extract_strided_slice %30 {offsets = [4, 0, 0], sizes = [1, 26, 128], strides = [1, 1, 1]} : vector<28x26x128xf32> to vector<1x26x128xf32>
    %340 = vector.shape_cast %339 : vector<1x26x128xf32> to vector<26x128xf32>
    %341 = vector.extract_strided_slice %31 {offsets = [4, 0, 0], sizes = [1, 26, 128], strides = [1, 1, 1]} : vector<28x26x128xf32> to vector<1x26x128xf32>
    %342 = vector.shape_cast %341 : vector<1x26x128xf32> to vector<26x128xf32>
    %343 = vector.extract_strided_slice %32 {offsets = [4, 0, 0], sizes = [1, 26, 128], strides = [1, 1, 1]} : vector<28x26x128xf32> to vector<1x26x128xf32>
    %344 = vector.shape_cast %343 : vector<1x26x128xf32> to vector<26x128xf32>
    %345 = vector.extract_strided_slice %30 {offsets = [5, 0, 0], sizes = [1, 26, 128], strides = [1, 1, 1]} : vector<28x26x128xf32> to vector<1x26x128xf32>
    %346 = vector.shape_cast %345 : vector<1x26x128xf32> to vector<26x128xf32>
    %347 = vector.extract_strided_slice %31 {offsets = [5, 0, 0], sizes = [1, 26, 128], strides = [1, 1, 1]} : vector<28x26x128xf32> to vector<1x26x128xf32>
    %348 = vector.shape_cast %347 : vector<1x26x128xf32> to vector<26x128xf32>
    %349 = vector.extract_strided_slice %32 {offsets = [5, 0, 0], sizes = [1, 26, 128], strides = [1, 1, 1]} : vector<28x26x128xf32> to vector<1x26x128xf32>
    %350 = vector.shape_cast %349 : vector<1x26x128xf32> to vector<26x128xf32>
    %351 = vector.extract_strided_slice %30 {offsets = [6, 0, 0], sizes = [1, 26, 128], strides = [1, 1, 1]} : vector<28x26x128xf32> to vector<1x26x128xf32>
    %352 = vector.shape_cast %351 : vector<1x26x128xf32> to vector<26x128xf32>
    %353 = vector.extract_strided_slice %31 {offsets = [6, 0, 0], sizes = [1, 26, 128], strides = [1, 1, 1]} : vector<28x26x128xf32> to vector<1x26x128xf32>
    %354 = vector.shape_cast %353 : vector<1x26x128xf32> to vector<26x128xf32>
    %355 = vector.extract_strided_slice %32 {offsets = [6, 0, 0], sizes = [1, 26, 128], strides = [1, 1, 1]} : vector<28x26x128xf32> to vector<1x26x128xf32>
    %356 = vector.shape_cast %355 : vector<1x26x128xf32> to vector<26x128xf32>
    %357 = vector.extract_strided_slice %30 {offsets = [7, 0, 0], sizes = [1, 26, 128], strides = [1, 1, 1]} : vector<28x26x128xf32> to vector<1x26x128xf32>
    %358 = vector.shape_cast %357 : vector<1x26x128xf32> to vector<26x128xf32>
    %359 = vector.extract_strided_slice %31 {offsets = [7, 0, 0], sizes = [1, 26, 128], strides = [1, 1, 1]} : vector<28x26x128xf32> to vector<1x26x128xf32>
    %360 = vector.shape_cast %359 : vector<1x26x128xf32> to vector<26x128xf32>
    %361 = vector.extract_strided_slice %32 {offsets = [7, 0, 0], sizes = [1, 26, 128], strides = [1, 1, 1]} : vector<28x26x128xf32> to vector<1x26x128xf32>
    %362 = vector.shape_cast %361 : vector<1x26x128xf32> to vector<26x128xf32>
    %363 = vector.broadcast %0 : f32 to vector<26x128xf32>
    %364 = arith.mulf %334, %363 : vector<26x128xf32>
    %365 = vector.broadcast %1 : f32 to vector<26x128xf32>
    %366 = arith.mulf %336, %365 : vector<26x128xf32>
    %367 = arith.addf %364, %366 : vector<26x128xf32>
    %368 = vector.broadcast %2 : f32 to vector<26x128xf32>
    %369 = arith.mulf %338, %368 : vector<26x128xf32>
    %370 = arith.addf %367, %369 : vector<26x128xf32>
    %371 = vector.broadcast %3 : f32 to vector<26x128xf32>
    %372 = arith.mulf %340, %371 : vector<26x128xf32>
    %373 = arith.addf %370, %372 : vector<26x128xf32>
    %374 = vector.broadcast %4 : f32 to vector<26x128xf32>
    %375 = arith.mulf %342, %374 : vector<26x128xf32>
    %376 = arith.addf %373, %375 : vector<26x128xf32>
    %377 = vector.broadcast %5 : f32 to vector<26x128xf32>
    %378 = arith.mulf %344, %377 : vector<26x128xf32>
    %379 = arith.addf %376, %378 : vector<26x128xf32>
    %380 = vector.broadcast %6 : f32 to vector<26x128xf32>
    %381 = arith.mulf %346, %380 : vector<26x128xf32>
    %382 = arith.addf %379, %381 : vector<26x128xf32>
    %383 = vector.broadcast %7 : f32 to vector<26x128xf32>
    %384 = arith.mulf %348, %383 : vector<26x128xf32>
    %385 = arith.addf %382, %384 : vector<26x128xf32>
    %386 = vector.broadcast %8 : f32 to vector<26x128xf32>
    %387 = arith.mulf %350, %386 : vector<26x128xf32>
    %388 = arith.addf %385, %387 : vector<26x128xf32>
    %389 = vector.broadcast %0 : f32 to vector<26x128xf32>
    %390 = arith.mulf %340, %389 : vector<26x128xf32>
    %391 = vector.broadcast %1 : f32 to vector<26x128xf32>
    %392 = arith.mulf %342, %391 : vector<26x128xf32>
    %393 = arith.addf %390, %392 : vector<26x128xf32>
    %394 = vector.broadcast %2 : f32 to vector<26x128xf32>
    %395 = arith.mulf %344, %394 : vector<26x128xf32>
    %396 = arith.addf %393, %395 : vector<26x128xf32>
    %397 = vector.broadcast %3 : f32 to vector<26x128xf32>
    %398 = arith.mulf %346, %397 : vector<26x128xf32>
    %399 = arith.addf %396, %398 : vector<26x128xf32>
    %400 = vector.broadcast %4 : f32 to vector<26x128xf32>
    %401 = arith.mulf %348, %400 : vector<26x128xf32>
    %402 = arith.addf %399, %401 : vector<26x128xf32>
    %403 = vector.broadcast %5 : f32 to vector<26x128xf32>
    %404 = arith.mulf %350, %403 : vector<26x128xf32>
    %405 = arith.addf %402, %404 : vector<26x128xf32>
    %406 = vector.broadcast %6 : f32 to vector<26x128xf32>
    %407 = arith.mulf %352, %406 : vector<26x128xf32>
    %408 = arith.addf %405, %407 : vector<26x128xf32>
    %409 = vector.broadcast %7 : f32 to vector<26x128xf32>
    %410 = arith.mulf %354, %409 : vector<26x128xf32>
    %411 = arith.addf %408, %410 : vector<26x128xf32>
    %412 = vector.broadcast %8 : f32 to vector<26x128xf32>
    %413 = arith.mulf %356, %412 : vector<26x128xf32>
    %414 = arith.addf %411, %413 : vector<26x128xf32>
    %415 = arith.maximumf %388, %414 : vector<26x128xf32>
    %416 = vector.broadcast %0 : f32 to vector<26x128xf32>
    %417 = arith.mulf %346, %416 : vector<26x128xf32>
    %418 = vector.broadcast %1 : f32 to vector<26x128xf32>
    %419 = arith.mulf %348, %418 : vector<26x128xf32>
    %420 = arith.addf %417, %419 : vector<26x128xf32>
    %421 = vector.broadcast %2 : f32 to vector<26x128xf32>
    %422 = arith.mulf %350, %421 : vector<26x128xf32>
    %423 = arith.addf %420, %422 : vector<26x128xf32>
    %424 = vector.broadcast %3 : f32 to vector<26x128xf32>
    %425 = arith.mulf %352, %424 : vector<26x128xf32>
    %426 = arith.addf %423, %425 : vector<26x128xf32>
    %427 = vector.broadcast %4 : f32 to vector<26x128xf32>
    %428 = arith.mulf %354, %427 : vector<26x128xf32>
    %429 = arith.addf %426, %428 : vector<26x128xf32>
    %430 = vector.broadcast %5 : f32 to vector<26x128xf32>
    %431 = arith.mulf %356, %430 : vector<26x128xf32>
    %432 = arith.addf %429, %431 : vector<26x128xf32>
    %433 = vector.broadcast %6 : f32 to vector<26x128xf32>
    %434 = arith.mulf %358, %433 : vector<26x128xf32>
    %435 = arith.addf %432, %434 : vector<26x128xf32>
    %436 = vector.broadcast %7 : f32 to vector<26x128xf32>
    %437 = arith.mulf %360, %436 : vector<26x128xf32>
    %438 = arith.addf %435, %437 : vector<26x128xf32>
    %439 = vector.broadcast %8 : f32 to vector<26x128xf32>
    %440 = arith.mulf %362, %439 : vector<26x128xf32>
    %441 = arith.addf %438, %440 : vector<26x128xf32>
    %442 = arith.maximumf %415, %441 : vector<26x128xf32>
    %443 = vector.extract_strided_slice %442 {offsets = [0, 0], sizes = [24, 128], strides = [1, 1]} : vector<26x128xf32> to vector<24x128xf32>
    %444 = vector.extract_strided_slice %442 {offsets = [1, 0], sizes = [24, 128], strides = [1, 1]} : vector<26x128xf32> to vector<24x128xf32>
    %445 = arith.maximumf %443, %444 : vector<24x128xf32>
    %446 = vector.extract_strided_slice %442 {offsets = [2, 0], sizes = [24, 128], strides = [1, 1]} : vector<26x128xf32> to vector<24x128xf32>
    %447 = arith.maximumf %445, %446 : vector<24x128xf32>
    %448 = vector.broadcast %27 : f32 to vector<24x128xf32>
    %449 = arith.addf %447, %448 : vector<24x128xf32>
    %cst_63 = arith.constant 0.000000e+00 : f32
    %450 = vector.broadcast %cst_63 : f32 to vector<24x128xf32>
    %451 = arith.maximumf %449, %450 : vector<24x128xf32>
    %c24 = arith.constant 24 : index
    %c0_64 = arith.constant 0 : index
    %452 = vector.load %arg7[%c24, %c0_64] : memref<576x128xf32, #tpu.memory_space<vmem>>, vector<24x128xf32>
    tpu.vector_store %arg7[%c24, %c0_64], %451 {strides = array<i32>} : memref<576x128xf32, #tpu.memory_space<vmem>>, vector<24x128xf32>,
    %453 = vector.broadcast %9 : f32 to vector<26x128xf32>
    %454 = arith.mulf %334, %453 : vector<26x128xf32>
    %455 = vector.broadcast %10 : f32 to vector<26x128xf32>
    %456 = arith.mulf %336, %455 : vector<26x128xf32>
    %457 = arith.addf %454, %456 : vector<26x128xf32>
    %458 = vector.broadcast %11 : f32 to vector<26x128xf32>
    %459 = arith.mulf %338, %458 : vector<26x128xf32>
    %460 = arith.addf %457, %459 : vector<26x128xf32>
    %461 = vector.broadcast %12 : f32 to vector<26x128xf32>
    %462 = arith.mulf %340, %461 : vector<26x128xf32>
    %463 = arith.addf %460, %462 : vector<26x128xf32>
    %464 = vector.broadcast %13 : f32 to vector<26x128xf32>
    %465 = arith.mulf %342, %464 : vector<26x128xf32>
    %466 = arith.addf %463, %465 : vector<26x128xf32>
    %467 = vector.broadcast %14 : f32 to vector<26x128xf32>
    %468 = arith.mulf %344, %467 : vector<26x128xf32>
    %469 = arith.addf %466, %468 : vector<26x128xf32>
    %470 = vector.broadcast %15 : f32 to vector<26x128xf32>
    %471 = arith.mulf %346, %470 : vector<26x128xf32>
    %472 = arith.addf %469, %471 : vector<26x128xf32>
    %473 = vector.broadcast %16 : f32 to vector<26x128xf32>
    %474 = arith.mulf %348, %473 : vector<26x128xf32>
    %475 = arith.addf %472, %474 : vector<26x128xf32>
    %476 = vector.broadcast %17 : f32 to vector<26x128xf32>
    %477 = arith.mulf %350, %476 : vector<26x128xf32>
    %478 = arith.addf %475, %477 : vector<26x128xf32>
    %479 = vector.broadcast %9 : f32 to vector<26x128xf32>
    %480 = arith.mulf %340, %479 : vector<26x128xf32>
    %481 = vector.broadcast %10 : f32 to vector<26x128xf32>
    %482 = arith.mulf %342, %481 : vector<26x128xf32>
    %483 = arith.addf %480, %482 : vector<26x128xf32>
    %484 = vector.broadcast %11 : f32 to vector<26x128xf32>
    %485 = arith.mulf %344, %484 : vector<26x128xf32>
    %486 = arith.addf %483, %485 : vector<26x128xf32>
    %487 = vector.broadcast %12 : f32 to vector<26x128xf32>
    %488 = arith.mulf %346, %487 : vector<26x128xf32>
    %489 = arith.addf %486, %488 : vector<26x128xf32>
    %490 = vector.broadcast %13 : f32 to vector<26x128xf32>
    %491 = arith.mulf %348, %490 : vector<26x128xf32>
    %492 = arith.addf %489, %491 : vector<26x128xf32>
    %493 = vector.broadcast %14 : f32 to vector<26x128xf32>
    %494 = arith.mulf %350, %493 : vector<26x128xf32>
    %495 = arith.addf %492, %494 : vector<26x128xf32>
    %496 = vector.broadcast %15 : f32 to vector<26x128xf32>
    %497 = arith.mulf %352, %496 : vector<26x128xf32>
    %498 = arith.addf %495, %497 : vector<26x128xf32>
    %499 = vector.broadcast %16 : f32 to vector<26x128xf32>
    %500 = arith.mulf %354, %499 : vector<26x128xf32>
    %501 = arith.addf %498, %500 : vector<26x128xf32>
    %502 = vector.broadcast %17 : f32 to vector<26x128xf32>
    %503 = arith.mulf %356, %502 : vector<26x128xf32>
    %504 = arith.addf %501, %503 : vector<26x128xf32>
    %505 = arith.maximumf %478, %504 : vector<26x128xf32>
    %506 = vector.broadcast %9 : f32 to vector<26x128xf32>
    %507 = arith.mulf %346, %506 : vector<26x128xf32>
    %508 = vector.broadcast %10 : f32 to vector<26x128xf32>
    %509 = arith.mulf %348, %508 : vector<26x128xf32>
    %510 = arith.addf %507, %509 : vector<26x128xf32>
    %511 = vector.broadcast %11 : f32 to vector<26x128xf32>
    %512 = arith.mulf %350, %511 : vector<26x128xf32>
    %513 = arith.addf %510, %512 : vector<26x128xf32>
    %514 = vector.broadcast %12 : f32 to vector<26x128xf32>
    %515 = arith.mulf %352, %514 : vector<26x128xf32>
    %516 = arith.addf %513, %515 : vector<26x128xf32>
    %517 = vector.broadcast %13 : f32 to vector<26x128xf32>
    %518 = arith.mulf %354, %517 : vector<26x128xf32>
    %519 = arith.addf %516, %518 : vector<26x128xf32>
    %520 = vector.broadcast %14 : f32 to vector<26x128xf32>
    %521 = arith.mulf %356, %520 : vector<26x128xf32>
    %522 = arith.addf %519, %521 : vector<26x128xf32>
    %523 = vector.broadcast %15 : f32 to vector<26x128xf32>
    %524 = arith.mulf %358, %523 : vector<26x128xf32>
    %525 = arith.addf %522, %524 : vector<26x128xf32>
    %526 = vector.broadcast %16 : f32 to vector<26x128xf32>
    %527 = arith.mulf %360, %526 : vector<26x128xf32>
    %528 = arith.addf %525, %527 : vector<26x128xf32>
    %529 = vector.broadcast %17 : f32 to vector<26x128xf32>
    %530 = arith.mulf %362, %529 : vector<26x128xf32>
    %531 = arith.addf %528, %530 : vector<26x128xf32>
    %532 = arith.maximumf %505, %531 : vector<26x128xf32>
    %533 = vector.extract_strided_slice %532 {offsets = [0, 0], sizes = [24, 128], strides = [1, 1]} : vector<26x128xf32> to vector<24x128xf32>
    %534 = vector.extract_strided_slice %532 {offsets = [1, 0], sizes = [24, 128], strides = [1, 1]} : vector<26x128xf32> to vector<24x128xf32>
    %535 = arith.maximumf %533, %534 : vector<24x128xf32>
    %536 = vector.extract_strided_slice %532 {offsets = [2, 0], sizes = [24, 128], strides = [1, 1]} : vector<26x128xf32> to vector<24x128xf32>
    %537 = arith.maximumf %535, %536 : vector<24x128xf32>
    %538 = vector.broadcast %28 : f32 to vector<24x128xf32>
    %539 = arith.addf %537, %538 : vector<24x128xf32>
    %cst_65 = arith.constant 0.000000e+00 : f32
    %540 = vector.broadcast %cst_65 : f32 to vector<24x128xf32>
    %541 = arith.maximumf %539, %540 : vector<24x128xf32>
    %c216 = arith.constant 216 : index
    %c0_66 = arith.constant 0 : index
    %542 = vector.load %arg7[%c216, %c0_66] : memref<576x128xf32, #tpu.memory_space<vmem>>, vector<24x128xf32>
    tpu.vector_store %arg7[%c216, %c0_66], %541 {strides = array<i32>} : memref<576x128xf32, #tpu.memory_space<vmem>>, vector<24x128xf32>,
    %543 = vector.broadcast %18 : f32 to vector<26x128xf32>
    %544 = arith.mulf %334, %543 : vector<26x128xf32>
    %545 = vector.broadcast %19 : f32 to vector<26x128xf32>
    %546 = arith.mulf %336, %545 : vector<26x128xf32>
    %547 = arith.addf %544, %546 : vector<26x128xf32>
    %548 = vector.broadcast %20 : f32 to vector<26x128xf32>
    %549 = arith.mulf %338, %548 : vector<26x128xf32>
    %550 = arith.addf %547, %549 : vector<26x128xf32>
    %551 = vector.broadcast %21 : f32 to vector<26x128xf32>
    %552 = arith.mulf %340, %551 : vector<26x128xf32>
    %553 = arith.addf %550, %552 : vector<26x128xf32>
    %554 = vector.broadcast %22 : f32 to vector<26x128xf32>
    %555 = arith.mulf %342, %554 : vector<26x128xf32>
    %556 = arith.addf %553, %555 : vector<26x128xf32>
    %557 = vector.broadcast %23 : f32 to vector<26x128xf32>
    %558 = arith.mulf %344, %557 : vector<26x128xf32>
    %559 = arith.addf %556, %558 : vector<26x128xf32>
    %560 = vector.broadcast %24 : f32 to vector<26x128xf32>
    %561 = arith.mulf %346, %560 : vector<26x128xf32>
    %562 = arith.addf %559, %561 : vector<26x128xf32>
    %563 = vector.broadcast %25 : f32 to vector<26x128xf32>
    %564 = arith.mulf %348, %563 : vector<26x128xf32>
    %565 = arith.addf %562, %564 : vector<26x128xf32>
    %566 = vector.broadcast %26 : f32 to vector<26x128xf32>
    %567 = arith.mulf %350, %566 : vector<26x128xf32>
    %568 = arith.addf %565, %567 : vector<26x128xf32>
    %569 = vector.broadcast %18 : f32 to vector<26x128xf32>
    %570 = arith.mulf %340, %569 : vector<26x128xf32>
    %571 = vector.broadcast %19 : f32 to vector<26x128xf32>
    %572 = arith.mulf %342, %571 : vector<26x128xf32>
    %573 = arith.addf %570, %572 : vector<26x128xf32>
    %574 = vector.broadcast %20 : f32 to vector<26x128xf32>
    %575 = arith.mulf %344, %574 : vector<26x128xf32>
    %576 = arith.addf %573, %575 : vector<26x128xf32>
    %577 = vector.broadcast %21 : f32 to vector<26x128xf32>
    %578 = arith.mulf %346, %577 : vector<26x128xf32>
    %579 = arith.addf %576, %578 : vector<26x128xf32>
    %580 = vector.broadcast %22 : f32 to vector<26x128xf32>
    %581 = arith.mulf %348, %580 : vector<26x128xf32>
    %582 = arith.addf %579, %581 : vector<26x128xf32>
    %583 = vector.broadcast %23 : f32 to vector<26x128xf32>
    %584 = arith.mulf %350, %583 : vector<26x128xf32>
    %585 = arith.addf %582, %584 : vector<26x128xf32>
    %586 = vector.broadcast %24 : f32 to vector<26x128xf32>
    %587 = arith.mulf %352, %586 : vector<26x128xf32>
    %588 = arith.addf %585, %587 : vector<26x128xf32>
    %589 = vector.broadcast %25 : f32 to vector<26x128xf32>
    %590 = arith.mulf %354, %589 : vector<26x128xf32>
    %591 = arith.addf %588, %590 : vector<26x128xf32>
    %592 = vector.broadcast %26 : f32 to vector<26x128xf32>
    %593 = arith.mulf %356, %592 : vector<26x128xf32>
    %594 = arith.addf %591, %593 : vector<26x128xf32>
    %595 = arith.maximumf %568, %594 : vector<26x128xf32>
    %596 = vector.broadcast %18 : f32 to vector<26x128xf32>
    %597 = arith.mulf %346, %596 : vector<26x128xf32>
    %598 = vector.broadcast %19 : f32 to vector<26x128xf32>
    %599 = arith.mulf %348, %598 : vector<26x128xf32>
    %600 = arith.addf %597, %599 : vector<26x128xf32>
    %601 = vector.broadcast %20 : f32 to vector<26x128xf32>
    %602 = arith.mulf %350, %601 : vector<26x128xf32>
    %603 = arith.addf %600, %602 : vector<26x128xf32>
    %604 = vector.broadcast %21 : f32 to vector<26x128xf32>
    %605 = arith.mulf %352, %604 : vector<26x128xf32>
    %606 = arith.addf %603, %605 : vector<26x128xf32>
    %607 = vector.broadcast %22 : f32 to vector<26x128xf32>
    %608 = arith.mulf %354, %607 : vector<26x128xf32>
    %609 = arith.addf %606, %608 : vector<26x128xf32>
    %610 = vector.broadcast %23 : f32 to vector<26x128xf32>
    %611 = arith.mulf %356, %610 : vector<26x128xf32>
    %612 = arith.addf %609, %611 : vector<26x128xf32>
    %613 = vector.broadcast %24 : f32 to vector<26x128xf32>
    %614 = arith.mulf %358, %613 : vector<26x128xf32>
    %615 = arith.addf %612, %614 : vector<26x128xf32>
    %616 = vector.broadcast %25 : f32 to vector<26x128xf32>
    %617 = arith.mulf %360, %616 : vector<26x128xf32>
    %618 = arith.addf %615, %617 : vector<26x128xf32>
    %619 = vector.broadcast %26 : f32 to vector<26x128xf32>
    %620 = arith.mulf %362, %619 : vector<26x128xf32>
    %621 = arith.addf %618, %620 : vector<26x128xf32>
    %622 = arith.maximumf %595, %621 : vector<26x128xf32>
    %623 = vector.extract_strided_slice %622 {offsets = [0, 0], sizes = [24, 128], strides = [1, 1]} : vector<26x128xf32> to vector<24x128xf32>
    %624 = vector.extract_strided_slice %622 {offsets = [1, 0], sizes = [24, 128], strides = [1, 1]} : vector<26x128xf32> to vector<24x128xf32>
    %625 = arith.maximumf %623, %624 : vector<24x128xf32>
    %626 = vector.extract_strided_slice %622 {offsets = [2, 0], sizes = [24, 128], strides = [1, 1]} : vector<26x128xf32> to vector<24x128xf32>
    %627 = arith.maximumf %625, %626 : vector<24x128xf32>
    %628 = vector.broadcast %29 : f32 to vector<24x128xf32>
    %629 = arith.addf %627, %628 : vector<24x128xf32>
    %cst_67 = arith.constant 0.000000e+00 : f32
    %630 = vector.broadcast %cst_67 : f32 to vector<24x128xf32>
    %631 = arith.maximumf %629, %630 : vector<24x128xf32>
    %c408 = arith.constant 408 : index
    %c0_68 = arith.constant 0 : index
    %632 = vector.load %arg7[%c408, %c0_68] : memref<576x128xf32, #tpu.memory_space<vmem>>, vector<24x128xf32>
    tpu.vector_store %arg7[%c408, %c0_68], %631 {strides = array<i32>} : memref<576x128xf32, #tpu.memory_space<vmem>>, vector<24x128xf32>,
    %633 = vector.extract_strided_slice %30 {offsets = [6, 0, 0], sizes = [1, 26, 128], strides = [1, 1, 1]} : vector<28x26x128xf32> to vector<1x26x128xf32>
    %634 = vector.shape_cast %633 : vector<1x26x128xf32> to vector<26x128xf32>
    %635 = vector.extract_strided_slice %31 {offsets = [6, 0, 0], sizes = [1, 26, 128], strides = [1, 1, 1]} : vector<28x26x128xf32> to vector<1x26x128xf32>
    %636 = vector.shape_cast %635 : vector<1x26x128xf32> to vector<26x128xf32>
    %637 = vector.extract_strided_slice %32 {offsets = [6, 0, 0], sizes = [1, 26, 128], strides = [1, 1, 1]} : vector<28x26x128xf32> to vector<1x26x128xf32>
    %638 = vector.shape_cast %637 : vector<1x26x128xf32> to vector<26x128xf32>
    %639 = vector.extract_strided_slice %30 {offsets = [7, 0, 0], sizes = [1, 26, 128], strides = [1, 1, 1]} : vector<28x26x128xf32> to vector<1x26x128xf32>
    %640 = vector.shape_cast %639 : vector<1x26x128xf32> to vector<26x128xf32>
    %641 = vector.extract_strided_slice %31 {offsets = [7, 0, 0], sizes = [1, 26, 128], strides = [1, 1, 1]} : vector<28x26x128xf32> to vector<1x26x128xf32>
    %642 = vector.shape_cast %641 : vector<1x26x128xf32> to vector<26x128xf32>
    %643 = vector.extract_strided_slice %32 {offsets = [7, 0, 0], sizes = [1, 26, 128], strides = [1, 1, 1]} : vector<28x26x128xf32> to vector<1x26x128xf32>
    %644 = vector.shape_cast %643 : vector<1x26x128xf32> to vector<26x128xf32>
    %645 = vector.extract_strided_slice %30 {offsets = [8, 0, 0], sizes = [1, 26, 128], strides = [1, 1, 1]} : vector<28x26x128xf32> to vector<1x26x128xf32>
    %646 = vector.shape_cast %645 : vector<1x26x128xf32> to vector<26x128xf32>
    %647 = vector.extract_strided_slice %31 {offsets = [8, 0, 0], sizes = [1, 26, 128], strides = [1, 1, 1]} : vector<28x26x128xf32> to vector<1x26x128xf32>
    %648 = vector.shape_cast %647 : vector<1x26x128xf32> to vector<26x128xf32>
    %649 = vector.extract_strided_slice %32 {offsets = [8, 0, 0], sizes = [1, 26, 128], strides = [1, 1, 1]} : vector<28x26x128xf32> to vector<1x26x128xf32>
    %650 = vector.shape_cast %649 : vector<1x26x128xf32> to vector<26x128xf32>
    %651 = vector.extract_strided_slice %30 {offsets = [9, 0, 0], sizes = [1, 26, 128], strides = [1, 1, 1]} : vector<28x26x128xf32> to vector<1x26x128xf32>
    %652 = vector.shape_cast %651 : vector<1x26x128xf32> to vector<26x128xf32>
    %653 = vector.extract_strided_slice %31 {offsets = [9, 0, 0], sizes = [1, 26, 128], strides = [1, 1, 1]} : vector<28x26x128xf32> to vector<1x26x128xf32>
    %654 = vector.shape_cast %653 : vector<1x26x128xf32> to vector<26x128xf32>
    %655 = vector.extract_strided_slice %32 {offsets = [9, 0, 0], sizes = [1, 26, 128], strides = [1, 1, 1]} : vector<28x26x128xf32> to vector<1x26x128xf32>
    %656 = vector.shape_cast %655 : vector<1x26x128xf32> to vector<26x128xf32>
    %657 = vector.extract_strided_slice %30 {offsets = [10, 0, 0], sizes = [1, 26, 128], strides = [1, 1, 1]} : vector<28x26x128xf32> to vector<1x26x128xf32>
    %658 = vector.shape_cast %657 : vector<1x26x128xf32> to vector<26x128xf32>
    %659 = vector.extract_strided_slice %31 {offsets = [10, 0, 0], sizes = [1, 26, 128], strides = [1, 1, 1]} : vector<28x26x128xf32> to vector<1x26x128xf32>
    %660 = vector.shape_cast %659 : vector<1x26x128xf32> to vector<26x128xf32>
    %661 = vector.extract_strided_slice %32 {offsets = [10, 0, 0], sizes = [1, 26, 128], strides = [1, 1, 1]} : vector<28x26x128xf32> to vector<1x26x128xf32>
    %662 = vector.shape_cast %661 : vector<1x26x128xf32> to vector<26x128xf32>
    %663 = vector.broadcast %0 : f32 to vector<26x128xf32>
    %664 = arith.mulf %634, %663 : vector<26x128xf32>
    %665 = vector.broadcast %1 : f32 to vector<26x128xf32>
    %666 = arith.mulf %636, %665 : vector<26x128xf32>
    %667 = arith.addf %664, %666 : vector<26x128xf32>
    %668 = vector.broadcast %2 : f32 to vector<26x128xf32>
    %669 = arith.mulf %638, %668 : vector<26x128xf32>
    %670 = arith.addf %667, %669 : vector<26x128xf32>
    %671 = vector.broadcast %3 : f32 to vector<26x128xf32>
    %672 = arith.mulf %640, %671 : vector<26x128xf32>
    %673 = arith.addf %670, %672 : vector<26x128xf32>
    %674 = vector.broadcast %4 : f32 to vector<26x128xf32>
    %675 = arith.mulf %642, %674 : vector<26x128xf32>
    %676 = arith.addf %673, %675 : vector<26x128xf32>
    %677 = vector.broadcast %5 : f32 to vector<26x128xf32>
    %678 = arith.mulf %644, %677 : vector<26x128xf32>
    %679 = arith.addf %676, %678 : vector<26x128xf32>
    %680 = vector.broadcast %6 : f32 to vector<26x128xf32>
    %681 = arith.mulf %646, %680 : vector<26x128xf32>
    %682 = arith.addf %679, %681 : vector<26x128xf32>
    %683 = vector.broadcast %7 : f32 to vector<26x128xf32>
    %684 = arith.mulf %648, %683 : vector<26x128xf32>
    %685 = arith.addf %682, %684 : vector<26x128xf32>
    %686 = vector.broadcast %8 : f32 to vector<26x128xf32>
    %687 = arith.mulf %650, %686 : vector<26x128xf32>
    %688 = arith.addf %685, %687 : vector<26x128xf32>
    %689 = vector.broadcast %0 : f32 to vector<26x128xf32>
    %690 = arith.mulf %640, %689 : vector<26x128xf32>
    %691 = vector.broadcast %1 : f32 to vector<26x128xf32>
    %692 = arith.mulf %642, %691 : vector<26x128xf32>
    %693 = arith.addf %690, %692 : vector<26x128xf32>
    %694 = vector.broadcast %2 : f32 to vector<26x128xf32>
    %695 = arith.mulf %644, %694 : vector<26x128xf32>
    %696 = arith.addf %693, %695 : vector<26x128xf32>
    %697 = vector.broadcast %3 : f32 to vector<26x128xf32>
    %698 = arith.mulf %646, %697 : vector<26x128xf32>
    %699 = arith.addf %696, %698 : vector<26x128xf32>
    %700 = vector.broadcast %4 : f32 to vector<26x128xf32>
    %701 = arith.mulf %648, %700 : vector<26x128xf32>
    %702 = arith.addf %699, %701 : vector<26x128xf32>
    %703 = vector.broadcast %5 : f32 to vector<26x128xf32>
    %704 = arith.mulf %650, %703 : vector<26x128xf32>
    %705 = arith.addf %702, %704 : vector<26x128xf32>
    %706 = vector.broadcast %6 : f32 to vector<26x128xf32>
    %707 = arith.mulf %652, %706 : vector<26x128xf32>
    %708 = arith.addf %705, %707 : vector<26x128xf32>
    %709 = vector.broadcast %7 : f32 to vector<26x128xf32>
    %710 = arith.mulf %654, %709 : vector<26x128xf32>
    %711 = arith.addf %708, %710 : vector<26x128xf32>
    %712 = vector.broadcast %8 : f32 to vector<26x128xf32>
    %713 = arith.mulf %656, %712 : vector<26x128xf32>
    %714 = arith.addf %711, %713 : vector<26x128xf32>
    %715 = arith.maximumf %688, %714 : vector<26x128xf32>
    %716 = vector.broadcast %0 : f32 to vector<26x128xf32>
    %717 = arith.mulf %646, %716 : vector<26x128xf32>
    %718 = vector.broadcast %1 : f32 to vector<26x128xf32>
    %719 = arith.mulf %648, %718 : vector<26x128xf32>
    %720 = arith.addf %717, %719 : vector<26x128xf32>
    %721 = vector.broadcast %2 : f32 to vector<26x128xf32>
    %722 = arith.mulf %650, %721 : vector<26x128xf32>
    %723 = arith.addf %720, %722 : vector<26x128xf32>
    %724 = vector.broadcast %3 : f32 to vector<26x128xf32>
    %725 = arith.mulf %652, %724 : vector<26x128xf32>
    %726 = arith.addf %723, %725 : vector<26x128xf32>
    %727 = vector.broadcast %4 : f32 to vector<26x128xf32>
    %728 = arith.mulf %654, %727 : vector<26x128xf32>
    %729 = arith.addf %726, %728 : vector<26x128xf32>
    %730 = vector.broadcast %5 : f32 to vector<26x128xf32>
    %731 = arith.mulf %656, %730 : vector<26x128xf32>
    %732 = arith.addf %729, %731 : vector<26x128xf32>
    %733 = vector.broadcast %6 : f32 to vector<26x128xf32>
    %734 = arith.mulf %658, %733 : vector<26x128xf32>
    %735 = arith.addf %732, %734 : vector<26x128xf32>
    %736 = vector.broadcast %7 : f32 to vector<26x128xf32>
    %737 = arith.mulf %660, %736 : vector<26x128xf32>
    %738 = arith.addf %735, %737 : vector<26x128xf32>
    %739 = vector.broadcast %8 : f32 to vector<26x128xf32>
    %740 = arith.mulf %662, %739 : vector<26x128xf32>
    %741 = arith.addf %738, %740 : vector<26x128xf32>
    %742 = arith.maximumf %715, %741 : vector<26x128xf32>
    %743 = vector.extract_strided_slice %742 {offsets = [0, 0], sizes = [24, 128], strides = [1, 1]} : vector<26x128xf32> to vector<24x128xf32>
    %744 = vector.extract_strided_slice %742 {offsets = [1, 0], sizes = [24, 128], strides = [1, 1]} : vector<26x128xf32> to vector<24x128xf32>
    %745 = arith.maximumf %743, %744 : vector<24x128xf32>
    %746 = vector.extract_strided_slice %742 {offsets = [2, 0], sizes = [24, 128], strides = [1, 1]} : vector<26x128xf32> to vector<24x128xf32>
    %747 = arith.maximumf %745, %746 : vector<24x128xf32>
    %748 = vector.broadcast %27 : f32 to vector<24x128xf32>
    %749 = arith.addf %747, %748 : vector<24x128xf32>
    %cst_69 = arith.constant 0.000000e+00 : f32
    %750 = vector.broadcast %cst_69 : f32 to vector<24x128xf32>
    %751 = arith.maximumf %749, %750 : vector<24x128xf32>
    %c48 = arith.constant 48 : index
    %c0_70 = arith.constant 0 : index
    %752 = vector.load %arg7[%c48, %c0_70] : memref<576x128xf32, #tpu.memory_space<vmem>>, vector<24x128xf32>
    tpu.vector_store %arg7[%c48, %c0_70], %751 {strides = array<i32>} : memref<576x128xf32, #tpu.memory_space<vmem>>, vector<24x128xf32>,
    %753 = vector.broadcast %9 : f32 to vector<26x128xf32>
    %754 = arith.mulf %634, %753 : vector<26x128xf32>
    %755 = vector.broadcast %10 : f32 to vector<26x128xf32>
    %756 = arith.mulf %636, %755 : vector<26x128xf32>
    %757 = arith.addf %754, %756 : vector<26x128xf32>
    %758 = vector.broadcast %11 : f32 to vector<26x128xf32>
    %759 = arith.mulf %638, %758 : vector<26x128xf32>
    %760 = arith.addf %757, %759 : vector<26x128xf32>
    %761 = vector.broadcast %12 : f32 to vector<26x128xf32>
    %762 = arith.mulf %640, %761 : vector<26x128xf32>
    %763 = arith.addf %760, %762 : vector<26x128xf32>
    %764 = vector.broadcast %13 : f32 to vector<26x128xf32>
    %765 = arith.mulf %642, %764 : vector<26x128xf32>
    %766 = arith.addf %763, %765 : vector<26x128xf32>
    %767 = vector.broadcast %14 : f32 to vector<26x128xf32>
    %768 = arith.mulf %644, %767 : vector<26x128xf32>
    %769 = arith.addf %766, %768 : vector<26x128xf32>
    %770 = vector.broadcast %15 : f32 to vector<26x128xf32>
    %771 = arith.mulf %646, %770 : vector<26x128xf32>
    %772 = arith.addf %769, %771 : vector<26x128xf32>
    %773 = vector.broadcast %16 : f32 to vector<26x128xf32>
    %774 = arith.mulf %648, %773 : vector<26x128xf32>
    %775 = arith.addf %772, %774 : vector<26x128xf32>
    %776 = vector.broadcast %17 : f32 to vector<26x128xf32>
    %777 = arith.mulf %650, %776 : vector<26x128xf32>
    %778 = arith.addf %775, %777 : vector<26x128xf32>
    %779 = vector.broadcast %9 : f32 to vector<26x128xf32>
    %780 = arith.mulf %640, %779 : vector<26x128xf32>
    %781 = vector.broadcast %10 : f32 to vector<26x128xf32>
    %782 = arith.mulf %642, %781 : vector<26x128xf32>
    %783 = arith.addf %780, %782 : vector<26x128xf32>
    %784 = vector.broadcast %11 : f32 to vector<26x128xf32>
    %785 = arith.mulf %644, %784 : vector<26x128xf32>
    %786 = arith.addf %783, %785 : vector<26x128xf32>
    %787 = vector.broadcast %12 : f32 to vector<26x128xf32>
    %788 = arith.mulf %646, %787 : vector<26x128xf32>
    %789 = arith.addf %786, %788 : vector<26x128xf32>
    %790 = vector.broadcast %13 : f32 to vector<26x128xf32>
    %791 = arith.mulf %648, %790 : vector<26x128xf32>
    %792 = arith.addf %789, %791 : vector<26x128xf32>
    %793 = vector.broadcast %14 : f32 to vector<26x128xf32>
    %794 = arith.mulf %650, %793 : vector<26x128xf32>
    %795 = arith.addf %792, %794 : vector<26x128xf32>
    %796 = vector.broadcast %15 : f32 to vector<26x128xf32>
    %797 = arith.mulf %652, %796 : vector<26x128xf32>
    %798 = arith.addf %795, %797 : vector<26x128xf32>
    %799 = vector.broadcast %16 : f32 to vector<26x128xf32>
    %800 = arith.mulf %654, %799 : vector<26x128xf32>
    %801 = arith.addf %798, %800 : vector<26x128xf32>
    %802 = vector.broadcast %17 : f32 to vector<26x128xf32>
    %803 = arith.mulf %656, %802 : vector<26x128xf32>
    %804 = arith.addf %801, %803 : vector<26x128xf32>
    %805 = arith.maximumf %778, %804 : vector<26x128xf32>
    %806 = vector.broadcast %9 : f32 to vector<26x128xf32>
    %807 = arith.mulf %646, %806 : vector<26x128xf32>
    %808 = vector.broadcast %10 : f32 to vector<26x128xf32>
    %809 = arith.mulf %648, %808 : vector<26x128xf32>
    %810 = arith.addf %807, %809 : vector<26x128xf32>
    %811 = vector.broadcast %11 : f32 to vector<26x128xf32>
    %812 = arith.mulf %650, %811 : vector<26x128xf32>
    %813 = arith.addf %810, %812 : vector<26x128xf32>
    %814 = vector.broadcast %12 : f32 to vector<26x128xf32>
    %815 = arith.mulf %652, %814 : vector<26x128xf32>
    %816 = arith.addf %813, %815 : vector<26x128xf32>
    %817 = vector.broadcast %13 : f32 to vector<26x128xf32>
    %818 = arith.mulf %654, %817 : vector<26x128xf32>
    %819 = arith.addf %816, %818 : vector<26x128xf32>
    %820 = vector.broadcast %14 : f32 to vector<26x128xf32>
    %821 = arith.mulf %656, %820 : vector<26x128xf32>
    %822 = arith.addf %819, %821 : vector<26x128xf32>
    %823 = vector.broadcast %15 : f32 to vector<26x128xf32>
    %824 = arith.mulf %658, %823 : vector<26x128xf32>
    %825 = arith.addf %822, %824 : vector<26x128xf32>
    %826 = vector.broadcast %16 : f32 to vector<26x128xf32>
    %827 = arith.mulf %660, %826 : vector<26x128xf32>
    %828 = arith.addf %825, %827 : vector<26x128xf32>
    %829 = vector.broadcast %17 : f32 to vector<26x128xf32>
    %830 = arith.mulf %662, %829 : vector<26x128xf32>
    %831 = arith.addf %828, %830 : vector<26x128xf32>
    %832 = arith.maximumf %805, %831 : vector<26x128xf32>
    %833 = vector.extract_strided_slice %832 {offsets = [0, 0], sizes = [24, 128], strides = [1, 1]} : vector<26x128xf32> to vector<24x128xf32>
    %834 = vector.extract_strided_slice %832 {offsets = [1, 0], sizes = [24, 128], strides = [1, 1]} : vector<26x128xf32> to vector<24x128xf32>
    %835 = arith.maximumf %833, %834 : vector<24x128xf32>
    %836 = vector.extract_strided_slice %832 {offsets = [2, 0], sizes = [24, 128], strides = [1, 1]} : vector<26x128xf32> to vector<24x128xf32>
    %837 = arith.maximumf %835, %836 : vector<24x128xf32>
    %838 = vector.broadcast %28 : f32 to vector<24x128xf32>
    %839 = arith.addf %837, %838 : vector<24x128xf32>
    %cst_71 = arith.constant 0.000000e+00 : f32
    %840 = vector.broadcast %cst_71 : f32 to vector<24x128xf32>
    %841 = arith.maximumf %839, %840 : vector<24x128xf32>
    %c240 = arith.constant 240 : index
    %c0_72 = arith.constant 0 : index
    %842 = vector.load %arg7[%c240, %c0_72] : memref<576x128xf32, #tpu.memory_space<vmem>>, vector<24x128xf32>
    tpu.vector_store %arg7[%c240, %c0_72], %841 {strides = array<i32>} : memref<576x128xf32, #tpu.memory_space<vmem>>, vector<24x128xf32>,
    %843 = vector.broadcast %18 : f32 to vector<26x128xf32>
    %844 = arith.mulf %634, %843 : vector<26x128xf32>
    %845 = vector.broadcast %19 : f32 to vector<26x128xf32>
    %846 = arith.mulf %636, %845 : vector<26x128xf32>
    %847 = arith.addf %844, %846 : vector<26x128xf32>
    %848 = vector.broadcast %20 : f32 to vector<26x128xf32>
    %849 = arith.mulf %638, %848 : vector<26x128xf32>
    %850 = arith.addf %847, %849 : vector<26x128xf32>
    %851 = vector.broadcast %21 : f32 to vector<26x128xf32>
    %852 = arith.mulf %640, %851 : vector<26x128xf32>
    %853 = arith.addf %850, %852 : vector<26x128xf32>
    %854 = vector.broadcast %22 : f32 to vector<26x128xf32>
    %855 = arith.mulf %642, %854 : vector<26x128xf32>
    %856 = arith.addf %853, %855 : vector<26x128xf32>
    %857 = vector.broadcast %23 : f32 to vector<26x128xf32>
    %858 = arith.mulf %644, %857 : vector<26x128xf32>
    %859 = arith.addf %856, %858 : vector<26x128xf32>
    %860 = vector.broadcast %24 : f32 to vector<26x128xf32>
    %861 = arith.mulf %646, %860 : vector<26x128xf32>
    %862 = arith.addf %859, %861 : vector<26x128xf32>
    %863 = vector.broadcast %25 : f32 to vector<26x128xf32>
    %864 = arith.mulf %648, %863 : vector<26x128xf32>
    %865 = arith.addf %862, %864 : vector<26x128xf32>
    %866 = vector.broadcast %26 : f32 to vector<26x128xf32>
    %867 = arith.mulf %650, %866 : vector<26x128xf32>
    %868 = arith.addf %865, %867 : vector<26x128xf32>
    %869 = vector.broadcast %18 : f32 to vector<26x128xf32>
    %870 = arith.mulf %640, %869 : vector<26x128xf32>
    %871 = vector.broadcast %19 : f32 to vector<26x128xf32>
    %872 = arith.mulf %642, %871 : vector<26x128xf32>
    %873 = arith.addf %870, %872 : vector<26x128xf32>
    %874 = vector.broadcast %20 : f32 to vector<26x128xf32>
    %875 = arith.mulf %644, %874 : vector<26x128xf32>
    %876 = arith.addf %873, %875 : vector<26x128xf32>
    %877 = vector.broadcast %21 : f32 to vector<26x128xf32>
    %878 = arith.mulf %646, %877 : vector<26x128xf32>
    %879 = arith.addf %876, %878 : vector<26x128xf32>
    %880 = vector.broadcast %22 : f32 to vector<26x128xf32>
    %881 = arith.mulf %648, %880 : vector<26x128xf32>
    %882 = arith.addf %879, %881 : vector<26x128xf32>
    %883 = vector.broadcast %23 : f32 to vector<26x128xf32>
    %884 = arith.mulf %650, %883 : vector<26x128xf32>
    %885 = arith.addf %882, %884 : vector<26x128xf32>
    %886 = vector.broadcast %24 : f32 to vector<26x128xf32>
    %887 = arith.mulf %652, %886 : vector<26x128xf32>
    %888 = arith.addf %885, %887 : vector<26x128xf32>
    %889 = vector.broadcast %25 : f32 to vector<26x128xf32>
    %890 = arith.mulf %654, %889 : vector<26x128xf32>
    %891 = arith.addf %888, %890 : vector<26x128xf32>
    %892 = vector.broadcast %26 : f32 to vector<26x128xf32>
    %893 = arith.mulf %656, %892 : vector<26x128xf32>
    %894 = arith.addf %891, %893 : vector<26x128xf32>
    %895 = arith.maximumf %868, %894 : vector<26x128xf32>
    %896 = vector.broadcast %18 : f32 to vector<26x128xf32>
    %897 = arith.mulf %646, %896 : vector<26x128xf32>
    %898 = vector.broadcast %19 : f32 to vector<26x128xf32>
    %899 = arith.mulf %648, %898 : vector<26x128xf32>
    %900 = arith.addf %897, %899 : vector<26x128xf32>
    %901 = vector.broadcast %20 : f32 to vector<26x128xf32>
    %902 = arith.mulf %650, %901 : vector<26x128xf32>
    %903 = arith.addf %900, %902 : vector<26x128xf32>
    %904 = vector.broadcast %21 : f32 to vector<26x128xf32>
    %905 = arith.mulf %652, %904 : vector<26x128xf32>
    %906 = arith.addf %903, %905 : vector<26x128xf32>
    %907 = vector.broadcast %22 : f32 to vector<26x128xf32>
    %908 = arith.mulf %654, %907 : vector<26x128xf32>
    %909 = arith.addf %906, %908 : vector<26x128xf32>
    %910 = vector.broadcast %23 : f32 to vector<26x128xf32>
    %911 = arith.mulf %656, %910 : vector<26x128xf32>
    %912 = arith.addf %909, %911 : vector<26x128xf32>
    %913 = vector.broadcast %24 : f32 to vector<26x128xf32>
    %914 = arith.mulf %658, %913 : vector<26x128xf32>
    %915 = arith.addf %912, %914 : vector<26x128xf32>
    %916 = vector.broadcast %25 : f32 to vector<26x128xf32>
    %917 = arith.mulf %660, %916 : vector<26x128xf32>
    %918 = arith.addf %915, %917 : vector<26x128xf32>
    %919 = vector.broadcast %26 : f32 to vector<26x128xf32>
    %920 = arith.mulf %662, %919 : vector<26x128xf32>
    %921 = arith.addf %918, %920 : vector<26x128xf32>
    %922 = arith.maximumf %895, %921 : vector<26x128xf32>
    %923 = vector.extract_strided_slice %922 {offsets = [0, 0], sizes = [24, 128], strides = [1, 1]} : vector<26x128xf32> to vector<24x128xf32>
    %924 = vector.extract_strided_slice %922 {offsets = [1, 0], sizes = [24, 128], strides = [1, 1]} : vector<26x128xf32> to vector<24x128xf32>
    %925 = arith.maximumf %923, %924 : vector<24x128xf32>
    %926 = vector.extract_strided_slice %922 {offsets = [2, 0], sizes = [24, 128], strides = [1, 1]} : vector<26x128xf32> to vector<24x128xf32>
    %927 = arith.maximumf %925, %926 : vector<24x128xf32>
    %928 = vector.broadcast %29 : f32 to vector<24x128xf32>
    %929 = arith.addf %927, %928 : vector<24x128xf32>
    %cst_73 = arith.constant 0.000000e+00 : f32
    %930 = vector.broadcast %cst_73 : f32 to vector<24x128xf32>
    %931 = arith.maximumf %929, %930 : vector<24x128xf32>
    %c432 = arith.constant 432 : index
    %c0_74 = arith.constant 0 : index
    %932 = vector.load %arg7[%c432, %c0_74] : memref<576x128xf32, #tpu.memory_space<vmem>>, vector<24x128xf32>
    tpu.vector_store %arg7[%c432, %c0_74], %931 {strides = array<i32>} : memref<576x128xf32, #tpu.memory_space<vmem>>, vector<24x128xf32>,
    %933 = vector.extract_strided_slice %30 {offsets = [9, 0, 0], sizes = [1, 26, 128], strides = [1, 1, 1]} : vector<28x26x128xf32> to vector<1x26x128xf32>
    %934 = vector.shape_cast %933 : vector<1x26x128xf32> to vector<26x128xf32>
    %935 = vector.extract_strided_slice %31 {offsets = [9, 0, 0], sizes = [1, 26, 128], strides = [1, 1, 1]} : vector<28x26x128xf32> to vector<1x26x128xf32>
    %936 = vector.shape_cast %935 : vector<1x26x128xf32> to vector<26x128xf32>
    %937 = vector.extract_strided_slice %32 {offsets = [9, 0, 0], sizes = [1, 26, 128], strides = [1, 1, 1]} : vector<28x26x128xf32> to vector<1x26x128xf32>
    %938 = vector.shape_cast %937 : vector<1x26x128xf32> to vector<26x128xf32>
    %939 = vector.extract_strided_slice %30 {offsets = [10, 0, 0], sizes = [1, 26, 128], strides = [1, 1, 1]} : vector<28x26x128xf32> to vector<1x26x128xf32>
    %940 = vector.shape_cast %939 : vector<1x26x128xf32> to vector<26x128xf32>
    %941 = vector.extract_strided_slice %31 {offsets = [10, 0, 0], sizes = [1, 26, 128], strides = [1, 1, 1]} : vector<28x26x128xf32> to vector<1x26x128xf32>
    %942 = vector.shape_cast %941 : vector<1x26x128xf32> to vector<26x128xf32>
    %943 = vector.extract_strided_slice %32 {offsets = [10, 0, 0], sizes = [1, 26, 128], strides = [1, 1, 1]} : vector<28x26x128xf32> to vector<1x26x128xf32>
    %944 = vector.shape_cast %943 : vector<1x26x128xf32> to vector<26x128xf32>
    %945 = vector.extract_strided_slice %30 {offsets = [11, 0, 0], sizes = [1, 26, 128], strides = [1, 1, 1]} : vector<28x26x128xf32> to vector<1x26x128xf32>
    %946 = vector.shape_cast %945 : vector<1x26x128xf32> to vector<26x128xf32>
    %947 = vector.extract_strided_slice %31 {offsets = [11, 0, 0], sizes = [1, 26, 128], strides = [1, 1, 1]} : vector<28x26x128xf32> to vector<1x26x128xf32>
    %948 = vector.shape_cast %947 : vector<1x26x128xf32> to vector<26x128xf32>
    %949 = vector.extract_strided_slice %32 {offsets = [11, 0, 0], sizes = [1, 26, 128], strides = [1, 1, 1]} : vector<28x26x128xf32> to vector<1x26x128xf32>
    %950 = vector.shape_cast %949 : vector<1x26x128xf32> to vector<26x128xf32>
    %951 = vector.extract_strided_slice %30 {offsets = [12, 0, 0], sizes = [1, 26, 128], strides = [1, 1, 1]} : vector<28x26x128xf32> to vector<1x26x128xf32>
    %952 = vector.shape_cast %951 : vector<1x26x128xf32> to vector<26x128xf32>
    %953 = vector.extract_strided_slice %31 {offsets = [12, 0, 0], sizes = [1, 26, 128], strides = [1, 1, 1]} : vector<28x26x128xf32> to vector<1x26x128xf32>
    %954 = vector.shape_cast %953 : vector<1x26x128xf32> to vector<26x128xf32>
    %955 = vector.extract_strided_slice %32 {offsets = [12, 0, 0], sizes = [1, 26, 128], strides = [1, 1, 1]} : vector<28x26x128xf32> to vector<1x26x128xf32>
    %956 = vector.shape_cast %955 : vector<1x26x128xf32> to vector<26x128xf32>
    %957 = vector.extract_strided_slice %30 {offsets = [13, 0, 0], sizes = [1, 26, 128], strides = [1, 1, 1]} : vector<28x26x128xf32> to vector<1x26x128xf32>
    %958 = vector.shape_cast %957 : vector<1x26x128xf32> to vector<26x128xf32>
    %959 = vector.extract_strided_slice %31 {offsets = [13, 0, 0], sizes = [1, 26, 128], strides = [1, 1, 1]} : vector<28x26x128xf32> to vector<1x26x128xf32>
    %960 = vector.shape_cast %959 : vector<1x26x128xf32> to vector<26x128xf32>
    %961 = vector.extract_strided_slice %32 {offsets = [13, 0, 0], sizes = [1, 26, 128], strides = [1, 1, 1]} : vector<28x26x128xf32> to vector<1x26x128xf32>
    %962 = vector.shape_cast %961 : vector<1x26x128xf32> to vector<26x128xf32>
    %963 = vector.broadcast %0 : f32 to vector<26x128xf32>
    %964 = arith.mulf %934, %963 : vector<26x128xf32>
    %965 = vector.broadcast %1 : f32 to vector<26x128xf32>
    %966 = arith.mulf %936, %965 : vector<26x128xf32>
    %967 = arith.addf %964, %966 : vector<26x128xf32>
    %968 = vector.broadcast %2 : f32 to vector<26x128xf32>
    %969 = arith.mulf %938, %968 : vector<26x128xf32>
    %970 = arith.addf %967, %969 : vector<26x128xf32>
    %971 = vector.broadcast %3 : f32 to vector<26x128xf32>
    %972 = arith.mulf %940, %971 : vector<26x128xf32>
    %973 = arith.addf %970, %972 : vector<26x128xf32>
    %974 = vector.broadcast %4 : f32 to vector<26x128xf32>
    %975 = arith.mulf %942, %974 : vector<26x128xf32>
    %976 = arith.addf %973, %975 : vector<26x128xf32>
    %977 = vector.broadcast %5 : f32 to vector<26x128xf32>
    %978 = arith.mulf %944, %977 : vector<26x128xf32>
    %979 = arith.addf %976, %978 : vector<26x128xf32>
    %980 = vector.broadcast %6 : f32 to vector<26x128xf32>
    %981 = arith.mulf %946, %980 : vector<26x128xf32>
    %982 = arith.addf %979, %981 : vector<26x128xf32>
    %983 = vector.broadcast %7 : f32 to vector<26x128xf32>
    %984 = arith.mulf %948, %983 : vector<26x128xf32>
    %985 = arith.addf %982, %984 : vector<26x128xf32>
    %986 = vector.broadcast %8 : f32 to vector<26x128xf32>
    %987 = arith.mulf %950, %986 : vector<26x128xf32>
    %988 = arith.addf %985, %987 : vector<26x128xf32>
    %989 = vector.broadcast %0 : f32 to vector<26x128xf32>
    %990 = arith.mulf %940, %989 : vector<26x128xf32>
    %991 = vector.broadcast %1 : f32 to vector<26x128xf32>
    %992 = arith.mulf %942, %991 : vector<26x128xf32>
    %993 = arith.addf %990, %992 : vector<26x128xf32>
    %994 = vector.broadcast %2 : f32 to vector<26x128xf32>
    %995 = arith.mulf %944, %994 : vector<26x128xf32>
    %996 = arith.addf %993, %995 : vector<26x128xf32>
    %997 = vector.broadcast %3 : f32 to vector<26x128xf32>
    %998 = arith.mulf %946, %997 : vector<26x128xf32>
    %999 = arith.addf %996, %998 : vector<26x128xf32>
    %1000 = vector.broadcast %4 : f32 to vector<26x128xf32>
    %1001 = arith.mulf %948, %1000 : vector<26x128xf32>
    %1002 = arith.addf %999, %1001 : vector<26x128xf32>
    %1003 = vector.broadcast %5 : f32 to vector<26x128xf32>
    %1004 = arith.mulf %950, %1003 : vector<26x128xf32>
    %1005 = arith.addf %1002, %1004 : vector<26x128xf32>
    %1006 = vector.broadcast %6 : f32 to vector<26x128xf32>
    %1007 = arith.mulf %952, %1006 : vector<26x128xf32>
    %1008 = arith.addf %1005, %1007 : vector<26x128xf32>
    %1009 = vector.broadcast %7 : f32 to vector<26x128xf32>
    %1010 = arith.mulf %954, %1009 : vector<26x128xf32>
    %1011 = arith.addf %1008, %1010 : vector<26x128xf32>
    %1012 = vector.broadcast %8 : f32 to vector<26x128xf32>
    %1013 = arith.mulf %956, %1012 : vector<26x128xf32>
    %1014 = arith.addf %1011, %1013 : vector<26x128xf32>
    %1015 = arith.maximumf %988, %1014 : vector<26x128xf32>
    %1016 = vector.broadcast %0 : f32 to vector<26x128xf32>
    %1017 = arith.mulf %946, %1016 : vector<26x128xf32>
    %1018 = vector.broadcast %1 : f32 to vector<26x128xf32>
    %1019 = arith.mulf %948, %1018 : vector<26x128xf32>
    %1020 = arith.addf %1017, %1019 : vector<26x128xf32>
    %1021 = vector.broadcast %2 : f32 to vector<26x128xf32>
    %1022 = arith.mulf %950, %1021 : vector<26x128xf32>
    %1023 = arith.addf %1020, %1022 : vector<26x128xf32>
    %1024 = vector.broadcast %3 : f32 to vector<26x128xf32>
    %1025 = arith.mulf %952, %1024 : vector<26x128xf32>
    %1026 = arith.addf %1023, %1025 : vector<26x128xf32>
    %1027 = vector.broadcast %4 : f32 to vector<26x128xf32>
    %1028 = arith.mulf %954, %1027 : vector<26x128xf32>
    %1029 = arith.addf %1026, %1028 : vector<26x128xf32>
    %1030 = vector.broadcast %5 : f32 to vector<26x128xf32>
    %1031 = arith.mulf %956, %1030 : vector<26x128xf32>
    %1032 = arith.addf %1029, %1031 : vector<26x128xf32>
    %1033 = vector.broadcast %6 : f32 to vector<26x128xf32>
    %1034 = arith.mulf %958, %1033 : vector<26x128xf32>
    %1035 = arith.addf %1032, %1034 : vector<26x128xf32>
    %1036 = vector.broadcast %7 : f32 to vector<26x128xf32>
    %1037 = arith.mulf %960, %1036 : vector<26x128xf32>
    %1038 = arith.addf %1035, %1037 : vector<26x128xf32>
    %1039 = vector.broadcast %8 : f32 to vector<26x128xf32>
    %1040 = arith.mulf %962, %1039 : vector<26x128xf32>
    %1041 = arith.addf %1038, %1040 : vector<26x128xf32>
    %1042 = arith.maximumf %1015, %1041 : vector<26x128xf32>
    %1043 = vector.extract_strided_slice %1042 {offsets = [0, 0], sizes = [24, 128], strides = [1, 1]} : vector<26x128xf32> to vector<24x128xf32>
    %1044 = vector.extract_strided_slice %1042 {offsets = [1, 0], sizes = [24, 128], strides = [1, 1]} : vector<26x128xf32> to vector<24x128xf32>
    %1045 = arith.maximumf %1043, %1044 : vector<24x128xf32>
    %1046 = vector.extract_strided_slice %1042 {offsets = [2, 0], sizes = [24, 128], strides = [1, 1]} : vector<26x128xf32> to vector<24x128xf32>
    %1047 = arith.maximumf %1045, %1046 : vector<24x128xf32>
    %1048 = vector.broadcast %27 : f32 to vector<24x128xf32>
    %1049 = arith.addf %1047, %1048 : vector<24x128xf32>
    %cst_75 = arith.constant 0.000000e+00 : f32
    %1050 = vector.broadcast %cst_75 : f32 to vector<24x128xf32>
    %1051 = arith.maximumf %1049, %1050 : vector<24x128xf32>
    %c72 = arith.constant 72 : index
    %c0_76 = arith.constant 0 : index
    %1052 = vector.load %arg7[%c72, %c0_76] : memref<576x128xf32, #tpu.memory_space<vmem>>, vector<24x128xf32>
    tpu.vector_store %arg7[%c72, %c0_76], %1051 {strides = array<i32>} : memref<576x128xf32, #tpu.memory_space<vmem>>, vector<24x128xf32>,
    %1053 = vector.broadcast %9 : f32 to vector<26x128xf32>
    %1054 = arith.mulf %934, %1053 : vector<26x128xf32>
    %1055 = vector.broadcast %10 : f32 to vector<26x128xf32>
    %1056 = arith.mulf %936, %1055 : vector<26x128xf32>
    %1057 = arith.addf %1054, %1056 : vector<26x128xf32>
    %1058 = vector.broadcast %11 : f32 to vector<26x128xf32>
    %1059 = arith.mulf %938, %1058 : vector<26x128xf32>
    %1060 = arith.addf %1057, %1059 : vector<26x128xf32>
    %1061 = vector.broadcast %12 : f32 to vector<26x128xf32>
    %1062 = arith.mulf %940, %1061 : vector<26x128xf32>
    %1063 = arith.addf %1060, %1062 : vector<26x128xf32>
    %1064 = vector.broadcast %13 : f32 to vector<26x128xf32>
    %1065 = arith.mulf %942, %1064 : vector<26x128xf32>
    %1066 = arith.addf %1063, %1065 : vector<26x128xf32>
    %1067 = vector.broadcast %14 : f32 to vector<26x128xf32>
    %1068 = arith.mulf %944, %1067 : vector<26x128xf32>
    %1069 = arith.addf %1066, %1068 : vector<26x128xf32>
    %1070 = vector.broadcast %15 : f32 to vector<26x128xf32>
    %1071 = arith.mulf %946, %1070 : vector<26x128xf32>
    %1072 = arith.addf %1069, %1071 : vector<26x128xf32>
    %1073 = vector.broadcast %16 : f32 to vector<26x128xf32>
    %1074 = arith.mulf %948, %1073 : vector<26x128xf32>
    %1075 = arith.addf %1072, %1074 : vector<26x128xf32>
    %1076 = vector.broadcast %17 : f32 to vector<26x128xf32>
    %1077 = arith.mulf %950, %1076 : vector<26x128xf32>
    %1078 = arith.addf %1075, %1077 : vector<26x128xf32>
    %1079 = vector.broadcast %9 : f32 to vector<26x128xf32>
    %1080 = arith.mulf %940, %1079 : vector<26x128xf32>
    %1081 = vector.broadcast %10 : f32 to vector<26x128xf32>
    %1082 = arith.mulf %942, %1081 : vector<26x128xf32>
    %1083 = arith.addf %1080, %1082 : vector<26x128xf32>
    %1084 = vector.broadcast %11 : f32 to vector<26x128xf32>
    %1085 = arith.mulf %944, %1084 : vector<26x128xf32>
    %1086 = arith.addf %1083, %1085 : vector<26x128xf32>
    %1087 = vector.broadcast %12 : f32 to vector<26x128xf32>
    %1088 = arith.mulf %946, %1087 : vector<26x128xf32>
    %1089 = arith.addf %1086, %1088 : vector<26x128xf32>
    %1090 = vector.broadcast %13 : f32 to vector<26x128xf32>
    %1091 = arith.mulf %948, %1090 : vector<26x128xf32>
    %1092 = arith.addf %1089, %1091 : vector<26x128xf32>
    %1093 = vector.broadcast %14 : f32 to vector<26x128xf32>
    %1094 = arith.mulf %950, %1093 : vector<26x128xf32>
    %1095 = arith.addf %1092, %1094 : vector<26x128xf32>
    %1096 = vector.broadcast %15 : f32 to vector<26x128xf32>
    %1097 = arith.mulf %952, %1096 : vector<26x128xf32>
    %1098 = arith.addf %1095, %1097 : vector<26x128xf32>
    %1099 = vector.broadcast %16 : f32 to vector<26x128xf32>
    %1100 = arith.mulf %954, %1099 : vector<26x128xf32>
    %1101 = arith.addf %1098, %1100 : vector<26x128xf32>
    %1102 = vector.broadcast %17 : f32 to vector<26x128xf32>
    %1103 = arith.mulf %956, %1102 : vector<26x128xf32>
    %1104 = arith.addf %1101, %1103 : vector<26x128xf32>
    %1105 = arith.maximumf %1078, %1104 : vector<26x128xf32>
    %1106 = vector.broadcast %9 : f32 to vector<26x128xf32>
    %1107 = arith.mulf %946, %1106 : vector<26x128xf32>
    %1108 = vector.broadcast %10 : f32 to vector<26x128xf32>
    %1109 = arith.mulf %948, %1108 : vector<26x128xf32>
    %1110 = arith.addf %1107, %1109 : vector<26x128xf32>
    %1111 = vector.broadcast %11 : f32 to vector<26x128xf32>
    %1112 = arith.mulf %950, %1111 : vector<26x128xf32>
    %1113 = arith.addf %1110, %1112 : vector<26x128xf32>
    %1114 = vector.broadcast %12 : f32 to vector<26x128xf32>
    %1115 = arith.mulf %952, %1114 : vector<26x128xf32>
    %1116 = arith.addf %1113, %1115 : vector<26x128xf32>
    %1117 = vector.broadcast %13 : f32 to vector<26x128xf32>
    %1118 = arith.mulf %954, %1117 : vector<26x128xf32>
    %1119 = arith.addf %1116, %1118 : vector<26x128xf32>
    %1120 = vector.broadcast %14 : f32 to vector<26x128xf32>
    %1121 = arith.mulf %956, %1120 : vector<26x128xf32>
    %1122 = arith.addf %1119, %1121 : vector<26x128xf32>
    %1123 = vector.broadcast %15 : f32 to vector<26x128xf32>
    %1124 = arith.mulf %958, %1123 : vector<26x128xf32>
    %1125 = arith.addf %1122, %1124 : vector<26x128xf32>
    %1126 = vector.broadcast %16 : f32 to vector<26x128xf32>
    %1127 = arith.mulf %960, %1126 : vector<26x128xf32>
    %1128 = arith.addf %1125, %1127 : vector<26x128xf32>
    %1129 = vector.broadcast %17 : f32 to vector<26x128xf32>
    %1130 = arith.mulf %962, %1129 : vector<26x128xf32>
    %1131 = arith.addf %1128, %1130 : vector<26x128xf32>
    %1132 = arith.maximumf %1105, %1131 : vector<26x128xf32>
    %1133 = vector.extract_strided_slice %1132 {offsets = [0, 0], sizes = [24, 128], strides = [1, 1]} : vector<26x128xf32> to vector<24x128xf32>
    %1134 = vector.extract_strided_slice %1132 {offsets = [1, 0], sizes = [24, 128], strides = [1, 1]} : vector<26x128xf32> to vector<24x128xf32>
    %1135 = arith.maximumf %1133, %1134 : vector<24x128xf32>
    %1136 = vector.extract_strided_slice %1132 {offsets = [2, 0], sizes = [24, 128], strides = [1, 1]} : vector<26x128xf32> to vector<24x128xf32>
    %1137 = arith.maximumf %1135, %1136 : vector<24x128xf32>
    %1138 = vector.broadcast %28 : f32 to vector<24x128xf32>
    %1139 = arith.addf %1137, %1138 : vector<24x128xf32>
    %cst_77 = arith.constant 0.000000e+00 : f32
    %1140 = vector.broadcast %cst_77 : f32 to vector<24x128xf32>
    %1141 = arith.maximumf %1139, %1140 : vector<24x128xf32>
    %c264 = arith.constant 264 : index
    %c0_78 = arith.constant 0 : index
    %1142 = vector.load %arg7[%c264, %c0_78] : memref<576x128xf32, #tpu.memory_space<vmem>>, vector<24x128xf32>
    tpu.vector_store %arg7[%c264, %c0_78], %1141 {strides = array<i32>} : memref<576x128xf32, #tpu.memory_space<vmem>>, vector<24x128xf32>,
    %1143 = vector.broadcast %18 : f32 to vector<26x128xf32>
    %1144 = arith.mulf %934, %1143 : vector<26x128xf32>
    %1145 = vector.broadcast %19 : f32 to vector<26x128xf32>
    %1146 = arith.mulf %936, %1145 : vector<26x128xf32>
    %1147 = arith.addf %1144, %1146 : vector<26x128xf32>
    %1148 = vector.broadcast %20 : f32 to vector<26x128xf32>
    %1149 = arith.mulf %938, %1148 : vector<26x128xf32>
    %1150 = arith.addf %1147, %1149 : vector<26x128xf32>
    %1151 = vector.broadcast %21 : f32 to vector<26x128xf32>
    %1152 = arith.mulf %940, %1151 : vector<26x128xf32>
    %1153 = arith.addf %1150, %1152 : vector<26x128xf32>
    %1154 = vector.broadcast %22 : f32 to vector<26x128xf32>
    %1155 = arith.mulf %942, %1154 : vector<26x128xf32>
    %1156 = arith.addf %1153, %1155 : vector<26x128xf32>
    %1157 = vector.broadcast %23 : f32 to vector<26x128xf32>
    %1158 = arith.mulf %944, %1157 : vector<26x128xf32>
    %1159 = arith.addf %1156, %1158 : vector<26x128xf32>
    %1160 = vector.broadcast %24 : f32 to vector<26x128xf32>
    %1161 = arith.mulf %946, %1160 : vector<26x128xf32>
    %1162 = arith.addf %1159, %1161 : vector<26x128xf32>
    %1163 = vector.broadcast %25 : f32 to vector<26x128xf32>
    %1164 = arith.mulf %948, %1163 : vector<26x128xf32>
    %1165 = arith.addf %1162, %1164 : vector<26x128xf32>
    %1166 = vector.broadcast %26 : f32 to vector<26x128xf32>
    %1167 = arith.mulf %950, %1166 : vector<26x128xf32>
    %1168 = arith.addf %1165, %1167 : vector<26x128xf32>
    %1169 = vector.broadcast %18 : f32 to vector<26x128xf32>
    %1170 = arith.mulf %940, %1169 : vector<26x128xf32>
    %1171 = vector.broadcast %19 : f32 to vector<26x128xf32>
    %1172 = arith.mulf %942, %1171 : vector<26x128xf32>
    %1173 = arith.addf %1170, %1172 : vector<26x128xf32>
    %1174 = vector.broadcast %20 : f32 to vector<26x128xf32>
    %1175 = arith.mulf %944, %1174 : vector<26x128xf32>
    %1176 = arith.addf %1173, %1175 : vector<26x128xf32>
    %1177 = vector.broadcast %21 : f32 to vector<26x128xf32>
    %1178 = arith.mulf %946, %1177 : vector<26x128xf32>
    %1179 = arith.addf %1176, %1178 : vector<26x128xf32>
    %1180 = vector.broadcast %22 : f32 to vector<26x128xf32>
    %1181 = arith.mulf %948, %1180 : vector<26x128xf32>
    %1182 = arith.addf %1179, %1181 : vector<26x128xf32>
    %1183 = vector.broadcast %23 : f32 to vector<26x128xf32>
    %1184 = arith.mulf %950, %1183 : vector<26x128xf32>
    %1185 = arith.addf %1182, %1184 : vector<26x128xf32>
    %1186 = vector.broadcast %24 : f32 to vector<26x128xf32>
    %1187 = arith.mulf %952, %1186 : vector<26x128xf32>
    %1188 = arith.addf %1185, %1187 : vector<26x128xf32>
    %1189 = vector.broadcast %25 : f32 to vector<26x128xf32>
    %1190 = arith.mulf %954, %1189 : vector<26x128xf32>
    %1191 = arith.addf %1188, %1190 : vector<26x128xf32>
    %1192 = vector.broadcast %26 : f32 to vector<26x128xf32>
    %1193 = arith.mulf %956, %1192 : vector<26x128xf32>
    %1194 = arith.addf %1191, %1193 : vector<26x128xf32>
    %1195 = arith.maximumf %1168, %1194 : vector<26x128xf32>
    %1196 = vector.broadcast %18 : f32 to vector<26x128xf32>
    %1197 = arith.mulf %946, %1196 : vector<26x128xf32>
    %1198 = vector.broadcast %19 : f32 to vector<26x128xf32>
    %1199 = arith.mulf %948, %1198 : vector<26x128xf32>
    %1200 = arith.addf %1197, %1199 : vector<26x128xf32>
    %1201 = vector.broadcast %20 : f32 to vector<26x128xf32>
    %1202 = arith.mulf %950, %1201 : vector<26x128xf32>
    %1203 = arith.addf %1200, %1202 : vector<26x128xf32>
    %1204 = vector.broadcast %21 : f32 to vector<26x128xf32>
    %1205 = arith.mulf %952, %1204 : vector<26x128xf32>
    %1206 = arith.addf %1203, %1205 : vector<26x128xf32>
    %1207 = vector.broadcast %22 : f32 to vector<26x128xf32>
    %1208 = arith.mulf %954, %1207 : vector<26x128xf32>
    %1209 = arith.addf %1206, %1208 : vector<26x128xf32>
    %1210 = vector.broadcast %23 : f32 to vector<26x128xf32>
    %1211 = arith.mulf %956, %1210 : vector<26x128xf32>
    %1212 = arith.addf %1209, %1211 : vector<26x128xf32>
    %1213 = vector.broadcast %24 : f32 to vector<26x128xf32>
    %1214 = arith.mulf %958, %1213 : vector<26x128xf32>
    %1215 = arith.addf %1212, %1214 : vector<26x128xf32>
    %1216 = vector.broadcast %25 : f32 to vector<26x128xf32>
    %1217 = arith.mulf %960, %1216 : vector<26x128xf32>
    %1218 = arith.addf %1215, %1217 : vector<26x128xf32>
    %1219 = vector.broadcast %26 : f32 to vector<26x128xf32>
    %1220 = arith.mulf %962, %1219 : vector<26x128xf32>
    %1221 = arith.addf %1218, %1220 : vector<26x128xf32>
    %1222 = arith.maximumf %1195, %1221 : vector<26x128xf32>
    %1223 = vector.extract_strided_slice %1222 {offsets = [0, 0], sizes = [24, 128], strides = [1, 1]} : vector<26x128xf32> to vector<24x128xf32>
    %1224 = vector.extract_strided_slice %1222 {offsets = [1, 0], sizes = [24, 128], strides = [1, 1]} : vector<26x128xf32> to vector<24x128xf32>
    %1225 = arith.maximumf %1223, %1224 : vector<24x128xf32>
    %1226 = vector.extract_strided_slice %1222 {offsets = [2, 0], sizes = [24, 128], strides = [1, 1]} : vector<26x128xf32> to vector<24x128xf32>
    %1227 = arith.maximumf %1225, %1226 : vector<24x128xf32>
    %1228 = vector.broadcast %29 : f32 to vector<24x128xf32>
    %1229 = arith.addf %1227, %1228 : vector<24x128xf32>
    %cst_79 = arith.constant 0.000000e+00 : f32
    %1230 = vector.broadcast %cst_79 : f32 to vector<24x128xf32>
    %1231 = arith.maximumf %1229, %1230 : vector<24x128xf32>
    %c456 = arith.constant 456 : index
    %c0_80 = arith.constant 0 : index
    %1232 = vector.load %arg7[%c456, %c0_80] : memref<576x128xf32, #tpu.memory_space<vmem>>, vector<24x128xf32>
    tpu.vector_store %arg7[%c456, %c0_80], %1231 {strides = array<i32>} : memref<576x128xf32, #tpu.memory_space<vmem>>, vector<24x128xf32>,
    %1233 = vector.extract_strided_slice %30 {offsets = [12, 0, 0], sizes = [1, 26, 128], strides = [1, 1, 1]} : vector<28x26x128xf32> to vector<1x26x128xf32>
    %1234 = vector.shape_cast %1233 : vector<1x26x128xf32> to vector<26x128xf32>
    %1235 = vector.extract_strided_slice %31 {offsets = [12, 0, 0], sizes = [1, 26, 128], strides = [1, 1, 1]} : vector<28x26x128xf32> to vector<1x26x128xf32>
    %1236 = vector.shape_cast %1235 : vector<1x26x128xf32> to vector<26x128xf32>
    %1237 = vector.extract_strided_slice %32 {offsets = [12, 0, 0], sizes = [1, 26, 128], strides = [1, 1, 1]} : vector<28x26x128xf32> to vector<1x26x128xf32>
    %1238 = vector.shape_cast %1237 : vector<1x26x128xf32> to vector<26x128xf32>
    %1239 = vector.extract_strided_slice %30 {offsets = [13, 0, 0], sizes = [1, 26, 128], strides = [1, 1, 1]} : vector<28x26x128xf32> to vector<1x26x128xf32>
    %1240 = vector.shape_cast %1239 : vector<1x26x128xf32> to vector<26x128xf32>
    %1241 = vector.extract_strided_slice %31 {offsets = [13, 0, 0], sizes = [1, 26, 128], strides = [1, 1, 1]} : vector<28x26x128xf32> to vector<1x26x128xf32>
    %1242 = vector.shape_cast %1241 : vector<1x26x128xf32> to vector<26x128xf32>
    %1243 = vector.extract_strided_slice %32 {offsets = [13, 0, 0], sizes = [1, 26, 128], strides = [1, 1, 1]} : vector<28x26x128xf32> to vector<1x26x128xf32>
    %1244 = vector.shape_cast %1243 : vector<1x26x128xf32> to vector<26x128xf32>
    %1245 = vector.extract_strided_slice %30 {offsets = [14, 0, 0], sizes = [1, 26, 128], strides = [1, 1, 1]} : vector<28x26x128xf32> to vector<1x26x128xf32>
    %1246 = vector.shape_cast %1245 : vector<1x26x128xf32> to vector<26x128xf32>
    %1247 = vector.extract_strided_slice %31 {offsets = [14, 0, 0], sizes = [1, 26, 128], strides = [1, 1, 1]} : vector<28x26x128xf32> to vector<1x26x128xf32>
    %1248 = vector.shape_cast %1247 : vector<1x26x128xf32> to vector<26x128xf32>
    %1249 = vector.extract_strided_slice %32 {offsets = [14, 0, 0], sizes = [1, 26, 128], strides = [1, 1, 1]} : vector<28x26x128xf32> to vector<1x26x128xf32>
    %1250 = vector.shape_cast %1249 : vector<1x26x128xf32> to vector<26x128xf32>
    %1251 = vector.extract_strided_slice %30 {offsets = [15, 0, 0], sizes = [1, 26, 128], strides = [1, 1, 1]} : vector<28x26x128xf32> to vector<1x26x128xf32>
    %1252 = vector.shape_cast %1251 : vector<1x26x128xf32> to vector<26x128xf32>
    %1253 = vector.extract_strided_slice %31 {offsets = [15, 0, 0], sizes = [1, 26, 128], strides = [1, 1, 1]} : vector<28x26x128xf32> to vector<1x26x128xf32>
    %1254 = vector.shape_cast %1253 : vector<1x26x128xf32> to vector<26x128xf32>
    %1255 = vector.extract_strided_slice %32 {offsets = [15, 0, 0], sizes = [1, 26, 128], strides = [1, 1, 1]} : vector<28x26x128xf32> to vector<1x26x128xf32>
    %1256 = vector.shape_cast %1255 : vector<1x26x128xf32> to vector<26x128xf32>
    %1257 = vector.extract_strided_slice %30 {offsets = [16, 0, 0], sizes = [1, 26, 128], strides = [1, 1, 1]} : vector<28x26x128xf32> to vector<1x26x128xf32>
    %1258 = vector.shape_cast %1257 : vector<1x26x128xf32> to vector<26x128xf32>
    %1259 = vector.extract_strided_slice %31 {offsets = [16, 0, 0], sizes = [1, 26, 128], strides = [1, 1, 1]} : vector<28x26x128xf32> to vector<1x26x128xf32>
    %1260 = vector.shape_cast %1259 : vector<1x26x128xf32> to vector<26x128xf32>
    %1261 = vector.extract_strided_slice %32 {offsets = [16, 0, 0], sizes = [1, 26, 128], strides = [1, 1, 1]} : vector<28x26x128xf32> to vector<1x26x128xf32>
    %1262 = vector.shape_cast %1261 : vector<1x26x128xf32> to vector<26x128xf32>
    %1263 = vector.broadcast %0 : f32 to vector<26x128xf32>
    %1264 = arith.mulf %1234, %1263 : vector<26x128xf32>
    %1265 = vector.broadcast %1 : f32 to vector<26x128xf32>
    %1266 = arith.mulf %1236, %1265 : vector<26x128xf32>
    %1267 = arith.addf %1264, %1266 : vector<26x128xf32>
    %1268 = vector.broadcast %2 : f32 to vector<26x128xf32>
    %1269 = arith.mulf %1238, %1268 : vector<26x128xf32>
    %1270 = arith.addf %1267, %1269 : vector<26x128xf32>
    %1271 = vector.broadcast %3 : f32 to vector<26x128xf32>
    %1272 = arith.mulf %1240, %1271 : vector<26x128xf32>
    %1273 = arith.addf %1270, %1272 : vector<26x128xf32>
    %1274 = vector.broadcast %4 : f32 to vector<26x128xf32>
    %1275 = arith.mulf %1242, %1274 : vector<26x128xf32>
    %1276 = arith.addf %1273, %1275 : vector<26x128xf32>
    %1277 = vector.broadcast %5 : f32 to vector<26x128xf32>
    %1278 = arith.mulf %1244, %1277 : vector<26x128xf32>
    %1279 = arith.addf %1276, %1278 : vector<26x128xf32>
    %1280 = vector.broadcast %6 : f32 to vector<26x128xf32>
    %1281 = arith.mulf %1246, %1280 : vector<26x128xf32>
    %1282 = arith.addf %1279, %1281 : vector<26x128xf32>
    %1283 = vector.broadcast %7 : f32 to vector<26x128xf32>
    %1284 = arith.mulf %1248, %1283 : vector<26x128xf32>
    %1285 = arith.addf %1282, %1284 : vector<26x128xf32>
    %1286 = vector.broadcast %8 : f32 to vector<26x128xf32>
    %1287 = arith.mulf %1250, %1286 : vector<26x128xf32>
    %1288 = arith.addf %1285, %1287 : vector<26x128xf32>
    %1289 = vector.broadcast %0 : f32 to vector<26x128xf32>
    %1290 = arith.mulf %1240, %1289 : vector<26x128xf32>
    %1291 = vector.broadcast %1 : f32 to vector<26x128xf32>
    %1292 = arith.mulf %1242, %1291 : vector<26x128xf32>
    %1293 = arith.addf %1290, %1292 : vector<26x128xf32>
    %1294 = vector.broadcast %2 : f32 to vector<26x128xf32>
    %1295 = arith.mulf %1244, %1294 : vector<26x128xf32>
    %1296 = arith.addf %1293, %1295 : vector<26x128xf32>
    %1297 = vector.broadcast %3 : f32 to vector<26x128xf32>
    %1298 = arith.mulf %1246, %1297 : vector<26x128xf32>
    %1299 = arith.addf %1296, %1298 : vector<26x128xf32>
    %1300 = vector.broadcast %4 : f32 to vector<26x128xf32>
    %1301 = arith.mulf %1248, %1300 : vector<26x128xf32>
    %1302 = arith.addf %1299, %1301 : vector<26x128xf32>
    %1303 = vector.broadcast %5 : f32 to vector<26x128xf32>
    %1304 = arith.mulf %1250, %1303 : vector<26x128xf32>
    %1305 = arith.addf %1302, %1304 : vector<26x128xf32>
    %1306 = vector.broadcast %6 : f32 to vector<26x128xf32>
    %1307 = arith.mulf %1252, %1306 : vector<26x128xf32>
    %1308 = arith.addf %1305, %1307 : vector<26x128xf32>
    %1309 = vector.broadcast %7 : f32 to vector<26x128xf32>
    %1310 = arith.mulf %1254, %1309 : vector<26x128xf32>
    %1311 = arith.addf %1308, %1310 : vector<26x128xf32>
    %1312 = vector.broadcast %8 : f32 to vector<26x128xf32>
    %1313 = arith.mulf %1256, %1312 : vector<26x128xf32>
    %1314 = arith.addf %1311, %1313 : vector<26x128xf32>
    %1315 = arith.maximumf %1288, %1314 : vector<26x128xf32>
    %1316 = vector.broadcast %0 : f32 to vector<26x128xf32>
    %1317 = arith.mulf %1246, %1316 : vector<26x128xf32>
    %1318 = vector.broadcast %1 : f32 to vector<26x128xf32>
    %1319 = arith.mulf %1248, %1318 : vector<26x128xf32>
    %1320 = arith.addf %1317, %1319 : vector<26x128xf32>
    %1321 = vector.broadcast %2 : f32 to vector<26x128xf32>
    %1322 = arith.mulf %1250, %1321 : vector<26x128xf32>
    %1323 = arith.addf %1320, %1322 : vector<26x128xf32>
    %1324 = vector.broadcast %3 : f32 to vector<26x128xf32>
    %1325 = arith.mulf %1252, %1324 : vector<26x128xf32>
    %1326 = arith.addf %1323, %1325 : vector<26x128xf32>
    %1327 = vector.broadcast %4 : f32 to vector<26x128xf32>
    %1328 = arith.mulf %1254, %1327 : vector<26x128xf32>
    %1329 = arith.addf %1326, %1328 : vector<26x128xf32>
    %1330 = vector.broadcast %5 : f32 to vector<26x128xf32>
    %1331 = arith.mulf %1256, %1330 : vector<26x128xf32>
    %1332 = arith.addf %1329, %1331 : vector<26x128xf32>
    %1333 = vector.broadcast %6 : f32 to vector<26x128xf32>
    %1334 = arith.mulf %1258, %1333 : vector<26x128xf32>
    %1335 = arith.addf %1332, %1334 : vector<26x128xf32>
    %1336 = vector.broadcast %7 : f32 to vector<26x128xf32>
    %1337 = arith.mulf %1260, %1336 : vector<26x128xf32>
    %1338 = arith.addf %1335, %1337 : vector<26x128xf32>
    %1339 = vector.broadcast %8 : f32 to vector<26x128xf32>
    %1340 = arith.mulf %1262, %1339 : vector<26x128xf32>
    %1341 = arith.addf %1338, %1340 : vector<26x128xf32>
    %1342 = arith.maximumf %1315, %1341 : vector<26x128xf32>
    %1343 = vector.extract_strided_slice %1342 {offsets = [0, 0], sizes = [24, 128], strides = [1, 1]} : vector<26x128xf32> to vector<24x128xf32>
    %1344 = vector.extract_strided_slice %1342 {offsets = [1, 0], sizes = [24, 128], strides = [1, 1]} : vector<26x128xf32> to vector<24x128xf32>
    %1345 = arith.maximumf %1343, %1344 : vector<24x128xf32>
    %1346 = vector.extract_strided_slice %1342 {offsets = [2, 0], sizes = [24, 128], strides = [1, 1]} : vector<26x128xf32> to vector<24x128xf32>
    %1347 = arith.maximumf %1345, %1346 : vector<24x128xf32>
    %1348 = vector.broadcast %27 : f32 to vector<24x128xf32>
    %1349 = arith.addf %1347, %1348 : vector<24x128xf32>
    %cst_81 = arith.constant 0.000000e+00 : f32
    %1350 = vector.broadcast %cst_81 : f32 to vector<24x128xf32>
    %1351 = arith.maximumf %1349, %1350 : vector<24x128xf32>
    %c96 = arith.constant 96 : index
    %c0_82 = arith.constant 0 : index
    %1352 = vector.load %arg7[%c96, %c0_82] : memref<576x128xf32, #tpu.memory_space<vmem>>, vector<24x128xf32>
    tpu.vector_store %arg7[%c96, %c0_82], %1351 {strides = array<i32>} : memref<576x128xf32, #tpu.memory_space<vmem>>, vector<24x128xf32>,
    %1353 = vector.broadcast %9 : f32 to vector<26x128xf32>
    %1354 = arith.mulf %1234, %1353 : vector<26x128xf32>
    %1355 = vector.broadcast %10 : f32 to vector<26x128xf32>
    %1356 = arith.mulf %1236, %1355 : vector<26x128xf32>
    %1357 = arith.addf %1354, %1356 : vector<26x128xf32>
    %1358 = vector.broadcast %11 : f32 to vector<26x128xf32>
    %1359 = arith.mulf %1238, %1358 : vector<26x128xf32>
    %1360 = arith.addf %1357, %1359 : vector<26x128xf32>
    %1361 = vector.broadcast %12 : f32 to vector<26x128xf32>
    %1362 = arith.mulf %1240, %1361 : vector<26x128xf32>
    %1363 = arith.addf %1360, %1362 : vector<26x128xf32>
    %1364 = vector.broadcast %13 : f32 to vector<26x128xf32>
    %1365 = arith.mulf %1242, %1364 : vector<26x128xf32>
    %1366 = arith.addf %1363, %1365 : vector<26x128xf32>
    %1367 = vector.broadcast %14 : f32 to vector<26x128xf32>
    %1368 = arith.mulf %1244, %1367 : vector<26x128xf32>
    %1369 = arith.addf %1366, %1368 : vector<26x128xf32>
    %1370 = vector.broadcast %15 : f32 to vector<26x128xf32>
    %1371 = arith.mulf %1246, %1370 : vector<26x128xf32>
    %1372 = arith.addf %1369, %1371 : vector<26x128xf32>
    %1373 = vector.broadcast %16 : f32 to vector<26x128xf32>
    %1374 = arith.mulf %1248, %1373 : vector<26x128xf32>
    %1375 = arith.addf %1372, %1374 : vector<26x128xf32>
    %1376 = vector.broadcast %17 : f32 to vector<26x128xf32>
    %1377 = arith.mulf %1250, %1376 : vector<26x128xf32>
    %1378 = arith.addf %1375, %1377 : vector<26x128xf32>
    %1379 = vector.broadcast %9 : f32 to vector<26x128xf32>
    %1380 = arith.mulf %1240, %1379 : vector<26x128xf32>
    %1381 = vector.broadcast %10 : f32 to vector<26x128xf32>
    %1382 = arith.mulf %1242, %1381 : vector<26x128xf32>
    %1383 = arith.addf %1380, %1382 : vector<26x128xf32>
    %1384 = vector.broadcast %11 : f32 to vector<26x128xf32>
    %1385 = arith.mulf %1244, %1384 : vector<26x128xf32>
    %1386 = arith.addf %1383, %1385 : vector<26x128xf32>
    %1387 = vector.broadcast %12 : f32 to vector<26x128xf32>
    %1388 = arith.mulf %1246, %1387 : vector<26x128xf32>
    %1389 = arith.addf %1386, %1388 : vector<26x128xf32>
    %1390 = vector.broadcast %13 : f32 to vector<26x128xf32>
    %1391 = arith.mulf %1248, %1390 : vector<26x128xf32>
    %1392 = arith.addf %1389, %1391 : vector<26x128xf32>
    %1393 = vector.broadcast %14 : f32 to vector<26x128xf32>
    %1394 = arith.mulf %1250, %1393 : vector<26x128xf32>
    %1395 = arith.addf %1392, %1394 : vector<26x128xf32>
    %1396 = vector.broadcast %15 : f32 to vector<26x128xf32>
    %1397 = arith.mulf %1252, %1396 : vector<26x128xf32>
    %1398 = arith.addf %1395, %1397 : vector<26x128xf32>
    %1399 = vector.broadcast %16 : f32 to vector<26x128xf32>
    %1400 = arith.mulf %1254, %1399 : vector<26x128xf32>
    %1401 = arith.addf %1398, %1400 : vector<26x128xf32>
    %1402 = vector.broadcast %17 : f32 to vector<26x128xf32>
    %1403 = arith.mulf %1256, %1402 : vector<26x128xf32>
    %1404 = arith.addf %1401, %1403 : vector<26x128xf32>
    %1405 = arith.maximumf %1378, %1404 : vector<26x128xf32>
    %1406 = vector.broadcast %9 : f32 to vector<26x128xf32>
    %1407 = arith.mulf %1246, %1406 : vector<26x128xf32>
    %1408 = vector.broadcast %10 : f32 to vector<26x128xf32>
    %1409 = arith.mulf %1248, %1408 : vector<26x128xf32>
    %1410 = arith.addf %1407, %1409 : vector<26x128xf32>
    %1411 = vector.broadcast %11 : f32 to vector<26x128xf32>
    %1412 = arith.mulf %1250, %1411 : vector<26x128xf32>
    %1413 = arith.addf %1410, %1412 : vector<26x128xf32>
    %1414 = vector.broadcast %12 : f32 to vector<26x128xf32>
    %1415 = arith.mulf %1252, %1414 : vector<26x128xf32>
    %1416 = arith.addf %1413, %1415 : vector<26x128xf32>
    %1417 = vector.broadcast %13 : f32 to vector<26x128xf32>
    %1418 = arith.mulf %1254, %1417 : vector<26x128xf32>
    %1419 = arith.addf %1416, %1418 : vector<26x128xf32>
    %1420 = vector.broadcast %14 : f32 to vector<26x128xf32>
    %1421 = arith.mulf %1256, %1420 : vector<26x128xf32>
    %1422 = arith.addf %1419, %1421 : vector<26x128xf32>
    %1423 = vector.broadcast %15 : f32 to vector<26x128xf32>
    %1424 = arith.mulf %1258, %1423 : vector<26x128xf32>
    %1425 = arith.addf %1422, %1424 : vector<26x128xf32>
    %1426 = vector.broadcast %16 : f32 to vector<26x128xf32>
    %1427 = arith.mulf %1260, %1426 : vector<26x128xf32>
    %1428 = arith.addf %1425, %1427 : vector<26x128xf32>
    %1429 = vector.broadcast %17 : f32 to vector<26x128xf32>
    %1430 = arith.mulf %1262, %1429 : vector<26x128xf32>
    %1431 = arith.addf %1428, %1430 : vector<26x128xf32>
    %1432 = arith.maximumf %1405, %1431 : vector<26x128xf32>
    %1433 = vector.extract_strided_slice %1432 {offsets = [0, 0], sizes = [24, 128], strides = [1, 1]} : vector<26x128xf32> to vector<24x128xf32>
    %1434 = vector.extract_strided_slice %1432 {offsets = [1, 0], sizes = [24, 128], strides = [1, 1]} : vector<26x128xf32> to vector<24x128xf32>
    %1435 = arith.maximumf %1433, %1434 : vector<24x128xf32>
    %1436 = vector.extract_strided_slice %1432 {offsets = [2, 0], sizes = [24, 128], strides = [1, 1]} : vector<26x128xf32> to vector<24x128xf32>
    %1437 = arith.maximumf %1435, %1436 : vector<24x128xf32>
    %1438 = vector.broadcast %28 : f32 to vector<24x128xf32>
    %1439 = arith.addf %1437, %1438 : vector<24x128xf32>
    %cst_83 = arith.constant 0.000000e+00 : f32
    %1440 = vector.broadcast %cst_83 : f32 to vector<24x128xf32>
    %1441 = arith.maximumf %1439, %1440 : vector<24x128xf32>
    %c288 = arith.constant 288 : index
    %c0_84 = arith.constant 0 : index
    %1442 = vector.load %arg7[%c288, %c0_84] : memref<576x128xf32, #tpu.memory_space<vmem>>, vector<24x128xf32>
    tpu.vector_store %arg7[%c288, %c0_84], %1441 {strides = array<i32>} : memref<576x128xf32, #tpu.memory_space<vmem>>, vector<24x128xf32>,
    %1443 = vector.broadcast %18 : f32 to vector<26x128xf32>
    %1444 = arith.mulf %1234, %1443 : vector<26x128xf32>
    %1445 = vector.broadcast %19 : f32 to vector<26x128xf32>
    %1446 = arith.mulf %1236, %1445 : vector<26x128xf32>
    %1447 = arith.addf %1444, %1446 : vector<26x128xf32>
    %1448 = vector.broadcast %20 : f32 to vector<26x128xf32>
    %1449 = arith.mulf %1238, %1448 : vector<26x128xf32>
    %1450 = arith.addf %1447, %1449 : vector<26x128xf32>
    %1451 = vector.broadcast %21 : f32 to vector<26x128xf32>
    %1452 = arith.mulf %1240, %1451 : vector<26x128xf32>
    %1453 = arith.addf %1450, %1452 : vector<26x128xf32>
    %1454 = vector.broadcast %22 : f32 to vector<26x128xf32>
    %1455 = arith.mulf %1242, %1454 : vector<26x128xf32>
    %1456 = arith.addf %1453, %1455 : vector<26x128xf32>
    %1457 = vector.broadcast %23 : f32 to vector<26x128xf32>
    %1458 = arith.mulf %1244, %1457 : vector<26x128xf32>
    %1459 = arith.addf %1456, %1458 : vector<26x128xf32>
    %1460 = vector.broadcast %24 : f32 to vector<26x128xf32>
    %1461 = arith.mulf %1246, %1460 : vector<26x128xf32>
    %1462 = arith.addf %1459, %1461 : vector<26x128xf32>
    %1463 = vector.broadcast %25 : f32 to vector<26x128xf32>
    %1464 = arith.mulf %1248, %1463 : vector<26x128xf32>
    %1465 = arith.addf %1462, %1464 : vector<26x128xf32>
    %1466 = vector.broadcast %26 : f32 to vector<26x128xf32>
    %1467 = arith.mulf %1250, %1466 : vector<26x128xf32>
    %1468 = arith.addf %1465, %1467 : vector<26x128xf32>
    %1469 = vector.broadcast %18 : f32 to vector<26x128xf32>
    %1470 = arith.mulf %1240, %1469 : vector<26x128xf32>
    %1471 = vector.broadcast %19 : f32 to vector<26x128xf32>
    %1472 = arith.mulf %1242, %1471 : vector<26x128xf32>
    %1473 = arith.addf %1470, %1472 : vector<26x128xf32>
    %1474 = vector.broadcast %20 : f32 to vector<26x128xf32>
    %1475 = arith.mulf %1244, %1474 : vector<26x128xf32>
    %1476 = arith.addf %1473, %1475 : vector<26x128xf32>
    %1477 = vector.broadcast %21 : f32 to vector<26x128xf32>
    %1478 = arith.mulf %1246, %1477 : vector<26x128xf32>
    %1479 = arith.addf %1476, %1478 : vector<26x128xf32>
    %1480 = vector.broadcast %22 : f32 to vector<26x128xf32>
    %1481 = arith.mulf %1248, %1480 : vector<26x128xf32>
    %1482 = arith.addf %1479, %1481 : vector<26x128xf32>
    %1483 = vector.broadcast %23 : f32 to vector<26x128xf32>
    %1484 = arith.mulf %1250, %1483 : vector<26x128xf32>
    %1485 = arith.addf %1482, %1484 : vector<26x128xf32>
    %1486 = vector.broadcast %24 : f32 to vector<26x128xf32>
    %1487 = arith.mulf %1252, %1486 : vector<26x128xf32>
    %1488 = arith.addf %1485, %1487 : vector<26x128xf32>
    %1489 = vector.broadcast %25 : f32 to vector<26x128xf32>
    %1490 = arith.mulf %1254, %1489 : vector<26x128xf32>
    %1491 = arith.addf %1488, %1490 : vector<26x128xf32>
    %1492 = vector.broadcast %26 : f32 to vector<26x128xf32>
    %1493 = arith.mulf %1256, %1492 : vector<26x128xf32>
    %1494 = arith.addf %1491, %1493 : vector<26x128xf32>
    %1495 = arith.maximumf %1468, %1494 : vector<26x128xf32>
    %1496 = vector.broadcast %18 : f32 to vector<26x128xf32>
    %1497 = arith.mulf %1246, %1496 : vector<26x128xf32>
    %1498 = vector.broadcast %19 : f32 to vector<26x128xf32>
    %1499 = arith.mulf %1248, %1498 : vector<26x128xf32>
    %1500 = arith.addf %1497, %1499 : vector<26x128xf32>
    %1501 = vector.broadcast %20 : f32 to vector<26x128xf32>
    %1502 = arith.mulf %1250, %1501 : vector<26x128xf32>
    %1503 = arith.addf %1500, %1502 : vector<26x128xf32>
    %1504 = vector.broadcast %21 : f32 to vector<26x128xf32>
    %1505 = arith.mulf %1252, %1504 : vector<26x128xf32>
    %1506 = arith.addf %1503, %1505 : vector<26x128xf32>
    %1507 = vector.broadcast %22 : f32 to vector<26x128xf32>
    %1508 = arith.mulf %1254, %1507 : vector<26x128xf32>
    %1509 = arith.addf %1506, %1508 : vector<26x128xf32>
    %1510 = vector.broadcast %23 : f32 to vector<26x128xf32>
    %1511 = arith.mulf %1256, %1510 : vector<26x128xf32>
    %1512 = arith.addf %1509, %1511 : vector<26x128xf32>
    %1513 = vector.broadcast %24 : f32 to vector<26x128xf32>
    %1514 = arith.mulf %1258, %1513 : vector<26x128xf32>
    %1515 = arith.addf %1512, %1514 : vector<26x128xf32>
    %1516 = vector.broadcast %25 : f32 to vector<26x128xf32>
    %1517 = arith.mulf %1260, %1516 : vector<26x128xf32>
    %1518 = arith.addf %1515, %1517 : vector<26x128xf32>
    %1519 = vector.broadcast %26 : f32 to vector<26x128xf32>
    %1520 = arith.mulf %1262, %1519 : vector<26x128xf32>
    %1521 = arith.addf %1518, %1520 : vector<26x128xf32>
    %1522 = arith.maximumf %1495, %1521 : vector<26x128xf32>
    %1523 = vector.extract_strided_slice %1522 {offsets = [0, 0], sizes = [24, 128], strides = [1, 1]} : vector<26x128xf32> to vector<24x128xf32>
    %1524 = vector.extract_strided_slice %1522 {offsets = [1, 0], sizes = [24, 128], strides = [1, 1]} : vector<26x128xf32> to vector<24x128xf32>
    %1525 = arith.maximumf %1523, %1524 : vector<24x128xf32>
    %1526 = vector.extract_strided_slice %1522 {offsets = [2, 0], sizes = [24, 128], strides = [1, 1]} : vector<26x128xf32> to vector<24x128xf32>
    %1527 = arith.maximumf %1525, %1526 : vector<24x128xf32>
    %1528 = vector.broadcast %29 : f32 to vector<24x128xf32>
    %1529 = arith.addf %1527, %1528 : vector<24x128xf32>
    %cst_85 = arith.constant 0.000000e+00 : f32
    %1530 = vector.broadcast %cst_85 : f32 to vector<24x128xf32>
    %1531 = arith.maximumf %1529, %1530 : vector<24x128xf32>
    %c480 = arith.constant 480 : index
    %c0_86 = arith.constant 0 : index
    %1532 = vector.load %arg7[%c480, %c0_86] : memref<576x128xf32, #tpu.memory_space<vmem>>, vector<24x128xf32>
    tpu.vector_store %arg7[%c480, %c0_86], %1531 {strides = array<i32>} : memref<576x128xf32, #tpu.memory_space<vmem>>, vector<24x128xf32>,
    %1533 = vector.extract_strided_slice %30 {offsets = [15, 0, 0], sizes = [1, 26, 128], strides = [1, 1, 1]} : vector<28x26x128xf32> to vector<1x26x128xf32>
    %1534 = vector.shape_cast %1533 : vector<1x26x128xf32> to vector<26x128xf32>
    %1535 = vector.extract_strided_slice %31 {offsets = [15, 0, 0], sizes = [1, 26, 128], strides = [1, 1, 1]} : vector<28x26x128xf32> to vector<1x26x128xf32>
    %1536 = vector.shape_cast %1535 : vector<1x26x128xf32> to vector<26x128xf32>
    %1537 = vector.extract_strided_slice %32 {offsets = [15, 0, 0], sizes = [1, 26, 128], strides = [1, 1, 1]} : vector<28x26x128xf32> to vector<1x26x128xf32>
    %1538 = vector.shape_cast %1537 : vector<1x26x128xf32> to vector<26x128xf32>
    %1539 = vector.extract_strided_slice %30 {offsets = [16, 0, 0], sizes = [1, 26, 128], strides = [1, 1, 1]} : vector<28x26x128xf32> to vector<1x26x128xf32>
    %1540 = vector.shape_cast %1539 : vector<1x26x128xf32> to vector<26x128xf32>
    %1541 = vector.extract_strided_slice %31 {offsets = [16, 0, 0], sizes = [1, 26, 128], strides = [1, 1, 1]} : vector<28x26x128xf32> to vector<1x26x128xf32>
    %1542 = vector.shape_cast %1541 : vector<1x26x128xf32> to vector<26x128xf32>
    %1543 = vector.extract_strided_slice %32 {offsets = [16, 0, 0], sizes = [1, 26, 128], strides = [1, 1, 1]} : vector<28x26x128xf32> to vector<1x26x128xf32>
    %1544 = vector.shape_cast %1543 : vector<1x26x128xf32> to vector<26x128xf32>
    %1545 = vector.extract_strided_slice %30 {offsets = [17, 0, 0], sizes = [1, 26, 128], strides = [1, 1, 1]} : vector<28x26x128xf32> to vector<1x26x128xf32>
    %1546 = vector.shape_cast %1545 : vector<1x26x128xf32> to vector<26x128xf32>
    %1547 = vector.extract_strided_slice %31 {offsets = [17, 0, 0], sizes = [1, 26, 128], strides = [1, 1, 1]} : vector<28x26x128xf32> to vector<1x26x128xf32>
    %1548 = vector.shape_cast %1547 : vector<1x26x128xf32> to vector<26x128xf32>
    %1549 = vector.extract_strided_slice %32 {offsets = [17, 0, 0], sizes = [1, 26, 128], strides = [1, 1, 1]} : vector<28x26x128xf32> to vector<1x26x128xf32>
    %1550 = vector.shape_cast %1549 : vector<1x26x128xf32> to vector<26x128xf32>
    %1551 = vector.extract_strided_slice %30 {offsets = [18, 0, 0], sizes = [1, 26, 128], strides = [1, 1, 1]} : vector<28x26x128xf32> to vector<1x26x128xf32>
    %1552 = vector.shape_cast %1551 : vector<1x26x128xf32> to vector<26x128xf32>
    %1553 = vector.extract_strided_slice %31 {offsets = [18, 0, 0], sizes = [1, 26, 128], strides = [1, 1, 1]} : vector<28x26x128xf32> to vector<1x26x128xf32>
    %1554 = vector.shape_cast %1553 : vector<1x26x128xf32> to vector<26x128xf32>
    %1555 = vector.extract_strided_slice %32 {offsets = [18, 0, 0], sizes = [1, 26, 128], strides = [1, 1, 1]} : vector<28x26x128xf32> to vector<1x26x128xf32>
    %1556 = vector.shape_cast %1555 : vector<1x26x128xf32> to vector<26x128xf32>
    %1557 = vector.extract_strided_slice %30 {offsets = [19, 0, 0], sizes = [1, 26, 128], strides = [1, 1, 1]} : vector<28x26x128xf32> to vector<1x26x128xf32>
    %1558 = vector.shape_cast %1557 : vector<1x26x128xf32> to vector<26x128xf32>
    %1559 = vector.extract_strided_slice %31 {offsets = [19, 0, 0], sizes = [1, 26, 128], strides = [1, 1, 1]} : vector<28x26x128xf32> to vector<1x26x128xf32>
    %1560 = vector.shape_cast %1559 : vector<1x26x128xf32> to vector<26x128xf32>
    %1561 = vector.extract_strided_slice %32 {offsets = [19, 0, 0], sizes = [1, 26, 128], strides = [1, 1, 1]} : vector<28x26x128xf32> to vector<1x26x128xf32>
    %1562 = vector.shape_cast %1561 : vector<1x26x128xf32> to vector<26x128xf32>
    %1563 = vector.broadcast %0 : f32 to vector<26x128xf32>
    %1564 = arith.mulf %1534, %1563 : vector<26x128xf32>
    %1565 = vector.broadcast %1 : f32 to vector<26x128xf32>
    %1566 = arith.mulf %1536, %1565 : vector<26x128xf32>
    %1567 = arith.addf %1564, %1566 : vector<26x128xf32>
    %1568 = vector.broadcast %2 : f32 to vector<26x128xf32>
    %1569 = arith.mulf %1538, %1568 : vector<26x128xf32>
    %1570 = arith.addf %1567, %1569 : vector<26x128xf32>
    %1571 = vector.broadcast %3 : f32 to vector<26x128xf32>
    %1572 = arith.mulf %1540, %1571 : vector<26x128xf32>
    %1573 = arith.addf %1570, %1572 : vector<26x128xf32>
    %1574 = vector.broadcast %4 : f32 to vector<26x128xf32>
    %1575 = arith.mulf %1542, %1574 : vector<26x128xf32>
    %1576 = arith.addf %1573, %1575 : vector<26x128xf32>
    %1577 = vector.broadcast %5 : f32 to vector<26x128xf32>
    %1578 = arith.mulf %1544, %1577 : vector<26x128xf32>
    %1579 = arith.addf %1576, %1578 : vector<26x128xf32>
    %1580 = vector.broadcast %6 : f32 to vector<26x128xf32>
    %1581 = arith.mulf %1546, %1580 : vector<26x128xf32>
    %1582 = arith.addf %1579, %1581 : vector<26x128xf32>
    %1583 = vector.broadcast %7 : f32 to vector<26x128xf32>
    %1584 = arith.mulf %1548, %1583 : vector<26x128xf32>
    %1585 = arith.addf %1582, %1584 : vector<26x128xf32>
    %1586 = vector.broadcast %8 : f32 to vector<26x128xf32>
    %1587 = arith.mulf %1550, %1586 : vector<26x128xf32>
    %1588 = arith.addf %1585, %1587 : vector<26x128xf32>
    %1589 = vector.broadcast %0 : f32 to vector<26x128xf32>
    %1590 = arith.mulf %1540, %1589 : vector<26x128xf32>
    %1591 = vector.broadcast %1 : f32 to vector<26x128xf32>
    %1592 = arith.mulf %1542, %1591 : vector<26x128xf32>
    %1593 = arith.addf %1590, %1592 : vector<26x128xf32>
    %1594 = vector.broadcast %2 : f32 to vector<26x128xf32>
    %1595 = arith.mulf %1544, %1594 : vector<26x128xf32>
    %1596 = arith.addf %1593, %1595 : vector<26x128xf32>
    %1597 = vector.broadcast %3 : f32 to vector<26x128xf32>
    %1598 = arith.mulf %1546, %1597 : vector<26x128xf32>
    %1599 = arith.addf %1596, %1598 : vector<26x128xf32>
    %1600 = vector.broadcast %4 : f32 to vector<26x128xf32>
    %1601 = arith.mulf %1548, %1600 : vector<26x128xf32>
    %1602 = arith.addf %1599, %1601 : vector<26x128xf32>
    %1603 = vector.broadcast %5 : f32 to vector<26x128xf32>
    %1604 = arith.mulf %1550, %1603 : vector<26x128xf32>
    %1605 = arith.addf %1602, %1604 : vector<26x128xf32>
    %1606 = vector.broadcast %6 : f32 to vector<26x128xf32>
    %1607 = arith.mulf %1552, %1606 : vector<26x128xf32>
    %1608 = arith.addf %1605, %1607 : vector<26x128xf32>
    %1609 = vector.broadcast %7 : f32 to vector<26x128xf32>
    %1610 = arith.mulf %1554, %1609 : vector<26x128xf32>
    %1611 = arith.addf %1608, %1610 : vector<26x128xf32>
    %1612 = vector.broadcast %8 : f32 to vector<26x128xf32>
    %1613 = arith.mulf %1556, %1612 : vector<26x128xf32>
    %1614 = arith.addf %1611, %1613 : vector<26x128xf32>
    %1615 = arith.maximumf %1588, %1614 : vector<26x128xf32>
    %1616 = vector.broadcast %0 : f32 to vector<26x128xf32>
    %1617 = arith.mulf %1546, %1616 : vector<26x128xf32>
    %1618 = vector.broadcast %1 : f32 to vector<26x128xf32>
    %1619 = arith.mulf %1548, %1618 : vector<26x128xf32>
    %1620 = arith.addf %1617, %1619 : vector<26x128xf32>
    %1621 = vector.broadcast %2 : f32 to vector<26x128xf32>
    %1622 = arith.mulf %1550, %1621 : vector<26x128xf32>
    %1623 = arith.addf %1620, %1622 : vector<26x128xf32>
    %1624 = vector.broadcast %3 : f32 to vector<26x128xf32>
    %1625 = arith.mulf %1552, %1624 : vector<26x128xf32>
    %1626 = arith.addf %1623, %1625 : vector<26x128xf32>
    %1627 = vector.broadcast %4 : f32 to vector<26x128xf32>
    %1628 = arith.mulf %1554, %1627 : vector<26x128xf32>
    %1629 = arith.addf %1626, %1628 : vector<26x128xf32>
    %1630 = vector.broadcast %5 : f32 to vector<26x128xf32>
    %1631 = arith.mulf %1556, %1630 : vector<26x128xf32>
    %1632 = arith.addf %1629, %1631 : vector<26x128xf32>
    %1633 = vector.broadcast %6 : f32 to vector<26x128xf32>
    %1634 = arith.mulf %1558, %1633 : vector<26x128xf32>
    %1635 = arith.addf %1632, %1634 : vector<26x128xf32>
    %1636 = vector.broadcast %7 : f32 to vector<26x128xf32>
    %1637 = arith.mulf %1560, %1636 : vector<26x128xf32>
    %1638 = arith.addf %1635, %1637 : vector<26x128xf32>
    %1639 = vector.broadcast %8 : f32 to vector<26x128xf32>
    %1640 = arith.mulf %1562, %1639 : vector<26x128xf32>
    %1641 = arith.addf %1638, %1640 : vector<26x128xf32>
    %1642 = arith.maximumf %1615, %1641 : vector<26x128xf32>
    %1643 = vector.extract_strided_slice %1642 {offsets = [0, 0], sizes = [24, 128], strides = [1, 1]} : vector<26x128xf32> to vector<24x128xf32>
    %1644 = vector.extract_strided_slice %1642 {offsets = [1, 0], sizes = [24, 128], strides = [1, 1]} : vector<26x128xf32> to vector<24x128xf32>
    %1645 = arith.maximumf %1643, %1644 : vector<24x128xf32>
    %1646 = vector.extract_strided_slice %1642 {offsets = [2, 0], sizes = [24, 128], strides = [1, 1]} : vector<26x128xf32> to vector<24x128xf32>
    %1647 = arith.maximumf %1645, %1646 : vector<24x128xf32>
    %1648 = vector.broadcast %27 : f32 to vector<24x128xf32>
    %1649 = arith.addf %1647, %1648 : vector<24x128xf32>
    %cst_87 = arith.constant 0.000000e+00 : f32
    %1650 = vector.broadcast %cst_87 : f32 to vector<24x128xf32>
    %1651 = arith.maximumf %1649, %1650 : vector<24x128xf32>
    %c120 = arith.constant 120 : index
    %c0_88 = arith.constant 0 : index
    %1652 = vector.load %arg7[%c120, %c0_88] : memref<576x128xf32, #tpu.memory_space<vmem>>, vector<24x128xf32>
    tpu.vector_store %arg7[%c120, %c0_88], %1651 {strides = array<i32>} : memref<576x128xf32, #tpu.memory_space<vmem>>, vector<24x128xf32>,
    %1653 = vector.broadcast %9 : f32 to vector<26x128xf32>
    %1654 = arith.mulf %1534, %1653 : vector<26x128xf32>
    %1655 = vector.broadcast %10 : f32 to vector<26x128xf32>
    %1656 = arith.mulf %1536, %1655 : vector<26x128xf32>
    %1657 = arith.addf %1654, %1656 : vector<26x128xf32>
    %1658 = vector.broadcast %11 : f32 to vector<26x128xf32>
    %1659 = arith.mulf %1538, %1658 : vector<26x128xf32>
    %1660 = arith.addf %1657, %1659 : vector<26x128xf32>
    %1661 = vector.broadcast %12 : f32 to vector<26x128xf32>
    %1662 = arith.mulf %1540, %1661 : vector<26x128xf32>
    %1663 = arith.addf %1660, %1662 : vector<26x128xf32>
    %1664 = vector.broadcast %13 : f32 to vector<26x128xf32>
    %1665 = arith.mulf %1542, %1664 : vector<26x128xf32>
    %1666 = arith.addf %1663, %1665 : vector<26x128xf32>
    %1667 = vector.broadcast %14 : f32 to vector<26x128xf32>
    %1668 = arith.mulf %1544, %1667 : vector<26x128xf32>
    %1669 = arith.addf %1666, %1668 : vector<26x128xf32>
    %1670 = vector.broadcast %15 : f32 to vector<26x128xf32>
    %1671 = arith.mulf %1546, %1670 : vector<26x128xf32>
    %1672 = arith.addf %1669, %1671 : vector<26x128xf32>
    %1673 = vector.broadcast %16 : f32 to vector<26x128xf32>
    %1674 = arith.mulf %1548, %1673 : vector<26x128xf32>
    %1675 = arith.addf %1672, %1674 : vector<26x128xf32>
    %1676 = vector.broadcast %17 : f32 to vector<26x128xf32>
    %1677 = arith.mulf %1550, %1676 : vector<26x128xf32>
    %1678 = arith.addf %1675, %1677 : vector<26x128xf32>
    %1679 = vector.broadcast %9 : f32 to vector<26x128xf32>
    %1680 = arith.mulf %1540, %1679 : vector<26x128xf32>
    %1681 = vector.broadcast %10 : f32 to vector<26x128xf32>
    %1682 = arith.mulf %1542, %1681 : vector<26x128xf32>
    %1683 = arith.addf %1680, %1682 : vector<26x128xf32>
    %1684 = vector.broadcast %11 : f32 to vector<26x128xf32>
    %1685 = arith.mulf %1544, %1684 : vector<26x128xf32>
    %1686 = arith.addf %1683, %1685 : vector<26x128xf32>
    %1687 = vector.broadcast %12 : f32 to vector<26x128xf32>
    %1688 = arith.mulf %1546, %1687 : vector<26x128xf32>
    %1689 = arith.addf %1686, %1688 : vector<26x128xf32>
    %1690 = vector.broadcast %13 : f32 to vector<26x128xf32>
    %1691 = arith.mulf %1548, %1690 : vector<26x128xf32>
    %1692 = arith.addf %1689, %1691 : vector<26x128xf32>
    %1693 = vector.broadcast %14 : f32 to vector<26x128xf32>
    %1694 = arith.mulf %1550, %1693 : vector<26x128xf32>
    %1695 = arith.addf %1692, %1694 : vector<26x128xf32>
    %1696 = vector.broadcast %15 : f32 to vector<26x128xf32>
    %1697 = arith.mulf %1552, %1696 : vector<26x128xf32>
    %1698 = arith.addf %1695, %1697 : vector<26x128xf32>
    %1699 = vector.broadcast %16 : f32 to vector<26x128xf32>
    %1700 = arith.mulf %1554, %1699 : vector<26x128xf32>
    %1701 = arith.addf %1698, %1700 : vector<26x128xf32>
    %1702 = vector.broadcast %17 : f32 to vector<26x128xf32>
    %1703 = arith.mulf %1556, %1702 : vector<26x128xf32>
    %1704 = arith.addf %1701, %1703 : vector<26x128xf32>
    %1705 = arith.maximumf %1678, %1704 : vector<26x128xf32>
    %1706 = vector.broadcast %9 : f32 to vector<26x128xf32>
    %1707 = arith.mulf %1546, %1706 : vector<26x128xf32>
    %1708 = vector.broadcast %10 : f32 to vector<26x128xf32>
    %1709 = arith.mulf %1548, %1708 : vector<26x128xf32>
    %1710 = arith.addf %1707, %1709 : vector<26x128xf32>
    %1711 = vector.broadcast %11 : f32 to vector<26x128xf32>
    %1712 = arith.mulf %1550, %1711 : vector<26x128xf32>
    %1713 = arith.addf %1710, %1712 : vector<26x128xf32>
    %1714 = vector.broadcast %12 : f32 to vector<26x128xf32>
    %1715 = arith.mulf %1552, %1714 : vector<26x128xf32>
    %1716 = arith.addf %1713, %1715 : vector<26x128xf32>
    %1717 = vector.broadcast %13 : f32 to vector<26x128xf32>
    %1718 = arith.mulf %1554, %1717 : vector<26x128xf32>
    %1719 = arith.addf %1716, %1718 : vector<26x128xf32>
    %1720 = vector.broadcast %14 : f32 to vector<26x128xf32>
    %1721 = arith.mulf %1556, %1720 : vector<26x128xf32>
    %1722 = arith.addf %1719, %1721 : vector<26x128xf32>
    %1723 = vector.broadcast %15 : f32 to vector<26x128xf32>
    %1724 = arith.mulf %1558, %1723 : vector<26x128xf32>
    %1725 = arith.addf %1722, %1724 : vector<26x128xf32>
    %1726 = vector.broadcast %16 : f32 to vector<26x128xf32>
    %1727 = arith.mulf %1560, %1726 : vector<26x128xf32>
    %1728 = arith.addf %1725, %1727 : vector<26x128xf32>
    %1729 = vector.broadcast %17 : f32 to vector<26x128xf32>
    %1730 = arith.mulf %1562, %1729 : vector<26x128xf32>
    %1731 = arith.addf %1728, %1730 : vector<26x128xf32>
    %1732 = arith.maximumf %1705, %1731 : vector<26x128xf32>
    %1733 = vector.extract_strided_slice %1732 {offsets = [0, 0], sizes = [24, 128], strides = [1, 1]} : vector<26x128xf32> to vector<24x128xf32>
    %1734 = vector.extract_strided_slice %1732 {offsets = [1, 0], sizes = [24, 128], strides = [1, 1]} : vector<26x128xf32> to vector<24x128xf32>
    %1735 = arith.maximumf %1733, %1734 : vector<24x128xf32>
    %1736 = vector.extract_strided_slice %1732 {offsets = [2, 0], sizes = [24, 128], strides = [1, 1]} : vector<26x128xf32> to vector<24x128xf32>
    %1737 = arith.maximumf %1735, %1736 : vector<24x128xf32>
    %1738 = vector.broadcast %28 : f32 to vector<24x128xf32>
    %1739 = arith.addf %1737, %1738 : vector<24x128xf32>
    %cst_89 = arith.constant 0.000000e+00 : f32
    %1740 = vector.broadcast %cst_89 : f32 to vector<24x128xf32>
    %1741 = arith.maximumf %1739, %1740 : vector<24x128xf32>
    %c312 = arith.constant 312 : index
    %c0_90 = arith.constant 0 : index
    %1742 = vector.load %arg7[%c312, %c0_90] : memref<576x128xf32, #tpu.memory_space<vmem>>, vector<24x128xf32>
    tpu.vector_store %arg7[%c312, %c0_90], %1741 {strides = array<i32>} : memref<576x128xf32, #tpu.memory_space<vmem>>, vector<24x128xf32>,
    %1743 = vector.broadcast %18 : f32 to vector<26x128xf32>
    %1744 = arith.mulf %1534, %1743 : vector<26x128xf32>
    %1745 = vector.broadcast %19 : f32 to vector<26x128xf32>
    %1746 = arith.mulf %1536, %1745 : vector<26x128xf32>
    %1747 = arith.addf %1744, %1746 : vector<26x128xf32>
    %1748 = vector.broadcast %20 : f32 to vector<26x128xf32>
    %1749 = arith.mulf %1538, %1748 : vector<26x128xf32>
    %1750 = arith.addf %1747, %1749 : vector<26x128xf32>
    %1751 = vector.broadcast %21 : f32 to vector<26x128xf32>
    %1752 = arith.mulf %1540, %1751 : vector<26x128xf32>
    %1753 = arith.addf %1750, %1752 : vector<26x128xf32>
    %1754 = vector.broadcast %22 : f32 to vector<26x128xf32>
    %1755 = arith.mulf %1542, %1754 : vector<26x128xf32>
    %1756 = arith.addf %1753, %1755 : vector<26x128xf32>
    %1757 = vector.broadcast %23 : f32 to vector<26x128xf32>
    %1758 = arith.mulf %1544, %1757 : vector<26x128xf32>
    %1759 = arith.addf %1756, %1758 : vector<26x128xf32>
    %1760 = vector.broadcast %24 : f32 to vector<26x128xf32>
    %1761 = arith.mulf %1546, %1760 : vector<26x128xf32>
    %1762 = arith.addf %1759, %1761 : vector<26x128xf32>
    %1763 = vector.broadcast %25 : f32 to vector<26x128xf32>
    %1764 = arith.mulf %1548, %1763 : vector<26x128xf32>
    %1765 = arith.addf %1762, %1764 : vector<26x128xf32>
    %1766 = vector.broadcast %26 : f32 to vector<26x128xf32>
    %1767 = arith.mulf %1550, %1766 : vector<26x128xf32>
    %1768 = arith.addf %1765, %1767 : vector<26x128xf32>
    %1769 = vector.broadcast %18 : f32 to vector<26x128xf32>
    %1770 = arith.mulf %1540, %1769 : vector<26x128xf32>
    %1771 = vector.broadcast %19 : f32 to vector<26x128xf32>
    %1772 = arith.mulf %1542, %1771 : vector<26x128xf32>
    %1773 = arith.addf %1770, %1772 : vector<26x128xf32>
    %1774 = vector.broadcast %20 : f32 to vector<26x128xf32>
    %1775 = arith.mulf %1544, %1774 : vector<26x128xf32>
    %1776 = arith.addf %1773, %1775 : vector<26x128xf32>
    %1777 = vector.broadcast %21 : f32 to vector<26x128xf32>
    %1778 = arith.mulf %1546, %1777 : vector<26x128xf32>
    %1779 = arith.addf %1776, %1778 : vector<26x128xf32>
    %1780 = vector.broadcast %22 : f32 to vector<26x128xf32>
    %1781 = arith.mulf %1548, %1780 : vector<26x128xf32>
    %1782 = arith.addf %1779, %1781 : vector<26x128xf32>
    %1783 = vector.broadcast %23 : f32 to vector<26x128xf32>
    %1784 = arith.mulf %1550, %1783 : vector<26x128xf32>
    %1785 = arith.addf %1782, %1784 : vector<26x128xf32>
    %1786 = vector.broadcast %24 : f32 to vector<26x128xf32>
    %1787 = arith.mulf %1552, %1786 : vector<26x128xf32>
    %1788 = arith.addf %1785, %1787 : vector<26x128xf32>
    %1789 = vector.broadcast %25 : f32 to vector<26x128xf32>
    %1790 = arith.mulf %1554, %1789 : vector<26x128xf32>
    %1791 = arith.addf %1788, %1790 : vector<26x128xf32>
    %1792 = vector.broadcast %26 : f32 to vector<26x128xf32>
    %1793 = arith.mulf %1556, %1792 : vector<26x128xf32>
    %1794 = arith.addf %1791, %1793 : vector<26x128xf32>
    %1795 = arith.maximumf %1768, %1794 : vector<26x128xf32>
    %1796 = vector.broadcast %18 : f32 to vector<26x128xf32>
    %1797 = arith.mulf %1546, %1796 : vector<26x128xf32>
    %1798 = vector.broadcast %19 : f32 to vector<26x128xf32>
    %1799 = arith.mulf %1548, %1798 : vector<26x128xf32>
    %1800 = arith.addf %1797, %1799 : vector<26x128xf32>
    %1801 = vector.broadcast %20 : f32 to vector<26x128xf32>
    %1802 = arith.mulf %1550, %1801 : vector<26x128xf32>
    %1803 = arith.addf %1800, %1802 : vector<26x128xf32>
    %1804 = vector.broadcast %21 : f32 to vector<26x128xf32>
    %1805 = arith.mulf %1552, %1804 : vector<26x128xf32>
    %1806 = arith.addf %1803, %1805 : vector<26x128xf32>
    %1807 = vector.broadcast %22 : f32 to vector<26x128xf32>
    %1808 = arith.mulf %1554, %1807 : vector<26x128xf32>
    %1809 = arith.addf %1806, %1808 : vector<26x128xf32>
    %1810 = vector.broadcast %23 : f32 to vector<26x128xf32>
    %1811 = arith.mulf %1556, %1810 : vector<26x128xf32>
    %1812 = arith.addf %1809, %1811 : vector<26x128xf32>
    %1813 = vector.broadcast %24 : f32 to vector<26x128xf32>
    %1814 = arith.mulf %1558, %1813 : vector<26x128xf32>
    %1815 = arith.addf %1812, %1814 : vector<26x128xf32>
    %1816 = vector.broadcast %25 : f32 to vector<26x128xf32>
    %1817 = arith.mulf %1560, %1816 : vector<26x128xf32>
    %1818 = arith.addf %1815, %1817 : vector<26x128xf32>
    %1819 = vector.broadcast %26 : f32 to vector<26x128xf32>
    %1820 = arith.mulf %1562, %1819 : vector<26x128xf32>
    %1821 = arith.addf %1818, %1820 : vector<26x128xf32>
    %1822 = arith.maximumf %1795, %1821 : vector<26x128xf32>
    %1823 = vector.extract_strided_slice %1822 {offsets = [0, 0], sizes = [24, 128], strides = [1, 1]} : vector<26x128xf32> to vector<24x128xf32>
    %1824 = vector.extract_strided_slice %1822 {offsets = [1, 0], sizes = [24, 128], strides = [1, 1]} : vector<26x128xf32> to vector<24x128xf32>
    %1825 = arith.maximumf %1823, %1824 : vector<24x128xf32>
    %1826 = vector.extract_strided_slice %1822 {offsets = [2, 0], sizes = [24, 128], strides = [1, 1]} : vector<26x128xf32> to vector<24x128xf32>
    %1827 = arith.maximumf %1825, %1826 : vector<24x128xf32>
    %1828 = vector.broadcast %29 : f32 to vector<24x128xf32>
    %1829 = arith.addf %1827, %1828 : vector<24x128xf32>
    %cst_91 = arith.constant 0.000000e+00 : f32
    %1830 = vector.broadcast %cst_91 : f32 to vector<24x128xf32>
    %1831 = arith.maximumf %1829, %1830 : vector<24x128xf32>
    %c504 = arith.constant 504 : index
    %c0_92 = arith.constant 0 : index
    %1832 = vector.load %arg7[%c504, %c0_92] : memref<576x128xf32, #tpu.memory_space<vmem>>, vector<24x128xf32>
    tpu.vector_store %arg7[%c504, %c0_92], %1831 {strides = array<i32>} : memref<576x128xf32, #tpu.memory_space<vmem>>, vector<24x128xf32>,
    %1833 = vector.extract_strided_slice %30 {offsets = [18, 0, 0], sizes = [1, 26, 128], strides = [1, 1, 1]} : vector<28x26x128xf32> to vector<1x26x128xf32>
    %1834 = vector.shape_cast %1833 : vector<1x26x128xf32> to vector<26x128xf32>
    %1835 = vector.extract_strided_slice %31 {offsets = [18, 0, 0], sizes = [1, 26, 128], strides = [1, 1, 1]} : vector<28x26x128xf32> to vector<1x26x128xf32>
    %1836 = vector.shape_cast %1835 : vector<1x26x128xf32> to vector<26x128xf32>
    %1837 = vector.extract_strided_slice %32 {offsets = [18, 0, 0], sizes = [1, 26, 128], strides = [1, 1, 1]} : vector<28x26x128xf32> to vector<1x26x128xf32>
    %1838 = vector.shape_cast %1837 : vector<1x26x128xf32> to vector<26x128xf32>
    %1839 = vector.extract_strided_slice %30 {offsets = [19, 0, 0], sizes = [1, 26, 128], strides = [1, 1, 1]} : vector<28x26x128xf32> to vector<1x26x128xf32>
    %1840 = vector.shape_cast %1839 : vector<1x26x128xf32> to vector<26x128xf32>
    %1841 = vector.extract_strided_slice %31 {offsets = [19, 0, 0], sizes = [1, 26, 128], strides = [1, 1, 1]} : vector<28x26x128xf32> to vector<1x26x128xf32>
    %1842 = vector.shape_cast %1841 : vector<1x26x128xf32> to vector<26x128xf32>
    %1843 = vector.extract_strided_slice %32 {offsets = [19, 0, 0], sizes = [1, 26, 128], strides = [1, 1, 1]} : vector<28x26x128xf32> to vector<1x26x128xf32>
    %1844 = vector.shape_cast %1843 : vector<1x26x128xf32> to vector<26x128xf32>
    %1845 = vector.extract_strided_slice %30 {offsets = [20, 0, 0], sizes = [1, 26, 128], strides = [1, 1, 1]} : vector<28x26x128xf32> to vector<1x26x128xf32>
    %1846 = vector.shape_cast %1845 : vector<1x26x128xf32> to vector<26x128xf32>
    %1847 = vector.extract_strided_slice %31 {offsets = [20, 0, 0], sizes = [1, 26, 128], strides = [1, 1, 1]} : vector<28x26x128xf32> to vector<1x26x128xf32>
    %1848 = vector.shape_cast %1847 : vector<1x26x128xf32> to vector<26x128xf32>
    %1849 = vector.extract_strided_slice %32 {offsets = [20, 0, 0], sizes = [1, 26, 128], strides = [1, 1, 1]} : vector<28x26x128xf32> to vector<1x26x128xf32>
    %1850 = vector.shape_cast %1849 : vector<1x26x128xf32> to vector<26x128xf32>
    %1851 = vector.extract_strided_slice %30 {offsets = [21, 0, 0], sizes = [1, 26, 128], strides = [1, 1, 1]} : vector<28x26x128xf32> to vector<1x26x128xf32>
    %1852 = vector.shape_cast %1851 : vector<1x26x128xf32> to vector<26x128xf32>
    %1853 = vector.extract_strided_slice %31 {offsets = [21, 0, 0], sizes = [1, 26, 128], strides = [1, 1, 1]} : vector<28x26x128xf32> to vector<1x26x128xf32>
    %1854 = vector.shape_cast %1853 : vector<1x26x128xf32> to vector<26x128xf32>
    %1855 = vector.extract_strided_slice %32 {offsets = [21, 0, 0], sizes = [1, 26, 128], strides = [1, 1, 1]} : vector<28x26x128xf32> to vector<1x26x128xf32>
    %1856 = vector.shape_cast %1855 : vector<1x26x128xf32> to vector<26x128xf32>
    %1857 = vector.extract_strided_slice %30 {offsets = [22, 0, 0], sizes = [1, 26, 128], strides = [1, 1, 1]} : vector<28x26x128xf32> to vector<1x26x128xf32>
    %1858 = vector.shape_cast %1857 : vector<1x26x128xf32> to vector<26x128xf32>
    %1859 = vector.extract_strided_slice %31 {offsets = [22, 0, 0], sizes = [1, 26, 128], strides = [1, 1, 1]} : vector<28x26x128xf32> to vector<1x26x128xf32>
    %1860 = vector.shape_cast %1859 : vector<1x26x128xf32> to vector<26x128xf32>
    %1861 = vector.extract_strided_slice %32 {offsets = [22, 0, 0], sizes = [1, 26, 128], strides = [1, 1, 1]} : vector<28x26x128xf32> to vector<1x26x128xf32>
    %1862 = vector.shape_cast %1861 : vector<1x26x128xf32> to vector<26x128xf32>
    %1863 = vector.broadcast %0 : f32 to vector<26x128xf32>
    %1864 = arith.mulf %1834, %1863 : vector<26x128xf32>
    %1865 = vector.broadcast %1 : f32 to vector<26x128xf32>
    %1866 = arith.mulf %1836, %1865 : vector<26x128xf32>
    %1867 = arith.addf %1864, %1866 : vector<26x128xf32>
    %1868 = vector.broadcast %2 : f32 to vector<26x128xf32>
    %1869 = arith.mulf %1838, %1868 : vector<26x128xf32>
    %1870 = arith.addf %1867, %1869 : vector<26x128xf32>
    %1871 = vector.broadcast %3 : f32 to vector<26x128xf32>
    %1872 = arith.mulf %1840, %1871 : vector<26x128xf32>
    %1873 = arith.addf %1870, %1872 : vector<26x128xf32>
    %1874 = vector.broadcast %4 : f32 to vector<26x128xf32>
    %1875 = arith.mulf %1842, %1874 : vector<26x128xf32>
    %1876 = arith.addf %1873, %1875 : vector<26x128xf32>
    %1877 = vector.broadcast %5 : f32 to vector<26x128xf32>
    %1878 = arith.mulf %1844, %1877 : vector<26x128xf32>
    %1879 = arith.addf %1876, %1878 : vector<26x128xf32>
    %1880 = vector.broadcast %6 : f32 to vector<26x128xf32>
    %1881 = arith.mulf %1846, %1880 : vector<26x128xf32>
    %1882 = arith.addf %1879, %1881 : vector<26x128xf32>
    %1883 = vector.broadcast %7 : f32 to vector<26x128xf32>
    %1884 = arith.mulf %1848, %1883 : vector<26x128xf32>
    %1885 = arith.addf %1882, %1884 : vector<26x128xf32>
    %1886 = vector.broadcast %8 : f32 to vector<26x128xf32>
    %1887 = arith.mulf %1850, %1886 : vector<26x128xf32>
    %1888 = arith.addf %1885, %1887 : vector<26x128xf32>
    %1889 = vector.broadcast %0 : f32 to vector<26x128xf32>
    %1890 = arith.mulf %1840, %1889 : vector<26x128xf32>
    %1891 = vector.broadcast %1 : f32 to vector<26x128xf32>
    %1892 = arith.mulf %1842, %1891 : vector<26x128xf32>
    %1893 = arith.addf %1890, %1892 : vector<26x128xf32>
    %1894 = vector.broadcast %2 : f32 to vector<26x128xf32>
    %1895 = arith.mulf %1844, %1894 : vector<26x128xf32>
    %1896 = arith.addf %1893, %1895 : vector<26x128xf32>
    %1897 = vector.broadcast %3 : f32 to vector<26x128xf32>
    %1898 = arith.mulf %1846, %1897 : vector<26x128xf32>
    %1899 = arith.addf %1896, %1898 : vector<26x128xf32>
    %1900 = vector.broadcast %4 : f32 to vector<26x128xf32>
    %1901 = arith.mulf %1848, %1900 : vector<26x128xf32>
    %1902 = arith.addf %1899, %1901 : vector<26x128xf32>
    %1903 = vector.broadcast %5 : f32 to vector<26x128xf32>
    %1904 = arith.mulf %1850, %1903 : vector<26x128xf32>
    %1905 = arith.addf %1902, %1904 : vector<26x128xf32>
    %1906 = vector.broadcast %6 : f32 to vector<26x128xf32>
    %1907 = arith.mulf %1852, %1906 : vector<26x128xf32>
    %1908 = arith.addf %1905, %1907 : vector<26x128xf32>
    %1909 = vector.broadcast %7 : f32 to vector<26x128xf32>
    %1910 = arith.mulf %1854, %1909 : vector<26x128xf32>
    %1911 = arith.addf %1908, %1910 : vector<26x128xf32>
    %1912 = vector.broadcast %8 : f32 to vector<26x128xf32>
    %1913 = arith.mulf %1856, %1912 : vector<26x128xf32>
    %1914 = arith.addf %1911, %1913 : vector<26x128xf32>
    %1915 = arith.maximumf %1888, %1914 : vector<26x128xf32>
    %1916 = vector.broadcast %0 : f32 to vector<26x128xf32>
    %1917 = arith.mulf %1846, %1916 : vector<26x128xf32>
    %1918 = vector.broadcast %1 : f32 to vector<26x128xf32>
    %1919 = arith.mulf %1848, %1918 : vector<26x128xf32>
    %1920 = arith.addf %1917, %1919 : vector<26x128xf32>
    %1921 = vector.broadcast %2 : f32 to vector<26x128xf32>
    %1922 = arith.mulf %1850, %1921 : vector<26x128xf32>
    %1923 = arith.addf %1920, %1922 : vector<26x128xf32>
    %1924 = vector.broadcast %3 : f32 to vector<26x128xf32>
    %1925 = arith.mulf %1852, %1924 : vector<26x128xf32>
    %1926 = arith.addf %1923, %1925 : vector<26x128xf32>
    %1927 = vector.broadcast %4 : f32 to vector<26x128xf32>
    %1928 = arith.mulf %1854, %1927 : vector<26x128xf32>
    %1929 = arith.addf %1926, %1928 : vector<26x128xf32>
    %1930 = vector.broadcast %5 : f32 to vector<26x128xf32>
    %1931 = arith.mulf %1856, %1930 : vector<26x128xf32>
    %1932 = arith.addf %1929, %1931 : vector<26x128xf32>
    %1933 = vector.broadcast %6 : f32 to vector<26x128xf32>
    %1934 = arith.mulf %1858, %1933 : vector<26x128xf32>
    %1935 = arith.addf %1932, %1934 : vector<26x128xf32>
    %1936 = vector.broadcast %7 : f32 to vector<26x128xf32>
    %1937 = arith.mulf %1860, %1936 : vector<26x128xf32>
    %1938 = arith.addf %1935, %1937 : vector<26x128xf32>
    %1939 = vector.broadcast %8 : f32 to vector<26x128xf32>
    %1940 = arith.mulf %1862, %1939 : vector<26x128xf32>
    %1941 = arith.addf %1938, %1940 : vector<26x128xf32>
    %1942 = arith.maximumf %1915, %1941 : vector<26x128xf32>
    %1943 = vector.extract_strided_slice %1942 {offsets = [0, 0], sizes = [24, 128], strides = [1, 1]} : vector<26x128xf32> to vector<24x128xf32>
    %1944 = vector.extract_strided_slice %1942 {offsets = [1, 0], sizes = [24, 128], strides = [1, 1]} : vector<26x128xf32> to vector<24x128xf32>
    %1945 = arith.maximumf %1943, %1944 : vector<24x128xf32>
    %1946 = vector.extract_strided_slice %1942 {offsets = [2, 0], sizes = [24, 128], strides = [1, 1]} : vector<26x128xf32> to vector<24x128xf32>
    %1947 = arith.maximumf %1945, %1946 : vector<24x128xf32>
    %1948 = vector.broadcast %27 : f32 to vector<24x128xf32>
    %1949 = arith.addf %1947, %1948 : vector<24x128xf32>
    %cst_93 = arith.constant 0.000000e+00 : f32
    %1950 = vector.broadcast %cst_93 : f32 to vector<24x128xf32>
    %1951 = arith.maximumf %1949, %1950 : vector<24x128xf32>
    %c144 = arith.constant 144 : index
    %c0_94 = arith.constant 0 : index
    %1952 = vector.load %arg7[%c144, %c0_94] : memref<576x128xf32, #tpu.memory_space<vmem>>, vector<24x128xf32>
    tpu.vector_store %arg7[%c144, %c0_94], %1951 {strides = array<i32>} : memref<576x128xf32, #tpu.memory_space<vmem>>, vector<24x128xf32>,
    %1953 = vector.broadcast %9 : f32 to vector<26x128xf32>
    %1954 = arith.mulf %1834, %1953 : vector<26x128xf32>
    %1955 = vector.broadcast %10 : f32 to vector<26x128xf32>
    %1956 = arith.mulf %1836, %1955 : vector<26x128xf32>
    %1957 = arith.addf %1954, %1956 : vector<26x128xf32>
    %1958 = vector.broadcast %11 : f32 to vector<26x128xf32>
    %1959 = arith.mulf %1838, %1958 : vector<26x128xf32>
    %1960 = arith.addf %1957, %1959 : vector<26x128xf32>
    %1961 = vector.broadcast %12 : f32 to vector<26x128xf32>
    %1962 = arith.mulf %1840, %1961 : vector<26x128xf32>
    %1963 = arith.addf %1960, %1962 : vector<26x128xf32>
    %1964 = vector.broadcast %13 : f32 to vector<26x128xf32>
    %1965 = arith.mulf %1842, %1964 : vector<26x128xf32>
    %1966 = arith.addf %1963, %1965 : vector<26x128xf32>
    %1967 = vector.broadcast %14 : f32 to vector<26x128xf32>
    %1968 = arith.mulf %1844, %1967 : vector<26x128xf32>
    %1969 = arith.addf %1966, %1968 : vector<26x128xf32>
    %1970 = vector.broadcast %15 : f32 to vector<26x128xf32>
    %1971 = arith.mulf %1846, %1970 : vector<26x128xf32>
    %1972 = arith.addf %1969, %1971 : vector<26x128xf32>
    %1973 = vector.broadcast %16 : f32 to vector<26x128xf32>
    %1974 = arith.mulf %1848, %1973 : vector<26x128xf32>
    %1975 = arith.addf %1972, %1974 : vector<26x128xf32>
    %1976 = vector.broadcast %17 : f32 to vector<26x128xf32>
    %1977 = arith.mulf %1850, %1976 : vector<26x128xf32>
    %1978 = arith.addf %1975, %1977 : vector<26x128xf32>
    %1979 = vector.broadcast %9 : f32 to vector<26x128xf32>
    %1980 = arith.mulf %1840, %1979 : vector<26x128xf32>
    %1981 = vector.broadcast %10 : f32 to vector<26x128xf32>
    %1982 = arith.mulf %1842, %1981 : vector<26x128xf32>
    %1983 = arith.addf %1980, %1982 : vector<26x128xf32>
    %1984 = vector.broadcast %11 : f32 to vector<26x128xf32>
    %1985 = arith.mulf %1844, %1984 : vector<26x128xf32>
    %1986 = arith.addf %1983, %1985 : vector<26x128xf32>
    %1987 = vector.broadcast %12 : f32 to vector<26x128xf32>
    %1988 = arith.mulf %1846, %1987 : vector<26x128xf32>
    %1989 = arith.addf %1986, %1988 : vector<26x128xf32>
    %1990 = vector.broadcast %13 : f32 to vector<26x128xf32>
    %1991 = arith.mulf %1848, %1990 : vector<26x128xf32>
    %1992 = arith.addf %1989, %1991 : vector<26x128xf32>
    %1993 = vector.broadcast %14 : f32 to vector<26x128xf32>
    %1994 = arith.mulf %1850, %1993 : vector<26x128xf32>
    %1995 = arith.addf %1992, %1994 : vector<26x128xf32>
    %1996 = vector.broadcast %15 : f32 to vector<26x128xf32>
    %1997 = arith.mulf %1852, %1996 : vector<26x128xf32>
    %1998 = arith.addf %1995, %1997 : vector<26x128xf32>
    %1999 = vector.broadcast %16 : f32 to vector<26x128xf32>
    %2000 = arith.mulf %1854, %1999 : vector<26x128xf32>
    %2001 = arith.addf %1998, %2000 : vector<26x128xf32>
    %2002 = vector.broadcast %17 : f32 to vector<26x128xf32>
    %2003 = arith.mulf %1856, %2002 : vector<26x128xf32>
    %2004 = arith.addf %2001, %2003 : vector<26x128xf32>
    %2005 = arith.maximumf %1978, %2004 : vector<26x128xf32>
    %2006 = vector.broadcast %9 : f32 to vector<26x128xf32>
    %2007 = arith.mulf %1846, %2006 : vector<26x128xf32>
    %2008 = vector.broadcast %10 : f32 to vector<26x128xf32>
    %2009 = arith.mulf %1848, %2008 : vector<26x128xf32>
    %2010 = arith.addf %2007, %2009 : vector<26x128xf32>
    %2011 = vector.broadcast %11 : f32 to vector<26x128xf32>
    %2012 = arith.mulf %1850, %2011 : vector<26x128xf32>
    %2013 = arith.addf %2010, %2012 : vector<26x128xf32>
    %2014 = vector.broadcast %12 : f32 to vector<26x128xf32>
    %2015 = arith.mulf %1852, %2014 : vector<26x128xf32>
    %2016 = arith.addf %2013, %2015 : vector<26x128xf32>
    %2017 = vector.broadcast %13 : f32 to vector<26x128xf32>
    %2018 = arith.mulf %1854, %2017 : vector<26x128xf32>
    %2019 = arith.addf %2016, %2018 : vector<26x128xf32>
    %2020 = vector.broadcast %14 : f32 to vector<26x128xf32>
    %2021 = arith.mulf %1856, %2020 : vector<26x128xf32>
    %2022 = arith.addf %2019, %2021 : vector<26x128xf32>
    %2023 = vector.broadcast %15 : f32 to vector<26x128xf32>
    %2024 = arith.mulf %1858, %2023 : vector<26x128xf32>
    %2025 = arith.addf %2022, %2024 : vector<26x128xf32>
    %2026 = vector.broadcast %16 : f32 to vector<26x128xf32>
    %2027 = arith.mulf %1860, %2026 : vector<26x128xf32>
    %2028 = arith.addf %2025, %2027 : vector<26x128xf32>
    %2029 = vector.broadcast %17 : f32 to vector<26x128xf32>
    %2030 = arith.mulf %1862, %2029 : vector<26x128xf32>
    %2031 = arith.addf %2028, %2030 : vector<26x128xf32>
    %2032 = arith.maximumf %2005, %2031 : vector<26x128xf32>
    %2033 = vector.extract_strided_slice %2032 {offsets = [0, 0], sizes = [24, 128], strides = [1, 1]} : vector<26x128xf32> to vector<24x128xf32>
    %2034 = vector.extract_strided_slice %2032 {offsets = [1, 0], sizes = [24, 128], strides = [1, 1]} : vector<26x128xf32> to vector<24x128xf32>
    %2035 = arith.maximumf %2033, %2034 : vector<24x128xf32>
    %2036 = vector.extract_strided_slice %2032 {offsets = [2, 0], sizes = [24, 128], strides = [1, 1]} : vector<26x128xf32> to vector<24x128xf32>
    %2037 = arith.maximumf %2035, %2036 : vector<24x128xf32>
    %2038 = vector.broadcast %28 : f32 to vector<24x128xf32>
    %2039 = arith.addf %2037, %2038 : vector<24x128xf32>
    %cst_95 = arith.constant 0.000000e+00 : f32
    %2040 = vector.broadcast %cst_95 : f32 to vector<24x128xf32>
    %2041 = arith.maximumf %2039, %2040 : vector<24x128xf32>
    %c336 = arith.constant 336 : index
    %c0_96 = arith.constant 0 : index
    %2042 = vector.load %arg7[%c336, %c0_96] : memref<576x128xf32, #tpu.memory_space<vmem>>, vector<24x128xf32>
    tpu.vector_store %arg7[%c336, %c0_96], %2041 {strides = array<i32>} : memref<576x128xf32, #tpu.memory_space<vmem>>, vector<24x128xf32>,
    %2043 = vector.broadcast %18 : f32 to vector<26x128xf32>
    %2044 = arith.mulf %1834, %2043 : vector<26x128xf32>
    %2045 = vector.broadcast %19 : f32 to vector<26x128xf32>
    %2046 = arith.mulf %1836, %2045 : vector<26x128xf32>
    %2047 = arith.addf %2044, %2046 : vector<26x128xf32>
    %2048 = vector.broadcast %20 : f32 to vector<26x128xf32>
    %2049 = arith.mulf %1838, %2048 : vector<26x128xf32>
    %2050 = arith.addf %2047, %2049 : vector<26x128xf32>
    %2051 = vector.broadcast %21 : f32 to vector<26x128xf32>
    %2052 = arith.mulf %1840, %2051 : vector<26x128xf32>
    %2053 = arith.addf %2050, %2052 : vector<26x128xf32>
    %2054 = vector.broadcast %22 : f32 to vector<26x128xf32>
    %2055 = arith.mulf %1842, %2054 : vector<26x128xf32>
    %2056 = arith.addf %2053, %2055 : vector<26x128xf32>
    %2057 = vector.broadcast %23 : f32 to vector<26x128xf32>
    %2058 = arith.mulf %1844, %2057 : vector<26x128xf32>
    %2059 = arith.addf %2056, %2058 : vector<26x128xf32>
    %2060 = vector.broadcast %24 : f32 to vector<26x128xf32>
    %2061 = arith.mulf %1846, %2060 : vector<26x128xf32>
    %2062 = arith.addf %2059, %2061 : vector<26x128xf32>
    %2063 = vector.broadcast %25 : f32 to vector<26x128xf32>
    %2064 = arith.mulf %1848, %2063 : vector<26x128xf32>
    %2065 = arith.addf %2062, %2064 : vector<26x128xf32>
    %2066 = vector.broadcast %26 : f32 to vector<26x128xf32>
    %2067 = arith.mulf %1850, %2066 : vector<26x128xf32>
    %2068 = arith.addf %2065, %2067 : vector<26x128xf32>
    %2069 = vector.broadcast %18 : f32 to vector<26x128xf32>
    %2070 = arith.mulf %1840, %2069 : vector<26x128xf32>
    %2071 = vector.broadcast %19 : f32 to vector<26x128xf32>
    %2072 = arith.mulf %1842, %2071 : vector<26x128xf32>
    %2073 = arith.addf %2070, %2072 : vector<26x128xf32>
    %2074 = vector.broadcast %20 : f32 to vector<26x128xf32>
    %2075 = arith.mulf %1844, %2074 : vector<26x128xf32>
    %2076 = arith.addf %2073, %2075 : vector<26x128xf32>
    %2077 = vector.broadcast %21 : f32 to vector<26x128xf32>
    %2078 = arith.mulf %1846, %2077 : vector<26x128xf32>
    %2079 = arith.addf %2076, %2078 : vector<26x128xf32>
    %2080 = vector.broadcast %22 : f32 to vector<26x128xf32>
    %2081 = arith.mulf %1848, %2080 : vector<26x128xf32>
    %2082 = arith.addf %2079, %2081 : vector<26x128xf32>
    %2083 = vector.broadcast %23 : f32 to vector<26x128xf32>
    %2084 = arith.mulf %1850, %2083 : vector<26x128xf32>
    %2085 = arith.addf %2082, %2084 : vector<26x128xf32>
    %2086 = vector.broadcast %24 : f32 to vector<26x128xf32>
    %2087 = arith.mulf %1852, %2086 : vector<26x128xf32>
    %2088 = arith.addf %2085, %2087 : vector<26x128xf32>
    %2089 = vector.broadcast %25 : f32 to vector<26x128xf32>
    %2090 = arith.mulf %1854, %2089 : vector<26x128xf32>
    %2091 = arith.addf %2088, %2090 : vector<26x128xf32>
    %2092 = vector.broadcast %26 : f32 to vector<26x128xf32>
    %2093 = arith.mulf %1856, %2092 : vector<26x128xf32>
    %2094 = arith.addf %2091, %2093 : vector<26x128xf32>
    %2095 = arith.maximumf %2068, %2094 : vector<26x128xf32>
    %2096 = vector.broadcast %18 : f32 to vector<26x128xf32>
    %2097 = arith.mulf %1846, %2096 : vector<26x128xf32>
    %2098 = vector.broadcast %19 : f32 to vector<26x128xf32>
    %2099 = arith.mulf %1848, %2098 : vector<26x128xf32>
    %2100 = arith.addf %2097, %2099 : vector<26x128xf32>
    %2101 = vector.broadcast %20 : f32 to vector<26x128xf32>
    %2102 = arith.mulf %1850, %2101 : vector<26x128xf32>
    %2103 = arith.addf %2100, %2102 : vector<26x128xf32>
    %2104 = vector.broadcast %21 : f32 to vector<26x128xf32>
    %2105 = arith.mulf %1852, %2104 : vector<26x128xf32>
    %2106 = arith.addf %2103, %2105 : vector<26x128xf32>
    %2107 = vector.broadcast %22 : f32 to vector<26x128xf32>
    %2108 = arith.mulf %1854, %2107 : vector<26x128xf32>
    %2109 = arith.addf %2106, %2108 : vector<26x128xf32>
    %2110 = vector.broadcast %23 : f32 to vector<26x128xf32>
    %2111 = arith.mulf %1856, %2110 : vector<26x128xf32>
    %2112 = arith.addf %2109, %2111 : vector<26x128xf32>
    %2113 = vector.broadcast %24 : f32 to vector<26x128xf32>
    %2114 = arith.mulf %1858, %2113 : vector<26x128xf32>
    %2115 = arith.addf %2112, %2114 : vector<26x128xf32>
    %2116 = vector.broadcast %25 : f32 to vector<26x128xf32>
    %2117 = arith.mulf %1860, %2116 : vector<26x128xf32>
    %2118 = arith.addf %2115, %2117 : vector<26x128xf32>
    %2119 = vector.broadcast %26 : f32 to vector<26x128xf32>
    %2120 = arith.mulf %1862, %2119 : vector<26x128xf32>
    %2121 = arith.addf %2118, %2120 : vector<26x128xf32>
    %2122 = arith.maximumf %2095, %2121 : vector<26x128xf32>
    %2123 = vector.extract_strided_slice %2122 {offsets = [0, 0], sizes = [24, 128], strides = [1, 1]} : vector<26x128xf32> to vector<24x128xf32>
    %2124 = vector.extract_strided_slice %2122 {offsets = [1, 0], sizes = [24, 128], strides = [1, 1]} : vector<26x128xf32> to vector<24x128xf32>
    %2125 = arith.maximumf %2123, %2124 : vector<24x128xf32>
    %2126 = vector.extract_strided_slice %2122 {offsets = [2, 0], sizes = [24, 128], strides = [1, 1]} : vector<26x128xf32> to vector<24x128xf32>
    %2127 = arith.maximumf %2125, %2126 : vector<24x128xf32>
    %2128 = vector.broadcast %29 : f32 to vector<24x128xf32>
    %2129 = arith.addf %2127, %2128 : vector<24x128xf32>
    %cst_97 = arith.constant 0.000000e+00 : f32
    %2130 = vector.broadcast %cst_97 : f32 to vector<24x128xf32>
    %2131 = arith.maximumf %2129, %2130 : vector<24x128xf32>
    %c528 = arith.constant 528 : index
    %c0_98 = arith.constant 0 : index
    %2132 = vector.load %arg7[%c528, %c0_98] : memref<576x128xf32, #tpu.memory_space<vmem>>, vector<24x128xf32>
    tpu.vector_store %arg7[%c528, %c0_98], %2131 {strides = array<i32>} : memref<576x128xf32, #tpu.memory_space<vmem>>, vector<24x128xf32>,
    %2133 = vector.extract_strided_slice %30 {offsets = [21, 0, 0], sizes = [1, 26, 128], strides = [1, 1, 1]} : vector<28x26x128xf32> to vector<1x26x128xf32>
    %2134 = vector.shape_cast %2133 : vector<1x26x128xf32> to vector<26x128xf32>
    %2135 = vector.extract_strided_slice %31 {offsets = [21, 0, 0], sizes = [1, 26, 128], strides = [1, 1, 1]} : vector<28x26x128xf32> to vector<1x26x128xf32>
    %2136 = vector.shape_cast %2135 : vector<1x26x128xf32> to vector<26x128xf32>
    %2137 = vector.extract_strided_slice %32 {offsets = [21, 0, 0], sizes = [1, 26, 128], strides = [1, 1, 1]} : vector<28x26x128xf32> to vector<1x26x128xf32>
    %2138 = vector.shape_cast %2137 : vector<1x26x128xf32> to vector<26x128xf32>
    %2139 = vector.extract_strided_slice %30 {offsets = [22, 0, 0], sizes = [1, 26, 128], strides = [1, 1, 1]} : vector<28x26x128xf32> to vector<1x26x128xf32>
    %2140 = vector.shape_cast %2139 : vector<1x26x128xf32> to vector<26x128xf32>
    %2141 = vector.extract_strided_slice %31 {offsets = [22, 0, 0], sizes = [1, 26, 128], strides = [1, 1, 1]} : vector<28x26x128xf32> to vector<1x26x128xf32>
    %2142 = vector.shape_cast %2141 : vector<1x26x128xf32> to vector<26x128xf32>
    %2143 = vector.extract_strided_slice %32 {offsets = [22, 0, 0], sizes = [1, 26, 128], strides = [1, 1, 1]} : vector<28x26x128xf32> to vector<1x26x128xf32>
    %2144 = vector.shape_cast %2143 : vector<1x26x128xf32> to vector<26x128xf32>
    %2145 = vector.extract_strided_slice %30 {offsets = [23, 0, 0], sizes = [1, 26, 128], strides = [1, 1, 1]} : vector<28x26x128xf32> to vector<1x26x128xf32>
    %2146 = vector.shape_cast %2145 : vector<1x26x128xf32> to vector<26x128xf32>
    %2147 = vector.extract_strided_slice %31 {offsets = [23, 0, 0], sizes = [1, 26, 128], strides = [1, 1, 1]} : vector<28x26x128xf32> to vector<1x26x128xf32>
    %2148 = vector.shape_cast %2147 : vector<1x26x128xf32> to vector<26x128xf32>
    %2149 = vector.extract_strided_slice %32 {offsets = [23, 0, 0], sizes = [1, 26, 128], strides = [1, 1, 1]} : vector<28x26x128xf32> to vector<1x26x128xf32>
    %2150 = vector.shape_cast %2149 : vector<1x26x128xf32> to vector<26x128xf32>
    %2151 = vector.extract_strided_slice %30 {offsets = [24, 0, 0], sizes = [1, 26, 128], strides = [1, 1, 1]} : vector<28x26x128xf32> to vector<1x26x128xf32>
    %2152 = vector.shape_cast %2151 : vector<1x26x128xf32> to vector<26x128xf32>
    %2153 = vector.extract_strided_slice %31 {offsets = [24, 0, 0], sizes = [1, 26, 128], strides = [1, 1, 1]} : vector<28x26x128xf32> to vector<1x26x128xf32>
    %2154 = vector.shape_cast %2153 : vector<1x26x128xf32> to vector<26x128xf32>
    %2155 = vector.extract_strided_slice %32 {offsets = [24, 0, 0], sizes = [1, 26, 128], strides = [1, 1, 1]} : vector<28x26x128xf32> to vector<1x26x128xf32>
    %2156 = vector.shape_cast %2155 : vector<1x26x128xf32> to vector<26x128xf32>
    %2157 = vector.extract_strided_slice %30 {offsets = [25, 0, 0], sizes = [1, 26, 128], strides = [1, 1, 1]} : vector<28x26x128xf32> to vector<1x26x128xf32>
    %2158 = vector.shape_cast %2157 : vector<1x26x128xf32> to vector<26x128xf32>
    %2159 = vector.extract_strided_slice %31 {offsets = [25, 0, 0], sizes = [1, 26, 128], strides = [1, 1, 1]} : vector<28x26x128xf32> to vector<1x26x128xf32>
    %2160 = vector.shape_cast %2159 : vector<1x26x128xf32> to vector<26x128xf32>
    %2161 = vector.extract_strided_slice %32 {offsets = [25, 0, 0], sizes = [1, 26, 128], strides = [1, 1, 1]} : vector<28x26x128xf32> to vector<1x26x128xf32>
    %2162 = vector.shape_cast %2161 : vector<1x26x128xf32> to vector<26x128xf32>
    %2163 = vector.broadcast %0 : f32 to vector<26x128xf32>
    %2164 = arith.mulf %2134, %2163 : vector<26x128xf32>
    %2165 = vector.broadcast %1 : f32 to vector<26x128xf32>
    %2166 = arith.mulf %2136, %2165 : vector<26x128xf32>
    %2167 = arith.addf %2164, %2166 : vector<26x128xf32>
    %2168 = vector.broadcast %2 : f32 to vector<26x128xf32>
    %2169 = arith.mulf %2138, %2168 : vector<26x128xf32>
    %2170 = arith.addf %2167, %2169 : vector<26x128xf32>
    %2171 = vector.broadcast %3 : f32 to vector<26x128xf32>
    %2172 = arith.mulf %2140, %2171 : vector<26x128xf32>
    %2173 = arith.addf %2170, %2172 : vector<26x128xf32>
    %2174 = vector.broadcast %4 : f32 to vector<26x128xf32>
    %2175 = arith.mulf %2142, %2174 : vector<26x128xf32>
    %2176 = arith.addf %2173, %2175 : vector<26x128xf32>
    %2177 = vector.broadcast %5 : f32 to vector<26x128xf32>
    %2178 = arith.mulf %2144, %2177 : vector<26x128xf32>
    %2179 = arith.addf %2176, %2178 : vector<26x128xf32>
    %2180 = vector.broadcast %6 : f32 to vector<26x128xf32>
    %2181 = arith.mulf %2146, %2180 : vector<26x128xf32>
    %2182 = arith.addf %2179, %2181 : vector<26x128xf32>
    %2183 = vector.broadcast %7 : f32 to vector<26x128xf32>
    %2184 = arith.mulf %2148, %2183 : vector<26x128xf32>
    %2185 = arith.addf %2182, %2184 : vector<26x128xf32>
    %2186 = vector.broadcast %8 : f32 to vector<26x128xf32>
    %2187 = arith.mulf %2150, %2186 : vector<26x128xf32>
    %2188 = arith.addf %2185, %2187 : vector<26x128xf32>
    %2189 = vector.broadcast %0 : f32 to vector<26x128xf32>
    %2190 = arith.mulf %2140, %2189 : vector<26x128xf32>
    %2191 = vector.broadcast %1 : f32 to vector<26x128xf32>
    %2192 = arith.mulf %2142, %2191 : vector<26x128xf32>
    %2193 = arith.addf %2190, %2192 : vector<26x128xf32>
    %2194 = vector.broadcast %2 : f32 to vector<26x128xf32>
    %2195 = arith.mulf %2144, %2194 : vector<26x128xf32>
    %2196 = arith.addf %2193, %2195 : vector<26x128xf32>
    %2197 = vector.broadcast %3 : f32 to vector<26x128xf32>
    %2198 = arith.mulf %2146, %2197 : vector<26x128xf32>
    %2199 = arith.addf %2196, %2198 : vector<26x128xf32>
    %2200 = vector.broadcast %4 : f32 to vector<26x128xf32>
    %2201 = arith.mulf %2148, %2200 : vector<26x128xf32>
    %2202 = arith.addf %2199, %2201 : vector<26x128xf32>
    %2203 = vector.broadcast %5 : f32 to vector<26x128xf32>
    %2204 = arith.mulf %2150, %2203 : vector<26x128xf32>
    %2205 = arith.addf %2202, %2204 : vector<26x128xf32>
    %2206 = vector.broadcast %6 : f32 to vector<26x128xf32>
    %2207 = arith.mulf %2152, %2206 : vector<26x128xf32>
    %2208 = arith.addf %2205, %2207 : vector<26x128xf32>
    %2209 = vector.broadcast %7 : f32 to vector<26x128xf32>
    %2210 = arith.mulf %2154, %2209 : vector<26x128xf32>
    %2211 = arith.addf %2208, %2210 : vector<26x128xf32>
    %2212 = vector.broadcast %8 : f32 to vector<26x128xf32>
    %2213 = arith.mulf %2156, %2212 : vector<26x128xf32>
    %2214 = arith.addf %2211, %2213 : vector<26x128xf32>
    %2215 = arith.maximumf %2188, %2214 : vector<26x128xf32>
    %2216 = vector.broadcast %0 : f32 to vector<26x128xf32>
    %2217 = arith.mulf %2146, %2216 : vector<26x128xf32>
    %2218 = vector.broadcast %1 : f32 to vector<26x128xf32>
    %2219 = arith.mulf %2148, %2218 : vector<26x128xf32>
    %2220 = arith.addf %2217, %2219 : vector<26x128xf32>
    %2221 = vector.broadcast %2 : f32 to vector<26x128xf32>
    %2222 = arith.mulf %2150, %2221 : vector<26x128xf32>
    %2223 = arith.addf %2220, %2222 : vector<26x128xf32>
    %2224 = vector.broadcast %3 : f32 to vector<26x128xf32>
    %2225 = arith.mulf %2152, %2224 : vector<26x128xf32>
    %2226 = arith.addf %2223, %2225 : vector<26x128xf32>
    %2227 = vector.broadcast %4 : f32 to vector<26x128xf32>
    %2228 = arith.mulf %2154, %2227 : vector<26x128xf32>
    %2229 = arith.addf %2226, %2228 : vector<26x128xf32>
    %2230 = vector.broadcast %5 : f32 to vector<26x128xf32>
    %2231 = arith.mulf %2156, %2230 : vector<26x128xf32>
    %2232 = arith.addf %2229, %2231 : vector<26x128xf32>
    %2233 = vector.broadcast %6 : f32 to vector<26x128xf32>
    %2234 = arith.mulf %2158, %2233 : vector<26x128xf32>
    %2235 = arith.addf %2232, %2234 : vector<26x128xf32>
    %2236 = vector.broadcast %7 : f32 to vector<26x128xf32>
    %2237 = arith.mulf %2160, %2236 : vector<26x128xf32>
    %2238 = arith.addf %2235, %2237 : vector<26x128xf32>
    %2239 = vector.broadcast %8 : f32 to vector<26x128xf32>
    %2240 = arith.mulf %2162, %2239 : vector<26x128xf32>
    %2241 = arith.addf %2238, %2240 : vector<26x128xf32>
    %2242 = arith.maximumf %2215, %2241 : vector<26x128xf32>
    %2243 = vector.extract_strided_slice %2242 {offsets = [0, 0], sizes = [24, 128], strides = [1, 1]} : vector<26x128xf32> to vector<24x128xf32>
    %2244 = vector.extract_strided_slice %2242 {offsets = [1, 0], sizes = [24, 128], strides = [1, 1]} : vector<26x128xf32> to vector<24x128xf32>
    %2245 = arith.maximumf %2243, %2244 : vector<24x128xf32>
    %2246 = vector.extract_strided_slice %2242 {offsets = [2, 0], sizes = [24, 128], strides = [1, 1]} : vector<26x128xf32> to vector<24x128xf32>
    %2247 = arith.maximumf %2245, %2246 : vector<24x128xf32>
    %2248 = vector.broadcast %27 : f32 to vector<24x128xf32>
    %2249 = arith.addf %2247, %2248 : vector<24x128xf32>
    %cst_99 = arith.constant 0.000000e+00 : f32
    %2250 = vector.broadcast %cst_99 : f32 to vector<24x128xf32>
    %2251 = arith.maximumf %2249, %2250 : vector<24x128xf32>
    %c168 = arith.constant 168 : index
    %c0_100 = arith.constant 0 : index
    %2252 = vector.load %arg7[%c168, %c0_100] : memref<576x128xf32, #tpu.memory_space<vmem>>, vector<24x128xf32>
    tpu.vector_store %arg7[%c168, %c0_100], %2251 {strides = array<i32>} : memref<576x128xf32, #tpu.memory_space<vmem>>, vector<24x128xf32>,
    %2253 = vector.broadcast %9 : f32 to vector<26x128xf32>
    %2254 = arith.mulf %2134, %2253 : vector<26x128xf32>
    %2255 = vector.broadcast %10 : f32 to vector<26x128xf32>
    %2256 = arith.mulf %2136, %2255 : vector<26x128xf32>
    %2257 = arith.addf %2254, %2256 : vector<26x128xf32>
    %2258 = vector.broadcast %11 : f32 to vector<26x128xf32>
    %2259 = arith.mulf %2138, %2258 : vector<26x128xf32>
    %2260 = arith.addf %2257, %2259 : vector<26x128xf32>
    %2261 = vector.broadcast %12 : f32 to vector<26x128xf32>
    %2262 = arith.mulf %2140, %2261 : vector<26x128xf32>
    %2263 = arith.addf %2260, %2262 : vector<26x128xf32>
    %2264 = vector.broadcast %13 : f32 to vector<26x128xf32>
    %2265 = arith.mulf %2142, %2264 : vector<26x128xf32>
    %2266 = arith.addf %2263, %2265 : vector<26x128xf32>
    %2267 = vector.broadcast %14 : f32 to vector<26x128xf32>
    %2268 = arith.mulf %2144, %2267 : vector<26x128xf32>
    %2269 = arith.addf %2266, %2268 : vector<26x128xf32>
    %2270 = vector.broadcast %15 : f32 to vector<26x128xf32>
    %2271 = arith.mulf %2146, %2270 : vector<26x128xf32>
    %2272 = arith.addf %2269, %2271 : vector<26x128xf32>
    %2273 = vector.broadcast %16 : f32 to vector<26x128xf32>
    %2274 = arith.mulf %2148, %2273 : vector<26x128xf32>
    %2275 = arith.addf %2272, %2274 : vector<26x128xf32>
    %2276 = vector.broadcast %17 : f32 to vector<26x128xf32>
    %2277 = arith.mulf %2150, %2276 : vector<26x128xf32>
    %2278 = arith.addf %2275, %2277 : vector<26x128xf32>
    %2279 = vector.broadcast %9 : f32 to vector<26x128xf32>
    %2280 = arith.mulf %2140, %2279 : vector<26x128xf32>
    %2281 = vector.broadcast %10 : f32 to vector<26x128xf32>
    %2282 = arith.mulf %2142, %2281 : vector<26x128xf32>
    %2283 = arith.addf %2280, %2282 : vector<26x128xf32>
    %2284 = vector.broadcast %11 : f32 to vector<26x128xf32>
    %2285 = arith.mulf %2144, %2284 : vector<26x128xf32>
    %2286 = arith.addf %2283, %2285 : vector<26x128xf32>
    %2287 = vector.broadcast %12 : f32 to vector<26x128xf32>
    %2288 = arith.mulf %2146, %2287 : vector<26x128xf32>
    %2289 = arith.addf %2286, %2288 : vector<26x128xf32>
    %2290 = vector.broadcast %13 : f32 to vector<26x128xf32>
    %2291 = arith.mulf %2148, %2290 : vector<26x128xf32>
    %2292 = arith.addf %2289, %2291 : vector<26x128xf32>
    %2293 = vector.broadcast %14 : f32 to vector<26x128xf32>
    %2294 = arith.mulf %2150, %2293 : vector<26x128xf32>
    %2295 = arith.addf %2292, %2294 : vector<26x128xf32>
    %2296 = vector.broadcast %15 : f32 to vector<26x128xf32>
    %2297 = arith.mulf %2152, %2296 : vector<26x128xf32>
    %2298 = arith.addf %2295, %2297 : vector<26x128xf32>
    %2299 = vector.broadcast %16 : f32 to vector<26x128xf32>
    %2300 = arith.mulf %2154, %2299 : vector<26x128xf32>
    %2301 = arith.addf %2298, %2300 : vector<26x128xf32>
    %2302 = vector.broadcast %17 : f32 to vector<26x128xf32>
    %2303 = arith.mulf %2156, %2302 : vector<26x128xf32>
    %2304 = arith.addf %2301, %2303 : vector<26x128xf32>
    %2305 = arith.maximumf %2278, %2304 : vector<26x128xf32>
    %2306 = vector.broadcast %9 : f32 to vector<26x128xf32>
    %2307 = arith.mulf %2146, %2306 : vector<26x128xf32>
    %2308 = vector.broadcast %10 : f32 to vector<26x128xf32>
    %2309 = arith.mulf %2148, %2308 : vector<26x128xf32>
    %2310 = arith.addf %2307, %2309 : vector<26x128xf32>
    %2311 = vector.broadcast %11 : f32 to vector<26x128xf32>
    %2312 = arith.mulf %2150, %2311 : vector<26x128xf32>
    %2313 = arith.addf %2310, %2312 : vector<26x128xf32>
    %2314 = vector.broadcast %12 : f32 to vector<26x128xf32>
    %2315 = arith.mulf %2152, %2314 : vector<26x128xf32>
    %2316 = arith.addf %2313, %2315 : vector<26x128xf32>
    %2317 = vector.broadcast %13 : f32 to vector<26x128xf32>
    %2318 = arith.mulf %2154, %2317 : vector<26x128xf32>
    %2319 = arith.addf %2316, %2318 : vector<26x128xf32>
    %2320 = vector.broadcast %14 : f32 to vector<26x128xf32>
    %2321 = arith.mulf %2156, %2320 : vector<26x128xf32>
    %2322 = arith.addf %2319, %2321 : vector<26x128xf32>
    %2323 = vector.broadcast %15 : f32 to vector<26x128xf32>
    %2324 = arith.mulf %2158, %2323 : vector<26x128xf32>
    %2325 = arith.addf %2322, %2324 : vector<26x128xf32>
    %2326 = vector.broadcast %16 : f32 to vector<26x128xf32>
    %2327 = arith.mulf %2160, %2326 : vector<26x128xf32>
    %2328 = arith.addf %2325, %2327 : vector<26x128xf32>
    %2329 = vector.broadcast %17 : f32 to vector<26x128xf32>
    %2330 = arith.mulf %2162, %2329 : vector<26x128xf32>
    %2331 = arith.addf %2328, %2330 : vector<26x128xf32>
    %2332 = arith.maximumf %2305, %2331 : vector<26x128xf32>
    %2333 = vector.extract_strided_slice %2332 {offsets = [0, 0], sizes = [24, 128], strides = [1, 1]} : vector<26x128xf32> to vector<24x128xf32>
    %2334 = vector.extract_strided_slice %2332 {offsets = [1, 0], sizes = [24, 128], strides = [1, 1]} : vector<26x128xf32> to vector<24x128xf32>
    %2335 = arith.maximumf %2333, %2334 : vector<24x128xf32>
    %2336 = vector.extract_strided_slice %2332 {offsets = [2, 0], sizes = [24, 128], strides = [1, 1]} : vector<26x128xf32> to vector<24x128xf32>
    %2337 = arith.maximumf %2335, %2336 : vector<24x128xf32>
    %2338 = vector.broadcast %28 : f32 to vector<24x128xf32>
    %2339 = arith.addf %2337, %2338 : vector<24x128xf32>
    %cst_101 = arith.constant 0.000000e+00 : f32
    %2340 = vector.broadcast %cst_101 : f32 to vector<24x128xf32>
    %2341 = arith.maximumf %2339, %2340 : vector<24x128xf32>
    %c360 = arith.constant 360 : index
    %c0_102 = arith.constant 0 : index
    %2342 = vector.load %arg7[%c360, %c0_102] : memref<576x128xf32, #tpu.memory_space<vmem>>, vector<24x128xf32>
    tpu.vector_store %arg7[%c360, %c0_102], %2341 {strides = array<i32>} : memref<576x128xf32, #tpu.memory_space<vmem>>, vector<24x128xf32>,
    %2343 = vector.broadcast %18 : f32 to vector<26x128xf32>
    %2344 = arith.mulf %2134, %2343 : vector<26x128xf32>
    %2345 = vector.broadcast %19 : f32 to vector<26x128xf32>
    %2346 = arith.mulf %2136, %2345 : vector<26x128xf32>
    %2347 = arith.addf %2344, %2346 : vector<26x128xf32>
    %2348 = vector.broadcast %20 : f32 to vector<26x128xf32>
    %2349 = arith.mulf %2138, %2348 : vector<26x128xf32>
    %2350 = arith.addf %2347, %2349 : vector<26x128xf32>
    %2351 = vector.broadcast %21 : f32 to vector<26x128xf32>
    %2352 = arith.mulf %2140, %2351 : vector<26x128xf32>
    %2353 = arith.addf %2350, %2352 : vector<26x128xf32>
    %2354 = vector.broadcast %22 : f32 to vector<26x128xf32>
    %2355 = arith.mulf %2142, %2354 : vector<26x128xf32>
    %2356 = arith.addf %2353, %2355 : vector<26x128xf32>
    %2357 = vector.broadcast %23 : f32 to vector<26x128xf32>
    %2358 = arith.mulf %2144, %2357 : vector<26x128xf32>
    %2359 = arith.addf %2356, %2358 : vector<26x128xf32>
    %2360 = vector.broadcast %24 : f32 to vector<26x128xf32>
    %2361 = arith.mulf %2146, %2360 : vector<26x128xf32>
    %2362 = arith.addf %2359, %2361 : vector<26x128xf32>
    %2363 = vector.broadcast %25 : f32 to vector<26x128xf32>
    %2364 = arith.mulf %2148, %2363 : vector<26x128xf32>
    %2365 = arith.addf %2362, %2364 : vector<26x128xf32>
    %2366 = vector.broadcast %26 : f32 to vector<26x128xf32>
    %2367 = arith.mulf %2150, %2366 : vector<26x128xf32>
    %2368 = arith.addf %2365, %2367 : vector<26x128xf32>
    %2369 = vector.broadcast %18 : f32 to vector<26x128xf32>
    %2370 = arith.mulf %2140, %2369 : vector<26x128xf32>
    %2371 = vector.broadcast %19 : f32 to vector<26x128xf32>
    %2372 = arith.mulf %2142, %2371 : vector<26x128xf32>
    %2373 = arith.addf %2370, %2372 : vector<26x128xf32>
    %2374 = vector.broadcast %20 : f32 to vector<26x128xf32>
    %2375 = arith.mulf %2144, %2374 : vector<26x128xf32>
    %2376 = arith.addf %2373, %2375 : vector<26x128xf32>
    %2377 = vector.broadcast %21 : f32 to vector<26x128xf32>
    %2378 = arith.mulf %2146, %2377 : vector<26x128xf32>
    %2379 = arith.addf %2376, %2378 : vector<26x128xf32>
    %2380 = vector.broadcast %22 : f32 to vector<26x128xf32>
    %2381 = arith.mulf %2148, %2380 : vector<26x128xf32>
    %2382 = arith.addf %2379, %2381 : vector<26x128xf32>
    %2383 = vector.broadcast %23 : f32 to vector<26x128xf32>
    %2384 = arith.mulf %2150, %2383 : vector<26x128xf32>
    %2385 = arith.addf %2382, %2384 : vector<26x128xf32>
    %2386 = vector.broadcast %24 : f32 to vector<26x128xf32>
    %2387 = arith.mulf %2152, %2386 : vector<26x128xf32>
    %2388 = arith.addf %2385, %2387 : vector<26x128xf32>
    %2389 = vector.broadcast %25 : f32 to vector<26x128xf32>
    %2390 = arith.mulf %2154, %2389 : vector<26x128xf32>
    %2391 = arith.addf %2388, %2390 : vector<26x128xf32>
    %2392 = vector.broadcast %26 : f32 to vector<26x128xf32>
    %2393 = arith.mulf %2156, %2392 : vector<26x128xf32>
    %2394 = arith.addf %2391, %2393 : vector<26x128xf32>
    %2395 = arith.maximumf %2368, %2394 : vector<26x128xf32>
    %2396 = vector.broadcast %18 : f32 to vector<26x128xf32>
    %2397 = arith.mulf %2146, %2396 : vector<26x128xf32>
    %2398 = vector.broadcast %19 : f32 to vector<26x128xf32>
    %2399 = arith.mulf %2148, %2398 : vector<26x128xf32>
    %2400 = arith.addf %2397, %2399 : vector<26x128xf32>
    %2401 = vector.broadcast %20 : f32 to vector<26x128xf32>
    %2402 = arith.mulf %2150, %2401 : vector<26x128xf32>
    %2403 = arith.addf %2400, %2402 : vector<26x128xf32>
    %2404 = vector.broadcast %21 : f32 to vector<26x128xf32>
    %2405 = arith.mulf %2152, %2404 : vector<26x128xf32>
    %2406 = arith.addf %2403, %2405 : vector<26x128xf32>
    %2407 = vector.broadcast %22 : f32 to vector<26x128xf32>
    %2408 = arith.mulf %2154, %2407 : vector<26x128xf32>
    %2409 = arith.addf %2406, %2408 : vector<26x128xf32>
    %2410 = vector.broadcast %23 : f32 to vector<26x128xf32>
    %2411 = arith.mulf %2156, %2410 : vector<26x128xf32>
    %2412 = arith.addf %2409, %2411 : vector<26x128xf32>
    %2413 = vector.broadcast %24 : f32 to vector<26x128xf32>
    %2414 = arith.mulf %2158, %2413 : vector<26x128xf32>
    %2415 = arith.addf %2412, %2414 : vector<26x128xf32>
    %2416 = vector.broadcast %25 : f32 to vector<26x128xf32>
    %2417 = arith.mulf %2160, %2416 : vector<26x128xf32>
    %2418 = arith.addf %2415, %2417 : vector<26x128xf32>
    %2419 = vector.broadcast %26 : f32 to vector<26x128xf32>
    %2420 = arith.mulf %2162, %2419 : vector<26x128xf32>
    %2421 = arith.addf %2418, %2420 : vector<26x128xf32>
    %2422 = arith.maximumf %2395, %2421 : vector<26x128xf32>
    %2423 = vector.extract_strided_slice %2422 {offsets = [0, 0], sizes = [24, 128], strides = [1, 1]} : vector<26x128xf32> to vector<24x128xf32>
    %2424 = vector.extract_strided_slice %2422 {offsets = [1, 0], sizes = [24, 128], strides = [1, 1]} : vector<26x128xf32> to vector<24x128xf32>
    %2425 = arith.maximumf %2423, %2424 : vector<24x128xf32>
    %2426 = vector.extract_strided_slice %2422 {offsets = [2, 0], sizes = [24, 128], strides = [1, 1]} : vector<26x128xf32> to vector<24x128xf32>
    %2427 = arith.maximumf %2425, %2426 : vector<24x128xf32>
    %2428 = vector.broadcast %29 : f32 to vector<24x128xf32>
    %2429 = arith.addf %2427, %2428 : vector<24x128xf32>
    %cst_103 = arith.constant 0.000000e+00 : f32
    %2430 = vector.broadcast %cst_103 : f32 to vector<24x128xf32>
    %2431 = arith.maximumf %2429, %2430 : vector<24x128xf32>
    %c552 = arith.constant 552 : index
    %c0_104 = arith.constant 0 : index
    %2432 = vector.load %arg7[%c552, %c0_104] : memref<576x128xf32, #tpu.memory_space<vmem>>, vector<24x128xf32>
    tpu.vector_store %arg7[%c552, %c0_104], %2431 {strides = array<i32>} : memref<576x128xf32, #tpu.memory_space<vmem>>, vector<24x128xf32>,
    %c0_105 = arith.constant 0 : index
    %c0_106 = arith.constant 0 : index
    %2433 = vector.load %arg4[%c0_105, %c0_106] : memref<10x576xf32, #tpu.memory_space<vmem>>, vector<10x576xf32>
    %c0_107 = arith.constant 0 : index
    %c0_108 = arith.constant 0 : index
    %2434 = vector.load %arg7[%c0_107, %c0_108] : memref<576x128xf32, #tpu.memory_space<vmem>>, vector<576x128xf32>
    %cst_109 = arith.constant dense<0.000000e+00> : vector<10x128xf32>
    %2435 = tpu.matmul %2433, %2434, %cst_109 {dimension_numbers = #tpu.dot_dimension_numbers<[1], [0], [0], [1], [0, 0, 1, 1], [], []>} : vector<10x576xf32>, vector<576x128xf32>, vector<10x128xf32> -> vector<10x128xf32>
    %c0_110 = arith.constant 0 : index
    %c0_111 = arith.constant 0 : index
    %2436 = vector.load %arg5[%c0_110, %c0_111] : memref<10x1xf32, #tpu.memory_space<vmem>>, vector<10x1xf32>
    %2437 = vector.broadcast %2436 : vector<10x1xf32> to vector<10x128xf32>
    %2438 = arith.addf %2435, %2437 : vector<10x128xf32>
    %cst_112 = arith.constant dense<0xFF800000> : vector<128xf32>
    %2439 = vector.multi_reduction <maximumf>, %2438, %cst_112 [0] : vector<10x128xf32> to vector<128xf32>
    %2440 = vector.shape_cast %2439 : vector<128xf32> to vector<1x128xf32>
    %2441 = vector.broadcast %2440 : vector<1x128xf32> to vector<10x128xf32>
    %2442 = arith.subf %2438, %2441 : vector<10x128xf32>
    %2443 = math.exp %2442 : vector<10x128xf32>
    %cst_113 = arith.constant dense<0.000000e+00> : vector<128xf32>
    %2444 = vector.multi_reduction <add>, %2443, %cst_113 [0] : vector<10x128xf32> to vector<128xf32>
    %2445 = vector.shape_cast %2444 : vector<128xf32> to vector<1x128xf32>
    %2446 = math.log %2445 : vector<1x128xf32>
    %2447 = vector.broadcast %2446 : vector<1x128xf32> to vector<10x128xf32>
    %2448 = arith.subf %2442, %2447 : vector<10x128xf32>
    %c0_114 = arith.constant 0 : index
    %c0_115 = arith.constant 0 : index
    %2449 = vector.load %arg6[%c0_114, %c0_115] : memref<10x128xf32, #tpu.memory_space<vmem>>, vector<10x128xf32>
    tpu.vector_store %arg6[%c0_114, %c0_115], %2448 {strides = array<i32>} : memref<10x128xf32, #tpu.memory_space<vmem>>, vector<10x128xf32>,
    return
  }
  func.func @transform_0(%arg0: i32) -> (i32, i32, i32) {
    %c0_i32 = arith.constant 0 : i32
    %c0_i32_0 = arith.constant 0 : i32
    %c0_i32_1 = arith.constant 0 : i32
    return %c0_i32, %c0_i32_0, %arg0 : i32, i32, i32
  }
  func.func @transform_1(%arg0: i32) -> (i32, i32) {
    %c0_i32 = arith.constant 0 : i32
    %c0_i32_0 = arith.constant 0 : i32
    %c0_i32_1 = arith.constant 0 : i32
    return %c0_i32, %c0_i32_0 : i32, i32
  }
  func.func @transform_2(%arg0: i32) -> i32 {
    %c0_i32 = arith.constant 0 : i32
    %c0_i32_0 = arith.constant 0 : i32
    return %c0_i32 : i32
  }
  func.func @transform_3(%arg0: i32) -> (i32, i32) {
    %c0_i32 = arith.constant 0 : i32
    %c0_i32_0 = arith.constant 0 : i32
    %c0_i32_1 = arith.constant 0 : i32
    return %c0_i32, %c0_i32_0 : i32, i32
  }
  func.func @transform_4(%arg0: i32) -> (i32, i32) {
    %c0_i32 = arith.constant 0 : i32
    %c0_i32_0 = arith.constant 0 : i32
    %c0_i32_1 = arith.constant 0 : i32
    return %c0_i32, %c0_i32_0 : i32, i32
  }
  func.func @transform_5(%arg0: i32) -> (i32, i32) {
    %c0_i32 = arith.constant 0 : i32
    %c0_i32_0 = arith.constant 0 : i32
    return %c0_i32, %arg0 : i32, i32
  }
}

</mosaic_0001>

<llo_original>
// kernel: tpu_custom_call.1
$region0: #{tpu_custom_call.1}
  #allocation0 [shape = 'u32[]', space=smem, size = 0x4, offset = 0x4, fixed_abs, tag = 'smem constant byte address 0x4 - core index']
  #allocation1 [shape = 'u32[72,128]{1,0:T(1,128)}', space=vmem, size = 0x9000, scoped, tag = 'internal scratch']
  #allocation2 [shape = 'f32[576,128]{1,0:T(8,128)}', space=vmem, size = 0x48000, scoped, tag = 'scratch operand']
  %s0 = inlined_call_operand.hbm [shape: f32[28,28,128], index: 0, kind: input, shape index: {}]
  %s1 = inlined_call_operand.vmem [shape: f32[3,9], index: 1, kind: input, shape index: {}]
  %s2 = inlined_call_operand.vmem [shape: f32[3], index: 2, kind: input, shape index: {}]
  %s3 = inlined_call_operand.hbm [shape: f32[10,576], index: 3, kind: input, shape index: {}]
  %s4 = inlined_call_operand.vmem [shape: f32[10,1], index: 4, kind: input, shape index: {}]
  %s5 = inlined_call_operand.hbm [shape: f32[10,128], index: 5, kind: output, shape index: {}]
  %s6 = sld [smem:[#allocation0]]
  $region46: #{tpu_custom_call.1} parent=0
    _
  %s8 = ssub.s32 1, %s6
  %s9 = scalar_select 0, %s8, %s6
  $region1: #{tpu_custom_call.1} parent=0
    #allocation3 [shape = 'u8[458752]{0}', space=vmem, size = 0x70000, scoped, tag = 'input window, operand 0, single buffered']
    #allocation4 [shape = 's32[1]{0}', space=sflag, size = 0x4, scoped, tag = 'scoped memory for tpu_custom_call.1']
    #allocation5 [shape = 's32[1]{0}', space=sflag, size = 0x4, scoped, tag = 'scoped memory for tpu_custom_call.1']
    #allocation6 [shape = 's32[1]{0}', space=sflag, size = 0x4, scoped, tag = 'scoped memory for tpu_custom_call.1']
    #allocation7 [shape = 'u8[2048]{0}', space=smem, size = 0x800, scoped, tag = 'input window, operand 1, single buffered']
    #allocation8 [shape = 'u8[512]{0}', space=smem, size = 0x200, scoped, tag = 'input window, operand 2, single buffered']
    #allocation9 [shape = 's32[1]{0}', space=sflag, size = 0x4, scoped, tag = 'scoped memory for tpu_custom_call.1']
    #allocation10 [shape = 'u8[40960]{0}', space=vmem, size = 0xa000, scoped, tag = 'input window, operand 3, single buffered']
    #allocation11 [shape = 's32[1]{0}', space=sflag, size = 0x4, scoped, tag = 'scoped memory for tpu_custom_call.1']
    #allocation12 [shape = 'u8[8192]{0}', space=vmem, size = 0x2000, scoped, tag = 'output window, operand 0, single buffered']
    %10 = vsyncpa [#allocation4], 0
    %11 = vsyncpa [#allocation6], 0
    %12 = vsyncpa [#allocation9], 0
    %13 = vsyncpa [#allocation11], 0
    %14 = vsyncpa [#allocation5], 0
    // Predicated region
    $region2: #{tpu_custom_call.1} parent=1 // pred_check
      _
    $region3: #{tpu_custom_call.1} parent=1 // pred_check_branch
      %16 = sbr.rel (0) target = $region5
    $region4: #{tpu_custom_call.1} parent=1 // pred_region
      %18 = vsyncadd [#allocation4], 0
      %s19 = sshll.u32 %s0, 4
      %s20 = int_to_ptr.hbm [resolvable:$true] %s19
      %s21 = sshll.u32 [#allocation3], 4
      %s22 = int_to_ptr.vmem [resolvable:$true] %s21
      %27 = dma.hbm_to_vmem [thread:$0]  %s20, 14336, %s22, [#allocation4], 128, 128, 8
    $region5: #{tpu_custom_call.1} parent=1 // pred_fallthru
      _
    // Predicated region
    $region6: #{tpu_custom_call.1} parent=1 // pred_check
      _
    $region7: #{tpu_custom_call.1} parent=1 // pred_check_branch
      %29 = sbr.rel (0) target = $region9
    $region8: #{tpu_custom_call.1} parent=1 // pred_region
      %31 = vsyncadd [#allocation6], 0
      %s33 = sshll.u32 %s1, 4
      %s34 = int_to_ptr.vmem [resolvable:$true] %s33
      %36 = dma.vmem_to_smem %s34, 64, [#allocation7], [#allocation6]
    $region9: #{tpu_custom_call.1} parent=1 // pred_fallthru
      _
    // Predicated region
    $region10: #{tpu_custom_call.1} parent=1 // pred_check
      _
    $region11: #{tpu_custom_call.1} parent=1 // pred_check_branch
      %38 = sbr.rel (0) target = $region13
    $region12: #{tpu_custom_call.1} parent=1 // pred_region
      %40 = vsyncadd [#allocation9], 0
      %s42 = sshll.u32 %s2, 4
      %s43 = int_to_ptr.vmem [resolvable:$true] %s42
      %45 = dma.vmem_to_smem %s43, 16, [#allocation8], [#allocation9]
    $region13: #{tpu_custom_call.1} parent=1 // pred_fallthru
      _
    // Predicated region
    $region14: #{tpu_custom_call.1} parent=1 // pred_check
      _
    $region15: #{tpu_custom_call.1} parent=1 // pred_check_branch
      %47 = sbr.rel (0) target = $region17
    $region16: #{tpu_custom_call.1} parent=1 // pred_region
      %49 = vsyncadd [#allocation11], 0
      %s50 = sshll.u32 %s3, 4
      %s51 = int_to_ptr.hbm [resolvable:$true] %s50
      %s52 = sshll.u32 [#allocation10], 4
      %s53 = int_to_ptr.vmem [resolvable:$true] %s52
      %58 = dma.hbm_to_vmem [thread:$0]  %s51, 1280, %s53, [#allocation11], 640, 640, 40
    $region17: #{tpu_custom_call.1} parent=1 // pred_fallthru
      _
    // Predicated region
    $region18: #{tpu_custom_call.1} parent=1 // pred_check
      _
    $region19: #{tpu_custom_call.1} parent=1 // pred_check_branch
      %60 = sbr.rel (0) target = $region21
    $region20: #{tpu_custom_call.1} parent=1 // pred_region
      _
    $region21: #{tpu_custom_call.1} parent=1 // pred_fallthru
      _
    // Predicated region
    $region22: #{tpu_custom_call.1} parent=1 // pred_check
      _
    $region23: #{tpu_custom_call.1} parent=1 // pred_check_branch
      %62 = sbr.rel (0) target = $region25
    $region24: #{tpu_custom_call.1} parent=1 // pred_region
      %64 = dma.done [#allocation4], 14336
    $region25: #{tpu_custom_call.1} parent=1 // pred_fallthru
      _
    // Predicated region
    $region26: #{tpu_custom_call.1} parent=1 // pred_check
      _
    $region27: #{tpu_custom_call.1} parent=1 // pred_check_branch
      %66 = sbr.rel (0) target = $region29
    $region28: #{tpu_custom_call.1} parent=1 // pred_region
      %68 = dma.done [#allocation6], 64
    $region29: #{tpu_custom_call.1} parent=1 // pred_fallthru
      _
    // Predicated region
    $region30: #{tpu_custom_call.1} parent=1 // pred_check
      _
    $region31: #{tpu_custom_call.1} parent=1 // pred_check_branch
      %70 = sbr.rel (0) target = $region33
    $region32: #{tpu_custom_call.1} parent=1 // pred_region
      %72 = dma.done [#allocation9], 16
    $region33: #{tpu_custom_call.1} parent=1 // pred_fallthru
      _
    // Predicated region
    $region34: #{tpu_custom_call.1} parent=1 // pred_check
      _
    $region35: #{tpu_custom_call.1} parent=1 // pred_check_branch
      %74 = sbr.rel (0) target = $region37
    $region36: #{tpu_custom_call.1} parent=1 // pred_region
      %76 = dma.done [#allocation11], 1280
    $region37: #{tpu_custom_call.1} parent=1 // pred_fallthru
      _
    %77 = sfence
    %s78 = sld [smem:[#allocation7]]
    %s79 = sld [smem:[#allocation7 + $0x1]]
    %s80 = sld [smem:[#allocation7 + $0x2]]
    %s81 = sld [smem:[#allocation7 + $0x3]]
    %s82 = sld [smem:[#allocation7 + $0x4]]
    %s83 = sld [smem:[#allocation7 + $0x5]]
    %s84 = sld [smem:[#allocation7 + $0x6]]
    %s85 = sld [smem:[#allocation7 + $0x7]]
    %s86 = sld [smem:[#allocation7 + $0x8]]
    %s87 = sld [smem:[#allocation7 + $0x80]]
    %s88 = sld [smem:[#allocation7 + $0x81]]
    %s89 = sld [smem:[#allocation7 + $0x82]]
    %s90 = sld [smem:[#allocation7 + $0x83]]
    %s91 = sld [smem:[#allocation7 + $0x84]]
    %s92 = sld [smem:[#allocation7 + $0x85]]
    %s93 = sld [smem:[#allocation7 + $0x86]]
    %s94 = sld [smem:[#allocation7 + $0x87]]
    %s95 = sld [smem:[#allocation7 + $0x88]]
    %s96 = sld [smem:[#allocation7 + $0x100]]
    %s97 = sld [smem:[#allocation7 + $0x101]]
    %s98 = sld [smem:[#allocation7 + $0x102]]
    %s99 = sld [smem:[#allocation7 + $0x103]]
    %s100 = sld [smem:[#allocation7 + $0x104]]
    %s101 = sld [smem:[#allocation7 + $0x105]]
    %s102 = sld [smem:[#allocation7 + $0x106]]
    %s103 = sld [smem:[#allocation7 + $0x107]]
    %s104 = sld [smem:[#allocation7 + $0x108]]
    %s105 = sld [smem:[#allocation8]]
    %s106 = sld [smem:[#allocation8 + $0x1]]
    %s107 = sld [smem:[#allocation8 + $0x2]]
    %v108 = vld [vmem:[#allocation3] sm:$0xff]
    %v109 = vld [vmem:[#allocation3 + $0x8] sm:$0xff]
    %v110 = vld [vmem:[#allocation3 + $0x10] sm:$0xff]
    %v111 = vld [vmem:[#allocation3 + $0x18] sm:$0x3]
    %v112 = vld [vmem:[#allocation3 + $0x20] sm:$0xff]
    %v113 = vld [vmem:[#allocation3 + $0x28] sm:$0xff]
    %v114 = vld [vmem:[#allocation3 + $0x30] sm:$0xff]
    %v115 = vld [vmem:[#allocation3 + $0x38] sm:$0x3]
    %v116 = vld [vmem:[#allocation3 + $0x40] sm:$0xff]
    %v117 = vld [vmem:[#allocation3 + $0x48] sm:$0xff]
    %v118 = vld [vmem:[#allocation3 + $0x50] sm:$0xff]
    %v119 = vld [vmem:[#allocation3 + $0x58] sm:$0x3]
    %v120 = vld [vmem:[#allocation3 + $0x60] sm:$0xff]
    %v121 = vld [vmem:[#allocation3 + $0x68] sm:$0xff]
    %v122 = vld [vmem:[#allocation3 + $0x70] sm:$0xff]
    %v123 = vld [vmem:[#allocation3 + $0x78] sm:$0x3]
    %v124 = vld [vmem:[#allocation3 + $0x80] sm:$0xff]
    %v125 = vld [vmem:[#allocation3 + $0x88] sm:$0xff]
    %v126 = vld [vmem:[#allocation3 + $0x90] sm:$0xff]
    %v127 = vld [vmem:[#allocation3 + $0x98] sm:$0x3]
    %v128 = vld [vmem:[#allocation3 + $0xa0] sm:$0xff]
    %v129 = vld [vmem:[#allocation3 + $0xa8] sm:$0xff]
    %v130 = vld [vmem:[#allocation3 + $0xb0] sm:$0xff]
    %v131 = vld [vmem:[#allocation3 + $0xb8] sm:$0x3]
    %v132 = vld [vmem:[#allocation3 + $0xc0] sm:$0xff]
    %v133 = vld [vmem:[#allocation3 + $0xc8] sm:$0xff]
    %v134 = vld [vmem:[#allocation3 + $0xd0] sm:$0xff]
    %v135 = vld [vmem:[#allocation3 + $0xd8] sm:$0x3]
    %v136 = vld [vmem:[#allocation3 + $0xe0] sm:$0xff]
    %v137 = vld [vmem:[#allocation3 + $0xe8] sm:$0xff]
    %v138 = vld [vmem:[#allocation3 + $0xf0] sm:$0xff]
    %v139 = vld [vmem:[#allocation3 + $0xf8] sm:$0x3]
    %v140 = vld [vmem:[#allocation3 + $0x100] sm:$0xff]
    %v141 = vld [vmem:[#allocation3 + $0x108] sm:$0xff]
    %v142 = vld [vmem:[#allocation3 + $0x110] sm:$0xff]
    %v143 = vld [vmem:[#allocation3 + $0x118] sm:$0x3]
    %v144 = vld [vmem:[#allocation3 + $0x120] sm:$0xff]
    %v145 = vld [vmem:[#allocation3 + $0x128] sm:$0xff]
    %v146 = vld [vmem:[#allocation3 + $0x130] sm:$0xff]
    %v147 = vld [vmem:[#allocation3 + $0x138] sm:$0x3]
    %v148 = vld [vmem:[#allocation3 + $0x140] sm:$0xff]
    %v149 = vld [vmem:[#allocation3 + $0x148] sm:$0xff]
    %v150 = vld [vmem:[#allocation3 + $0x150] sm:$0xff]
    %v151 = vld [vmem:[#allocation3 + $0x158] sm:$0x3]
    %v152 = vld [vmem:[#allocation3 + $0x160] sm:$0xff]
    %v153 = vld [vmem:[#allocation3 + $0x168] sm:$0xff]
    %v154 = vld [vmem:[#allocation3 + $0x170] sm:$0xff]
    %v155 = vld [vmem:[#allocation3 + $0x178] sm:$0x3]
    %v156 = vld [vmem:[#allocation3 + $0x180] sm:$0xff]
    %v157 = vld [vmem:[#allocation3 + $0x188] sm:$0xff]
    %v158 = vld [vmem:[#allocation3 + $0x190] sm:$0xff]
    %v159 = vld [vmem:[#allocation3 + $0x198] sm:$0x3]
    %v160 = vld [vmem:[#allocation3 + $0x1a0] sm:$0xff]
    %v161 = vld [vmem:[#allocation3 + $0x1a8] sm:$0xff]
    %v162 = vld [vmem:[#allocation3 + $0x1b0] sm:$0xff]
    %v163 = vld [vmem:[#allocation3 + $0x1b8] sm:$0x3]
    %v164 = vld [vmem:[#allocation3 + $0x1c0] sm:$0xff]
    %v165 = vld [vmem:[#allocation3 + $0x1c8] sm:$0xff]
    %v166 = vld [vmem:[#allocation3 + $0x1d0] sm:$0xff]
    %v167 = vld [vmem:[#allocation3 + $0x1d8] sm:$0x3]
    %v168 = vld [vmem:[#allocation3 + $0x1e0] sm:$0xff]
    %v169 = vld [vmem:[#allocation3 + $0x1e8] sm:$0xff]
    %v170 = vld [vmem:[#allocation3 + $0x1f0] sm:$0xff]
    %v171 = vld [vmem:[#allocation3 + $0x1f8] sm:$0x3]
    %v172 = vld [vmem:[#allocation3 + $0x200] sm:$0xff]
    %v173 = vld [vmem:[#allocation3 + $0x208] sm:$0xff]
    %v174 = vld [vmem:[#allocation3 + $0x210] sm:$0xff]
    %v175 = vld [vmem:[#allocation3 + $0x218] sm:$0x3]
    %v176 = vld [vmem:[#allocation3 + $0x220] sm:$0xff]
    %v177 = vld [vmem:[#allocation3 + $0x228] sm:$0xff]
    %v178 = vld [vmem:[#allocation3 + $0x230] sm:$0xff]
    %v179 = vld [vmem:[#allocation3 + $0x238] sm:$0x3]
    %v180 = vld [vmem:[#allocation3 + $0x240] sm:$0xff]
    %v181 = vld [vmem:[#allocation3 + $0x248] sm:$0xff]
    %v182 = vld [vmem:[#allocation3 + $0x250] sm:$0xff]
    %v183 = vld [vmem:[#allocation3 + $0x258] sm:$0x3]
    %v184 = vld [vmem:[#allocation3 + $0x260] sm:$0xff]
    %v185 = vld [vmem:[#allocation3 + $0x268] sm:$0xff]
    %v186 = vld [vmem:[#allocation3 + $0x270] sm:$0xff]
    %v187 = vld [vmem:[#allocation3 + $0x278] sm:$0x3]
    %v188 = vld [vmem:[#allocation3 + $0x280] sm:$0xff]
    %v189 = vld [vmem:[#allocation3 + $0x288] sm:$0xff]
    %v190 = vld [vmem:[#allocation3 + $0x290] sm:$0xff]
    %v191 = vld [vmem:[#allocation3 + $0x298] sm:$0x3]
    %v192 = vld [vmem:[#allocation3 + $0x2a0] sm:$0xff]
    %v193 = vld [vmem:[#allocation3 + $0x2a8] sm:$0xff]
    %v194 = vld [vmem:[#allocation3 + $0x2b0] sm:$0xff]
    %v195 = vld [vmem:[#allocation3 + $0x2b8] sm:$0x3]
    %v196 = vld [vmem:[#allocation3 + $0x2c0] sm:$0xff]
    %v197 = vld [vmem:[#allocation3 + $0x2c8] sm:$0xff]
    %v198 = vld [vmem:[#allocation3 + $0x2d0] sm:$0xff]
    %v199 = vld [vmem:[#allocation3 + $0x2d8] sm:$0x3]
    %v200 = vld [vmem:[#allocation3 + $0x2e0] sm:$0xff]
    %v201 = vld [vmem:[#allocation3 + $0x2e8] sm:$0xff]
    %v202 = vld [vmem:[#allocation3 + $0x2f0] sm:$0xff]
    %v203 = vld [vmem:[#allocation3 + $0x2f8] sm:$0x3]
    %v204 = vld [vmem:[#allocation3 + $0x300] sm:$0xff]
    %v205 = vld [vmem:[#allocation3 + $0x308] sm:$0xff]
    %v206 = vld [vmem:[#allocation3 + $0x310] sm:$0xff]
    %v207 = vld [vmem:[#allocation3 + $0x318] sm:$0x3]
    %v208 = vld [vmem:[#allocation3 + $0x320] sm:$0xff]
    %v209 = vld [vmem:[#allocation3 + $0x328] sm:$0xff]
    %v210 = vld [vmem:[#allocation3 + $0x330] sm:$0xff]
    %v211 = vld [vmem:[#allocation3 + $0x338] sm:$0x3]
    %v212 = vld [vmem:[#allocation3 + $0x1] sm:$0xff]
    %v213 = vld [vmem:[#allocation3 + $0x9] sm:$0xff]
    %v214 = vld [vmem:[#allocation3 + $0x11] sm:$0xff]
    %v215 = vld [vmem:[#allocation3 + $0x19] sm:$0x3]
    %v216 = vld [vmem:[#allocation3 + $0x21] sm:$0xff]
    %v217 = vld [vmem:[#allocation3 + $0x29] sm:$0xff]
    %v218 = vld [vmem:[#allocation3 + $0x31] sm:$0xff]
    %v219 = vld [vmem:[#allocation3 + $0x39] sm:$0x3]
    %v220 = vld [vmem:[#allocation3 + $0x41] sm:$0xff]
    %v221 = vld [vmem:[#allocation3 + $0x49] sm:$0xff]
    %v222 = vld [vmem:[#allocation3 + $0x51] sm:$0xff]
    %v223 = vld [vmem:[#allocation3 + $0x59] sm:$0x3]
    %v224 = vld [vmem:[#allocation3 + $0x61] sm:$0xff]
    %v225 = vld [vmem:[#allocation3 + $0x69] sm:$0xff]
    %v226 = vld [vmem:[#allocation3 + $0x71] sm:$0xff]
    %v227 = vld [vmem:[#allocation3 + $0x79] sm:$0x3]
    %v228 = vld [vmem:[#allocation3 + $0x81] sm:$0xff]
    %v229 = vld [vmem:[#allocation3 + $0x89] sm:$0xff]
    %v230 = vld [vmem:[#allocation3 + $0x91] sm:$0xff]
    %v231 = vld [vmem:[#allocation3 + $0x99] sm:$0x3]
    %v232 = vld [vmem:[#allocation3 + $0xa1] sm:$0xff]
    %v233 = vld [vmem:[#allocation3 + $0xa9] sm:$0xff]
    %v234 = vld [vmem:[#allocation3 + $0xb1] sm:$0xff]
    %v235 = vld [vmem:[#allocation3 + $0xb9] sm:$0x3]
    %v236 = vld [vmem:[#allocation3 + $0xc1] sm:$0xff]
    %v237 = vld [vmem:[#allocation3 + $0xc9] sm:$0xff]
    %v238 = vld [vmem:[#allocation3 + $0xd1] sm:$0xff]
    %v239 = vld [vmem:[#allocation3 + $0xd9] sm:$0x3]
    %v240 = vld [vmem:[#allocation3 + $0xe1] sm:$0xff]
    %v241 = vld [vmem:[#allocation3 + $0xe9] sm:$0xff]
    %v242 = vld [vmem:[#allocation3 + $0xf1] sm:$0xff]
    %v243 = vld [vmem:[#allocation3 + $0xf9] sm:$0x3]
    %v244 = vld [vmem:[#allocation3 + $0x101] sm:$0xff]
    %v245 = vld [vmem:[#allocation3 + $0x109] sm:$0xff]
    %v246 = vld [vmem:[#allocation3 + $0x111] sm:$0xff]
    %v247 = vld [vmem:[#allocation3 + $0x119] sm:$0x3]
    %v248 = vld [vmem:[#allocation3 + $0x121] sm:$0xff]
    %v249 = vld [vmem:[#allocation3 + $0x129] sm:$0xff]
    %v250 = vld [vmem:[#allocation3 + $0x131] sm:$0xff]
    %v251 = vld [vmem:[#allocation3 + $0x139] sm:$0x3]
    %v252 = vld [vmem:[#allocation3 + $0x141] sm:$0xff]
    %v253 = vld [vmem:[#allocation3 + $0x149] sm:$0xff]
    %v254 = vld [vmem:[#allocation3 + $0x151] sm:$0xff]
    %v255 = vld [vmem:[#allocation3 + $0x159] sm:$0x3]
    %v256 = vld [vmem:[#allocation3 + $0x161] sm:$0xff]
    %v257 = vld [vmem:[#allocation3 + $0x169] sm:$0xff]
    %v258 = vld [vmem:[#allocation3 + $0x171] sm:$0xff]
    %v259 = vld [vmem:[#allocation3 + $0x179] sm:$0x3]
    %v260 = vld [vmem:[#allocation3 + $0x181] sm:$0xff]
    %v261 = vld [vmem:[#allocation3 + $0x189] sm:$0xff]
    %v262 = vld [vmem:[#allocation3 + $0x191] sm:$0xff]
    %v263 = vld [vmem:[#allocation3 + $0x199] sm:$0x3]
    %v264 = vld [vmem:[#allocation3 + $0x1a1] sm:$0xff]
    %v265 = vld [vmem:[#allocation3 + $0x1a9] sm:$0xff]
    %v266 = vld [vmem:[#allocation3 + $0x1b1] sm:$0xff]
    %v267 = vld [vmem:[#allocation3 + $0x1b9] sm:$0x3]
    %v268 = vld [vmem:[#allocation3 + $0x1c1] sm:$0xff]
    %v269 = vld [vmem:[#allocation3 + $0x1c9] sm:$0xff]
    %v270 = vld [vmem:[#allocation3 + $0x1d1] sm:$0xff]
    %v271 = vld [vmem:[#allocation3 + $0x1d9] sm:$0x3]
    %v272 = vld [vmem:[#allocation3 + $0x1e1] sm:$0xff]
    %v273 = vld [vmem:[#allocation3 + $0x1e9] sm:$0xff]
    %v274 = vld [vmem:[#allocation3 + $0x1f1] sm:$0xff]
    %v275 = vld [vmem:[#allocation3 + $0x1f9] sm:$0x3]
    %v276 = vld [vmem:[#allocation3 + $0x201] sm:$0xff]
    %v277 = vld [vmem:[#allocation3 + $0x209] sm:$0xff]
    %v278 = vld [vmem:[#allocation3 + $0x211] sm:$0xff]
    %v279 = vld [vmem:[#allocation3 + $0x219] sm:$0x3]
    %v280 = vld [vmem:[#allocation3 + $0x221] sm:$0xff]
    %v281 = vld [vmem:[#allocation3 + $0x229] sm:$0xff]
    %v282 = vld [vmem:[#allocation3 + $0x231] sm:$0xff]
    %v283 = vld [vmem:[#allocation3 + $0x239] sm:$0x3]
    %v284 = vld [vmem:[#allocation3 + $0x241] sm:$0xff]
    %v285 = vld [vmem:[#allocation3 + $0x249] sm:$0xff]
    %v286 = vld [vmem:[#allocation3 + $0x251] sm:$0xff]
    %v287 = vld [vmem:[#allocation3 + $0x259] sm:$0x3]
    %v288 = vld [vmem:[#allocation3 + $0x261] sm:$0xff]
    %v289 = vld [vmem:[#allocation3 + $0x269] sm:$0xff]
    %v290 = vld [vmem:[#allocation3 + $0x271] sm:$0xff]
    %v291 = vld [vmem:[#allocation3 + $0x279] sm:$0x3]
    %v292 = vld [vmem:[#allocation3 + $0x281] sm:$0xff]
    %v293 = vld [vmem:[#allocation3 + $0x289] sm:$0xff]
    %v294 = vld [vmem:[#allocation3 + $0x291] sm:$0xff]
    %v295 = vld [vmem:[#allocation3 + $0x299] sm:$0x3]
    %v296 = vld [vmem:[#allocation3 + $0x2a1] sm:$0xff]
    %v297 = vld [vmem:[#allocation3 + $0x2a9] sm:$0xff]
    %v298 = vld [vmem:[#allocation3 + $0x2b1] sm:$0xff]
    %v299 = vld [vmem:[#allocation3 + $0x2b9] sm:$0x3]
    %v300 = vld [vmem:[#allocation3 + $0x2c1] sm:$0xff]
    %v301 = vld [vmem:[#allocation3 + $0x2c9] sm:$0xff]
    %v302 = vld [vmem:[#allocation3 + $0x2d1] sm:$0xff]
    %v303 = vld [vmem:[#allocation3 + $0x2d9] sm:$0x3]
    %v304 = vld [vmem:[#allocation3 + $0x2e1] sm:$0xff]
    %v305 = vld [vmem:[#allocation3 + $0x2e9] sm:$0xff]
    %v306 = vld [vmem:[#allocation3 + $0x2f1] sm:$0xff]
    %v307 = vld [vmem:[#allocation3 + $0x2f9] sm:$0x3]
    %v308 = vld [vmem:[#allocation3 + $0x301] sm:$0xff]
    %v309 = vld [vmem:[#allocation3 + $0x309] sm:$0xff]
    %v310 = vld [vmem:[#allocation3 + $0x311] sm:$0xff]
    %v311 = vld [vmem:[#allocation3 + $0x319] sm:$0x3]
    %v312 = vld [vmem:[#allocation3 + $0x321] sm:$0xff]
    %v313 = vld [vmem:[#allocation3 + $0x329] sm:$0xff]
    %v314 = vld [vmem:[#allocation3 + $0x331] sm:$0xff]
    %v315 = vld [vmem:[#allocation3 + $0x339] sm:$0x3]
    %v316 = vld [vmem:[#allocation3 + $0x2] sm:$0xff]
    %v317 = vld [vmem:[#allocation3 + $0xa] sm:$0xff]
    %v318 = vld [vmem:[#allocation3 + $0x12] sm:$0xff]
    %v319 = vld [vmem:[#allocation3 + $0x1a] sm:$0x3]
    %v320 = vld [vmem:[#allocation3 + $0x22] sm:$0xff]
    %v321 = vld [vmem:[#allocation3 + $0x2a] sm:$0xff]
    %v322 = vld [vmem:[#allocation3 + $0x32] sm:$0xff]
    %v323 = vld [vmem:[#allocation3 + $0x3a] sm:$0x3]
    %v324 = vld [vmem:[#allocation3 + $0x42] sm:$0xff]
    %v325 = vld [vmem:[#allocation3 + $0x4a] sm:$0xff]
    %v326 = vld [vmem:[#allocation3 + $0x52] sm:$0xff]
    %v327 = vld [vmem:[#allocation3 + $0x5a] sm:$0x3]
    %v328 = vld [vmem:[#allocation3 + $0x62] sm:$0xff]
    %v329 = vld [vmem:[#allocation3 + $0x6a] sm:$0xff]
    %v330 = vld [vmem:[#allocation3 + $0x72] sm:$0xff]
    %v331 = vld [vmem:[#allocation3 + $0x7a] sm:$0x3]
    %v332 = vld [vmem:[#allocation3 + $0x82] sm:$0xff]
    %v333 = vld [vmem:[#allocation3 + $0x8a] sm:$0xff]
    %v334 = vld [vmem:[#allocation3 + $0x92] sm:$0xff]
    %v335 = vld [vmem:[#allocation3 + $0x9a] sm:$0x3]
    %v336 = vld [vmem:[#allocation3 + $0xa2] sm:$0xff]
    %v337 = vld [vmem:[#allocation3 + $0xaa] sm:$0xff]
    %v338 = vld [vmem:[#allocation3 + $0xb2] sm:$0xff]
    %v339 = vld [vmem:[#allocation3 + $0xba] sm:$0x3]
    %v340 = vld [vmem:[#allocation3 + $0xc2] sm:$0xff]
    %v341 = vld [vmem:[#allocation3 + $0xca] sm:$0xff]
    %v342 = vld [vmem:[#allocation3 + $0xd2] sm:$0xff]
    %v343 = vld [vmem:[#allocation3 + $0xda] sm:$0x3]
    %v344 = vld [vmem:[#allocation3 + $0xe2] sm:$0xff]
    %v345 = vld [vmem:[#allocation3 + $0xea] sm:$0xff]
    %v346 = vld [vmem:[#allocation3 + $0xf2] sm:$0xff]
    %v347 = vld [vmem:[#allocation3 + $0xfa] sm:$0x3]
    %v348 = vld [vmem:[#allocation3 + $0x102] sm:$0xff]
    %v349 = vld [vmem:[#allocation3 + $0x10a] sm:$0xff]
    %v350 = vld [vmem:[#allocation3 + $0x112] sm:$0xff]
    %v351 = vld [vmem:[#allocation3 + $0x11a] sm:$0x3]
    %v352 = vld [vmem:[#allocation3 + $0x122] sm:$0xff]
    %v353 = vld [vmem:[#allocation3 + $0x12a] sm:$0xff]
    %v354 = vld [vmem:[#allocation3 + $0x132] sm:$0xff]
    %v355 = vld [vmem:[#allocation3 + $0x13a] sm:$0x3]
    %v356 = vld [vmem:[#allocation3 + $0x142] sm:$0xff]
    %v357 = vld [vmem:[#allocation3 + $0x14a] sm:$0xff]
    %v358 = vld [vmem:[#allocation3 + $0x152] sm:$0xff]
    %v359 = vld [vmem:[#allocation3 + $0x15a] sm:$0x3]
    %v360 = vld [vmem:[#allocation3 + $0x162] sm:$0xff]
    %v361 = vld [vmem:[#allocation3 + $0x16a] sm:$0xff]
    %v362 = vld [vmem:[#allocation3 + $0x172] sm:$0xff]
    %v363 = vld [vmem:[#allocation3 + $0x17a] sm:$0x3]
    %v364 = vld [vmem:[#allocation3 + $0x182] sm:$0xff]
    %v365 = vld [vmem:[#allocation3 + $0x18a] sm:$0xff]
    %v366 = vld [vmem:[#allocation3 + $0x192] sm:$0xff]
    %v367 = vld [vmem:[#allocation3 + $0x19a] sm:$0x3]
    %v368 = vld [vmem:[#allocation3 + $0x1a2] sm:$0xff]
    %v369 = vld [vmem:[#allocation3 + $0x1aa] sm:$0xff]
    %v370 = vld [vmem:[#allocation3 + $0x1b2] sm:$0xff]
    %v371 = vld [vmem:[#allocation3 + $0x1ba] sm:$0x3]
    %v372 = vld [vmem:[#allocation3 + $0x1c2] sm:$0xff]
    %v373 = vld [vmem:[#allocation3 + $0x1ca] sm:$0xff]
    %v374 = vld [vmem:[#allocation3 + $0x1d2] sm:$0xff]
    %v375 = vld [vmem:[#allocation3 + $0x1da] sm:$0x3]
    %v376 = vld [vmem:[#allocation3 + $0x1e2] sm:$0xff]
    %v377 = vld [vmem:[#allocation3 + $0x1ea] sm:$0xff]
    %v378 = vld [vmem:[#allocation3 + $0x1f2] sm:$0xff]
    %v379 = vld [vmem:[#allocation3 + $0x1fa] sm:$0x3]
    %v380 = vld [vmem:[#allocation3 + $0x202] sm:$0xff]
    %v381 = vld [vmem:[#allocation3 + $0x20a] sm:$0xff]
    %v382 = vld [vmem:[#allocation3 + $0x212] sm:$0xff]
    %v383 = vld [vmem:[#allocation3 + $0x21a] sm:$0x3]
    %v384 = vld [vmem:[#allocation3 + $0x222] sm:$0xff]
    %v385 = vld [vmem:[#allocation3 + $0x22a] sm:$0xff]
    %v386 = vld [vmem:[#allocation3 + $0x232] sm:$0xff]
    %v387 = vld [vmem:[#allocation3 + $0x23a] sm:$0x3]
    %v388 = vld [vmem:[#allocation3 + $0x242] sm:$0xff]
    %v389 = vld [vmem:[#allocation3 + $0x24a] sm:$0xff]
    %v390 = vld [vmem:[#allocation3 + $0x252] sm:$0xff]
    %v391 = vld [vmem:[#allocation3 + $0x25a] sm:$0x3]
    %v392 = vld [vmem:[#allocation3 + $0x262] sm:$0xff]
    %v393 = vld [vmem:[#allocation3 + $0x26a] sm:$0xff]
    %v394 = vld [vmem:[#allocation3 + $0x272] sm:$0xff]
    %v395 = vld [vmem:[#allocation3 + $0x27a] sm:$0x3]
    %v396 = vld [vmem:[#allocation3 + $0x282] sm:$0xff]
    %v397 = vld [vmem:[#allocation3 + $0x28a] sm:$0xff]
    %v398 = vld [vmem:[#allocation3 + $0x292] sm:$0xff]
    %v399 = vld [vmem:[#allocation3 + $0x29a] sm:$0x3]
    %v400 = vld [vmem:[#allocation3 + $0x2a2] sm:$0xff]
    %v401 = vld [vmem:[#allocation3 + $0x2aa] sm:$0xff]
    %v402 = vld [vmem:[#allocation3 + $0x2b2] sm:$0xff]
    %v403 = vld [vmem:[#allocation3 + $0x2ba] sm:$0x3]
    %v404 = vld [vmem:[#allocation3 + $0x2c2] sm:$0xff]
    %v405 = vld [vmem:[#allocation3 + $0x2ca] sm:$0xff]
    %v406 = vld [vmem:[#allocation3 + $0x2d2] sm:$0xff]
    %v407 = vld [vmem:[#allocation3 + $0x2da] sm:$0x3]
    %v408 = vld [vmem:[#allocation3 + $0x2e2] sm:$0xff]
    %v409 = vld [vmem:[#allocation3 + $0x2ea] sm:$0xff]
    %v410 = vld [vmem:[#allocation3 + $0x2f2] sm:$0xff]
    %v411 = vld [vmem:[#allocation3 + $0x2fa] sm:$0x3]
    %v412 = vld [vmem:[#allocation3 + $0x302] sm:$0xff]
    %v413 = vld [vmem:[#allocation3 + $0x30a] sm:$0xff]
    %v414 = vld [vmem:[#allocation3 + $0x312] sm:$0xff]
    %v415 = vld [vmem:[#allocation3 + $0x31a] sm:$0x3]
    %v416 = vld [vmem:[#allocation3 + $0x322] sm:$0xff]
    %v417 = vld [vmem:[#allocation3 + $0x32a] sm:$0xff]
    %v418 = vld [vmem:[#allocation3 + $0x332] sm:$0xff]
    %v419 = vld [vmem:[#allocation3 + $0x33a] sm:$0x3]
    %v420 = vstv %s78
    %v421 = vmul.f32 %v108, %v420
    %v422 = vmul.f32 %v109, %v420
    %v423 = vmul.f32 %v110, %v420
    %v424 = vmul.f32 %v111, %v420
    %v425 = vstv %s79
    %v426 = vmul.f32 %v212, %v425
    %v427 = vmul.f32 %v213, %v425
    %v428 = vmul.f32 %v214, %v425
    %v429 = vmul.f32 %v215, %v425
    %v430 = vadd.f32 %v421, %v426
    %v431 = vadd.f32 %v422, %v427
    %v432 = vadd.f32 %v423, %v428
    %v433 = vadd.f32 %v424, %v429
    %v434 = vstv %s80
    %v435 = vmul.f32 %v316, %v434
    %v436 = vmul.f32 %v317, %v434
    %v437 = vmul.f32 %v318, %v434
    %v438 = vmul.f32 %v319, %v434
    %v439 = vadd.f32 %v430, %v435
    %v440 = vadd.f32 %v431, %v436
    %v441 = vadd.f32 %v432, %v437
    %v442 = vadd.f32 %v433, %v438
    %v443 = vstv %s81
    %v444 = vmul.f32 %v112, %v443
    %v445 = vmul.f32 %v113, %v443
    %v446 = vmul.f32 %v114, %v443
    %v447 = vmul.f32 %v115, %v443
    %v448 = vadd.f32 %v439, %v444
    %v449 = vadd.f32 %v440, %v445
    %v450 = vadd.f32 %v441, %v446
    %v451 = vadd.f32 %v442, %v447
    %v452 = vstv %s82
    %v453 = vmul.f32 %v216, %v452
    %v454 = vmul.f32 %v217, %v452
    %v455 = vmul.f32 %v218, %v452
    %v456 = vmul.f32 %v219, %v452
    %v457 = vadd.f32 %v448, %v453
    %v458 = vadd.f32 %v449, %v454
    %v459 = vadd.f32 %v450, %v455
    %v460 = vadd.f32 %v451, %v456
    %v461 = vstv %s83
    %v462 = vmul.f32 %v320, %v461
    %v463 = vmul.f32 %v321, %v461
    %v464 = vmul.f32 %v322, %v461
    %v465 = vmul.f32 %v323, %v461
    %v466 = vadd.f32 %v457, %v462
    %v467 = vadd.f32 %v458, %v463
    %v468 = vadd.f32 %v459, %v464
    %v469 = vadd.f32 %v460, %v465
    %v470 = vstv %s84
    %v471 = vmul.f32 %v116, %v470
    %v472 = vmul.f32 %v117, %v470
    %v473 = vmul.f32 %v118, %v470
    %v474 = vmul.f32 %v119, %v470
    %v475 = vadd.f32 %v466, %v471
    %v476 = vadd.f32 %v467, %v472
    %v477 = vadd.f32 %v468, %v473
    %v478 = vadd.f32 %v469, %v474
    %v479 = vstv %s85
    %v480 = vmul.f32 %v220, %v479
    %v481 = vmul.f32 %v221, %v479
    %v482 = vmul.f32 %v222, %v479
    %v483 = vmul.f32 %v223, %v479
    %v484 = vadd.f32 %v475, %v480
    %v485 = vadd.f32 %v476, %v481
    %v486 = vadd.f32 %v477, %v482
    %v487 = vadd.f32 %v478, %v483
    %v488 = vstv %s86
    %v489 = vmul.f32 %v324, %v488
    %v490 = vmul.f32 %v325, %v488
    %v491 = vmul.f32 %v326, %v488
    %v492 = vmul.f32 %v327, %v488
    %v493 = vadd.f32 %v484, %v489
    %v494 = vadd.f32 %v485, %v490
    %v495 = vadd.f32 %v486, %v491
    %v496 = vadd.f32 %v487, %v492
    %v497 = vmul.f32 %v112, %v420
    %v498 = vmul.f32 %v113, %v420
    %v499 = vmul.f32 %v114, %v420
    %v500 = vmul.f32 %v115, %v420
    %v501 = vmul.f32 %v216, %v425
    %v502 = vmul.f32 %v217, %v425
    %v503 = vmul.f32 %v218, %v425
    %v504 = vmul.f32 %v219, %v425
    %v505 = vadd.f32 %v497, %v501
    %v506 = vadd.f32 %v498, %v502
    %v507 = vadd.f32 %v499, %v503
    %v508 = vadd.f32 %v500, %v504
    %v509 = vmul.f32 %v320, %v434
    %v510 = vmul.f32 %v321, %v434
    %v511 = vmul.f32 %v322, %v434
    %v512 = vmul.f32 %v323, %v434
    %v513 = vadd.f32 %v505, %v509
    %v514 = vadd.f32 %v506, %v510
    %v515 = vadd.f32 %v507, %v511
    %v516 = vadd.f32 %v508, %v512
    %v517 = vmul.f32 %v116, %v443
    %v518 = vmul.f32 %v117, %v443
    %v519 = vmul.f32 %v118, %v443
    %v520 = vmul.f32 %v119, %v443
    %v521 = vadd.f32 %v513, %v517
    %v522 = vadd.f32 %v514, %v518
    %v523 = vadd.f32 %v515, %v519
    %v524 = vadd.f32 %v516, %v520
    %v525 = vmul.f32 %v220, %v452
    %v526 = vmul.f32 %v221, %v452
    %v527 = vmul.f32 %v222, %v452
    %v528 = vmul.f32 %v223, %v452
    %v529 = vadd.f32 %v521, %v525
    %v530 = vadd.f32 %v522, %v526
    %v531 = vadd.f32 %v523, %v527
    %v532 = vadd.f32 %v524, %v528
    %v533 = vmul.f32 %v324, %v461
    %v534 = vmul.f32 %v325, %v461
    %v535 = vmul.f32 %v326, %v461
    %v536 = vmul.f32 %v327, %v461
    %v537 = vadd.f32 %v529, %v533
    %v538 = vadd.f32 %v530, %v534
    %v539 = vadd.f32 %v531, %v535
    %v540 = vadd.f32 %v532, %v536
    %v541 = vmul.f32 %v120, %v470
    %v542 = vmul.f32 %v121, %v470
    %v543 = vmul.f32 %v122, %v470
    %v544 = vmul.f32 %v123, %v470
    %v545 = vadd.f32 %v537, %v541
    %v546 = vadd.f32 %v538, %v542
    %v547 = vadd.f32 %v539, %v543
    %v548 = vadd.f32 %v540, %v544
    %v549 = vmul.f32 %v224, %v479
    %v550 = vmul.f32 %v225, %v479
    %v551 = vmul.f32 %v226, %v479
    %v552 = vmul.f32 %v227, %v479
    %v553 = vadd.f32 %v545, %v549
    %v554 = vadd.f32 %v546, %v550
    %v555 = vadd.f32 %v547, %v551
    %v556 = vadd.f32 %v548, %v552
    %v557 = vmul.f32 %v328, %v488
    %v558 = vmul.f32 %v329, %v488
    %v559 = vmul.f32 %v330, %v488
    %v560 = vmul.f32 %v331, %v488
    %v561 = vadd.f32 %v553, %v557
    %v562 = vadd.f32 %v554, %v558
    %v563 = vadd.f32 %v555, %v559
    %v564 = vadd.f32 %v556, %v560
    %v565 = vmax.f32 %v493, %v561
    %v566 = vmax.f32 %v494, %v562
    %v567 = vmax.f32 %v495, %v563
    %v568 = vmax.f32 %v496, %v564
    %v569 = vmul.f32 %v116, %v420
    %v570 = vmul.f32 %v117, %v420
    %v571 = vmul.f32 %v118, %v420
    %v572 = vmul.f32 %v119, %v420
    %v573 = vmul.f32 %v220, %v425
    %v574 = vmul.f32 %v221, %v425
    %v575 = vmul.f32 %v222, %v425
    %v576 = vmul.f32 %v223, %v425
    %v577 = vadd.f32 %v569, %v573
    %v578 = vadd.f32 %v570, %v574
    %v579 = vadd.f32 %v571, %v575
    %v580 = vadd.f32 %v572, %v576
    %v581 = vmul.f32 %v324, %v434
    %v582 = vmul.f32 %v325, %v434
    %v583 = vmul.f32 %v326, %v434
    %v584 = vmul.f32 %v327, %v434
    %v585 = vadd.f32 %v577, %v581
    %v586 = vadd.f32 %v578, %v582
    %v587 = vadd.f32 %v579, %v583
    %v588 = vadd.f32 %v580, %v584
    %v589 = vmul.f32 %v120, %v443
    %v590 = vmul.f32 %v121, %v443
    %v591 = vmul.f32 %v122, %v443
    %v592 = vmul.f32 %v123, %v443
    %v593 = vadd.f32 %v585, %v589
    %v594 = vadd.f32 %v586, %v590
    %v595 = vadd.f32 %v587, %v591
    %v596 = vadd.f32 %v588, %v592
    %v597 = vmul.f32 %v224, %v452
    %v598 = vmul.f32 %v225, %v452
    %v599 = vmul.f32 %v226, %v452
    %v600 = vmul.f32 %v227, %v452
    %v601 = vadd.f32 %v593, %v597
    %v602 = vadd.f32 %v594, %v598
    %v603 = vadd.f32 %v595, %v599
    %v604 = vadd.f32 %v596, %v600
    %v605 = vmul.f32 %v328, %v461
    %v606 = vmul.f32 %v329, %v461
    %v607 = vmul.f32 %v330, %v461
    %v608 = vmul.f32 %v331, %v461
    %v609 = vadd.f32 %v601, %v605
    %v610 = vadd.f32 %v602, %v606
    %v611 = vadd.f32 %v603, %v607
    %v612 = vadd.f32 %v604, %v608
    %v613 = vmul.f32 %v124, %v470
    %v614 = vmul.f32 %v125, %v470
    %v615 = vmul.f32 %v126, %v470
    %v616 = vmul.f32 %v127, %v470
    %v617 = vadd.f32 %v609, %v613
    %v618 = vadd.f32 %v610, %v614
    %v619 = vadd.f32 %v611, %v615
    %v620 = vadd.f32 %v612, %v616
    %v621 = vmul.f32 %v228, %v479
    %v622 = vmul.f32 %v229, %v479
    %v623 = vmul.f32 %v230, %v479
    %v624 = vmul.f32 %v231, %v479
    %v625 = vadd.f32 %v617, %v621
    %v626 = vadd.f32 %v618, %v622
    %v627 = vadd.f32 %v619, %v623
    %v628 = vadd.f32 %v620, %v624
    %v629 = vmul.f32 %v332, %v488
    %v630 = vmul.f32 %v333, %v488
    %v631 = vmul.f32 %v334, %v488
    %v632 = vmul.f32 %v335, %v488
    %v633 = vadd.f32 %v625, %v629
    %v634 = vadd.f32 %v626, %v630
    %v635 = vadd.f32 %v627, %v631
    %v636 = vadd.f32 %v628, %v632
    %v637 = vmax.f32 %v565, %v633
    %v638 = vmax.f32 %v566, %v634
    %v639 = vmax.f32 %v567, %v635
    %v640 = vmax.f32 %v568, %v636
    %vm645 = vcmask 1046528
    %v646 = vrot.slane %v637, 1
    %v647 = vrot.slane %v638, 1
    %v648 = vsel %vm645, %v646, %v647
    %v649 = vrot.slane %v639, 1
    %v650 = vsel %vm645, %v647, %v649
    %v651 = vrot.slane %v640, 1
    %v652 = vsel %vm645, %v649, %v651
    %v656 = vmax.f32 %v637, %v648
    %v657 = vmax.f32 %v638, %v650
    %v658 = vmax.f32 %v639, %v652
    %vm659 = vcmask 1045504
    %v660 = vrot.slane %v637, 2
    %v661 = vrot.slane %v638, 2
    %v662 = vsel %vm659, %v660, %v661
    %v663 = vrot.slane %v639, 2
    %v664 = vsel %vm659, %v661, %v663
    %v665 = vrot.slane %v640, 2
    %v666 = vsel %vm659, %v663, %v665
    %v670 = vmax.f32 %v656, %v662
    %v671 = vmax.f32 %v657, %v664
    %v672 = vmax.f32 %v658, %v666
    %v673 = vstv %s105
    %v674 = vadd.f32 %v670, %v673
    %v675 = vadd.f32 %v671, %v673
    %v676 = vadd.f32 %v672, %v673
    %v677 = vmax.f32 %v674, 0.0
    %v678 = vmax.f32 %v675, 0.0
    %v679 = vmax.f32 %v676, 0.0
    %680 = vst [vmem:[#allocation2] sm:$0xff] %v677
    %681 = vst [vmem:[#allocation2 + $0x8] sm:$0xff] %v678
    %682 = vst [vmem:[#allocation2 + $0x10] sm:$0xff] %v679
    %v683 = vstv %s87
    %v684 = vmul.f32 %v108, %v683
    %v685 = vmul.f32 %v109, %v683
    %v686 = vmul.f32 %v110, %v683
    %v687 = vmul.f32 %v111, %v683
    %v688 = vstv %s88
    %v689 = vmul.f32 %v212, %v688
    %v690 = vmul.f32 %v213, %v688
    %v691 = vmul.f32 %v214, %v688
    %v692 = vmul.f32 %v215, %v688
    %v693 = vadd.f32 %v684, %v689
    %v694 = vadd.f32 %v685, %v690
    %v695 = vadd.f32 %v686, %v691
    %v696 = vadd.f32 %v687, %v692
    %v697 = vstv %s89
    %v698 = vmul.f32 %v316, %v697
    %v699 = vmul.f32 %v317, %v697
    %v700 = vmul.f32 %v318, %v697
    %v701 = vmul.f32 %v319, %v697
    %v702 = vadd.f32 %v693, %v698
    %v703 = vadd.f32 %v694, %v699
    %v704 = vadd.f32 %v695, %v700
    %v705 = vadd.f32 %v696, %v701
    %v706 = vstv %s90
    %v707 = vmul.f32 %v112, %v706
    %v708 = vmul.f32 %v113, %v706
    %v709 = vmul.f32 %v114, %v706
    %v710 = vmul.f32 %v115, %v706
    %v711 = vadd.f32 %v702, %v707
    %v712 = vadd.f32 %v703, %v708
    %v713 = vadd.f32 %v704, %v709
    %v714 = vadd.f32 %v705, %v710
    %v715 = vstv %s91
    %v716 = vmul.f32 %v216, %v715
    %v717 = vmul.f32 %v217, %v715
    %v718 = vmul.f32 %v218, %v715
    %v719 = vmul.f32 %v219, %v715
    %v720 = vadd.f32 %v711, %v716
    %v721 = vadd.f32 %v712, %v717
    %v722 = vadd.f32 %v713, %v718
    %v723 = vadd.f32 %v714, %v719
    %v724 = vstv %s92
    %v725 = vmul.f32 %v320, %v724
    %v726 = vmul.f32 %v321, %v724
    %v727 = vmul.f32 %v322, %v724
    %v728 = vmul.f32 %v323, %v724
    %v729 = vadd.f32 %v720, %v725
    %v730 = vadd.f32 %v721, %v726
    %v731 = vadd.f32 %v722, %v727
    %v732 = vadd.f32 %v723, %v728
    %v733 = vstv %s93
    %v734 = vmul.f32 %v116, %v733
    %v735 = vmul.f32 %v117, %v733
    %v736 = vmul.f32 %v118, %v733
    %v737 = vmul.f32 %v119, %v733
    %v738 = vadd.f32 %v729, %v734
    %v739 = vadd.f32 %v730, %v735
    %v740 = vadd.f32 %v731, %v736
    %v741 = vadd.f32 %v732, %v737
    %v742 = vstv %s94
    %v743 = vmul.f32 %v220, %v742
    %v744 = vmul.f32 %v221, %v742
    %v745 = vmul.f32 %v222, %v742
    %v746 = vmul.f32 %v223, %v742
    %v747 = vadd.f32 %v738, %v743
    %v748 = vadd.f32 %v739, %v744
    %v749 = vadd.f32 %v740, %v745
    %v750 = vadd.f32 %v741, %v746
    %v751 = vstv %s95
    %v752 = vmul.f32 %v324, %v751
    %v753 = vmul.f32 %v325, %v751
    %v754 = vmul.f32 %v326, %v751
    %v755 = vmul.f32 %v327, %v751
    %v756 = vadd.f32 %v747, %v752
    %v757 = vadd.f32 %v748, %v753
    %v758 = vadd.f32 %v749, %v754
    %v759 = vadd.f32 %v750, %v755
    %v760 = vmul.f32 %v112, %v683
    %v761 = vmul.f32 %v113, %v683
    %v762 = vmul.f32 %v114, %v683
    %v763 = vmul.f32 %v115, %v683
    %v764 = vmul.f32 %v216, %v688
    %v765 = vmul.f32 %v217, %v688
    %v766 = vmul.f32 %v218, %v688
    %v767 = vmul.f32 %v219, %v688
    %v768 = vadd.f32 %v760, %v764
    %v769 = vadd.f32 %v761, %v765
    %v770 = vadd.f32 %v762, %v766
    %v771 = vadd.f32 %v763, %v767
    %v772 = vmul.f32 %v320, %v697
    %v773 = vmul.f32 %v321, %v697
    %v774 = vmul.f32 %v322, %v697
    %v775 = vmul.f32 %v323, %v697
    %v776 = vadd.f32 %v768, %v772
    %v777 = vadd.f32 %v769, %v773
    %v778 = vadd.f32 %v770, %v774
    %v779 = vadd.f32 %v771, %v775
    %v780 = vmul.f32 %v116, %v706
    %v781 = vmul.f32 %v117, %v706
    %v782 = vmul.f32 %v118, %v706
    %v783 = vmul.f32 %v119, %v706
    %v784 = vadd.f32 %v776, %v780
    %v785 = vadd.f32 %v777, %v781
    %v786 = vadd.f32 %v778, %v782
    %v787 = vadd.f32 %v779, %v783
    %v788 = vmul.f32 %v220, %v715
    %v789 = vmul.f32 %v221, %v715
    %v790 = vmul.f32 %v222, %v715
    %v791 = vmul.f32 %v223, %v715
    %v792 = vadd.f32 %v784, %v788
    %v793 = vadd.f32 %v785, %v789
    %v794 = vadd.f32 %v786, %v790
    %v795 = vadd.f32 %v787, %v791
    %v796 = vmul.f32 %v324, %v724
    %v797 = vmul.f32 %v325, %v724
    %v798 = vmul.f32 %v326, %v724
    %v799 = vmul.f32 %v327, %v724
    %v800 = vadd.f32 %v792, %v796
    %v801 = vadd.f32 %v793, %v797
    %v802 = vadd.f32 %v794, %v798
    %v803 = vadd.f32 %v795, %v799
    %v804 = vmul.f32 %v120, %v733
    %v805 = vmul.f32 %v121, %v733
    %v806 = vmul.f32 %v122, %v733
    %v807 = vmul.f32 %v123, %v733
    %v808 = vadd.f32 %v800, %v804
    %v809 = vadd.f32 %v801, %v805
    %v810 = vadd.f32 %v802, %v806
    %v811 = vadd.f32 %v803, %v807
    %v812 = vmul.f32 %v224, %v742
    %v813 = vmul.f32 %v225, %v742
    %v814 = vmul.f32 %v226, %v742
    %v815 = vmul.f32 %v227, %v742
    %v816 = vadd.f32 %v808, %v812
    %v817 = vadd.f32 %v809, %v813
    %v818 = vadd.f32 %v810, %v814
    %v819 = vadd.f32 %v811, %v815
    %v820 = vmul.f32 %v328, %v751
    %v821 = vmul.f32 %v329, %v751
    %v822 = vmul.f32 %v330, %v751
    %v823 = vmul.f32 %v331, %v751
    %v824 = vadd.f32 %v816, %v820
    %v825 = vadd.f32 %v817, %v821
    %v826 = vadd.f32 %v818, %v822
    %v827 = vadd.f32 %v819, %v823
    %v828 = vmax.f32 %v756, %v824
    %v829 = vmax.f32 %v757, %v825
    %v830 = vmax.f32 %v758, %v826
    %v831 = vmax.f32 %v759, %v827
    %v832 = vmul.f32 %v116, %v683
    %v833 = vmul.f32 %v117, %v683
    %v834 = vmul.f32 %v118, %v683
    %v835 = vmul.f32 %v119, %v683
    %v836 = vmul.f32 %v220, %v688
    %v837 = vmul.f32 %v221, %v688
    %v838 = vmul.f32 %v222, %v688
    %v839 = vmul.f32 %v223, %v688
    %v840 = vadd.f32 %v832, %v836
    %v841 = vadd.f32 %v833, %v837
    %v842 = vadd.f32 %v834, %v838
    %v843 = vadd.f32 %v835, %v839
    %v844 = vmul.f32 %v324, %v697
    %v845 = vmul.f32 %v325, %v697
    %v846 = vmul.f32 %v326, %v697
    %v847 = vmul.f32 %v327, %v697
    %v848 = vadd.f32 %v840, %v844
    %v849 = vadd.f32 %v841, %v845
    %v850 = vadd.f32 %v842, %v846
    %v851 = vadd.f32 %v843, %v847
    %v852 = vmul.f32 %v120, %v706
    %v853 = vmul.f32 %v121, %v706
    %v854 = vmul.f32 %v122, %v706
    %v855 = vmul.f32 %v123, %v706
    %v856 = vadd.f32 %v848, %v852
    %v857 = vadd.f32 %v849, %v853
    %v858 = vadd.f32 %v850, %v854
    %v859 = vadd.f32 %v851, %v855
    %v860 = vmul.f32 %v224, %v715
    %v861 = vmul.f32 %v225, %v715
    %v862 = vmul.f32 %v226, %v715
    %v863 = vmul.f32 %v227, %v715
    %v864 = vadd.f32 %v856, %v860
    %v865 = vadd.f32 %v857, %v861
    %v866 = vadd.f32 %v858, %v862
    %v867 = vadd.f32 %v859, %v863
    %v868 = vmul.f32 %v328, %v724
    %v869 = vmul.f32 %v329, %v724
    %v870 = vmul.f32 %v330, %v724
    %v871 = vmul.f32 %v331, %v724
    %v872 = vadd.f32 %v864, %v868
    %v873 = vadd.f32 %v865, %v869
    %v874 = vadd.f32 %v866, %v870
    %v875 = vadd.f32 %v867, %v871
    %v876 = vmul.f32 %v124, %v733
    %v877 = vmul.f32 %v125, %v733
    %v878 = vmul.f32 %v126, %v733
    %v879 = vmul.f32 %v127, %v733
    %v880 = vadd.f32 %v872, %v876
    %v881 = vadd.f32 %v873, %v877
    %v882 = vadd.f32 %v874, %v878
    %v883 = vadd.f32 %v875, %v879
    %v884 = vmul.f32 %v228, %v742
    %v885 = vmul.f32 %v229, %v742
    %v886 = vmul.f32 %v230, %v742
    %v887 = vmul.f32 %v231, %v742
    %v888 = vadd.f32 %v880, %v884
    %v889 = vadd.f32 %v881, %v885
    %v890 = vadd.f32 %v882, %v886
    %v891 = vadd.f32 %v883, %v887
    %v892 = vmul.f32 %v332, %v751
    %v893 = vmul.f32 %v333, %v751
    %v894 = vmul.f32 %v334, %v751
    %v895 = vmul.f32 %v335, %v751
    %v896 = vadd.f32 %v888, %v892
    %v897 = vadd.f32 %v889, %v893
    %v898 = vadd.f32 %v890, %v894
    %v899 = vadd.f32 %v891, %v895
    %v900 = vmax.f32 %v828, %v896
    %v901 = vmax.f32 %v829, %v897
    %v902 = vmax.f32 %v830, %v898
    %v903 = vmax.f32 %v831, %v899
    %v908 = vrot.slane %v900, 1
    %v909 = vrot.slane %v901, 1
    %v910 = vsel %vm645, %v908, %v909
    %v911 = vrot.slane %v902, 1
    %v912 = vsel %vm645, %v909, %v911
    %v913 = vrot.slane %v903, 1
    %v914 = vsel %vm645, %v911, %v913
    %v918 = vmax.f32 %v900, %v910
    %v919 = vmax.f32 %v901, %v912
    %v920 = vmax.f32 %v902, %v914
    %v921 = vrot.slane %v900, 2
    %v922 = vrot.slane %v901, 2
    %v923 = vsel %vm659, %v921, %v922
    %v924 = vrot.slane %v902, 2
    %v925 = vsel %vm659, %v922, %v924
    %v926 = vrot.slane %v903, 2
    %v927 = vsel %vm659, %v924, %v926
    %v931 = vmax.f32 %v918, %v923
    %v932 = vmax.f32 %v919, %v925
    %v933 = vmax.f32 %v920, %v927
    %v934 = vstv %s106
    %v935 = vadd.f32 %v931, %v934
    %v936 = vadd.f32 %v932, %v934
    %v937 = vadd.f32 %v933, %v934
    %v938 = vmax.f32 %v935, 0.0
    %v939 = vmax.f32 %v936, 0.0
    %v940 = vmax.f32 %v937, 0.0
    %941 = vst [vmem:[#allocation2 + $0xc0] sm:$0xff] %v938
    %942 = vst [vmem:[#allocation2 + $0xc8] sm:$0xff] %v939
    %943 = vst [vmem:[#allocation2 + $0xd0] sm:$0xff] %v940
    %v944 = vstv %s96
    %v945 = vmul.f32 %v108, %v944
    %v946 = vmul.f32 %v109, %v944
    %v947 = vmul.f32 %v110, %v944
    %v948 = vmul.f32 %v111, %v944
    %v949 = vstv %s97
    %v950 = vmul.f32 %v212, %v949
    %v951 = vmul.f32 %v213, %v949
    %v952 = vmul.f32 %v214, %v949
    %v953 = vmul.f32 %v215, %v949
    %v954 = vadd.f32 %v945, %v950
    %v955 = vadd.f32 %v946, %v951
    %v956 = vadd.f32 %v947, %v952
    %v957 = vadd.f32 %v948, %v953
    %v958 = vstv %s98
    %v959 = vmul.f32 %v316, %v958
    %v960 = vmul.f32 %v317, %v958
    %v961 = vmul.f32 %v318, %v958
    %v962 = vmul.f32 %v319, %v958
    %v963 = vadd.f32 %v954, %v959
    %v964 = vadd.f32 %v955, %v960
    %v965 = vadd.f32 %v956, %v961
    %v966 = vadd.f32 %v957, %v962
    %v967 = vstv %s99
    %v968 = vmul.f32 %v112, %v967
    %v969 = vmul.f32 %v113, %v967
    %v970 = vmul.f32 %v114, %v967
    %v971 = vmul.f32 %v115, %v967
    %v972 = vadd.f32 %v963, %v968
    %v973 = vadd.f32 %v964, %v969
    %v974 = vadd.f32 %v965, %v970
    %v975 = vadd.f32 %v966, %v971
    %v976 = vstv %s100
    %v977 = vmul.f32 %v216, %v976
    %v978 = vmul.f32 %v217, %v976
    %v979 = vmul.f32 %v218, %v976
    %v980 = vmul.f32 %v219, %v976
    %v981 = vadd.f32 %v972, %v977
    %v982 = vadd.f32 %v973, %v978
    %v983 = vadd.f32 %v974, %v979
    %v984 = vadd.f32 %v975, %v980
    %v985 = vstv %s101
    %v986 = vmul.f32 %v320, %v985
    %v987 = vmul.f32 %v321, %v985
    %v988 = vmul.f32 %v322, %v985
    %v989 = vmul.f32 %v323, %v985
    %v990 = vadd.f32 %v981, %v986
    %v991 = vadd.f32 %v982, %v987
    %v992 = vadd.f32 %v983, %v988
    %v993 = vadd.f32 %v984, %v989
    %v994 = vstv %s102
    %v995 = vmul.f32 %v116, %v994
    %v996 = vmul.f32 %v117, %v994
    %v997 = vmul.f32 %v118, %v994
    %v998 = vmul.f32 %v119, %v994
    %v999 = vadd.f32 %v990, %v995
    %v1000 = vadd.f32 %v991, %v996
    %v1001 = vadd.f32 %v992, %v997
    %v1002 = vadd.f32 %v993, %v998
    %v1003 = vstv %s103
    %v1004 = vmul.f32 %v220, %v1003
    %v1005 = vmul.f32 %v221, %v1003
    %v1006 = vmul.f32 %v222, %v1003
    %v1007 = vmul.f32 %v223, %v1003
    %v1008 = vadd.f32 %v999, %v1004
    %v1009 = vadd.f32 %v1000, %v1005
    %v1010 = vadd.f32 %v1001, %v1006
    %v1011 = vadd.f32 %v1002, %v1007
    %v1012 = vstv %s104
    %v1013 = vmul.f32 %v324, %v1012
    %v1014 = vmul.f32 %v325, %v1012
    %v1015 = vmul.f32 %v326, %v1012
    %v1016 = vmul.f32 %v327, %v1012
    %v1017 = vadd.f32 %v1008, %v1013
    %v1018 = vadd.f32 %v1009, %v1014
    %v1019 = vadd.f32 %v1010, %v1015
    %v1020 = vadd.f32 %v1011, %v1016
    %v1021 = vmul.f32 %v112, %v944
    %v1022 = vmul.f32 %v113, %v944
    %v1023 = vmul.f32 %v114, %v944
    %v1024 = vmul.f32 %v115, %v944
    %v1025 = vmul.f32 %v216, %v949
    %v1026 = vmul.f32 %v217, %v949
    %v1027 = vmul.f32 %v218, %v949
    %v1028 = vmul.f32 %v219, %v949
    %v1029 = vadd.f32 %v1021, %v1025
    %v1030 = vadd.f32 %v1022, %v1026
    %v1031 = vadd.f32 %v1023, %v1027
    %v1032 = vadd.f32 %v1024, %v1028
    %v1033 = vmul.f32 %v320, %v958
    %v1034 = vmul.f32 %v321, %v958
    %v1035 = vmul.f32 %v322, %v958
    %v1036 = vmul.f32 %v323, %v958
    %v1037 = vadd.f32 %v1029, %v1033
    %v1038 = vadd.f32 %v1030, %v1034
    %v1039 = vadd.f32 %v1031, %v1035
    %v1040 = vadd.f32 %v1032, %v1036
    %v1041 = vmul.f32 %v116, %v967
    %v1042 = vmul.f32 %v117, %v967
    %v1043 = vmul.f32 %v118, %v967
    %v1044 = vmul.f32 %v119, %v967
    %v1045 = vadd.f32 %v1037, %v1041
    %v1046 = vadd.f32 %v1038, %v1042
    %v1047 = vadd.f32 %v1039, %v1043
    %v1048 = vadd.f32 %v1040, %v1044
    %v1049 = vmul.f32 %v220, %v976
    %v1050 = vmul.f32 %v221, %v976
    %v1051 = vmul.f32 %v222, %v976
    %v1052 = vmul.f32 %v223, %v976
    %v1053 = vadd.f32 %v1045, %v1049
    %v1054 = vadd.f32 %v1046, %v1050
    %v1055 = vadd.f32 %v1047, %v1051
    %v1056 = vadd.f32 %v1048, %v1052
    %v1057 = vmul.f32 %v324, %v985
    %v1058 = vmul.f32 %v325, %v985
    %v1059 = vmul.f32 %v326, %v985
    %v1060 = vmul.f32 %v327, %v985
    %v1061 = vadd.f32 %v1053, %v1057
    %v1062 = vadd.f32 %v1054, %v1058
    %v1063 = vadd.f32 %v1055, %v1059
    %v1064 = vadd.f32 %v1056, %v1060
    %v1065 = vmul.f32 %v120, %v994
    %v1066 = vmul.f32 %v121, %v994
    %v1067 = vmul.f32 %v122, %v994
    %v1068 = vmul.f32 %v123, %v994
    %v1069 = vadd.f32 %v1061, %v1065
    %v1070 = vadd.f32 %v1062, %v1066
    %v1071 = vadd.f32 %v1063, %v1067
    %v1072 = vadd.f32 %v1064, %v1068
    %v1073 = vmul.f32 %v224, %v1003
    %v1074 = vmul.f32 %v225, %v1003
    %v1075 = vmul.f32 %v226, %v1003
    %v1076 = vmul.f32 %v227, %v1003
    %v1077 = vadd.f32 %v1069, %v1073
    %v1078 = vadd.f32 %v1070, %v1074
    %v1079 = vadd.f32 %v1071, %v1075
    %v1080 = vadd.f32 %v1072, %v1076
    %v1081 = vmul.f32 %v328, %v1012
    %v1082 = vmul.f32 %v329, %v1012
    %v1083 = vmul.f32 %v330, %v1012
    %v1084 = vmul.f32 %v331, %v1012
    %v1085 = vadd.f32 %v1077, %v1081
    %v1086 = vadd.f32 %v1078, %v1082
    %v1087 = vadd.f32 %v1079, %v1083
    %v1088 = vadd.f32 %v1080, %v1084
    %v1089 = vmax.f32 %v1017, %v1085
    %v1090 = vmax.f32 %v1018, %v1086
    %v1091 = vmax.f32 %v1019, %v1087
    %v1092 = vmax.f32 %v1020, %v1088
    %v1093 = vmul.f32 %v116, %v944
    %v1094 = vmul.f32 %v117, %v944
    %v1095 = vmul.f32 %v118, %v944
    %v1096 = vmul.f32 %v119, %v944
    %v1097 = vmul.f32 %v220, %v949
    %v1098 = vmul.f32 %v221, %v949
    %v1099 = vmul.f32 %v222, %v949
    %v1100 = vmul.f32 %v223, %v949
    %v1101 = vadd.f32 %v1093, %v1097
    %v1102 = vadd.f32 %v1094, %v1098
    %v1103 = vadd.f32 %v1095, %v1099
    %v1104 = vadd.f32 %v1096, %v1100
    %v1105 = vmul.f32 %v324, %v958
    %v1106 = vmul.f32 %v325, %v958
    %v1107 = vmul.f32 %v326, %v958
    %v1108 = vmul.f32 %v327, %v958
    %v1109 = vadd.f32 %v1101, %v1105
    %v1110 = vadd.f32 %v1102, %v1106
    %v1111 = vadd.f32 %v1103, %v1107
    %v1112 = vadd.f32 %v1104, %v1108
    %v1113 = vmul.f32 %v120, %v967
    %v1114 = vmul.f32 %v121, %v967
    %v1115 = vmul.f32 %v122, %v967
    %v1116 = vmul.f32 %v123, %v967
    %v1117 = vadd.f32 %v1109, %v1113
    %v1118 = vadd.f32 %v1110, %v1114
    %v1119 = vadd.f32 %v1111, %v1115
    %v1120 = vadd.f32 %v1112, %v1116
    %v1121 = vmul.f32 %v224, %v976
    %v1122 = vmul.f32 %v225, %v976
    %v1123 = vmul.f32 %v226, %v976
    %v1124 = vmul.f32 %v227, %v976
    %v1125 = vadd.f32 %v1117, %v1121
    %v1126 = vadd.f32 %v1118, %v1122
    %v1127 = vadd.f32 %v1119, %v1123
    %v1128 = vadd.f32 %v1120, %v1124
    %v1129 = vmul.f32 %v328, %v985
    %v1130 = vmul.f32 %v329, %v985
    %v1131 = vmul.f32 %v330, %v985
    %v1132 = vmul.f32 %v331, %v985
    %v1133 = vadd.f32 %v1125, %v1129
    %v1134 = vadd.f32 %v1126, %v1130
    %v1135 = vadd.f32 %v1127, %v1131
    %v1136 = vadd.f32 %v1128, %v1132
    %v1137 = vmul.f32 %v124, %v994
    %v1138 = vmul.f32 %v125, %v994
    %v1139 = vmul.f32 %v126, %v994
    %v1140 = vmul.f32 %v127, %v994
    %v1141 = vadd.f32 %v1133, %v1137
    %v1142 = vadd.f32 %v1134, %v1138
    %v1143 = vadd.f32 %v1135, %v1139
    %v1144 = vadd.f32 %v1136, %v1140
    %v1145 = vmul.f32 %v228, %v1003
    %v1146 = vmul.f32 %v229, %v1003
    %v1147 = vmul.f32 %v230, %v1003
    %v1148 = vmul.f32 %v231, %v1003
    %v1149 = vadd.f32 %v1141, %v1145
    %v1150 = vadd.f32 %v1142, %v1146
    %v1151 = vadd.f32 %v1143, %v1147
    %v1152 = vadd.f32 %v1144, %v1148
    %v1153 = vmul.f32 %v332, %v1012
    %v1154 = vmul.f32 %v333, %v1012
    %v1155 = vmul.f32 %v334, %v1012
    %v1156 = vmul.f32 %v335, %v1012
    %v1157 = vadd.f32 %v1149, %v1153
    %v1158 = vadd.f32 %v1150, %v1154
    %v1159 = vadd.f32 %v1151, %v1155
    %v1160 = vadd.f32 %v1152, %v1156
    %v1161 = vmax.f32 %v1089, %v1157
    %v1162 = vmax.f32 %v1090, %v1158
    %v1163 = vmax.f32 %v1091, %v1159
    %v1164 = vmax.f32 %v1092, %v1160
    %v1169 = vrot.slane %v1161, 1
    %v1170 = vrot.slane %v1162, 1
    %v1171 = vsel %vm645, %v1169, %v1170
    %v1172 = vrot.slane %v1163, 1
    %v1173 = vsel %vm645, %v1170, %v1172
    %v1174 = vrot.slane %v1164, 1
    %v1175 = vsel %vm645, %v1172, %v1174
    %v1179 = vmax.f32 %v1161, %v1171
    %v1180 = vmax.f32 %v1162, %v1173
    %v1181 = vmax.f32 %v1163, %v1175
    %v1182 = vrot.slane %v1161, 2
    %v1183 = vrot.slane %v1162, 2
    %v1184 = vsel %vm659, %v1182, %v1183
    %v1185 = vrot.slane %v1163, 2
    %v1186 = vsel %vm659, %v1183, %v1185
    %v1187 = vrot.slane %v1164, 2
    %v1188 = vsel %vm659, %v1185, %v1187
    %v1192 = vmax.f32 %v1179, %v1184
    %v1193 = vmax.f32 %v1180, %v1186
    %v1194 = vmax.f32 %v1181, %v1188
    %v1195 = vstv %s107
    %v1196 = vadd.f32 %v1192, %v1195
    %v1197 = vadd.f32 %v1193, %v1195
    %v1198 = vadd.f32 %v1194, %v1195
    %v1199 = vmax.f32 %v1196, 0.0
    %v1200 = vmax.f32 %v1197, 0.0
    %v1201 = vmax.f32 %v1198, 0.0
    %1202 = vst [vmem:[#allocation2 + $0x180] sm:$0xff] %v1199
    %1203 = vst [vmem:[#allocation2 + $0x188] sm:$0xff] %v1200
    %1204 = vst [vmem:[#allocation2 + $0x190] sm:$0xff] %v1201
    %v1205 = vmul.f32 %v120, %v420
    %v1206 = vmul.f32 %v121, %v420
    %v1207 = vmul.f32 %v122, %v420
    %v1208 = vmul.f32 %v123, %v420
    %v1209 = vmul.f32 %v224, %v425
    %v1210 = vmul.f32 %v225, %v425
    %v1211 = vmul.f32 %v226, %v425
    %v1212 = vmul.f32 %v227, %v425
    %v1213 = vadd.f32 %v1205, %v1209
    %v1214 = vadd.f32 %v1206, %v1210
    %v1215 = vadd.f32 %v1207, %v1211
    %v1216 = vadd.f32 %v1208, %v1212
    %v1217 = vmul.f32 %v328, %v434
    %v1218 = vmul.f32 %v329, %v434
    %v1219 = vmul.f32 %v330, %v434
    %v1220 = vmul.f32 %v331, %v434
    %v1221 = vadd.f32 %v1213, %v1217
    %v1222 = vadd.f32 %v1214, %v1218
    %v1223 = vadd.f32 %v1215, %v1219
    %v1224 = vadd.f32 %v1216, %v1220
    %v1225 = vmul.f32 %v124, %v443
    %v1226 = vmul.f32 %v125, %v443
    %v1227 = vmul.f32 %v126, %v443
    %v1228 = vmul.f32 %v127, %v443
    %v1229 = vadd.f32 %v1221, %v1225
    %v1230 = vadd.f32 %v1222, %v1226
    %v1231 = vadd.f32 %v1223, %v1227
    %v1232 = vadd.f32 %v1224, %v1228
    %v1233 = vmul.f32 %v228, %v452
    %v1234 = vmul.f32 %v229, %v452
    %v1235 = vmul.f32 %v230, %v452
    %v1236 = vmul.f32 %v231, %v452
    %v1237 = vadd.f32 %v1229, %v1233
    %v1238 = vadd.f32 %v1230, %v1234
    %v1239 = vadd.f32 %v1231, %v1235
    %v1240 = vadd.f32 %v1232, %v1236
    %v1241 = vmul.f32 %v332, %v461
    %v1242 = vmul.f32 %v333, %v461
    %v1243 = vmul.f32 %v334, %v461
    %v1244 = vmul.f32 %v335, %v461
    %v1245 = vadd.f32 %v1237, %v1241
    %v1246 = vadd.f32 %v1238, %v1242
    %v1247 = vadd.f32 %v1239, %v1243
    %v1248 = vadd.f32 %v1240, %v1244
    %v1249 = vmul.f32 %v128, %v470
    %v1250 = vmul.f32 %v129, %v470
    %v1251 = vmul.f32 %v130, %v470
    %v1252 = vmul.f32 %v131, %v470
    %v1253 = vadd.f32 %v1245, %v1249
    %v1254 = vadd.f32 %v1246, %v1250
    %v1255 = vadd.f32 %v1247, %v1251
    %v1256 = vadd.f32 %v1248, %v1252
    %v1257 = vmul.f32 %v232, %v479
    %v1258 = vmul.f32 %v233, %v479
    %v1259 = vmul.f32 %v234, %v479
    %v1260 = vmul.f32 %v235, %v479
    %v1261 = vadd.f32 %v1253, %v1257
    %v1262 = vadd.f32 %v1254, %v1258
    %v1263 = vadd.f32 %v1255, %v1259
    %v1264 = vadd.f32 %v1256, %v1260
    %v1265 = vmul.f32 %v336, %v488
    %v1266 = vmul.f32 %v337, %v488
    %v1267 = vmul.f32 %v338, %v488
    %v1268 = vmul.f32 %v339, %v488
    %v1269 = vadd.f32 %v1261, %v1265
    %v1270 = vadd.f32 %v1262, %v1266
    %v1271 = vadd.f32 %v1263, %v1267
    %v1272 = vadd.f32 %v1264, %v1268
    %v1273 = vmul.f32 %v124, %v420
    %v1274 = vmul.f32 %v125, %v420
    %v1275 = vmul.f32 %v126, %v420
    %v1276 = vmul.f32 %v127, %v420
    %v1277 = vmul.f32 %v228, %v425
    %v1278 = vmul.f32 %v229, %v425
    %v1279 = vmul.f32 %v230, %v425
    %v1280 = vmul.f32 %v231, %v425
    %v1281 = vadd.f32 %v1273, %v1277
    %v1282 = vadd.f32 %v1274, %v1278
    %v1283 = vadd.f32 %v1275, %v1279
    %v1284 = vadd.f32 %v1276, %v1280
    %v1285 = vmul.f32 %v332, %v434
    %v1286 = vmul.f32 %v333, %v434
    %v1287 = vmul.f32 %v334, %v434
    %v1288 = vmul.f32 %v335, %v434
    %v1289 = vadd.f32 %v1281, %v1285
    %v1290 = vadd.f32 %v1282, %v1286
    %v1291 = vadd.f32 %v1283, %v1287
    %v1292 = vadd.f32 %v1284, %v1288
    %v1293 = vmul.f32 %v128, %v443
    %v1294 = vmul.f32 %v129, %v443
    %v1295 = vmul.f32 %v130, %v443
    %v1296 = vmul.f32 %v131, %v443
    %v1297 = vadd.f32 %v1289, %v1293
    %v1298 = vadd.f32 %v1290, %v1294
    %v1299 = vadd.f32 %v1291, %v1295
    %v1300 = vadd.f32 %v1292, %v1296
    %v1301 = vmul.f32 %v232, %v452
    %v1302 = vmul.f32 %v233, %v452
    %v1303 = vmul.f32 %v234, %v452
    %v1304 = vmul.f32 %v235, %v452
    %v1305 = vadd.f32 %v1297, %v1301
    %v1306 = vadd.f32 %v1298, %v1302
    %v1307 = vadd.f32 %v1299, %v1303
    %v1308 = vadd.f32 %v1300, %v1304
    %v1309 = vmul.f32 %v336, %v461
    %v1310 = vmul.f32 %v337, %v461
    %v1311 = vmul.f32 %v338, %v461
    %v1312 = vmul.f32 %v339, %v461
    %v1313 = vadd.f32 %v1305, %v1309
    %v1314 = vadd.f32 %v1306, %v1310
    %v1315 = vadd.f32 %v1307, %v1311
    %v1316 = vadd.f32 %v1308, %v1312
    %v1317 = vmul.f32 %v132, %v470
    %v1318 = vmul.f32 %v133, %v470
    %v1319 = vmul.f32 %v134, %v470
    %v1320 = vmul.f32 %v135, %v470
    %v1321 = vadd.f32 %v1313, %v1317
    %v1322 = vadd.f32 %v1314, %v1318
    %v1323 = vadd.f32 %v1315, %v1319
    %v1324 = vadd.f32 %v1316, %v1320
    %v1325 = vmul.f32 %v236, %v479
    %v1326 = vmul.f32 %v237, %v479
    %v1327 = vmul.f32 %v238, %v479
    %v1328 = vmul.f32 %v239, %v479
    %v1329 = vadd.f32 %v1321, %v1325
    %v1330 = vadd.f32 %v1322, %v1326
    %v1331 = vadd.f32 %v1323, %v1327
    %v1332 = vadd.f32 %v1324, %v1328
    %v1333 = vmul.f32 %v340, %v488
    %v1334 = vmul.f32 %v341, %v488
    %v1335 = vmul.f32 %v342, %v488
    %v1336 = vmul.f32 %v343, %v488
    %v1337 = vadd.f32 %v1329, %v1333
    %v1338 = vadd.f32 %v1330, %v1334
    %v1339 = vadd.f32 %v1331, %v1335
    %v1340 = vadd.f32 %v1332, %v1336
    %v1341 = vmax.f32 %v1269, %v1337
    %v1342 = vmax.f32 %v1270, %v1338
    %v1343 = vmax.f32 %v1271, %v1339
    %v1344 = vmax.f32 %v1272, %v1340
    %v1345 = vmul.f32 %v128, %v420
    %v1346 = vmul.f32 %v129, %v420
    %v1347 = vmul.f32 %v130, %v420
    %v1348 = vmul.f32 %v131, %v420
    %v1349 = vmul.f32 %v232, %v425
    %v1350 = vmul.f32 %v233, %v425
    %v1351 = vmul.f32 %v234, %v425
    %v1352 = vmul.f32 %v235, %v425
    %v1353 = vadd.f32 %v1345, %v1349
    %v1354 = vadd.f32 %v1346, %v1350
    %v1355 = vadd.f32 %v1347, %v1351
    %v1356 = vadd.f32 %v1348, %v1352
    %v1357 = vmul.f32 %v336, %v434
    %v1358 = vmul.f32 %v337, %v434
    %v1359 = vmul.f32 %v338, %v434
    %v1360 = vmul.f32 %v339, %v434
    %v1361 = vadd.f32 %v1353, %v1357
    %v1362 = vadd.f32 %v1354, %v1358
    %v1363 = vadd.f32 %v1355, %v1359
    %v1364 = vadd.f32 %v1356, %v1360
    %v1365 = vmul.f32 %v132, %v443
    %v1366 = vmul.f32 %v133, %v443
    %v1367 = vmul.f32 %v134, %v443
    %v1368 = vmul.f32 %v135, %v443
    %v1369 = vadd.f32 %v1361, %v1365
    %v1370 = vadd.f32 %v1362, %v1366
    %v1371 = vadd.f32 %v1363, %v1367
    %v1372 = vadd.f32 %v1364, %v1368
    %v1373 = vmul.f32 %v236, %v452
    %v1374 = vmul.f32 %v237, %v452
    %v1375 = vmul.f32 %v238, %v452
    %v1376 = vmul.f32 %v239, %v452
    %v1377 = vadd.f32 %v1369, %v1373
    %v1378 = vadd.f32 %v1370, %v1374
    %v1379 = vadd.f32 %v1371, %v1375
    %v1380 = vadd.f32 %v1372, %v1376
    %v1381 = vmul.f32 %v340, %v461
    %v1382 = vmul.f32 %v341, %v461
    %v1383 = vmul.f32 %v342, %v461
    %v1384 = vmul.f32 %v343, %v461
    %v1385 = vadd.f32 %v1377, %v1381
    %v1386 = vadd.f32 %v1378, %v1382
    %v1387 = vadd.f32 %v1379, %v1383
    %v1388 = vadd.f32 %v1380, %v1384
    %v1389 = vmul.f32 %v136, %v470
    %v1390 = vmul.f32 %v137, %v470
    %v1391 = vmul.f32 %v138, %v470
    %v1392 = vmul.f32 %v139, %v470
    %v1393 = vadd.f32 %v1385, %v1389
    %v1394 = vadd.f32 %v1386, %v1390
    %v1395 = vadd.f32 %v1387, %v1391
    %v1396 = vadd.f32 %v1388, %v1392
    %v1397 = vmul.f32 %v240, %v479
    %v1398 = vmul.f32 %v241, %v479
    %v1399 = vmul.f32 %v242, %v479
    %v1400 = vmul.f32 %v243, %v479
    %v1401 = vadd.f32 %v1393, %v1397
    %v1402 = vadd.f32 %v1394, %v1398
    %v1403 = vadd.f32 %v1395, %v1399
    %v1404 = vadd.f32 %v1396, %v1400
    %v1405 = vmul.f32 %v344, %v488
    %v1406 = vmul.f32 %v345, %v488
    %v1407 = vmul.f32 %v346, %v488
    %v1408 = vmul.f32 %v347, %v488
    %v1409 = vadd.f32 %v1401, %v1405
    %v1410 = vadd.f32 %v1402, %v1406
    %v1411 = vadd.f32 %v1403, %v1407
    %v1412 = vadd.f32 %v1404, %v1408
    %v1413 = vmax.f32 %v1341, %v1409
    %v1414 = vmax.f32 %v1342, %v1410
    %v1415 = vmax.f32 %v1343, %v1411
    %v1416 = vmax.f32 %v1344, %v1412
    %v1421 = vrot.slane %v1413, 1
    %v1422 = vrot.slane %v1414, 1
    %v1423 = vsel %vm645, %v1421, %v1422
    %v1424 = vrot.slane %v1415, 1
    %v1425 = vsel %vm645, %v1422, %v1424
    %v1426 = vrot.slane %v1416, 1
    %v1427 = vsel %vm645, %v1424, %v1426
    %v1431 = vmax.f32 %v1413, %v1423
    %v1432 = vmax.f32 %v1414, %v1425
    %v1433 = vmax.f32 %v1415, %v1427
    %v1434 = vrot.slane %v1413, 2
    %v1435 = vrot.slane %v1414, 2
    %v1436 = vsel %vm659, %v1434, %v1435
    %v1437 = vrot.slane %v1415, 2
    %v1438 = vsel %vm659, %v1435, %v1437
    %v1439 = vrot.slane %v1416, 2
    %v1440 = vsel %vm659, %v1437, %v1439
    %v1444 = vmax.f32 %v1431, %v1436
    %v1445 = vmax.f32 %v1432, %v1438
    %v1446 = vmax.f32 %v1433, %v1440
    %v1447 = vadd.f32 %v1444, %v673
    %v1448 = vadd.f32 %v1445, %v673
    %v1449 = vadd.f32 %v1446, %v673
    %v1450 = vmax.f32 %v1447, 0.0
    %v1451 = vmax.f32 %v1448, 0.0
    %v1452 = vmax.f32 %v1449, 0.0
    %1453 = vst [vmem:[#allocation2 + $0x18] sm:$0xff] %v1450
    %1454 = vst [vmem:[#allocation2 + $0x20] sm:$0xff] %v1451
    %1455 = vst [vmem:[#allocation2 + $0x28] sm:$0xff] %v1452
    %v1456 = vmul.f32 %v120, %v683
    %v1457 = vmul.f32 %v121, %v683
    %v1458 = vmul.f32 %v122, %v683
    %v1459 = vmul.f32 %v123, %v683
    %v1460 = vmul.f32 %v224, %v688
    %v1461 = vmul.f32 %v225, %v688
    %v1462 = vmul.f32 %v226, %v688
    %v1463 = vmul.f32 %v227, %v688
    %v1464 = vadd.f32 %v1456, %v1460
    %v1465 = vadd.f32 %v1457, %v1461
    %v1466 = vadd.f32 %v1458, %v1462
    %v1467 = vadd.f32 %v1459, %v1463
    %v1468 = vmul.f32 %v328, %v697
    %v1469 = vmul.f32 %v329, %v697
    %v1470 = vmul.f32 %v330, %v697
    %v1471 = vmul.f32 %v331, %v697
    %v1472 = vadd.f32 %v1464, %v1468
    %v1473 = vadd.f32 %v1465, %v1469
    %v1474 = vadd.f32 %v1466, %v1470
    %v1475 = vadd.f32 %v1467, %v1471
    %v1476 = vmul.f32 %v124, %v706
    %v1477 = vmul.f32 %v125, %v706
    %v1478 = vmul.f32 %v126, %v706
    %v1479 = vmul.f32 %v127, %v706
    %v1480 = vadd.f32 %v1472, %v1476
    %v1481 = vadd.f32 %v1473, %v1477
    %v1482 = vadd.f32 %v1474, %v1478
    %v1483 = vadd.f32 %v1475, %v1479
    %v1484 = vmul.f32 %v228, %v715
    %v1485 = vmul.f32 %v229, %v715
    %v1486 = vmul.f32 %v230, %v715
    %v1487 = vmul.f32 %v231, %v715
    %v1488 = vadd.f32 %v1480, %v1484
    %v1489 = vadd.f32 %v1481, %v1485
    %v1490 = vadd.f32 %v1482, %v1486
    %v1491 = vadd.f32 %v1483, %v1487
    %v1492 = vmul.f32 %v332, %v724
    %v1493 = vmul.f32 %v333, %v724
    %v1494 = vmul.f32 %v334, %v724
    %v1495 = vmul.f32 %v335, %v724
    %v1496 = vadd.f32 %v1488, %v1492
    %v1497 = vadd.f32 %v1489, %v1493
    %v1498 = vadd.f32 %v1490, %v1494
    %v1499 = vadd.f32 %v1491, %v1495
    %v1500 = vmul.f32 %v128, %v733
    %v1501 = vmul.f32 %v129, %v733
    %v1502 = vmul.f32 %v130, %v733
    %v1503 = vmul.f32 %v131, %v733
    %v1504 = vadd.f32 %v1496, %v1500
    %v1505 = vadd.f32 %v1497, %v1501
    %v1506 = vadd.f32 %v1498, %v1502
    %v1507 = vadd.f32 %v1499, %v1503
    %v1508 = vmul.f32 %v232, %v742
    %v1509 = vmul.f32 %v233, %v742
    %v1510 = vmul.f32 %v234, %v742
    %v1511 = vmul.f32 %v235, %v742
    %v1512 = vadd.f32 %v1504, %v1508
    %v1513 = vadd.f32 %v1505, %v1509
    %v1514 = vadd.f32 %v1506, %v1510
    %v1515 = vadd.f32 %v1507, %v1511
    %v1516 = vmul.f32 %v336, %v751
    %v1517 = vmul.f32 %v337, %v751
    %v1518 = vmul.f32 %v338, %v751
    %v1519 = vmul.f32 %v339, %v751
    %v1520 = vadd.f32 %v1512, %v1516
    %v1521 = vadd.f32 %v1513, %v1517
    %v1522 = vadd.f32 %v1514, %v1518
    %v1523 = vadd.f32 %v1515, %v1519
    %v1524 = vmul.f32 %v124, %v683
    %v1525 = vmul.f32 %v125, %v683
    %v1526 = vmul.f32 %v126, %v683
    %v1527 = vmul.f32 %v127, %v683
    %v1528 = vmul.f32 %v228, %v688
    %v1529 = vmul.f32 %v229, %v688
    %v1530 = vmul.f32 %v230, %v688
    %v1531 = vmul.f32 %v231, %v688
    %v1532 = vadd.f32 %v1524, %v1528
    %v1533 = vadd.f32 %v1525, %v1529
    %v1534 = vadd.f32 %v1526, %v1530
    %v1535 = vadd.f32 %v1527, %v1531
    %v1536 = vmul.f32 %v332, %v697
    %v1537 = vmul.f32 %v333, %v697
    %v1538 = vmul.f32 %v334, %v697
    %v1539 = vmul.f32 %v335, %v697
    %v1540 = vadd.f32 %v1532, %v1536
    %v1541 = vadd.f32 %v1533, %v1537
    %v1542 = vadd.f32 %v1534, %v1538
    %v1543 = vadd.f32 %v1535, %v1539
    %v1544 = vmul.f32 %v128, %v706
    %v1545 = vmul.f32 %v129, %v706
    %v1546 = vmul.f32 %v130, %v706
    %v1547 = vmul.f32 %v131, %v706
    %v1548 = vadd.f32 %v1540, %v1544
    %v1549 = vadd.f32 %v1541, %v1545
    %v1550 = vadd.f32 %v1542, %v1546
    %v1551 = vadd.f32 %v1543, %v1547
    %v1552 = vmul.f32 %v232, %v715
    %v1553 = vmul.f32 %v233, %v715
    %v1554 = vmul.f32 %v234, %v715
    %v1555 = vmul.f32 %v235, %v715
    %v1556 = vadd.f32 %v1548, %v1552
    %v1557 = vadd.f32 %v1549, %v1553
    %v1558 = vadd.f32 %v1550, %v1554
    %v1559 = vadd.f32 %v1551, %v1555
    %v1560 = vmul.f32 %v336, %v724
    %v1561 = vmul.f32 %v337, %v724
    %v1562 = vmul.f32 %v338, %v724
    %v1563 = vmul.f32 %v339, %v724
    %v1564 = vadd.f32 %v1556, %v1560
    %v1565 = vadd.f32 %v1557, %v1561
    %v1566 = vadd.f32 %v1558, %v1562
    %v1567 = vadd.f32 %v1559, %v1563
    %v1568 = vmul.f32 %v132, %v733
    %v1569 = vmul.f32 %v133, %v733
    %v1570 = vmul.f32 %v134, %v733
    %v1571 = vmul.f32 %v135, %v733
    %v1572 = vadd.f32 %v1564, %v1568
    %v1573 = vadd.f32 %v1565, %v1569
    %v1574 = vadd.f32 %v1566, %v1570
    %v1575 = vadd.f32 %v1567, %v1571
    %v1576 = vmul.f32 %v236, %v742
    %v1577 = vmul.f32 %v237, %v742
    %v1578 = vmul.f32 %v238, %v742
    %v1579 = vmul.f32 %v239, %v742
    %v1580 = vadd.f32 %v1572, %v1576
    %v1581 = vadd.f32 %v1573, %v1577
    %v1582 = vadd.f32 %v1574, %v1578
    %v1583 = vadd.f32 %v1575, %v1579
    %v1584 = vmul.f32 %v340, %v751
    %v1585 = vmul.f32 %v341, %v751
    %v1586 = vmul.f32 %v342, %v751
    %v1587 = vmul.f32 %v343, %v751
    %v1588 = vadd.f32 %v1580, %v1584
    %v1589 = vadd.f32 %v1581, %v1585
    %v1590 = vadd.f32 %v1582, %v1586
    %v1591 = vadd.f32 %v1583, %v1587
    %v1592 = vmax.f32 %v1520, %v1588
    %v1593 = vmax.f32 %v1521, %v1589
    %v1594 = vmax.f32 %v1522, %v1590
    %v1595 = vmax.f32 %v1523, %v1591
    %v1596 = vmul.f32 %v128, %v683
    %v1597 = vmul.f32 %v129, %v683
    %v1598 = vmul.f32 %v130, %v683
    %v1599 = vmul.f32 %v131, %v683
    %v1600 = vmul.f32 %v232, %v688
    %v1601 = vmul.f32 %v233, %v688
    %v1602 = vmul.f32 %v234, %v688
    %v1603 = vmul.f32 %v235, %v688
    %v1604 = vadd.f32 %v1596, %v1600
    %v1605 = vadd.f32 %v1597, %v1601
    %v1606 = vadd.f32 %v1598, %v1602
    %v1607 = vadd.f32 %v1599, %v1603
    %v1608 = vmul.f32 %v336, %v697
    %v1609 = vmul.f32 %v337, %v697
    %v1610 = vmul.f32 %v338, %v697
    %v1611 = vmul.f32 %v339, %v697
    %v1612 = vadd.f32 %v1604, %v1608
    %v1613 = vadd.f32 %v1605, %v1609
    %v1614 = vadd.f32 %v1606, %v1610
    %v1615 = vadd.f32 %v1607, %v1611
    %v1616 = vmul.f32 %v132, %v706
    %v1617 = vmul.f32 %v133, %v706
    %v1618 = vmul.f32 %v134, %v706
    %v1619 = vmul.f32 %v135, %v706
    %v1620 = vadd.f32 %v1612, %v1616
    %v1621 = vadd.f32 %v1613, %v1617
    %v1622 = vadd.f32 %v1614, %v1618
    %v1623 = vadd.f32 %v1615, %v1619
    %v1624 = vmul.f32 %v236, %v715
    %v1625 = vmul.f32 %v237, %v715
    %v1626 = vmul.f32 %v238, %v715
    %v1627 = vmul.f32 %v239, %v715
    %v1628 = vadd.f32 %v1620, %v1624
    %v1629 = vadd.f32 %v1621, %v1625
    %v1630 = vadd.f32 %v1622, %v1626
    %v1631 = vadd.f32 %v1623, %v1627
    %v1632 = vmul.f32 %v340, %v724
    %v1633 = vmul.f32 %v341, %v724
    %v1634 = vmul.f32 %v342, %v724
    %v1635 = vmul.f32 %v343, %v724
    %v1636 = vadd.f32 %v1628, %v1632
    %v1637 = vadd.f32 %v1629, %v1633
    %v1638 = vadd.f32 %v1630, %v1634
    %v1639 = vadd.f32 %v1631, %v1635
    %v1640 = vmul.f32 %v136, %v733
    %v1641 = vmul.f32 %v137, %v733
    %v1642 = vmul.f32 %v138, %v733
    %v1643 = vmul.f32 %v139, %v733
    %v1644 = vadd.f32 %v1636, %v1640
    %v1645 = vadd.f32 %v1637, %v1641
    %v1646 = vadd.f32 %v1638, %v1642
    %v1647 = vadd.f32 %v1639, %v1643
    %v1648 = vmul.f32 %v240, %v742
    %v1649 = vmul.f32 %v241, %v742
    %v1650 = vmul.f32 %v242, %v742
    %v1651 = vmul.f32 %v243, %v742
    %v1652 = vadd.f32 %v1644, %v1648
    %v1653 = vadd.f32 %v1645, %v1649
    %v1654 = vadd.f32 %v1646, %v1650
    %v1655 = vadd.f32 %v1647, %v1651
    %v1656 = vmul.f32 %v344, %v751
    %v1657 = vmul.f32 %v345, %v751
    %v1658 = vmul.f32 %v346, %v751
    %v1659 = vmul.f32 %v347, %v751
    %v1660 = vadd.f32 %v1652, %v1656
    %v1661 = vadd.f32 %v1653, %v1657
    %v1662 = vadd.f32 %v1654, %v1658
    %v1663 = vadd.f32 %v1655, %v1659
    %v1664 = vmax.f32 %v1592, %v1660
    %v1665 = vmax.f32 %v1593, %v1661
    %v1666 = vmax.f32 %v1594, %v1662
    %v1667 = vmax.f32 %v1595, %v1663
    %v1672 = vrot.slane %v1664, 1
    %v1673 = vrot.slane %v1665, 1
    %v1674 = vsel %vm645, %v1672, %v1673
    %v1675 = vrot.slane %v1666, 1
    %v1676 = vsel %vm645, %v1673, %v1675
    %v1677 = vrot.slane %v1667, 1
    %v1678 = vsel %vm645, %v1675, %v1677
    %v1682 = vmax.f32 %v1664, %v1674
    %v1683 = vmax.f32 %v1665, %v1676
    %v1684 = vmax.f32 %v1666, %v1678
    %v1685 = vrot.slane %v1664, 2
    %v1686 = vrot.slane %v1665, 2
    %v1687 = vsel %vm659, %v1685, %v1686
    %v1688 = vrot.slane %v1666, 2
    %v1689 = vsel %vm659, %v1686, %v1688
    %v1690 = vrot.slane %v1667, 2
    %v1691 = vsel %vm659, %v1688, %v1690
    %v1695 = vmax.f32 %v1682, %v1687
    %v1696 = vmax.f32 %v1683, %v1689
    %v1697 = vmax.f32 %v1684, %v1691
    %v1698 = vadd.f32 %v1695, %v934
    %v1699 = vadd.f32 %v1696, %v934
    %v1700 = vadd.f32 %v1697, %v934
    %v1701 = vmax.f32 %v1698, 0.0
    %v1702 = vmax.f32 %v1699, 0.0
    %v1703 = vmax.f32 %v1700, 0.0
    %1704 = vst [vmem:[#allocation2 + $0xd8] sm:$0xff] %v1701
    %1705 = vst [vmem:[#allocation2 + $0xe0] sm:$0xff] %v1702
    %1706 = vst [vmem:[#allocation2 + $0xe8] sm:$0xff] %v1703
    %v1707 = vmul.f32 %v120, %v944
    %v1708 = vmul.f32 %v121, %v944
    %v1709 = vmul.f32 %v122, %v944
    %v1710 = vmul.f32 %v123, %v944
    %v1711 = vmul.f32 %v224, %v949
    %v1712 = vmul.f32 %v225, %v949
    %v1713 = vmul.f32 %v226, %v949
    %v1714 = vmul.f32 %v227, %v949
    %v1715 = vadd.f32 %v1707, %v1711
    %v1716 = vadd.f32 %v1708, %v1712
    %v1717 = vadd.f32 %v1709, %v1713
    %v1718 = vadd.f32 %v1710, %v1714
    %v1719 = vmul.f32 %v328, %v958
    %v1720 = vmul.f32 %v329, %v958
    %v1721 = vmul.f32 %v330, %v958
    %v1722 = vmul.f32 %v331, %v958
    %v1723 = vadd.f32 %v1715, %v1719
    %v1724 = vadd.f32 %v1716, %v1720
    %v1725 = vadd.f32 %v1717, %v1721
    %v1726 = vadd.f32 %v1718, %v1722
    %v1727 = vmul.f32 %v124, %v967
    %v1728 = vmul.f32 %v125, %v967
    %v1729 = vmul.f32 %v126, %v967
    %v1730 = vmul.f32 %v127, %v967
    %v1731 = vadd.f32 %v1723, %v1727
    %v1732 = vadd.f32 %v1724, %v1728
    %v1733 = vadd.f32 %v1725, %v1729
    %v1734 = vadd.f32 %v1726, %v1730
    %v1735 = vmul.f32 %v228, %v976
    %v1736 = vmul.f32 %v229, %v976
    %v1737 = vmul.f32 %v230, %v976
    %v1738 = vmul.f32 %v231, %v976
    %v1739 = vadd.f32 %v1731, %v1735
    %v1740 = vadd.f32 %v1732, %v1736
    %v1741 = vadd.f32 %v1733, %v1737
    %v1742 = vadd.f32 %v1734, %v1738
    %v1743 = vmul.f32 %v332, %v985
    %v1744 = vmul.f32 %v333, %v985
    %v1745 = vmul.f32 %v334, %v985
    %v1746 = vmul.f32 %v335, %v985
    %v1747 = vadd.f32 %v1739, %v1743
    %v1748 = vadd.f32 %v1740, %v1744
    %v1749 = vadd.f32 %v1741, %v1745
    %v1750 = vadd.f32 %v1742, %v1746
    %v1751 = vmul.f32 %v128, %v994
    %v1752 = vmul.f32 %v129, %v994
    %v1753 = vmul.f32 %v130, %v994
    %v1754 = vmul.f32 %v131, %v994
    %v1755 = vadd.f32 %v1747, %v1751
    %v1756 = vadd.f32 %v1748, %v1752
    %v1757 = vadd.f32 %v1749, %v1753
    %v1758 = vadd.f32 %v1750, %v1754
    %v1759 = vmul.f32 %v232, %v1003
    %v1760 = vmul.f32 %v233, %v1003
    %v1761 = vmul.f32 %v234, %v1003
    %v1762 = vmul.f32 %v235, %v1003
    %v1763 = vadd.f32 %v1755, %v1759
    %v1764 = vadd.f32 %v1756, %v1760
    %v1765 = vadd.f32 %v1757, %v1761
    %v1766 = vadd.f32 %v1758, %v1762
    %v1767 = vmul.f32 %v336, %v1012
    %v1768 = vmul.f32 %v337, %v1012
    %v1769 = vmul.f32 %v338, %v1012
    %v1770 = vmul.f32 %v339, %v1012
    %v1771 = vadd.f32 %v1763, %v1767
    %v1772 = vadd.f32 %v1764, %v1768
    %v1773 = vadd.f32 %v1765, %v1769
    %v1774 = vadd.f32 %v1766, %v1770
    %v1775 = vmul.f32 %v124, %v944
    %v1776 = vmul.f32 %v125, %v944
    %v1777 = vmul.f32 %v126, %v944
    %v1778 = vmul.f32 %v127, %v944
    %v1779 = vmul.f32 %v228, %v949
    %v1780 = vmul.f32 %v229, %v949
    %v1781 = vmul.f32 %v230, %v949
    %v1782 = vmul.f32 %v231, %v949
    %v1783 = vadd.f32 %v1775, %v1779
    %v1784 = vadd.f32 %v1776, %v1780
    %v1785 = vadd.f32 %v1777, %v1781
    %v1786 = vadd.f32 %v1778, %v1782
    %v1787 = vmul.f32 %v332, %v958
    %v1788 = vmul.f32 %v333, %v958
    %v1789 = vmul.f32 %v334, %v958
    %v1790 = vmul.f32 %v335, %v958
    %v1791 = vadd.f32 %v1783, %v1787
    %v1792 = vadd.f32 %v1784, %v1788
    %v1793 = vadd.f32 %v1785, %v1789
    %v1794 = vadd.f32 %v1786, %v1790
    %v1795 = vmul.f32 %v128, %v967
    %v1796 = vmul.f32 %v129, %v967
    %v1797 = vmul.f32 %v130, %v967
    %v1798 = vmul.f32 %v131, %v967
    %v1799 = vadd.f32 %v1791, %v1795
    %v1800 = vadd.f32 %v1792, %v1796
    %v1801 = vadd.f32 %v1793, %v1797
    %v1802 = vadd.f32 %v1794, %v1798
    %v1803 = vmul.f32 %v232, %v976
    %v1804 = vmul.f32 %v233, %v976
    %v1805 = vmul.f32 %v234, %v976
    %v1806 = vmul.f32 %v235, %v976
    %v1807 = vadd.f32 %v1799, %v1803
    %v1808 = vadd.f32 %v1800, %v1804
    %v1809 = vadd.f32 %v1801, %v1805
    %v1810 = vadd.f32 %v1802, %v1806
    %v1811 = vmul.f32 %v336, %v985
    %v1812 = vmul.f32 %v337, %v985
    %v1813 = vmul.f32 %v338, %v985
    %v1814 = vmul.f32 %v339, %v985
    %v1815 = vadd.f32 %v1807, %v1811
    %v1816 = vadd.f32 %v1808, %v1812
    %v1817 = vadd.f32 %v1809, %v1813
    %v1818 = vadd.f32 %v1810, %v1814
    %v1819 = vmul.f32 %v132, %v994
    %v1820 = vmul.f32 %v133, %v994
    %v1821 = vmul.f32 %v134, %v994
    %v1822 = vmul.f32 %v135, %v994
    %v1823 = vadd.f32 %v1815, %v1819
    %v1824 = vadd.f32 %v1816, %v1820
    %v1825 = vadd.f32 %v1817, %v1821
    %v1826 = vadd.f32 %v1818, %v1822
    %v1827 = vmul.f32 %v236, %v1003
    %v1828 = vmul.f32 %v237, %v1003
    %v1829 = vmul.f32 %v238, %v1003
    %v1830 = vmul.f32 %v239, %v1003
    %v1831 = vadd.f32 %v1823, %v1827
    %v1832 = vadd.f32 %v1824, %v1828
    %v1833 = vadd.f32 %v1825, %v1829
    %v1834 = vadd.f32 %v1826, %v1830
    %v1835 = vmul.f32 %v340, %v1012
    %v1836 = vmul.f32 %v341, %v1012
    %v1837 = vmul.f32 %v342, %v1012
    %v1838 = vmul.f32 %v343, %v1012
    %v1839 = vadd.f32 %v1831, %v1835
    %v1840 = vadd.f32 %v1832, %v1836
    %v1841 = vadd.f32 %v1833, %v1837
    %v1842 = vadd.f32 %v1834, %v1838
    %v1843 = vmax.f32 %v1771, %v1839
    %v1844 = vmax.f32 %v1772, %v1840
    %v1845 = vmax.f32 %v1773, %v1841
    %v1846 = vmax.f32 %v1774, %v1842
    %v1847 = vmul.f32 %v128, %v944
    %v1848 = vmul.f32 %v129, %v944
    %v1849 = vmul.f32 %v130, %v944
    %v1850 = vmul.f32 %v131, %v944
    %v1851 = vmul.f32 %v232, %v949
    %v1852 = vmul.f32 %v233, %v949
    %v1853 = vmul.f32 %v234, %v949
    %v1854 = vmul.f32 %v235, %v949
    %v1855 = vadd.f32 %v1847, %v1851
    %v1856 = vadd.f32 %v1848, %v1852
    %v1857 = vadd.f32 %v1849, %v1853
    %v1858 = vadd.f32 %v1850, %v1854
    %v1859 = vmul.f32 %v336, %v958
    %v1860 = vmul.f32 %v337, %v958
    %v1861 = vmul.f32 %v338, %v958
    %v1862 = vmul.f32 %v339, %v958
    %v1863 = vadd.f32 %v1855, %v1859
    %v1864 = vadd.f32 %v1856, %v1860
    %v1865 = vadd.f32 %v1857, %v1861
    %v1866 = vadd.f32 %v1858, %v1862
    %v1867 = vmul.f32 %v132, %v967
    %v1868 = vmul.f32 %v133, %v967
    %v1869 = vmul.f32 %v134, %v967
    %v1870 = vmul.f32 %v135, %v967
    %v1871 = vadd.f32 %v1863, %v1867
    %v1872 = vadd.f32 %v1864, %v1868
    %v1873 = vadd.f32 %v1865, %v1869
    %v1874 = vadd.f32 %v1866, %v1870
    %v1875 = vmul.f32 %v236, %v976
    %v1876 = vmul.f32 %v237, %v976
    %v1877 = vmul.f32 %v238, %v976
    %v1878 = vmul.f32 %v239, %v976
    %v1879 = vadd.f32 %v1871, %v1875
    %v1880 = vadd.f32 %v1872, %v1876
    %v1881 = vadd.f32 %v1873, %v1877
    %v1882 = vadd.f32 %v1874, %v1878
    %v1883 = vmul.f32 %v340, %v985
    %v1884 = vmul.f32 %v341, %v985
    %v1885 = vmul.f32 %v342, %v985
    %v1886 = vmul.f32 %v343, %v985
    %v1887 = vadd.f32 %v1879, %v1883
    %v1888 = vadd.f32 %v1880, %v1884
    %v1889 = vadd.f32 %v1881, %v1885
    %v1890 = vadd.f32 %v1882, %v1886
    %v1891 = vmul.f32 %v136, %v994
    %v1892 = vmul.f32 %v137, %v994
    %v1893 = vmul.f32 %v138, %v994
    %v1894 = vmul.f32 %v139, %v994
    %v1895 = vadd.f32 %v1887, %v1891
    %v1896 = vadd.f32 %v1888, %v1892
    %v1897 = vadd.f32 %v1889, %v1893
    %v1898 = vadd.f32 %v1890, %v1894
    %v1899 = vmul.f32 %v240, %v1003
    %v1900 = vmul.f32 %v241, %v1003
    %v1901 = vmul.f32 %v242, %v1003
    %v1902 = vmul.f32 %v243, %v1003
    %v1903 = vadd.f32 %v1895, %v1899
    %v1904 = vadd.f32 %v1896, %v1900
    %v1905 = vadd.f32 %v1897, %v1901
    %v1906 = vadd.f32 %v1898, %v1902
    %v1907 = vmul.f32 %v344, %v1012
    %v1908 = vmul.f32 %v345, %v1012
    %v1909 = vmul.f32 %v346, %v1012
    %v1910 = vmul.f32 %v347, %v1012
    %v1911 = vadd.f32 %v1903, %v1907
    %v1912 = vadd.f32 %v1904, %v1908
    %v1913 = vadd.f32 %v1905, %v1909
    %v1914 = vadd.f32 %v1906, %v1910
    %v1915 = vmax.f32 %v1843, %v1911
    %v1916 = vmax.f32 %v1844, %v1912
    %v1917 = vmax.f32 %v1845, %v1913
    %v1918 = vmax.f32 %v1846, %v1914
    %v1923 = vrot.slane %v1915, 1
    %v1924 = vrot.slane %v1916, 1
    %v1925 = vsel %vm645, %v1923, %v1924
    %v1926 = vrot.slane %v1917, 1
    %v1927 = vsel %vm645, %v1924, %v1926
    %v1928 = vrot.slane %v1918, 1
    %v1929 = vsel %vm645, %v1926, %v1928
    %v1933 = vmax.f32 %v1915, %v1925
    %v1934 = vmax.f32 %v1916, %v1927
    %v1935 = vmax.f32 %v1917, %v1929
    %v1936 = vrot.slane %v1915, 2
    %v1937 = vrot.slane %v1916, 2
    %v1938 = vsel %vm659, %v1936, %v1937
    %v1939 = vrot.slane %v1917, 2
    %v1940 = vsel %vm659, %v1937, %v1939
    %v1941 = vrot.slane %v1918, 2
    %v1942 = vsel %vm659, %v1939, %v1941
    %v1946 = vmax.f32 %v1933, %v1938
    %v1947 = vmax.f32 %v1934, %v1940
    %v1948 = vmax.f32 %v1935, %v1942
    %v1949 = vadd.f32 %v1946, %v1195
    %v1950 = vadd.f32 %v1947, %v1195
    %v1951 = vadd.f32 %v1948, %v1195
    %v1952 = vmax.f32 %v1949, 0.0
    %v1953 = vmax.f32 %v1950, 0.0
    %v1954 = vmax.f32 %v1951, 0.0
    %1955 = vst [vmem:[#allocation2 + $0x198] sm:$0xff] %v1952
    %1956 = vst [vmem:[#allocation2 + $0x1a0] sm:$0xff] %v1953
    %1957 = vst [vmem:[#allocation2 + $0x1a8] sm:$0xff] %v1954
    %v1958 = vmul.f32 %v132, %v420
    %v1959 = vmul.f32 %v133, %v420
    %v1960 = vmul.f32 %v134, %v420
    %v1961 = vmul.f32 %v135, %v420
    %v1962 = vmul.f32 %v236, %v425
    %v1963 = vmul.f32 %v237, %v425
    %v1964 = vmul.f32 %v238, %v425
    %v1965 = vmul.f32 %v239, %v425
    %v1966 = vadd.f32 %v1958, %v1962
    %v1967 = vadd.f32 %v1959, %v1963
    %v1968 = vadd.f32 %v1960, %v1964
    %v1969 = vadd.f32 %v1961, %v1965
    %v1970 = vmul.f32 %v340, %v434
    %v1971 = vmul.f32 %v341, %v434
    %v1972 = vmul.f32 %v342, %v434
    %v1973 = vmul.f32 %v343, %v434
    %v1974 = vadd.f32 %v1966, %v1970
    %v1975 = vadd.f32 %v1967, %v1971
    %v1976 = vadd.f32 %v1968, %v1972
    %v1977 = vadd.f32 %v1969, %v1973
    %v1978 = vmul.f32 %v136, %v443
    %v1979 = vmul.f32 %v137, %v443
    %v1980 = vmul.f32 %v138, %v443
    %v1981 = vmul.f32 %v139, %v443
    %v1982 = vadd.f32 %v1974, %v1978
    %v1983 = vadd.f32 %v1975, %v1979
    %v1984 = vadd.f32 %v1976, %v1980
    %v1985 = vadd.f32 %v1977, %v1981
    %v1986 = vmul.f32 %v240, %v452
    %v1987 = vmul.f32 %v241, %v452
    %v1988 = vmul.f32 %v242, %v452
    %v1989 = vmul.f32 %v243, %v452
    %v1990 = vadd.f32 %v1982, %v1986
    %v1991 = vadd.f32 %v1983, %v1987
    %v1992 = vadd.f32 %v1984, %v1988
    %v1993 = vadd.f32 %v1985, %v1989
    %v1994 = vmul.f32 %v344, %v461
    %v1995 = vmul.f32 %v345, %v461
    %v1996 = vmul.f32 %v346, %v461
    %v1997 = vmul.f32 %v347, %v461
    %v1998 = vadd.f32 %v1990, %v1994
    %v1999 = vadd.f32 %v1991, %v1995
    %v2000 = vadd.f32 %v1992, %v1996
    %v2001 = vadd.f32 %v1993, %v1997
    %v2002 = vmul.f32 %v140, %v470
    %v2003 = vmul.f32 %v141, %v470
    %v2004 = vmul.f32 %v142, %v470
    %v2005 = vmul.f32 %v143, %v470
    %v2006 = vadd.f32 %v1998, %v2002
    %v2007 = vadd.f32 %v1999, %v2003
    %v2008 = vadd.f32 %v2000, %v2004
    %v2009 = vadd.f32 %v2001, %v2005
    %v2010 = vmul.f32 %v244, %v479
    %v2011 = vmul.f32 %v245, %v479
    %v2012 = vmul.f32 %v246, %v479
    %v2013 = vmul.f32 %v247, %v479
    %v2014 = vadd.f32 %v2006, %v2010
    %v2015 = vadd.f32 %v2007, %v2011
    %v2016 = vadd.f32 %v2008, %v2012
    %v2017 = vadd.f32 %v2009, %v2013
    %v2018 = vmul.f32 %v348, %v488
    %v2019 = vmul.f32 %v349, %v488
    %v2020 = vmul.f32 %v350, %v488
    %v2021 = vmul.f32 %v351, %v488
    %v2022 = vadd.f32 %v2014, %v2018
    %v2023 = vadd.f32 %v2015, %v2019
    %v2024 = vadd.f32 %v2016, %v2020
    %v2025 = vadd.f32 %v2017, %v2021
    %v2026 = vmul.f32 %v136, %v420
    %v2027 = vmul.f32 %v137, %v420
    %v2028 = vmul.f32 %v138, %v420
    %v2029 = vmul.f32 %v139, %v420
    %v2030 = vmul.f32 %v240, %v425
    %v2031 = vmul.f32 %v241, %v425
    %v2032 = vmul.f32 %v242, %v425
    %v2033 = vmul.f32 %v243, %v425
    %v2034 = vadd.f32 %v2026, %v2030
    %v2035 = vadd.f32 %v2027, %v2031
    %v2036 = vadd.f32 %v2028, %v2032
    %v2037 = vadd.f32 %v2029, %v2033
    %v2038 = vmul.f32 %v344, %v434
    %v2039 = vmul.f32 %v345, %v434
    %v2040 = vmul.f32 %v346, %v434
    %v2041 = vmul.f32 %v347, %v434
    %v2042 = vadd.f32 %v2034, %v2038
    %v2043 = vadd.f32 %v2035, %v2039
    %v2044 = vadd.f32 %v2036, %v2040
    %v2045 = vadd.f32 %v2037, %v2041
    %v2046 = vmul.f32 %v140, %v443
    %v2047 = vmul.f32 %v141, %v443
    %v2048 = vmul.f32 %v142, %v443
    %v2049 = vmul.f32 %v143, %v443
    %v2050 = vadd.f32 %v2042, %v2046
    %v2051 = vadd.f32 %v2043, %v2047
    %v2052 = vadd.f32 %v2044, %v2048
    %v2053 = vadd.f32 %v2045, %v2049
    %v2054 = vmul.f32 %v244, %v452
    %v2055 = vmul.f32 %v245, %v452
    %v2056 = vmul.f32 %v246, %v452
    %v2057 = vmul.f32 %v247, %v452
    %v2058 = vadd.f32 %v2050, %v2054
    %v2059 = vadd.f32 %v2051, %v2055
    %v2060 = vadd.f32 %v2052, %v2056
    %v2061 = vadd.f32 %v2053, %v2057
    %v2062 = vmul.f32 %v348, %v461
    %v2063 = vmul.f32 %v349, %v461
    %v2064 = vmul.f32 %v350, %v461
    %v2065 = vmul.f32 %v351, %v461
    %v2066 = vadd.f32 %v2058, %v2062
    %v2067 = vadd.f32 %v2059, %v2063
    %v2068 = vadd.f32 %v2060, %v2064
    %v2069 = vadd.f32 %v2061, %v2065
    %v2070 = vmul.f32 %v144, %v470
    %v2071 = vmul.f32 %v145, %v470
    %v2072 = vmul.f32 %v146, %v470
    %v2073 = vmul.f32 %v147, %v470
    %v2074 = vadd.f32 %v2066, %v2070
    %v2075 = vadd.f32 %v2067, %v2071
    %v2076 = vadd.f32 %v2068, %v2072
    %v2077 = vadd.f32 %v2069, %v2073
    %v2078 = vmul.f32 %v248, %v479
    %v2079 = vmul.f32 %v249, %v479
    %v2080 = vmul.f32 %v250, %v479
    %v2081 = vmul.f32 %v251, %v479
    %v2082 = vadd.f32 %v2074, %v2078
    %v2083 = vadd.f32 %v2075, %v2079
    %v2084 = vadd.f32 %v2076, %v2080
    %v2085 = vadd.f32 %v2077, %v2081
    %v2086 = vmul.f32 %v352, %v488
    %v2087 = vmul.f32 %v353, %v488
    %v2088 = vmul.f32 %v354, %v488
    %v2089 = vmul.f32 %v355, %v488
    %v2090 = vadd.f32 %v2082, %v2086
    %v2091 = vadd.f32 %v2083, %v2087
    %v2092 = vadd.f32 %v2084, %v2088
    %v2093 = vadd.f32 %v2085, %v2089
    %v2094 = vmax.f32 %v2022, %v2090
    %v2095 = vmax.f32 %v2023, %v2091
    %v2096 = vmax.f32 %v2024, %v2092
    %v2097 = vmax.f32 %v2025, %v2093
    %v2098 = vmul.f32 %v140, %v420
    %v2099 = vmul.f32 %v141, %v420
    %v2100 = vmul.f32 %v142, %v420
    %v2101 = vmul.f32 %v143, %v420
    %v2102 = vmul.f32 %v244, %v425
    %v2103 = vmul.f32 %v245, %v425
    %v2104 = vmul.f32 %v246, %v425
    %v2105 = vmul.f32 %v247, %v425
    %v2106 = vadd.f32 %v2098, %v2102
    %v2107 = vadd.f32 %v2099, %v2103
    %v2108 = vadd.f32 %v2100, %v2104
    %v2109 = vadd.f32 %v2101, %v2105
    %v2110 = vmul.f32 %v348, %v434
    %v2111 = vmul.f32 %v349, %v434
    %v2112 = vmul.f32 %v350, %v434
    %v2113 = vmul.f32 %v351, %v434
    %v2114 = vadd.f32 %v2106, %v2110
    %v2115 = vadd.f32 %v2107, %v2111
    %v2116 = vadd.f32 %v2108, %v2112
    %v2117 = vadd.f32 %v2109, %v2113
    %v2118 = vmul.f32 %v144, %v443
    %v2119 = vmul.f32 %v145, %v443
    %v2120 = vmul.f32 %v146, %v443
    %v2121 = vmul.f32 %v147, %v443
    %v2122 = vadd.f32 %v2114, %v2118
    %v2123 = vadd.f32 %v2115, %v2119
    %v2124 = vadd.f32 %v2116, %v2120
    %v2125 = vadd.f32 %v2117, %v2121
    %v2126 = vmul.f32 %v248, %v452
    %v2127 = vmul.f32 %v249, %v452
    %v2128 = vmul.f32 %v250, %v452
    %v2129 = vmul.f32 %v251, %v452
    %v2130 = vadd.f32 %v2122, %v2126
    %v2131 = vadd.f32 %v2123, %v2127
    %v2132 = vadd.f32 %v2124, %v2128
    %v2133 = vadd.f32 %v2125, %v2129
    %v2134 = vmul.f32 %v352, %v461
    %v2135 = vmul.f32 %v353, %v461
    %v2136 = vmul.f32 %v354, %v461
    %v2137 = vmul.f32 %v355, %v461
    %v2138 = vadd.f32 %v2130, %v2134
    %v2139 = vadd.f32 %v2131, %v2135
    %v2140 = vadd.f32 %v2132, %v2136
    %v2141 = vadd.f32 %v2133, %v2137
    %v2142 = vmul.f32 %v148, %v470
    %v2143 = vmul.f32 %v149, %v470
    %v2144 = vmul.f32 %v150, %v470
    %v2145 = vmul.f32 %v151, %v470
    %v2146 = vadd.f32 %v2138, %v2142
    %v2147 = vadd.f32 %v2139, %v2143
    %v2148 = vadd.f32 %v2140, %v2144
    %v2149 = vadd.f32 %v2141, %v2145
    %v2150 = vmul.f32 %v252, %v479
    %v2151 = vmul.f32 %v253, %v479
    %v2152 = vmul.f32 %v254, %v479
    %v2153 = vmul.f32 %v255, %v479
    %v2154 = vadd.f32 %v2146, %v2150
    %v2155 = vadd.f32 %v2147, %v2151
    %v2156 = vadd.f32 %v2148, %v2152
    %v2157 = vadd.f32 %v2149, %v2153
    %v2158 = vmul.f32 %v356, %v488
    %v2159 = vmul.f32 %v357, %v488
    %v2160 = vmul.f32 %v358, %v488
    %v2161 = vmul.f32 %v359, %v488
    %v2162 = vadd.f32 %v2154, %v2158
    %v2163 = vadd.f32 %v2155, %v2159
    %v2164 = vadd.f32 %v2156, %v2160
    %v2165 = vadd.f32 %v2157, %v2161
    %v2166 = vmax.f32 %v2094, %v2162
    %v2167 = vmax.f32 %v2095, %v2163
    %v2168 = vmax.f32 %v2096, %v2164
    %v2169 = vmax.f32 %v2097, %v2165
    %v2174 = vrot.slane %v2166, 1
    %v2175 = vrot.slane %v2167, 1
    %v2176 = vsel %vm645, %v2174, %v2175
    %v2177 = vrot.slane %v2168, 1
    %v2178 = vsel %vm645, %v2175, %v2177
    %v2179 = vrot.slane %v2169, 1
    %v2180 = vsel %vm645, %v2177, %v2179
    %v2184 = vmax.f32 %v2166, %v2176
    %v2185 = vmax.f32 %v2167, %v2178
    %v2186 = vmax.f32 %v2168, %v2180
    %v2187 = vrot.slane %v2166, 2
    %v2188 = vrot.slane %v2167, 2
    %v2189 = vsel %vm659, %v2187, %v2188
    %v2190 = vrot.slane %v2168, 2
    %v2191 = vsel %vm659, %v2188, %v2190
    %v2192 = vrot.slane %v2169, 2
    %v2193 = vsel %vm659, %v2190, %v2192
    %v2197 = vmax.f32 %v2184, %v2189
    %v2198 = vmax.f32 %v2185, %v2191
    %v2199 = vmax.f32 %v2186, %v2193
    %v2200 = vadd.f32 %v2197, %v673
    %v2201 = vadd.f32 %v2198, %v673
    %v2202 = vadd.f32 %v2199, %v673
    %v2203 = vmax.f32 %v2200, 0.0
    %v2204 = vmax.f32 %v2201, 0.0
    %v2205 = vmax.f32 %v2202, 0.0
    %2206 = vst [vmem:[#allocation2 + $0x30] sm:$0xff] %v2203
    %2207 = vst [vmem:[#allocation2 + $0x38] sm:$0xff] %v2204
    %2208 = vst [vmem:[#allocation2 + $0x40] sm:$0xff] %v2205
    %v2209 = vmul.f32 %v132, %v683
    %v2210 = vmul.f32 %v133, %v683
    %v2211 = vmul.f32 %v134, %v683
    %v2212 = vmul.f32 %v135, %v683
    %v2213 = vmul.f32 %v236, %v688
    %v2214 = vmul.f32 %v237, %v688
    %v2215 = vmul.f32 %v238, %v688
    %v2216 = vmul.f32 %v239, %v688
    %v2217 = vadd.f32 %v2209, %v2213
    %v2218 = vadd.f32 %v2210, %v2214
    %v2219 = vadd.f32 %v2211, %v2215
    %v2220 = vadd.f32 %v2212, %v2216
    %v2221 = vmul.f32 %v340, %v697
    %v2222 = vmul.f32 %v341, %v697
    %v2223 = vmul.f32 %v342, %v697
    %v2224 = vmul.f32 %v343, %v697
    %v2225 = vadd.f32 %v2217, %v2221
    %v2226 = vadd.f32 %v2218, %v2222
    %v2227 = vadd.f32 %v2219, %v2223
    %v2228 = vadd.f32 %v2220, %v2224
    %v2229 = vmul.f32 %v136, %v706
    %v2230 = vmul.f32 %v137, %v706
    %v2231 = vmul.f32 %v138, %v706
    %v2232 = vmul.f32 %v139, %v706
    %v2233 = vadd.f32 %v2225, %v2229
    %v2234 = vadd.f32 %v2226, %v2230
    %v2235 = vadd.f32 %v2227, %v2231
    %v2236 = vadd.f32 %v2228, %v2232
    %v2237 = vmul.f32 %v240, %v715
    %v2238 = vmul.f32 %v241, %v715
    %v2239 = vmul.f32 %v242, %v715
    %v2240 = vmul.f32 %v243, %v715
    %v2241 = vadd.f32 %v2233, %v2237
    %v2242 = vadd.f32 %v2234, %v2238
    %v2243 = vadd.f32 %v2235, %v2239
    %v2244 = vadd.f32 %v2236, %v2240
    %v2245 = vmul.f32 %v344, %v724
    %v2246 = vmul.f32 %v345, %v724
    %v2247 = vmul.f32 %v346, %v724
    %v2248 = vmul.f32 %v347, %v724
    %v2249 = vadd.f32 %v2241, %v2245
    %v2250 = vadd.f32 %v2242, %v2246
    %v2251 = vadd.f32 %v2243, %v2247
    %v2252 = vadd.f32 %v2244, %v2248
    %v2253 = vmul.f32 %v140, %v733
    %v2254 = vmul.f32 %v141, %v733
    %v2255 = vmul.f32 %v142, %v733
    %v2256 = vmul.f32 %v143, %v733
    %v2257 = vadd.f32 %v2249, %v2253
    %v2258 = vadd.f32 %v2250, %v2254
    %v2259 = vadd.f32 %v2251, %v2255
    %v2260 = vadd.f32 %v2252, %v2256
    %v2261 = vmul.f32 %v244, %v742
    %v2262 = vmul.f32 %v245, %v742
    %v2263 = vmul.f32 %v246, %v742
    %v2264 = vmul.f32 %v247, %v742
    %v2265 = vadd.f32 %v2257, %v2261
    %v2266 = vadd.f32 %v2258, %v2262
    %v2267 = vadd.f32 %v2259, %v2263
    %v2268 = vadd.f32 %v2260, %v2264
    %v2269 = vmul.f32 %v348, %v751
    %v2270 = vmul.f32 %v349, %v751
    %v2271 = vmul.f32 %v350, %v751
    %v2272 = vmul.f32 %v351, %v751
    %v2273 = vadd.f32 %v2265, %v2269
    %v2274 = vadd.f32 %v2266, %v2270
    %v2275 = vadd.f32 %v2267, %v2271
    %v2276 = vadd.f32 %v2268, %v2272
    %v2277 = vmul.f32 %v136, %v683
    %v2278 = vmul.f32 %v137, %v683
    %v2279 = vmul.f32 %v138, %v683
    %v2280 = vmul.f32 %v139, %v683
    %v2281 = vmul.f32 %v240, %v688
    %v2282 = vmul.f32 %v241, %v688
    %v2283 = vmul.f32 %v242, %v688
    %v2284 = vmul.f32 %v243, %v688
    %v2285 = vadd.f32 %v2277, %v2281
    %v2286 = vadd.f32 %v2278, %v2282
    %v2287 = vadd.f32 %v2279, %v2283
    %v2288 = vadd.f32 %v2280, %v2284
    %v2289 = vmul.f32 %v344, %v697
    %v2290 = vmul.f32 %v345, %v697
    %v2291 = vmul.f32 %v346, %v697
    %v2292 = vmul.f32 %v347, %v697
    %v2293 = vadd.f32 %v2285, %v2289
    %v2294 = vadd.f32 %v2286, %v2290
    %v2295 = vadd.f32 %v2287, %v2291
    %v2296 = vadd.f32 %v2288, %v2292
    %v2297 = vmul.f32 %v140, %v706
    %v2298 = vmul.f32 %v141, %v706
    %v2299 = vmul.f32 %v142, %v706
    %v2300 = vmul.f32 %v143, %v706
    %v2301 = vadd.f32 %v2293, %v2297
    %v2302 = vadd.f32 %v2294, %v2298
    %v2303 = vadd.f32 %v2295, %v2299
    %v2304 = vadd.f32 %v2296, %v2300
    %v2305 = vmul.f32 %v244, %v715
    %v2306 = vmul.f32 %v245, %v715
    %v2307 = vmul.f32 %v246, %v715
    %v2308 = vmul.f32 %v247, %v715
    %v2309 = vadd.f32 %v2301, %v2305
    %v2310 = vadd.f32 %v2302, %v2306
    %v2311 = vadd.f32 %v2303, %v2307
    %v2312 = vadd.f32 %v2304, %v2308
    %v2313 = vmul.f32 %v348, %v724
    %v2314 = vmul.f32 %v349, %v724
    %v2315 = vmul.f32 %v350, %v724
    %v2316 = vmul.f32 %v351, %v724
    %v2317 = vadd.f32 %v2309, %v2313
    %v2318 = vadd.f32 %v2310, %v2314
    %v2319 = vadd.f32 %v2311, %v2315
    %v2320 = vadd.f32 %v2312, %v2316
    %v2321 = vmul.f32 %v144, %v733
    %v2322 = vmul.f32 %v145, %v733
    %v2323 = vmul.f32 %v146, %v733
    %v2324 = vmul.f32 %v147, %v733
    %v2325 = vadd.f32 %v2317, %v2321
    %v2326 = vadd.f32 %v2318, %v2322
    %v2327 = vadd.f32 %v2319, %v2323
    %v2328 = vadd.f32 %v2320, %v2324
    %v2329 = vmul.f32 %v248, %v742
    %v2330 = vmul.f32 %v249, %v742
    %v2331 = vmul.f32 %v250, %v742
    %v2332 = vmul.f32 %v251, %v742
    %v2333 = vadd.f32 %v2325, %v2329
    %v2334 = vadd.f32 %v2326, %v2330
    %v2335 = vadd.f32 %v2327, %v2331
    %v2336 = vadd.f32 %v2328, %v2332
    %v2337 = vmul.f32 %v352, %v751
    %v2338 = vmul.f32 %v353, %v751
    %v2339 = vmul.f32 %v354, %v751
    %v2340 = vmul.f32 %v355, %v751
    %v2341 = vadd.f32 %v2333, %v2337
    %v2342 = vadd.f32 %v2334, %v2338
    %v2343 = vadd.f32 %v2335, %v2339
    %v2344 = vadd.f32 %v2336, %v2340
    %v2345 = vmax.f32 %v2273, %v2341
    %v2346 = vmax.f32 %v2274, %v2342
    %v2347 = vmax.f32 %v2275, %v2343
    %v2348 = vmax.f32 %v2276, %v2344
    %v2349 = vmul.f32 %v140, %v683
    %v2350 = vmul.f32 %v141, %v683
    %v2351 = vmul.f32 %v142, %v683
    %v2352 = vmul.f32 %v143, %v683
    %v2353 = vmul.f32 %v244, %v688
    %v2354 = vmul.f32 %v245, %v688
    %v2355 = vmul.f32 %v246, %v688
    %v2356 = vmul.f32 %v247, %v688
    %v2357 = vadd.f32 %v2349, %v2353
    %v2358 = vadd.f32 %v2350, %v2354
    %v2359 = vadd.f32 %v2351, %v2355
    %v2360 = vadd.f32 %v2352, %v2356
    %v2361 = vmul.f32 %v348, %v697
    %v2362 = vmul.f32 %v349, %v697
    %v2363 = vmul.f32 %v350, %v697
    %v2364 = vmul.f32 %v351, %v697
    %v2365 = vadd.f32 %v2357, %v2361
    %v2366 = vadd.f32 %v2358, %v2362
    %v2367 = vadd.f32 %v2359, %v2363
    %v2368 = vadd.f32 %v2360, %v2364
    %v2369 = vmul.f32 %v144, %v706
    %v2370 = vmul.f32 %v145, %v706
    %v2371 = vmul.f32 %v146, %v706
    %v2372 = vmul.f32 %v147, %v706
    %v2373 = vadd.f32 %v2365, %v2369
    %v2374 = vadd.f32 %v2366, %v2370
    %v2375 = vadd.f32 %v2367, %v2371
    %v2376 = vadd.f32 %v2368, %v2372
    %v2377 = vmul.f32 %v248, %v715
    %v2378 = vmul.f32 %v249, %v715
    %v2379 = vmul.f32 %v250, %v715
    %v2380 = vmul.f32 %v251, %v715
    %v2381 = vadd.f32 %v2373, %v2377
    %v2382 = vadd.f32 %v2374, %v2378
    %v2383 = vadd.f32 %v2375, %v2379
    %v2384 = vadd.f32 %v2376, %v2380
    %v2385 = vmul.f32 %v352, %v724
    %v2386 = vmul.f32 %v353, %v724
    %v2387 = vmul.f32 %v354, %v724
    %v2388 = vmul.f32 %v355, %v724
    %v2389 = vadd.f32 %v2381, %v2385
    %v2390 = vadd.f32 %v2382, %v2386
    %v2391 = vadd.f32 %v2383, %v2387
    %v2392 = vadd.f32 %v2384, %v2388
    %v2393 = vmul.f32 %v148, %v733
    %v2394 = vmul.f32 %v149, %v733
    %v2395 = vmul.f32 %v150, %v733
    %v2396 = vmul.f32 %v151, %v733
    %v2397 = vadd.f32 %v2389, %v2393
    %v2398 = vadd.f32 %v2390, %v2394
    %v2399 = vadd.f32 %v2391, %v2395
    %v2400 = vadd.f32 %v2392, %v2396
    %v2401 = vmul.f32 %v252, %v742
    %v2402 = vmul.f32 %v253, %v742
    %v2403 = vmul.f32 %v254, %v742
    %v2404 = vmul.f32 %v255, %v742
    %v2405 = vadd.f32 %v2397, %v2401
    %v2406 = vadd.f32 %v2398, %v2402
    %v2407 = vadd.f32 %v2399, %v2403
    %v2408 = vadd.f32 %v2400, %v2404
    %v2409 = vmul.f32 %v356, %v751
    %v2410 = vmul.f32 %v357, %v751
    %v2411 = vmul.f32 %v358, %v751
    %v2412 = vmul.f32 %v359, %v751
    %v2413 = vadd.f32 %v2405, %v2409
    %v2414 = vadd.f32 %v2406, %v2410
    %v2415 = vadd.f32 %v2407, %v2411
    %v2416 = vadd.f32 %v2408, %v2412
    %v2417 = vmax.f32 %v2345, %v2413
    %v2418 = vmax.f32 %v2346, %v2414
    %v2419 = vmax.f32 %v2347, %v2415
    %v2420 = vmax.f32 %v2348, %v2416
    %v2425 = vrot.slane %v2417, 1
    %v2426 = vrot.slane %v2418, 1
    %v2427 = vsel %vm645, %v2425, %v2426
    %v2428 = vrot.slane %v2419, 1
    %v2429 = vsel %vm645, %v2426, %v2428
    %v2430 = vrot.slane %v2420, 1
    %v2431 = vsel %vm645, %v2428, %v2430
    %v2435 = vmax.f32 %v2417, %v2427
    %v2436 = vmax.f32 %v2418, %v2429
    %v2437 = vmax.f32 %v2419, %v2431
    %v2438 = vrot.slane %v2417, 2
    %v2439 = vrot.slane %v2418, 2
    %v2440 = vsel %vm659, %v2438, %v2439
    %v2441 = vrot.slane %v2419, 2
    %v2442 = vsel %vm659, %v2439, %v2441
    %v2443 = vrot.slane %v2420, 2
    %v2444 = vsel %vm659, %v2441, %v2443
    %v2448 = vmax.f32 %v2435, %v2440
    %v2449 = vmax.f32 %v2436, %v2442
    %v2450 = vmax.f32 %v2437, %v2444
    %v2451 = vadd.f32 %v2448, %v934
    %v2452 = vadd.f32 %v2449, %v934
    %v2453 = vadd.f32 %v2450, %v934
    %v2454 = vmax.f32 %v2451, 0.0
    %v2455 = vmax.f32 %v2452, 0.0
    %v2456 = vmax.f32 %v2453, 0.0
    %2457 = vst [vmem:[#allocation2 + $0xf0] sm:$0xff] %v2454
    %2458 = vst [vmem:[#allocation2 + $0xf8] sm:$0xff] %v2455
    %2459 = vst [vmem:[#allocation2 + $0x100] sm:$0xff] %v2456
    %v2460 = vmul.f32 %v132, %v944
    %v2461 = vmul.f32 %v133, %v944
    %v2462 = vmul.f32 %v134, %v944
    %v2463 = vmul.f32 %v135, %v944
    %v2464 = vmul.f32 %v236, %v949
    %v2465 = vmul.f32 %v237, %v949
    %v2466 = vmul.f32 %v238, %v949
    %v2467 = vmul.f32 %v239, %v949
    %v2468 = vadd.f32 %v2460, %v2464
    %v2469 = vadd.f32 %v2461, %v2465
    %v2470 = vadd.f32 %v2462, %v2466
    %v2471 = vadd.f32 %v2463, %v2467
    %v2472 = vmul.f32 %v340, %v958
    %v2473 = vmul.f32 %v341, %v958
    %v2474 = vmul.f32 %v342, %v958
    %v2475 = vmul.f32 %v343, %v958
    %v2476 = vadd.f32 %v2468, %v2472
    %v2477 = vadd.f32 %v2469, %v2473
    %v2478 = vadd.f32 %v2470, %v2474
    %v2479 = vadd.f32 %v2471, %v2475
    %v2480 = vmul.f32 %v136, %v967
    %v2481 = vmul.f32 %v137, %v967
    %v2482 = vmul.f32 %v138, %v967
    %v2483 = vmul.f32 %v139, %v967
    %v2484 = vadd.f32 %v2476, %v2480
    %v2485 = vadd.f32 %v2477, %v2481
    %v2486 = vadd.f32 %v2478, %v2482
    %v2487 = vadd.f32 %v2479, %v2483
    %v2488 = vmul.f32 %v240, %v976
    %v2489 = vmul.f32 %v241, %v976
    %v2490 = vmul.f32 %v242, %v976
    %v2491 = vmul.f32 %v243, %v976
    %v2492 = vadd.f32 %v2484, %v2488
    %v2493 = vadd.f32 %v2485, %v2489
    %v2494 = vadd.f32 %v2486, %v2490
    %v2495 = vadd.f32 %v2487, %v2491
    %v2496 = vmul.f32 %v344, %v985
    %v2497 = vmul.f32 %v345, %v985
    %v2498 = vmul.f32 %v346, %v985
    %v2499 = vmul.f32 %v347, %v985
    %v2500 = vadd.f32 %v2492, %v2496
    %v2501 = vadd.f32 %v2493, %v2497
    %v2502 = vadd.f32 %v2494, %v2498
    %v2503 = vadd.f32 %v2495, %v2499
    %v2504 = vmul.f32 %v140, %v994
    %v2505 = vmul.f32 %v141, %v994
    %v2506 = vmul.f32 %v142, %v994
    %v2507 = vmul.f32 %v143, %v994
    %v2508 = vadd.f32 %v2500, %v2504
    %v2509 = vadd.f32 %v2501, %v2505
    %v2510 = vadd.f32 %v2502, %v2506
    %v2511 = vadd.f32 %v2503, %v2507
    %v2512 = vmul.f32 %v244, %v1003
    %v2513 = vmul.f32 %v245, %v1003
    %v2514 = vmul.f32 %v246, %v1003
    %v2515 = vmul.f32 %v247, %v1003
    %v2516 = vadd.f32 %v2508, %v2512
    %v2517 = vadd.f32 %v2509, %v2513
    %v2518 = vadd.f32 %v2510, %v2514
    %v2519 = vadd.f32 %v2511, %v2515
    %v2520 = vmul.f32 %v348, %v1012
    %v2521 = vmul.f32 %v349, %v1012
    %v2522 = vmul.f32 %v350, %v1012
    %v2523 = vmul.f32 %v351, %v1012
    %v2524 = vadd.f32 %v2516, %v2520
    %v2525 = vadd.f32 %v2517, %v2521
    %v2526 = vadd.f32 %v2518, %v2522
    %v2527 = vadd.f32 %v2519, %v2523
    %v2528 = vmul.f32 %v136, %v944
    %v2529 = vmul.f32 %v137, %v944
    %v2530 = vmul.f32 %v138, %v944
    %v2531 = vmul.f32 %v139, %v944
    %v2532 = vmul.f32 %v240, %v949
    %v2533 = vmul.f32 %v241, %v949
    %v2534 = vmul.f32 %v242, %v949
    %v2535 = vmul.f32 %v243, %v949
    %v2536 = vadd.f32 %v2528, %v2532
    %v2537 = vadd.f32 %v2529, %v2533
    %v2538 = vadd.f32 %v2530, %v2534
    %v2539 = vadd.f32 %v2531, %v2535
    %v2540 = vmul.f32 %v344, %v958
    %v2541 = vmul.f32 %v345, %v958
    %v2542 = vmul.f32 %v346, %v958
    %v2543 = vmul.f32 %v347, %v958
    %v2544 = vadd.f32 %v2536, %v2540
    %v2545 = vadd.f32 %v2537, %v2541
    %v2546 = vadd.f32 %v2538, %v2542
    %v2547 = vadd.f32 %v2539, %v2543
    %v2548 = vmul.f32 %v140, %v967
    %v2549 = vmul.f32 %v141, %v967
    %v2550 = vmul.f32 %v142, %v967
    %v2551 = vmul.f32 %v143, %v967
    %v2552 = vadd.f32 %v2544, %v2548
    %v2553 = vadd.f32 %v2545, %v2549
    %v2554 = vadd.f32 %v2546, %v2550
    %v2555 = vadd.f32 %v2547, %v2551
    %v2556 = vmul.f32 %v244, %v976
    %v2557 = vmul.f32 %v245, %v976
    %v2558 = vmul.f32 %v246, %v976
    %v2559 = vmul.f32 %v247, %v976
    %v2560 = vadd.f32 %v2552, %v2556
    %v2561 = vadd.f32 %v2553, %v2557
    %v2562 = vadd.f32 %v2554, %v2558
    %v2563 = vadd.f32 %v2555, %v2559
    %v2564 = vmul.f32 %v348, %v985
    %v2565 = vmul.f32 %v349, %v985
    %v2566 = vmul.f32 %v350, %v985
    %v2567 = vmul.f32 %v351, %v985
    %v2568 = vadd.f32 %v2560, %v2564
    %v2569 = vadd.f32 %v2561, %v2565
    %v2570 = vadd.f32 %v2562, %v2566
    %v2571 = vadd.f32 %v2563, %v2567
    %v2572 = vmul.f32 %v144, %v994
    %v2573 = vmul.f32 %v145, %v994
    %v2574 = vmul.f32 %v146, %v994
    %v2575 = vmul.f32 %v147, %v994
    %v2576 = vadd.f32 %v2568, %v2572
    %v2577 = vadd.f32 %v2569, %v2573
    %v2578 = vadd.f32 %v2570, %v2574
    %v2579 = vadd.f32 %v2571, %v2575
    %v2580 = vmul.f32 %v248, %v1003
    %v2581 = vmul.f32 %v249, %v1003
    %v2582 = vmul.f32 %v250, %v1003
    %v2583 = vmul.f32 %v251, %v1003
    %v2584 = vadd.f32 %v2576, %v2580
    %v2585 = vadd.f32 %v2577, %v2581
    %v2586 = vadd.f32 %v2578, %v2582
    %v2587 = vadd.f32 %v2579, %v2583
    %v2588 = vmul.f32 %v352, %v1012
    %v2589 = vmul.f32 %v353, %v1012
    %v2590 = vmul.f32 %v354, %v1012
    %v2591 = vmul.f32 %v355, %v1012
    %v2592 = vadd.f32 %v2584, %v2588
    %v2593 = vadd.f32 %v2585, %v2589
    %v2594 = vadd.f32 %v2586, %v2590
    %v2595 = vadd.f32 %v2587, %v2591
    %v2596 = vmax.f32 %v2524, %v2592
    %v2597 = vmax.f32 %v2525, %v2593
    %v2598 = vmax.f32 %v2526, %v2594
    %v2599 = vmax.f32 %v2527, %v2595
    %v2600 = vmul.f32 %v140, %v944
    %v2601 = vmul.f32 %v141, %v944
    %v2602 = vmul.f32 %v142, %v944
    %v2603 = vmul.f32 %v143, %v944
    %v2604 = vmul.f32 %v244, %v949
    %v2605 = vmul.f32 %v245, %v949
    %v2606 = vmul.f32 %v246, %v949
    %v2607 = vmul.f32 %v247, %v949
    %v2608 = vadd.f32 %v2600, %v2604
    %v2609 = vadd.f32 %v2601, %v2605
    %v2610 = vadd.f32 %v2602, %v2606
    %v2611 = vadd.f32 %v2603, %v2607
    %v2612 = vmul.f32 %v348, %v958
    %v2613 = vmul.f32 %v349, %v958
    %v2614 = vmul.f32 %v350, %v958
    %v2615 = vmul.f32 %v351, %v958
    %v2616 = vadd.f32 %v2608, %v2612
    %v2617 = vadd.f32 %v2609, %v2613
    %v2618 = vadd.f32 %v2610, %v2614
    %v2619 = vadd.f32 %v2611, %v2615
    %v2620 = vmul.f32 %v144, %v967
    %v2621 = vmul.f32 %v145, %v967
    %v2622 = vmul.f32 %v146, %v967
    %v2623 = vmul.f32 %v147, %v967
    %v2624 = vadd.f32 %v2616, %v2620
    %v2625 = vadd.f32 %v2617, %v2621
    %v2626 = vadd.f32 %v2618, %v2622
    %v2627 = vadd.f32 %v2619, %v2623
    %v2628 = vmul.f32 %v248, %v976
    %v2629 = vmul.f32 %v249, %v976
    %v2630 = vmul.f32 %v250, %v976
    %v2631 = vmul.f32 %v251, %v976
    %v2632 = vadd.f32 %v2624, %v2628
    %v2633 = vadd.f32 %v2625, %v2629
    %v2634 = vadd.f32 %v2626, %v2630
    %v2635 = vadd.f32 %v2627, %v2631
    %v2636 = vmul.f32 %v352, %v985
    %v2637 = vmul.f32 %v353, %v985
    %v2638 = vmul.f32 %v354, %v985
    %v2639 = vmul.f32 %v355, %v985
    %v2640 = vadd.f32 %v2632, %v2636
    %v2641 = vadd.f32 %v2633, %v2637
    %v2642 = vadd.f32 %v2634, %v2638
    %v2643 = vadd.f32 %v2635, %v2639
    %v2644 = vmul.f32 %v148, %v994
    %v2645 = vmul.f32 %v149, %v994
    %v2646 = vmul.f32 %v150, %v994
    %v2647 = vmul.f32 %v151, %v994
    %v2648 = vadd.f32 %v2640, %v2644
    %v2649 = vadd.f32 %v2641, %v2645
    %v2650 = vadd.f32 %v2642, %v2646
    %v2651 = vadd.f32 %v2643, %v2647
    %v2652 = vmul.f32 %v252, %v1003
    %v2653 = vmul.f32 %v253, %v1003
    %v2654 = vmul.f32 %v254, %v1003
    %v2655 = vmul.f32 %v255, %v1003
    %v2656 = vadd.f32 %v2648, %v2652
    %v2657 = vadd.f32 %v2649, %v2653
    %v2658 = vadd.f32 %v2650, %v2654
    %v2659 = vadd.f32 %v2651, %v2655
    %v2660 = vmul.f32 %v356, %v1012
    %v2661 = vmul.f32 %v357, %v1012
    %v2662 = vmul.f32 %v358, %v1012
    %v2663 = vmul.f32 %v359, %v1012
    %v2664 = vadd.f32 %v2656, %v2660
    %v2665 = vadd.f32 %v2657, %v2661
    %v2666 = vadd.f32 %v2658, %v2662
    %v2667 = vadd.f32 %v2659, %v2663
    %v2668 = vmax.f32 %v2596, %v2664
    %v2669 = vmax.f32 %v2597, %v2665
    %v2670 = vmax.f32 %v2598, %v2666
    %v2671 = vmax.f32 %v2599, %v2667
    %v2676 = vrot.slane %v2668, 1
    %v2677 = vrot.slane %v2669, 1
    %v2678 = vsel %vm645, %v2676, %v2677
    %v2679 = vrot.slane %v2670, 1
    %v2680 = vsel %vm645, %v2677, %v2679
    %v2681 = vrot.slane %v2671, 1
    %v2682 = vsel %vm645, %v2679, %v2681
    %v2686 = vmax.f32 %v2668, %v2678
    %v2687 = vmax.f32 %v2669, %v2680
    %v2688 = vmax.f32 %v2670, %v2682
    %v2689 = vrot.slane %v2668, 2
    %v2690 = vrot.slane %v2669, 2
    %v2691 = vsel %vm659, %v2689, %v2690
    %v2692 = vrot.slane %v2670, 2
    %v2693 = vsel %vm659, %v2690, %v2692
    %v2694 = vrot.slane %v2671, 2
    %v2695 = vsel %vm659, %v2692, %v2694
    %v2699 = vmax.f32 %v2686, %v2691
    %v2700 = vmax.f32 %v2687, %v2693
    %v2701 = vmax.f32 %v2688, %v2695
    %v2702 = vadd.f32 %v2699, %v1195
    %v2703 = vadd.f32 %v2700, %v1195
    %v2704 = vadd.f32 %v2701, %v1195
    %v2705 = vmax.f32 %v2702, 0.0
    %v2706 = vmax.f32 %v2703, 0.0
    %v2707 = vmax.f32 %v2704, 0.0
    %2708 = vst [vmem:[#allocation2 + $0x1b0] sm:$0xff] %v2705
    %2709 = vst [vmem:[#allocation2 + $0x1b8] sm:$0xff] %v2706
    %2710 = vst [vmem:[#allocation2 + $0x1c0] sm:$0xff] %v2707
    %v2711 = vmul.f32 %v144, %v420
    %v2712 = vmul.f32 %v145, %v420
    %v2713 = vmul.f32 %v146, %v420
    %v2714 = vmul.f32 %v147, %v420
    %v2715 = vmul.f32 %v248, %v425
    %v2716 = vmul.f32 %v249, %v425
    %v2717 = vmul.f32 %v250, %v425
    %v2718 = vmul.f32 %v251, %v425
    %v2719 = vadd.f32 %v2711, %v2715
    %v2720 = vadd.f32 %v2712, %v2716
    %v2721 = vadd.f32 %v2713, %v2717
    %v2722 = vadd.f32 %v2714, %v2718
    %v2723 = vmul.f32 %v352, %v434
    %v2724 = vmul.f32 %v353, %v434
    %v2725 = vmul.f32 %v354, %v434
    %v2726 = vmul.f32 %v355, %v434
    %v2727 = vadd.f32 %v2719, %v2723
    %v2728 = vadd.f32 %v2720, %v2724
    %v2729 = vadd.f32 %v2721, %v2725
    %v2730 = vadd.f32 %v2722, %v2726
    %v2731 = vmul.f32 %v148, %v443
    %v2732 = vmul.f32 %v149, %v443
    %v2733 = vmul.f32 %v150, %v443
    %v2734 = vmul.f32 %v151, %v443
    %v2735 = vadd.f32 %v2727, %v2731
    %v2736 = vadd.f32 %v2728, %v2732
    %v2737 = vadd.f32 %v2729, %v2733
    %v2738 = vadd.f32 %v2730, %v2734
    %v2739 = vmul.f32 %v252, %v452
    %v2740 = vmul.f32 %v253, %v452
    %v2741 = vmul.f32 %v254, %v452
    %v2742 = vmul.f32 %v255, %v452
    %v2743 = vadd.f32 %v2735, %v2739
    %v2744 = vadd.f32 %v2736, %v2740
    %v2745 = vadd.f32 %v2737, %v2741
    %v2746 = vadd.f32 %v2738, %v2742
    %v2747 = vmul.f32 %v356, %v461
    %v2748 = vmul.f32 %v357, %v461
    %v2749 = vmul.f32 %v358, %v461
    %v2750 = vmul.f32 %v359, %v461
    %v2751 = vadd.f32 %v2743, %v2747
    %v2752 = vadd.f32 %v2744, %v2748
    %v2753 = vadd.f32 %v2745, %v2749
    %v2754 = vadd.f32 %v2746, %v2750
    %v2755 = vmul.f32 %v152, %v470
    %v2756 = vmul.f32 %v153, %v470
    %v2757 = vmul.f32 %v154, %v470
    %v2758 = vmul.f32 %v155, %v470
    %v2759 = vadd.f32 %v2751, %v2755
    %v2760 = vadd.f32 %v2752, %v2756
    %v2761 = vadd.f32 %v2753, %v2757
    %v2762 = vadd.f32 %v2754, %v2758
    %v2763 = vmul.f32 %v256, %v479
    %v2764 = vmul.f32 %v257, %v479
    %v2765 = vmul.f32 %v258, %v479
    %v2766 = vmul.f32 %v259, %v479
    %v2767 = vadd.f32 %v2759, %v2763
    %v2768 = vadd.f32 %v2760, %v2764
    %v2769 = vadd.f32 %v2761, %v2765
    %v2770 = vadd.f32 %v2762, %v2766
    %v2771 = vmul.f32 %v360, %v488
    %v2772 = vmul.f32 %v361, %v488
    %v2773 = vmul.f32 %v362, %v488
    %v2774 = vmul.f32 %v363, %v488
    %v2775 = vadd.f32 %v2767, %v2771
    %v2776 = vadd.f32 %v2768, %v2772
    %v2777 = vadd.f32 %v2769, %v2773
    %v2778 = vadd.f32 %v2770, %v2774
    %v2779 = vmul.f32 %v148, %v420
    %v2780 = vmul.f32 %v149, %v420
    %v2781 = vmul.f32 %v150, %v420
    %v2782 = vmul.f32 %v151, %v420
    %v2783 = vmul.f32 %v252, %v425
    %v2784 = vmul.f32 %v253, %v425
    %v2785 = vmul.f32 %v254, %v425
    %v2786 = vmul.f32 %v255, %v425
    %v2787 = vadd.f32 %v2779, %v2783
    %v2788 = vadd.f32 %v2780, %v2784
    %v2789 = vadd.f32 %v2781, %v2785
    %v2790 = vadd.f32 %v2782, %v2786
    %v2791 = vmul.f32 %v356, %v434
    %v2792 = vmul.f32 %v357, %v434
    %v2793 = vmul.f32 %v358, %v434
    %v2794 = vmul.f32 %v359, %v434
    %v2795 = vadd.f32 %v2787, %v2791
    %v2796 = vadd.f32 %v2788, %v2792
    %v2797 = vadd.f32 %v2789, %v2793
    %v2798 = vadd.f32 %v2790, %v2794
    %v2799 = vmul.f32 %v152, %v443
    %v2800 = vmul.f32 %v153, %v443
    %v2801 = vmul.f32 %v154, %v443
    %v2802 = vmul.f32 %v155, %v443
    %v2803 = vadd.f32 %v2795, %v2799
    %v2804 = vadd.f32 %v2796, %v2800
    %v2805 = vadd.f32 %v2797, %v2801
    %v2806 = vadd.f32 %v2798, %v2802
    %v2807 = vmul.f32 %v256, %v452
    %v2808 = vmul.f32 %v257, %v452
    %v2809 = vmul.f32 %v258, %v452
    %v2810 = vmul.f32 %v259, %v452
    %v2811 = vadd.f32 %v2803, %v2807
    %v2812 = vadd.f32 %v2804, %v2808
    %v2813 = vadd.f32 %v2805, %v2809
    %v2814 = vadd.f32 %v2806, %v2810
    %v2815 = vmul.f32 %v360, %v461
    %v2816 = vmul.f32 %v361, %v461
    %v2817 = vmul.f32 %v362, %v461
    %v2818 = vmul.f32 %v363, %v461
    %v2819 = vadd.f32 %v2811, %v2815
    %v2820 = vadd.f32 %v2812, %v2816
    %v2821 = vadd.f32 %v2813, %v2817
    %v2822 = vadd.f32 %v2814, %v2818
    %v2823 = vmul.f32 %v156, %v470
    %v2824 = vmul.f32 %v157, %v470
    %v2825 = vmul.f32 %v158, %v470
    %v2826 = vmul.f32 %v159, %v470
    %v2827 = vadd.f32 %v2819, %v2823
    %v2828 = vadd.f32 %v2820, %v2824
    %v2829 = vadd.f32 %v2821, %v2825
    %v2830 = vadd.f32 %v2822, %v2826
    %v2831 = vmul.f32 %v260, %v479
    %v2832 = vmul.f32 %v261, %v479
    %v2833 = vmul.f32 %v262, %v479
    %v2834 = vmul.f32 %v263, %v479
    %v2835 = vadd.f32 %v2827, %v2831
    %v2836 = vadd.f32 %v2828, %v2832
    %v2837 = vadd.f32 %v2829, %v2833
    %v2838 = vadd.f32 %v2830, %v2834
    %v2839 = vmul.f32 %v364, %v488
    %v2840 = vmul.f32 %v365, %v488
    %v2841 = vmul.f32 %v366, %v488
    %v2842 = vmul.f32 %v367, %v488
    %v2843 = vadd.f32 %v2835, %v2839
    %v2844 = vadd.f32 %v2836, %v2840
    %v2845 = vadd.f32 %v2837, %v2841
    %v2846 = vadd.f32 %v2838, %v2842
    %v2847 = vmax.f32 %v2775, %v2843
    %v2848 = vmax.f32 %v2776, %v2844
    %v2849 = vmax.f32 %v2777, %v2845
    %v2850 = vmax.f32 %v2778, %v2846
    %v2851 = vmul.f32 %v152, %v420
    %v2852 = vmul.f32 %v153, %v420
    %v2853 = vmul.f32 %v154, %v420
    %v2854 = vmul.f32 %v155, %v420
    %v2855 = vmul.f32 %v256, %v425
    %v2856 = vmul.f32 %v257, %v425
    %v2857 = vmul.f32 %v258, %v425
    %v2858 = vmul.f32 %v259, %v425
    %v2859 = vadd.f32 %v2851, %v2855
    %v2860 = vadd.f32 %v2852, %v2856
    %v2861 = vadd.f32 %v2853, %v2857
    %v2862 = vadd.f32 %v2854, %v2858
    %v2863 = vmul.f32 %v360, %v434
    %v2864 = vmul.f32 %v361, %v434
    %v2865 = vmul.f32 %v362, %v434
    %v2866 = vmul.f32 %v363, %v434
    %v2867 = vadd.f32 %v2859, %v2863
    %v2868 = vadd.f32 %v2860, %v2864
    %v2869 = vadd.f32 %v2861, %v2865
    %v2870 = vadd.f32 %v2862, %v2866
    %v2871 = vmul.f32 %v156, %v443
    %v2872 = vmul.f32 %v157, %v443
    %v2873 = vmul.f32 %v158, %v443
    %v2874 = vmul.f32 %v159, %v443
    %v2875 = vadd.f32 %v2867, %v2871
    %v2876 = vadd.f32 %v2868, %v2872
    %v2877 = vadd.f32 %v2869, %v2873
    %v2878 = vadd.f32 %v2870, %v2874
    %v2879 = vmul.f32 %v260, %v452
    %v2880 = vmul.f32 %v261, %v452
    %v2881 = vmul.f32 %v262, %v452
    %v2882 = vmul.f32 %v263, %v452
    %v2883 = vadd.f32 %v2875, %v2879
    %v2884 = vadd.f32 %v2876, %v2880
    %v2885 = vadd.f32 %v2877, %v2881
    %v2886 = vadd.f32 %v2878, %v2882
    %v2887 = vmul.f32 %v364, %v461
    %v2888 = vmul.f32 %v365, %v461
    %v2889 = vmul.f32 %v366, %v461
    %v2890 = vmul.f32 %v367, %v461
    %v2891 = vadd.f32 %v2883, %v2887
    %v2892 = vadd.f32 %v2884, %v2888
    %v2893 = vadd.f32 %v2885, %v2889
    %v2894 = vadd.f32 %v2886, %v2890
    %v2895 = vmul.f32 %v160, %v470
    %v2896 = vmul.f32 %v161, %v470
    %v2897 = vmul.f32 %v162, %v470
    %v2898 = vmul.f32 %v163, %v470
    %v2899 = vadd.f32 %v2891, %v2895
    %v2900 = vadd.f32 %v2892, %v2896
    %v2901 = vadd.f32 %v2893, %v2897
    %v2902 = vadd.f32 %v2894, %v2898
    %v2903 = vmul.f32 %v264, %v479
    %v2904 = vmul.f32 %v265, %v479
    %v2905 = vmul.f32 %v266, %v479
    %v2906 = vmul.f32 %v267, %v479
    %v2907 = vadd.f32 %v2899, %v2903
    %v2908 = vadd.f32 %v2900, %v2904
    %v2909 = vadd.f32 %v2901, %v2905
    %v2910 = vadd.f32 %v2902, %v2906
    %v2911 = vmul.f32 %v368, %v488
    %v2912 = vmul.f32 %v369, %v488
    %v2913 = vmul.f32 %v370, %v488
    %v2914 = vmul.f32 %v371, %v488
    %v2915 = vadd.f32 %v2907, %v2911
    %v2916 = vadd.f32 %v2908, %v2912
    %v2917 = vadd.f32 %v2909, %v2913
    %v2918 = vadd.f32 %v2910, %v2914
    %v2919 = vmax.f32 %v2847, %v2915
    %v2920 = vmax.f32 %v2848, %v2916
    %v2921 = vmax.f32 %v2849, %v2917
    %v2922 = vmax.f32 %v2850, %v2918
    %v2927 = vrot.slane %v2919, 1
    %v2928 = vrot.slane %v2920, 1
    %v2929 = vsel %vm645, %v2927, %v2928
    %v2930 = vrot.slane %v2921, 1
    %v2931 = vsel %vm645, %v2928, %v2930
    %v2932 = vrot.slane %v2922, 1
    %v2933 = vsel %vm645, %v2930, %v2932
    %v2937 = vmax.f32 %v2919, %v2929
    %v2938 = vmax.f32 %v2920, %v2931
    %v2939 = vmax.f32 %v2921, %v2933
    %v2940 = vrot.slane %v2919, 2
    %v2941 = vrot.slane %v2920, 2
    %v2942 = vsel %vm659, %v2940, %v2941
    %v2943 = vrot.slane %v2921, 2
    %v2944 = vsel %vm659, %v2941, %v2943
    %v2945 = vrot.slane %v2922, 2
    %v2946 = vsel %vm659, %v2943, %v2945
    %v2950 = vmax.f32 %v2937, %v2942
    %v2951 = vmax.f32 %v2938, %v2944
    %v2952 = vmax.f32 %v2939, %v2946
    %v2953 = vadd.f32 %v2950, %v673
    %v2954 = vadd.f32 %v2951, %v673
    %v2955 = vadd.f32 %v2952, %v673
    %v2956 = vmax.f32 %v2953, 0.0
    %v2957 = vmax.f32 %v2954, 0.0
    %v2958 = vmax.f32 %v2955, 0.0
    %2959 = vst [vmem:[#allocation2 + $0x48] sm:$0xff] %v2956
    %2960 = vst [vmem:[#allocation2 + $0x50] sm:$0xff] %v2957
    %2961 = vst [vmem:[#allocation2 + $0x58] sm:$0xff] %v2958
    %v2962 = vmul.f32 %v144, %v683
    %v2963 = vmul.f32 %v145, %v683
    %v2964 = vmul.f32 %v146, %v683
    %v2965 = vmul.f32 %v147, %v683
    %v2966 = vmul.f32 %v248, %v688
    %v2967 = vmul.f32 %v249, %v688
    %v2968 = vmul.f32 %v250, %v688
    %v2969 = vmul.f32 %v251, %v688
    %v2970 = vadd.f32 %v2962, %v2966
    %v2971 = vadd.f32 %v2963, %v2967
    %v2972 = vadd.f32 %v2964, %v2968
    %v2973 = vadd.f32 %v2965, %v2969
    %v2974 = vmul.f32 %v352, %v697
    %v2975 = vmul.f32 %v353, %v697
    %v2976 = vmul.f32 %v354, %v697
    %v2977 = vmul.f32 %v355, %v697
    %v2978 = vadd.f32 %v2970, %v2974
    %v2979 = vadd.f32 %v2971, %v2975
    %v2980 = vadd.f32 %v2972, %v2976
    %v2981 = vadd.f32 %v2973, %v2977
    %v2982 = vmul.f32 %v148, %v706
    %v2983 = vmul.f32 %v149, %v706
    %v2984 = vmul.f32 %v150, %v706
    %v2985 = vmul.f32 %v151, %v706
    %v2986 = vadd.f32 %v2978, %v2982
    %v2987 = vadd.f32 %v2979, %v2983
    %v2988 = vadd.f32 %v2980, %v2984
    %v2989 = vadd.f32 %v2981, %v2985
    %v2990 = vmul.f32 %v252, %v715
    %v2991 = vmul.f32 %v253, %v715
    %v2992 = vmul.f32 %v254, %v715
    %v2993 = vmul.f32 %v255, %v715
    %v2994 = vadd.f32 %v2986, %v2990
    %v2995 = vadd.f32 %v2987, %v2991
    %v2996 = vadd.f32 %v2988, %v2992
    %v2997 = vadd.f32 %v2989, %v2993
    %v2998 = vmul.f32 %v356, %v724
    %v2999 = vmul.f32 %v357, %v724
    %v3000 = vmul.f32 %v358, %v724
    %v3001 = vmul.f32 %v359, %v724
    %v3002 = vadd.f32 %v2994, %v2998
    %v3003 = vadd.f32 %v2995, %v2999
    %v3004 = vadd.f32 %v2996, %v3000
    %v3005 = vadd.f32 %v2997, %v3001
    %v3006 = vmul.f32 %v152, %v733
    %v3007 = vmul.f32 %v153, %v733
    %v3008 = vmul.f32 %v154, %v733
    %v3009 = vmul.f32 %v155, %v733
    %v3010 = vadd.f32 %v3002, %v3006
    %v3011 = vadd.f32 %v3003, %v3007
    %v3012 = vadd.f32 %v3004, %v3008
    %v3013 = vadd.f32 %v3005, %v3009
    %v3014 = vmul.f32 %v256, %v742
    %v3015 = vmul.f32 %v257, %v742
    %v3016 = vmul.f32 %v258, %v742
    %v3017 = vmul.f32 %v259, %v742
    %v3018 = vadd.f32 %v3010, %v3014
    %v3019 = vadd.f32 %v3011, %v3015
    %v3020 = vadd.f32 %v3012, %v3016
    %v3021 = vadd.f32 %v3013, %v3017
    %v3022 = vmul.f32 %v360, %v751
    %v3023 = vmul.f32 %v361, %v751
    %v3024 = vmul.f32 %v362, %v751
    %v3025 = vmul.f32 %v363, %v751
    %v3026 = vadd.f32 %v3018, %v3022
    %v3027 = vadd.f32 %v3019, %v3023
    %v3028 = vadd.f32 %v3020, %v3024
    %v3029 = vadd.f32 %v3021, %v3025
    %v3030 = vmul.f32 %v148, %v683
    %v3031 = vmul.f32 %v149, %v683
    %v3032 = vmul.f32 %v150, %v683
    %v3033 = vmul.f32 %v151, %v683
    %v3034 = vmul.f32 %v252, %v688
    %v3035 = vmul.f32 %v253, %v688
    %v3036 = vmul.f32 %v254, %v688
    %v3037 = vmul.f32 %v255, %v688
    %v3038 = vadd.f32 %v3030, %v3034
    %v3039 = vadd.f32 %v3031, %v3035
    %v3040 = vadd.f32 %v3032, %v3036
    %v3041 = vadd.f32 %v3033, %v3037
    %v3042 = vmul.f32 %v356, %v697
    %v3043 = vmul.f32 %v357, %v697
    %v3044 = vmul.f32 %v358, %v697
    %v3045 = vmul.f32 %v359, %v697
    %v3046 = vadd.f32 %v3038, %v3042
    %v3047 = vadd.f32 %v3039, %v3043
    %v3048 = vadd.f32 %v3040, %v3044
    %v3049 = vadd.f32 %v3041, %v3045
    %v3050 = vmul.f32 %v152, %v706
    %v3051 = vmul.f32 %v153, %v706
    %v3052 = vmul.f32 %v154, %v706
    %v3053 = vmul.f32 %v155, %v706
    %v3054 = vadd.f32 %v3046, %v3050
    %v3055 = vadd.f32 %v3047, %v3051
    %v3056 = vadd.f32 %v3048, %v3052
    %v3057 = vadd.f32 %v3049, %v3053
    %v3058 = vmul.f32 %v256, %v715
    %v3059 = vmul.f32 %v257, %v715
    %v3060 = vmul.f32 %v258, %v715
    %v3061 = vmul.f32 %v259, %v715
    %v3062 = vadd.f32 %v3054, %v3058
    %v3063 = vadd.f32 %v3055, %v3059
    %v3064 = vadd.f32 %v3056, %v3060
    %v3065 = vadd.f32 %v3057, %v3061
    %v3066 = vmul.f32 %v360, %v724
    %v3067 = vmul.f32 %v361, %v724
    %v3068 = vmul.f32 %v362, %v724
    %v3069 = vmul.f32 %v363, %v724
    %v3070 = vadd.f32 %v3062, %v3066
    %v3071 = vadd.f32 %v3063, %v3067
    %v3072 = vadd.f32 %v3064, %v3068
    %v3073 = vadd.f32 %v3065, %v3069
    %v3074 = vmul.f32 %v156, %v733
    %v3075 = vmul.f32 %v157, %v733
    %v3076 = vmul.f32 %v158, %v733
    %v3077 = vmul.f32 %v159, %v733
    %v3078 = vadd.f32 %v3070, %v3074
    %v3079 = vadd.f32 %v3071, %v3075
    %v3080 = vadd.f32 %v3072, %v3076
    %v3081 = vadd.f32 %v3073, %v3077
    %v3082 = vmul.f32 %v260, %v742
    %v3083 = vmul.f32 %v261, %v742
    %v3084 = vmul.f32 %v262, %v742
    %v3085 = vmul.f32 %v263, %v742
    %v3086 = vadd.f32 %v3078, %v3082
    %v3087 = vadd.f32 %v3079, %v3083
    %v3088 = vadd.f32 %v3080, %v3084
    %v3089 = vadd.f32 %v3081, %v3085
    %v3090 = vmul.f32 %v364, %v751
    %v3091 = vmul.f32 %v365, %v751
    %v3092 = vmul.f32 %v366, %v751
    %v3093 = vmul.f32 %v367, %v751
    %v3094 = vadd.f32 %v3086, %v3090
    %v3095 = vadd.f32 %v3087, %v3091
    %v3096 = vadd.f32 %v3088, %v3092
    %v3097 = vadd.f32 %v3089, %v3093
    %v3098 = vmax.f32 %v3026, %v3094
    %v3099 = vmax.f32 %v3027, %v3095
    %v3100 = vmax.f32 %v3028, %v3096
    %v3101 = vmax.f32 %v3029, %v3097
    %v3102 = vmul.f32 %v152, %v683
    %v3103 = vmul.f32 %v153, %v683
    %v3104 = vmul.f32 %v154, %v683
    %v3105 = vmul.f32 %v155, %v683
    %v3106 = vmul.f32 %v256, %v688
    %v3107 = vmul.f32 %v257, %v688
    %v3108 = vmul.f32 %v258, %v688
    %v3109 = vmul.f32 %v259, %v688
    %v3110 = vadd.f32 %v3102, %v3106
    %v3111 = vadd.f32 %v3103, %v3107
    %v3112 = vadd.f32 %v3104, %v3108
    %v3113 = vadd.f32 %v3105, %v3109
    %v3114 = vmul.f32 %v360, %v697
    %v3115 = vmul.f32 %v361, %v697
    %v3116 = vmul.f32 %v362, %v697
    %v3117 = vmul.f32 %v363, %v697
    %v3118 = vadd.f32 %v3110, %v3114
    %v3119 = vadd.f32 %v3111, %v3115
    %v3120 = vadd.f32 %v3112, %v3116
    %v3121 = vadd.f32 %v3113, %v3117
    %v3122 = vmul.f32 %v156, %v706
    %v3123 = vmul.f32 %v157, %v706
    %v3124 = vmul.f32 %v158, %v706
    %v3125 = vmul.f32 %v159, %v706
    %v3126 = vadd.f32 %v3118, %v3122
    %v3127 = vadd.f32 %v3119, %v3123
    %v3128 = vadd.f32 %v3120, %v3124
    %v3129 = vadd.f32 %v3121, %v3125
    %v3130 = vmul.f32 %v260, %v715
    %v3131 = vmul.f32 %v261, %v715
    %v3132 = vmul.f32 %v262, %v715
    %v3133 = vmul.f32 %v263, %v715
    %v3134 = vadd.f32 %v3126, %v3130
    %v3135 = vadd.f32 %v3127, %v3131
    %v3136 = vadd.f32 %v3128, %v3132
    %v3137 = vadd.f32 %v3129, %v3133
    %v3138 = vmul.f32 %v364, %v724
    %v3139 = vmul.f32 %v365, %v724
    %v3140 = vmul.f32 %v366, %v724
    %v3141 = vmul.f32 %v367, %v724
    %v3142 = vadd.f32 %v3134, %v3138
    %v3143 = vadd.f32 %v3135, %v3139
    %v3144 = vadd.f32 %v3136, %v3140
    %v3145 = vadd.f32 %v3137, %v3141
    %v3146 = vmul.f32 %v160, %v733
    %v3147 = vmul.f32 %v161, %v733
    %v3148 = vmul.f32 %v162, %v733
    %v3149 = vmul.f32 %v163, %v733
    %v3150 = vadd.f32 %v3142, %v3146
    %v3151 = vadd.f32 %v3143, %v3147
    %v3152 = vadd.f32 %v3144, %v3148
    %v3153 = vadd.f32 %v3145, %v3149
    %v3154 = vmul.f32 %v264, %v742
    %v3155 = vmul.f32 %v265, %v742
    %v3156 = vmul.f32 %v266, %v742
    %v3157 = vmul.f32 %v267, %v742
    %v3158 = vadd.f32 %v3150, %v3154
    %v3159 = vadd.f32 %v3151, %v3155
    %v3160 = vadd.f32 %v3152, %v3156
    %v3161 = vadd.f32 %v3153, %v3157
    %v3162 = vmul.f32 %v368, %v751
    %v3163 = vmul.f32 %v369, %v751
    %v3164 = vmul.f32 %v370, %v751
    %v3165 = vmul.f32 %v371, %v751
    %v3166 = vadd.f32 %v3158, %v3162
    %v3167 = vadd.f32 %v3159, %v3163
    %v3168 = vadd.f32 %v3160, %v3164
    %v3169 = vadd.f32 %v3161, %v3165
    %v3170 = vmax.f32 %v3098, %v3166
    %v3171 = vmax.f32 %v3099, %v3167
    %v3172 = vmax.f32 %v3100, %v3168
    %v3173 = vmax.f32 %v3101, %v3169
    %v3178 = vrot.slane %v3170, 1
    %v3179 = vrot.slane %v3171, 1
    %v3180 = vsel %vm645, %v3178, %v3179
    %v3181 = vrot.slane %v3172, 1
    %v3182 = vsel %vm645, %v3179, %v3181
    %v3183 = vrot.slane %v3173, 1
    %v3184 = vsel %vm645, %v3181, %v3183
    %v3188 = vmax.f32 %v3170, %v3180
    %v3189 = vmax.f32 %v3171, %v3182
    %v3190 = vmax.f32 %v3172, %v3184
    %v3191 = vrot.slane %v3170, 2
    %v3192 = vrot.slane %v3171, 2
    %v3193 = vsel %vm659, %v3191, %v3192
    %v3194 = vrot.slane %v3172, 2
    %v3195 = vsel %vm659, %v3192, %v3194
    %v3196 = vrot.slane %v3173, 2
    %v3197 = vsel %vm659, %v3194, %v3196
    %v3201 = vmax.f32 %v3188, %v3193
    %v3202 = vmax.f32 %v3189, %v3195
    %v3203 = vmax.f32 %v3190, %v3197
    %v3204 = vadd.f32 %v3201, %v934
    %v3205 = vadd.f32 %v3202, %v934
    %v3206 = vadd.f32 %v3203, %v934
    %v3207 = vmax.f32 %v3204, 0.0
    %v3208 = vmax.f32 %v3205, 0.0
    %v3209 = vmax.f32 %v3206, 0.0
    %3210 = vst [vmem:[#allocation2 + $0x108] sm:$0xff] %v3207
    %3211 = vst [vmem:[#allocation2 + $0x110] sm:$0xff] %v3208
    %3212 = vst [vmem:[#allocation2 + $0x118] sm:$0xff] %v3209
    %v3213 = vmul.f32 %v144, %v944
    %v3214 = vmul.f32 %v145, %v944
    %v3215 = vmul.f32 %v146, %v944
    %v3216 = vmul.f32 %v147, %v944
    %v3217 = vmul.f32 %v248, %v949
    %v3218 = vmul.f32 %v249, %v949
    %v3219 = vmul.f32 %v250, %v949
    %v3220 = vmul.f32 %v251, %v949
    %v3221 = vadd.f32 %v3213, %v3217
    %v3222 = vadd.f32 %v3214, %v3218
    %v3223 = vadd.f32 %v3215, %v3219
    %v3224 = vadd.f32 %v3216, %v3220
    %v3225 = vmul.f32 %v352, %v958
    %v3226 = vmul.f32 %v353, %v958
    %v3227 = vmul.f32 %v354, %v958
    %v3228 = vmul.f32 %v355, %v958
    %v3229 = vadd.f32 %v3221, %v3225
    %v3230 = vadd.f32 %v3222, %v3226
    %v3231 = vadd.f32 %v3223, %v3227
    %v3232 = vadd.f32 %v3224, %v3228
    %v3233 = vmul.f32 %v148, %v967
    %v3234 = vmul.f32 %v149, %v967
    %v3235 = vmul.f32 %v150, %v967
    %v3236 = vmul.f32 %v151, %v967
    %v3237 = vadd.f32 %v3229, %v3233
    %v3238 = vadd.f32 %v3230, %v3234
    %v3239 = vadd.f32 %v3231, %v3235
    %v3240 = vadd.f32 %v3232, %v3236
    %v3241 = vmul.f32 %v252, %v976
    %v3242 = vmul.f32 %v253, %v976
    %v3243 = vmul.f32 %v254, %v976
    %v3244 = vmul.f32 %v255, %v976
    %v3245 = vadd.f32 %v3237, %v3241
    %v3246 = vadd.f32 %v3238, %v3242
    %v3247 = vadd.f32 %v3239, %v3243
    %v3248 = vadd.f32 %v3240, %v3244
    %v3249 = vmul.f32 %v356, %v985
    %v3250 = vmul.f32 %v357, %v985
    %v3251 = vmul.f32 %v358, %v985
    %v3252 = vmul.f32 %v359, %v985
    %v3253 = vadd.f32 %v3245, %v3249
    %v3254 = vadd.f32 %v3246, %v3250
    %v3255 = vadd.f32 %v3247, %v3251
    %v3256 = vadd.f32 %v3248, %v3252
    %v3257 = vmul.f32 %v152, %v994
    %v3258 = vmul.f32 %v153, %v994
    %v3259 = vmul.f32 %v154, %v994
    %v3260 = vmul.f32 %v155, %v994
    %v3261 = vadd.f32 %v3253, %v3257
    %v3262 = vadd.f32 %v3254, %v3258
    %v3263 = vadd.f32 %v3255, %v3259
    %v3264 = vadd.f32 %v3256, %v3260
    %v3265 = vmul.f32 %v256, %v1003
    %v3266 = vmul.f32 %v257, %v1003
    %v3267 = vmul.f32 %v258, %v1003
    %v3268 = vmul.f32 %v259, %v1003
    %v3269 = vadd.f32 %v3261, %v3265
    %v3270 = vadd.f32 %v3262, %v3266
    %v3271 = vadd.f32 %v3263, %v3267
    %v3272 = vadd.f32 %v3264, %v3268
    %v3273 = vmul.f32 %v360, %v1012
    %v3274 = vmul.f32 %v361, %v1012
    %v3275 = vmul.f32 %v362, %v1012
    %v3276 = vmul.f32 %v363, %v1012
    %v3277 = vadd.f32 %v3269, %v3273
    %v3278 = vadd.f32 %v3270, %v3274
    %v3279 = vadd.f32 %v3271, %v3275
    %v3280 = vadd.f32 %v3272, %v3276
    %v3281 = vmul.f32 %v148, %v944
    %v3282 = vmul.f32 %v149, %v944
    %v3283 = vmul.f32 %v150, %v944
    %v3284 = vmul.f32 %v151, %v944
    %v3285 = vmul.f32 %v252, %v949
    %v3286 = vmul.f32 %v253, %v949
    %v3287 = vmul.f32 %v254, %v949
    %v3288 = vmul.f32 %v255, %v949
    %v3289 = vadd.f32 %v3281, %v3285
    %v3290 = vadd.f32 %v3282, %v3286
    %v3291 = vadd.f32 %v3283, %v3287
    %v3292 = vadd.f32 %v3284, %v3288
    %v3293 = vmul.f32 %v356, %v958
    %v3294 = vmul.f32 %v357, %v958
    %v3295 = vmul.f32 %v358, %v958
    %v3296 = vmul.f32 %v359, %v958
    %v3297 = vadd.f32 %v3289, %v3293
    %v3298 = vadd.f32 %v3290, %v3294
    %v3299 = vadd.f32 %v3291, %v3295
    %v3300 = vadd.f32 %v3292, %v3296
    %v3301 = vmul.f32 %v152, %v967
    %v3302 = vmul.f32 %v153, %v967
    %v3303 = vmul.f32 %v154, %v967
    %v3304 = vmul.f32 %v155, %v967
    %v3305 = vadd.f32 %v3297, %v3301
    %v3306 = vadd.f32 %v3298, %v3302
    %v3307 = vadd.f32 %v3299, %v3303
    %v3308 = vadd.f32 %v3300, %v3304
    %v3309 = vmul.f32 %v256, %v976
    %v3310 = vmul.f32 %v257, %v976
    %v3311 = vmul.f32 %v258, %v976
    %v3312 = vmul.f32 %v259, %v976
    %v3313 = vadd.f32 %v3305, %v3309
    %v3314 = vadd.f32 %v3306, %v3310
    %v3315 = vadd.f32 %v3307, %v3311
    %v3316 = vadd.f32 %v3308, %v3312
    %v3317 = vmul.f32 %v360, %v985
    %v3318 = vmul.f32 %v361, %v985
    %v3319 = vmul.f32 %v362, %v985
    %v3320 = vmul.f32 %v363, %v985
    %v3321 = vadd.f32 %v3313, %v3317
    %v3322 = vadd.f32 %v3314, %v3318
    %v3323 = vadd.f32 %v3315, %v3319
    %v3324 = vadd.f32 %v3316, %v3320
    %v3325 = vmul.f32 %v156, %v994
    %v3326 = vmul.f32 %v157, %v994
    %v3327 = vmul.f32 %v158, %v994
    %v3328 = vmul.f32 %v159, %v994
    %v3329 = vadd.f32 %v3321, %v3325
    %v3330 = vadd.f32 %v3322, %v3326
    %v3331 = vadd.f32 %v3323, %v3327
    %v3332 = vadd.f32 %v3324, %v3328
    %v3333 = vmul.f32 %v260, %v1003
    %v3334 = vmul.f32 %v261, %v1003
    %v3335 = vmul.f32 %v262, %v1003
    %v3336 = vmul.f32 %v263, %v1003
    %v3337 = vadd.f32 %v3329, %v3333
    %v3338 = vadd.f32 %v3330, %v3334
    %v3339 = vadd.f32 %v3331, %v3335
    %v3340 = vadd.f32 %v3332, %v3336
    %v3341 = vmul.f32 %v364, %v1012
    %v3342 = vmul.f32 %v365, %v1012
    %v3343 = vmul.f32 %v366, %v1012
    %v3344 = vmul.f32 %v367, %v1012
    %v3345 = vadd.f32 %v3337, %v3341
    %v3346 = vadd.f32 %v3338, %v3342
    %v3347 = vadd.f32 %v3339, %v3343
    %v3348 = vadd.f32 %v3340, %v3344
    %v3349 = vmax.f32 %v3277, %v3345
    %v3350 = vmax.f32 %v3278, %v3346
    %v3351 = vmax.f32 %v3279, %v3347
    %v3352 = vmax.f32 %v3280, %v3348
    %v3353 = vmul.f32 %v152, %v944
    %v3354 = vmul.f32 %v153, %v944
    %v3355 = vmul.f32 %v154, %v944
    %v3356 = vmul.f32 %v155, %v944
    %v3357 = vmul.f32 %v256, %v949
    %v3358 = vmul.f32 %v257, %v949
    %v3359 = vmul.f32 %v258, %v949
    %v3360 = vmul.f32 %v259, %v949
    %v3361 = vadd.f32 %v3353, %v3357
    %v3362 = vadd.f32 %v3354, %v3358
    %v3363 = vadd.f32 %v3355, %v3359
    %v3364 = vadd.f32 %v3356, %v3360
    %v3365 = vmul.f32 %v360, %v958
    %v3366 = vmul.f32 %v361, %v958
    %v3367 = vmul.f32 %v362, %v958
    %v3368 = vmul.f32 %v363, %v958
    %v3369 = vadd.f32 %v3361, %v3365
    %v3370 = vadd.f32 %v3362, %v3366
    %v3371 = vadd.f32 %v3363, %v3367
    %v3372 = vadd.f32 %v3364, %v3368
    %v3373 = vmul.f32 %v156, %v967
    %v3374 = vmul.f32 %v157, %v967
    %v3375 = vmul.f32 %v158, %v967
    %v3376 = vmul.f32 %v159, %v967
    %v3377 = vadd.f32 %v3369, %v3373
    %v3378 = vadd.f32 %v3370, %v3374
    %v3379 = vadd.f32 %v3371, %v3375
    %v3380 = vadd.f32 %v3372, %v3376
    %v3381 = vmul.f32 %v260, %v976
    %v3382 = vmul.f32 %v261, %v976
    %v3383 = vmul.f32 %v262, %v976
    %v3384 = vmul.f32 %v263, %v976
    %v3385 = vadd.f32 %v3377, %v3381
    %v3386 = vadd.f32 %v3378, %v3382
    %v3387 = vadd.f32 %v3379, %v3383
    %v3388 = vadd.f32 %v3380, %v3384
    %v3389 = vmul.f32 %v364, %v985
    %v3390 = vmul.f32 %v365, %v985
    %v3391 = vmul.f32 %v366, %v985
    %v3392 = vmul.f32 %v367, %v985
    %v3393 = vadd.f32 %v3385, %v3389
    %v3394 = vadd.f32 %v3386, %v3390
    %v3395 = vadd.f32 %v3387, %v3391
    %v3396 = vadd.f32 %v3388, %v3392
    %v3397 = vmul.f32 %v160, %v994
    %v3398 = vmul.f32 %v161, %v994
    %v3399 = vmul.f32 %v162, %v994
    %v3400 = vmul.f32 %v163, %v994
    %v3401 = vadd.f32 %v3393, %v3397
    %v3402 = vadd.f32 %v3394, %v3398
    %v3403 = vadd.f32 %v3395, %v3399
    %v3404 = vadd.f32 %v3396, %v3400
    %v3405 = vmul.f32 %v264, %v1003
    %v3406 = vmul.f32 %v265, %v1003
    %v3407 = vmul.f32 %v266, %v1003
    %v3408 = vmul.f32 %v267, %v1003
    %v3409 = vadd.f32 %v3401, %v3405
    %v3410 = vadd.f32 %v3402, %v3406
    %v3411 = vadd.f32 %v3403, %v3407
    %v3412 = vadd.f32 %v3404, %v3408
    %v3413 = vmul.f32 %v368, %v1012
    %v3414 = vmul.f32 %v369, %v1012
    %v3415 = vmul.f32 %v370, %v1012
    %v3416 = vmul.f32 %v371, %v1012
    %v3417 = vadd.f32 %v3409, %v3413
    %v3418 = vadd.f32 %v3410, %v3414
    %v3419 = vadd.f32 %v3411, %v3415
    %v3420 = vadd.f32 %v3412, %v3416
    %v3421 = vmax.f32 %v3349, %v3417
    %v3422 = vmax.f32 %v3350, %v3418
    %v3423 = vmax.f32 %v3351, %v3419
    %v3424 = vmax.f32 %v3352, %v3420
    %v3429 = vrot.slane %v3421, 1
    %v3430 = vrot.slane %v3422, 1
    %v3431 = vsel %vm645, %v3429, %v3430
    %v3432 = vrot.slane %v3423, 1
    %v3433 = vsel %vm645, %v3430, %v3432
    %v3434 = vrot.slane %v3424, 1
    %v3435 = vsel %vm645, %v3432, %v3434
    %v3439 = vmax.f32 %v3421, %v3431
    %v3440 = vmax.f32 %v3422, %v3433
    %v3441 = vmax.f32 %v3423, %v3435
    %v3442 = vrot.slane %v3421, 2
    %v3443 = vrot.slane %v3422, 2
    %v3444 = vsel %vm659, %v3442, %v3443
    %v3445 = vrot.slane %v3423, 2
    %v3446 = vsel %vm659, %v3443, %v3445
    %v3447 = vrot.slane %v3424, 2
    %v3448 = vsel %vm659, %v3445, %v3447
    %v3452 = vmax.f32 %v3439, %v3444
    %v3453 = vmax.f32 %v3440, %v3446
    %v3454 = vmax.f32 %v3441, %v3448
    %v3455 = vadd.f32 %v3452, %v1195
    %v3456 = vadd.f32 %v3453, %v1195
    %v3457 = vadd.f32 %v3454, %v1195
    %v3458 = vmax.f32 %v3455, 0.0
    %v3459 = vmax.f32 %v3456, 0.0
    %v3460 = vmax.f32 %v3457, 0.0
    %3461 = vst [vmem:[#allocation2 + $0x1c8] sm:$0xff] %v3458
    %3462 = vst [vmem:[#allocation2 + $0x1d0] sm:$0xff] %v3459
    %3463 = vst [vmem:[#allocation2 + $0x1d8] sm:$0xff] %v3460
    %v3464 = vmul.f32 %v156, %v420
    %v3465 = vmul.f32 %v157, %v420
    %v3466 = vmul.f32 %v158, %v420
    %v3467 = vmul.f32 %v159, %v420
    %v3468 = vmul.f32 %v260, %v425
    %v3469 = vmul.f32 %v261, %v425
    %v3470 = vmul.f32 %v262, %v425
    %v3471 = vmul.f32 %v263, %v425
    %v3472 = vadd.f32 %v3464, %v3468
    %v3473 = vadd.f32 %v3465, %v3469
    %v3474 = vadd.f32 %v3466, %v3470
    %v3475 = vadd.f32 %v3467, %v3471
    %v3476 = vmul.f32 %v364, %v434
    %v3477 = vmul.f32 %v365, %v434
    %v3478 = vmul.f32 %v366, %v434
    %v3479 = vmul.f32 %v367, %v434
    %v3480 = vadd.f32 %v3472, %v3476
    %v3481 = vadd.f32 %v3473, %v3477
    %v3482 = vadd.f32 %v3474, %v3478
    %v3483 = vadd.f32 %v3475, %v3479
    %v3484 = vmul.f32 %v160, %v443
    %v3485 = vmul.f32 %v161, %v443
    %v3486 = vmul.f32 %v162, %v443
    %v3487 = vmul.f32 %v163, %v443
    %v3488 = vadd.f32 %v3480, %v3484
    %v3489 = vadd.f32 %v3481, %v3485
    %v3490 = vadd.f32 %v3482, %v3486
    %v3491 = vadd.f32 %v3483, %v3487
    %v3492 = vmul.f32 %v264, %v452
    %v3493 = vmul.f32 %v265, %v452
    %v3494 = vmul.f32 %v266, %v452
    %v3495 = vmul.f32 %v267, %v452
    %v3496 = vadd.f32 %v3488, %v3492
    %v3497 = vadd.f32 %v3489, %v3493
    %v3498 = vadd.f32 %v3490, %v3494
    %v3499 = vadd.f32 %v3491, %v3495
    %v3500 = vmul.f32 %v368, %v461
    %v3501 = vmul.f32 %v369, %v461
    %v3502 = vmul.f32 %v370, %v461
    %v3503 = vmul.f32 %v371, %v461
    %v3504 = vadd.f32 %v3496, %v3500
    %v3505 = vadd.f32 %v3497, %v3501
    %v3506 = vadd.f32 %v3498, %v3502
    %v3507 = vadd.f32 %v3499, %v3503
    %v3508 = vmul.f32 %v164, %v470
    %v3509 = vmul.f32 %v165, %v470
    %v3510 = vmul.f32 %v166, %v470
    %v3511 = vmul.f32 %v167, %v470
    %v3512 = vadd.f32 %v3504, %v3508
    %v3513 = vadd.f32 %v3505, %v3509
    %v3514 = vadd.f32 %v3506, %v3510
    %v3515 = vadd.f32 %v3507, %v3511
    %v3516 = vmul.f32 %v268, %v479
    %v3517 = vmul.f32 %v269, %v479
    %v3518 = vmul.f32 %v270, %v479
    %v3519 = vmul.f32 %v271, %v479
    %v3520 = vadd.f32 %v3512, %v3516
    %v3521 = vadd.f32 %v3513, %v3517
    %v3522 = vadd.f32 %v3514, %v3518
    %v3523 = vadd.f32 %v3515, %v3519
    %v3524 = vmul.f32 %v372, %v488
    %v3525 = vmul.f32 %v373, %v488
    %v3526 = vmul.f32 %v374, %v488
    %v3527 = vmul.f32 %v375, %v488
    %v3528 = vadd.f32 %v3520, %v3524
    %v3529 = vadd.f32 %v3521, %v3525
    %v3530 = vadd.f32 %v3522, %v3526
    %v3531 = vadd.f32 %v3523, %v3527
    %v3532 = vmul.f32 %v160, %v420
    %v3533 = vmul.f32 %v161, %v420
    %v3534 = vmul.f32 %v162, %v420
    %v3535 = vmul.f32 %v163, %v420
    %v3536 = vmul.f32 %v264, %v425
    %v3537 = vmul.f32 %v265, %v425
    %v3538 = vmul.f32 %v266, %v425
    %v3539 = vmul.f32 %v267, %v425
    %v3540 = vadd.f32 %v3532, %v3536
    %v3541 = vadd.f32 %v3533, %v3537
    %v3542 = vadd.f32 %v3534, %v3538
    %v3543 = vadd.f32 %v3535, %v3539
    %v3544 = vmul.f32 %v368, %v434
    %v3545 = vmul.f32 %v369, %v434
    %v3546 = vmul.f32 %v370, %v434
    %v3547 = vmul.f32 %v371, %v434
    %v3548 = vadd.f32 %v3540, %v3544
    %v3549 = vadd.f32 %v3541, %v3545
    %v3550 = vadd.f32 %v3542, %v3546
    %v3551 = vadd.f32 %v3543, %v3547
    %v3552 = vmul.f32 %v164, %v443
    %v3553 = vmul.f32 %v165, %v443
    %v3554 = vmul.f32 %v166, %v443
    %v3555 = vmul.f32 %v167, %v443
    %v3556 = vadd.f32 %v3548, %v3552
    %v3557 = vadd.f32 %v3549, %v3553
    %v3558 = vadd.f32 %v3550, %v3554
    %v3559 = vadd.f32 %v3551, %v3555
    %v3560 = vmul.f32 %v268, %v452
    %v3561 = vmul.f32 %v269, %v452
    %v3562 = vmul.f32 %v270, %v452
    %v3563 = vmul.f32 %v271, %v452
    %v3564 = vadd.f32 %v3556, %v3560
    %v3565 = vadd.f32 %v3557, %v3561
    %v3566 = vadd.f32 %v3558, %v3562
    %v3567 = vadd.f32 %v3559, %v3563
    %v3568 = vmul.f32 %v372, %v461
    %v3569 = vmul.f32 %v373, %v461
    %v3570 = vmul.f32 %v374, %v461
    %v3571 = vmul.f32 %v375, %v461
    %v3572 = vadd.f32 %v3564, %v3568
    %v3573 = vadd.f32 %v3565, %v3569
    %v3574 = vadd.f32 %v3566, %v3570
    %v3575 = vadd.f32 %v3567, %v3571
    %v3576 = vmul.f32 %v168, %v470
    %v3577 = vmul.f32 %v169, %v470
    %v3578 = vmul.f32 %v170, %v470
    %v3579 = vmul.f32 %v171, %v470
    %v3580 = vadd.f32 %v3572, %v3576
    %v3581 = vadd.f32 %v3573, %v3577
    %v3582 = vadd.f32 %v3574, %v3578
    %v3583 = vadd.f32 %v3575, %v3579
    %v3584 = vmul.f32 %v272, %v479
    %v3585 = vmul.f32 %v273, %v479
    %v3586 = vmul.f32 %v274, %v479
    %v3587 = vmul.f32 %v275, %v479
    %v3588 = vadd.f32 %v3580, %v3584
    %v3589 = vadd.f32 %v3581, %v3585
    %v3590 = vadd.f32 %v3582, %v3586
    %v3591 = vadd.f32 %v3583, %v3587
    %v3592 = vmul.f32 %v376, %v488
    %v3593 = vmul.f32 %v377, %v488
    %v3594 = vmul.f32 %v378, %v488
    %v3595 = vmul.f32 %v379, %v488
    %v3596 = vadd.f32 %v3588, %v3592
    %v3597 = vadd.f32 %v3589, %v3593
    %v3598 = vadd.f32 %v3590, %v3594
    %v3599 = vadd.f32 %v3591, %v3595
    %v3600 = vmax.f32 %v3528, %v3596
    %v3601 = vmax.f32 %v3529, %v3597
    %v3602 = vmax.f32 %v3530, %v3598
    %v3603 = vmax.f32 %v3531, %v3599
    %v3604 = vmul.f32 %v164, %v420
    %v3605 = vmul.f32 %v165, %v420
    %v3606 = vmul.f32 %v166, %v420
    %v3607 = vmul.f32 %v167, %v420
    %v3608 = vmul.f32 %v268, %v425
    %v3609 = vmul.f32 %v269, %v425
    %v3610 = vmul.f32 %v270, %v425
    %v3611 = vmul.f32 %v271, %v425
    %v3612 = vadd.f32 %v3604, %v3608
    %v3613 = vadd.f32 %v3605, %v3609
    %v3614 = vadd.f32 %v3606, %v3610
    %v3615 = vadd.f32 %v3607, %v3611
    %v3616 = vmul.f32 %v372, %v434
    %v3617 = vmul.f32 %v373, %v434
    %v3618 = vmul.f32 %v374, %v434
    %v3619 = vmul.f32 %v375, %v434
    %v3620 = vadd.f32 %v3612, %v3616
    %v3621 = vadd.f32 %v3613, %v3617
    %v3622 = vadd.f32 %v3614, %v3618
    %v3623 = vadd.f32 %v3615, %v3619
    %v3624 = vmul.f32 %v168, %v443
    %v3625 = vmul.f32 %v169, %v443
    %v3626 = vmul.f32 %v170, %v443
    %v3627 = vmul.f32 %v171, %v443
    %v3628 = vadd.f32 %v3620, %v3624
    %v3629 = vadd.f32 %v3621, %v3625
    %v3630 = vadd.f32 %v3622, %v3626
    %v3631 = vadd.f32 %v3623, %v3627
    %v3632 = vmul.f32 %v272, %v452
    %v3633 = vmul.f32 %v273, %v452
    %v3634 = vmul.f32 %v274, %v452
    %v3635 = vmul.f32 %v275, %v452
    %v3636 = vadd.f32 %v3628, %v3632
    %v3637 = vadd.f32 %v3629, %v3633
    %v3638 = vadd.f32 %v3630, %v3634
    %v3639 = vadd.f32 %v3631, %v3635
    %v3640 = vmul.f32 %v376, %v461
    %v3641 = vmul.f32 %v377, %v461
    %v3642 = vmul.f32 %v378, %v461
    %v3643 = vmul.f32 %v379, %v461
    %v3644 = vadd.f32 %v3636, %v3640
    %v3645 = vadd.f32 %v3637, %v3641
    %v3646 = vadd.f32 %v3638, %v3642
    %v3647 = vadd.f32 %v3639, %v3643
    %v3648 = vmul.f32 %v172, %v470
    %v3649 = vmul.f32 %v173, %v470
    %v3650 = vmul.f32 %v174, %v470
    %v3651 = vmul.f32 %v175, %v470
    %v3652 = vadd.f32 %v3644, %v3648
    %v3653 = vadd.f32 %v3645, %v3649
    %v3654 = vadd.f32 %v3646, %v3650
    %v3655 = vadd.f32 %v3647, %v3651
    %v3656 = vmul.f32 %v276, %v479
    %v3657 = vmul.f32 %v277, %v479
    %v3658 = vmul.f32 %v278, %v479
    %v3659 = vmul.f32 %v279, %v479
    %v3660 = vadd.f32 %v3652, %v3656
    %v3661 = vadd.f32 %v3653, %v3657
    %v3662 = vadd.f32 %v3654, %v3658
    %v3663 = vadd.f32 %v3655, %v3659
    %v3664 = vmul.f32 %v380, %v488
    %v3665 = vmul.f32 %v381, %v488
    %v3666 = vmul.f32 %v382, %v488
    %v3667 = vmul.f32 %v383, %v488
    %v3668 = vadd.f32 %v3660, %v3664
    %v3669 = vadd.f32 %v3661, %v3665
    %v3670 = vadd.f32 %v3662, %v3666
    %v3671 = vadd.f32 %v3663, %v3667
    %v3672 = vmax.f32 %v3600, %v3668
    %v3673 = vmax.f32 %v3601, %v3669
    %v3674 = vmax.f32 %v3602, %v3670
    %v3675 = vmax.f32 %v3603, %v3671
    %v3680 = vrot.slane %v3672, 1
    %v3681 = vrot.slane %v3673, 1
    %v3682 = vsel %vm645, %v3680, %v3681
    %v3683 = vrot.slane %v3674, 1
    %v3684 = vsel %vm645, %v3681, %v3683
    %v3685 = vrot.slane %v3675, 1
    %v3686 = vsel %vm645, %v3683, %v3685
    %v3690 = vmax.f32 %v3672, %v3682
    %v3691 = vmax.f32 %v3673, %v3684
    %v3692 = vmax.f32 %v3674, %v3686
    %v3693 = vrot.slane %v3672, 2
    %v3694 = vrot.slane %v3673, 2
    %v3695 = vsel %vm659, %v3693, %v3694
    %v3696 = vrot.slane %v3674, 2
    %v3697 = vsel %vm659, %v3694, %v3696
    %v3698 = vrot.slane %v3675, 2
    %v3699 = vsel %vm659, %v3696, %v3698
    %v3703 = vmax.f32 %v3690, %v3695
    %v3704 = vmax.f32 %v3691, %v3697
    %v3705 = vmax.f32 %v3692, %v3699
    %v3706 = vadd.f32 %v3703, %v673
    %v3707 = vadd.f32 %v3704, %v673
    %v3708 = vadd.f32 %v3705, %v673
    %v3709 = vmax.f32 %v3706, 0.0
    %v3710 = vmax.f32 %v3707, 0.0
    %v3711 = vmax.f32 %v3708, 0.0
    %3712 = vst [vmem:[#allocation2 + $0x60] sm:$0xff] %v3709
    %3713 = vst [vmem:[#allocation2 + $0x68] sm:$0xff] %v3710
    %3714 = vst [vmem:[#allocation2 + $0x70] sm:$0xff] %v3711
    %v3715 = vmul.f32 %v156, %v683
    %v3716 = vmul.f32 %v157, %v683
    %v3717 = vmul.f32 %v158, %v683
    %v3718 = vmul.f32 %v159, %v683
    %v3719 = vmul.f32 %v260, %v688
    %v3720 = vmul.f32 %v261, %v688
    %v3721 = vmul.f32 %v262, %v688
    %v3722 = vmul.f32 %v263, %v688
    %v3723 = vadd.f32 %v3715, %v3719
    %v3724 = vadd.f32 %v3716, %v3720
    %v3725 = vadd.f32 %v3717, %v3721
    %v3726 = vadd.f32 %v3718, %v3722
    %v3727 = vmul.f32 %v364, %v697
    %v3728 = vmul.f32 %v365, %v697
    %v3729 = vmul.f32 %v366, %v697
    %v3730 = vmul.f32 %v367, %v697
    %v3731 = vadd.f32 %v3723, %v3727
    %v3732 = vadd.f32 %v3724, %v3728
    %v3733 = vadd.f32 %v3725, %v3729
    %v3734 = vadd.f32 %v3726, %v3730
    %v3735 = vmul.f32 %v160, %v706
    %v3736 = vmul.f32 %v161, %v706
    %v3737 = vmul.f32 %v162, %v706
    %v3738 = vmul.f32 %v163, %v706
    %v3739 = vadd.f32 %v3731, %v3735
    %v3740 = vadd.f32 %v3732, %v3736
    %v3741 = vadd.f32 %v3733, %v3737
    %v3742 = vadd.f32 %v3734, %v3738
    %v3743 = vmul.f32 %v264, %v715
    %v3744 = vmul.f32 %v265, %v715
    %v3745 = vmul.f32 %v266, %v715
    %v3746 = vmul.f32 %v267, %v715
    %v3747 = vadd.f32 %v3739, %v3743
    %v3748 = vadd.f32 %v3740, %v3744
    %v3749 = vadd.f32 %v3741, %v3745
    %v3750 = vadd.f32 %v3742, %v3746
    %v3751 = vmul.f32 %v368, %v724
    %v3752 = vmul.f32 %v369, %v724
    %v3753 = vmul.f32 %v370, %v724
    %v3754 = vmul.f32 %v371, %v724
    %v3755 = vadd.f32 %v3747, %v3751
    %v3756 = vadd.f32 %v3748, %v3752
    %v3757 = vadd.f32 %v3749, %v3753
    %v3758 = vadd.f32 %v3750, %v3754
    %v3759 = vmul.f32 %v164, %v733
    %v3760 = vmul.f32 %v165, %v733
    %v3761 = vmul.f32 %v166, %v733
    %v3762 = vmul.f32 %v167, %v733
    %v3763 = vadd.f32 %v3755, %v3759
    %v3764 = vadd.f32 %v3756, %v3760
    %v3765 = vadd.f32 %v3757, %v3761
    %v3766 = vadd.f32 %v3758, %v3762
    %v3767 = vmul.f32 %v268, %v742
    %v3768 = vmul.f32 %v269, %v742
    %v3769 = vmul.f32 %v270, %v742
    %v3770 = vmul.f32 %v271, %v742
    %v3771 = vadd.f32 %v3763, %v3767
    %v3772 = vadd.f32 %v3764, %v3768
    %v3773 = vadd.f32 %v3765, %v3769
    %v3774 = vadd.f32 %v3766, %v3770
    %v3775 = vmul.f32 %v372, %v751
    %v3776 = vmul.f32 %v373, %v751
    %v3777 = vmul.f32 %v374, %v751
    %v3778 = vmul.f32 %v375, %v751
    %v3779 = vadd.f32 %v3771, %v3775
    %v3780 = vadd.f32 %v3772, %v3776
    %v3781 = vadd.f32 %v3773, %v3777
    %v3782 = vadd.f32 %v3774, %v3778
    %v3783 = vmul.f32 %v160, %v683
    %v3784 = vmul.f32 %v161, %v683
    %v3785 = vmul.f32 %v162, %v683
    %v3786 = vmul.f32 %v163, %v683
    %v3787 = vmul.f32 %v264, %v688
    %v3788 = vmul.f32 %v265, %v688
    %v3789 = vmul.f32 %v266, %v688
    %v3790 = vmul.f32 %v267, %v688
    %v3791 = vadd.f32 %v3783, %v3787
    %v3792 = vadd.f32 %v3784, %v3788
    %v3793 = vadd.f32 %v3785, %v3789
    %v3794 = vadd.f32 %v3786, %v3790
    %v3795 = vmul.f32 %v368, %v697
    %v3796 = vmul.f32 %v369, %v697
    %v3797 = vmul.f32 %v370, %v697
    %v3798 = vmul.f32 %v371, %v697
    %v3799 = vadd.f32 %v3791, %v3795
    %v3800 = vadd.f32 %v3792, %v3796
    %v3801 = vadd.f32 %v3793, %v3797
    %v3802 = vadd.f32 %v3794, %v3798
    %v3803 = vmul.f32 %v164, %v706
    %v3804 = vmul.f32 %v165, %v706
    %v3805 = vmul.f32 %v166, %v706
    %v3806 = vmul.f32 %v167, %v706
    %v3807 = vadd.f32 %v3799, %v3803
    %v3808 = vadd.f32 %v3800, %v3804
    %v3809 = vadd.f32 %v3801, %v3805
    %v3810 = vadd.f32 %v3802, %v3806
    %v3811 = vmul.f32 %v268, %v715
    %v3812 = vmul.f32 %v269, %v715
    %v3813 = vmul.f32 %v270, %v715
    %v3814 = vmul.f32 %v271, %v715
    %v3815 = vadd.f32 %v3807, %v3811
    %v3816 = vadd.f32 %v3808, %v3812
    %v3817 = vadd.f32 %v3809, %v3813
    %v3818 = vadd.f32 %v3810, %v3814
    %v3819 = vmul.f32 %v372, %v724
    %v3820 = vmul.f32 %v373, %v724
    %v3821 = vmul.f32 %v374, %v724
    %v3822 = vmul.f32 %v375, %v724
    %v3823 = vadd.f32 %v3815, %v3819
    %v3824 = vadd.f32 %v3816, %v3820
    %v3825 = vadd.f32 %v3817, %v3821
    %v3826 = vadd.f32 %v3818, %v3822
    %v3827 = vmul.f32 %v168, %v733
    %v3828 = vmul.f32 %v169, %v733
    %v3829 = vmul.f32 %v170, %v733
    %v3830 = vmul.f32 %v171, %v733
    %v3831 = vadd.f32 %v3823, %v3827
    %v3832 = vadd.f32 %v3824, %v3828
    %v3833 = vadd.f32 %v3825, %v3829
    %v3834 = vadd.f32 %v3826, %v3830
    %v3835 = vmul.f32 %v272, %v742
    %v3836 = vmul.f32 %v273, %v742
    %v3837 = vmul.f32 %v274, %v742
    %v3838 = vmul.f32 %v275, %v742
    %v3839 = vadd.f32 %v3831, %v3835
    %v3840 = vadd.f32 %v3832, %v3836
    %v3841 = vadd.f32 %v3833, %v3837
    %v3842 = vadd.f32 %v3834, %v3838
    %v3843 = vmul.f32 %v376, %v751
    %v3844 = vmul.f32 %v377, %v751
    %v3845 = vmul.f32 %v378, %v751
    %v3846 = vmul.f32 %v379, %v751
    %v3847 = vadd.f32 %v3839, %v3843
    %v3848 = vadd.f32 %v3840, %v3844
    %v3849 = vadd.f32 %v3841, %v3845
    %v3850 = vadd.f32 %v3842, %v3846
    %v3851 = vmax.f32 %v3779, %v3847
    %v3852 = vmax.f32 %v3780, %v3848
    %v3853 = vmax.f32 %v3781, %v3849
    %v3854 = vmax.f32 %v3782, %v3850
    %v3855 = vmul.f32 %v164, %v683
    %v3856 = vmul.f32 %v165, %v683
    %v3857 = vmul.f32 %v166, %v683
    %v3858 = vmul.f32 %v167, %v683
    %v3859 = vmul.f32 %v268, %v688
    %v3860 = vmul.f32 %v269, %v688
    %v3861 = vmul.f32 %v270, %v688
    %v3862 = vmul.f32 %v271, %v688
    %v3863 = vadd.f32 %v3855, %v3859
    %v3864 = vadd.f32 %v3856, %v3860
    %v3865 = vadd.f32 %v3857, %v3861
    %v3866 = vadd.f32 %v3858, %v3862
    %v3867 = vmul.f32 %v372, %v697
    %v3868 = vmul.f32 %v373, %v697
    %v3869 = vmul.f32 %v374, %v697
    %v3870 = vmul.f32 %v375, %v697
    %v3871 = vadd.f32 %v3863, %v3867
    %v3872 = vadd.f32 %v3864, %v3868
    %v3873 = vadd.f32 %v3865, %v3869
    %v3874 = vadd.f32 %v3866, %v3870
    %v3875 = vmul.f32 %v168, %v706
    %v3876 = vmul.f32 %v169, %v706
    %v3877 = vmul.f32 %v170, %v706
    %v3878 = vmul.f32 %v171, %v706
    %v3879 = vadd.f32 %v3871, %v3875
    %v3880 = vadd.f32 %v3872, %v3876
    %v3881 = vadd.f32 %v3873, %v3877
    %v3882 = vadd.f32 %v3874, %v3878
    %v3883 = vmul.f32 %v272, %v715
    %v3884 = vmul.f32 %v273, %v715
    %v3885 = vmul.f32 %v274, %v715
    %v3886 = vmul.f32 %v275, %v715
    %v3887 = vadd.f32 %v3879, %v3883
    %v3888 = vadd.f32 %v3880, %v3884
    %v3889 = vadd.f32 %v3881, %v3885
    %v3890 = vadd.f32 %v3882, %v3886
    %v3891 = vmul.f32 %v376, %v724
    %v3892 = vmul.f32 %v377, %v724
    %v3893 = vmul.f32 %v378, %v724
    %v3894 = vmul.f32 %v379, %v724
    %v3895 = vadd.f32 %v3887, %v3891
    %v3896 = vadd.f32 %v3888, %v3892
    %v3897 = vadd.f32 %v3889, %v3893
    %v3898 = vadd.f32 %v3890, %v3894
    %v3899 = vmul.f32 %v172, %v733
    %v3900 = vmul.f32 %v173, %v733
    %v3901 = vmul.f32 %v174, %v733
    %v3902 = vmul.f32 %v175, %v733
    %v3903 = vadd.f32 %v3895, %v3899
    %v3904 = vadd.f32 %v3896, %v3900
    %v3905 = vadd.f32 %v3897, %v3901
    %v3906 = vadd.f32 %v3898, %v3902
    %v3907 = vmul.f32 %v276, %v742
    %v3908 = vmul.f32 %v277, %v742
    %v3909 = vmul.f32 %v278, %v742
    %v3910 = vmul.f32 %v279, %v742
    %v3911 = vadd.f32 %v3903, %v3907
    %v3912 = vadd.f32 %v3904, %v3908
    %v3913 = vadd.f32 %v3905, %v3909
    %v3914 = vadd.f32 %v3906, %v3910
    %v3915 = vmul.f32 %v380, %v751
    %v3916 = vmul.f32 %v381, %v751
    %v3917 = vmul.f32 %v382, %v751
    %v3918 = vmul.f32 %v383, %v751
    %v3919 = vadd.f32 %v3911, %v3915
    %v3920 = vadd.f32 %v3912, %v3916
    %v3921 = vadd.f32 %v3913, %v3917
    %v3922 = vadd.f32 %v3914, %v3918
    %v3923 = vmax.f32 %v3851, %v3919
    %v3924 = vmax.f32 %v3852, %v3920
    %v3925 = vmax.f32 %v3853, %v3921
    %v3926 = vmax.f32 %v3854, %v3922
    %v3931 = vrot.slane %v3923, 1
    %v3932 = vrot.slane %v3924, 1
    %v3933 = vsel %vm645, %v3931, %v3932
    %v3934 = vrot.slane %v3925, 1
    %v3935 = vsel %vm645, %v3932, %v3934
    %v3936 = vrot.slane %v3926, 1
    %v3937 = vsel %vm645, %v3934, %v3936
    %v3941 = vmax.f32 %v3923, %v3933
    %v3942 = vmax.f32 %v3924, %v3935
    %v3943 = vmax.f32 %v3925, %v3937
    %v3944 = vrot.slane %v3923, 2
    %v3945 = vrot.slane %v3924, 2
    %v3946 = vsel %vm659, %v3944, %v3945
    %v3947 = vrot.slane %v3925, 2
    %v3948 = vsel %vm659, %v3945, %v3947
    %v3949 = vrot.slane %v3926, 2
    %v3950 = vsel %vm659, %v3947, %v3949
    %v3954 = vmax.f32 %v3941, %v3946
    %v3955 = vmax.f32 %v3942, %v3948
    %v3956 = vmax.f32 %v3943, %v3950
    %v3957 = vadd.f32 %v3954, %v934
    %v3958 = vadd.f32 %v3955, %v934
    %v3959 = vadd.f32 %v3956, %v934
    %v3960 = vmax.f32 %v3957, 0.0
    %v3961 = vmax.f32 %v3958, 0.0
    %v3962 = vmax.f32 %v3959, 0.0
    %3963 = vst [vmem:[#allocation2 + $0x120] sm:$0xff] %v3960
    %3964 = vst [vmem:[#allocation2 + $0x128] sm:$0xff] %v3961
    %3965 = vst [vmem:[#allocation2 + $0x130] sm:$0xff] %v3962
    %v3966 = vmul.f32 %v156, %v944
    %v3967 = vmul.f32 %v157, %v944
    %v3968 = vmul.f32 %v158, %v944
    %v3969 = vmul.f32 %v159, %v944
    %v3970 = vmul.f32 %v260, %v949
    %v3971 = vmul.f32 %v261, %v949
    %v3972 = vmul.f32 %v262, %v949
    %v3973 = vmul.f32 %v263, %v949
    %v3974 = vadd.f32 %v3966, %v3970
    %v3975 = vadd.f32 %v3967, %v3971
    %v3976 = vadd.f32 %v3968, %v3972
    %v3977 = vadd.f32 %v3969, %v3973
    %v3978 = vmul.f32 %v364, %v958
    %v3979 = vmul.f32 %v365, %v958
    %v3980 = vmul.f32 %v366, %v958
    %v3981 = vmul.f32 %v367, %v958
    %v3982 = vadd.f32 %v3974, %v3978
    %v3983 = vadd.f32 %v3975, %v3979
    %v3984 = vadd.f32 %v3976, %v3980
    %v3985 = vadd.f32 %v3977, %v3981
    %v3986 = vmul.f32 %v160, %v967
    %v3987 = vmul.f32 %v161, %v967
    %v3988 = vmul.f32 %v162, %v967
    %v3989 = vmul.f32 %v163, %v967
    %v3990 = vadd.f32 %v3982, %v3986
    %v3991 = vadd.f32 %v3983, %v3987
    %v3992 = vadd.f32 %v3984, %v3988
    %v3993 = vadd.f32 %v3985, %v3989
    %v3994 = vmul.f32 %v264, %v976
    %v3995 = vmul.f32 %v265, %v976
    %v3996 = vmul.f32 %v266, %v976
    %v3997 = vmul.f32 %v267, %v976
    %v3998 = vadd.f32 %v3990, %v3994
    %v3999 = vadd.f32 %v3991, %v3995
    %v4000 = vadd.f32 %v3992, %v3996
    %v4001 = vadd.f32 %v3993, %v3997
    %v4002 = vmul.f32 %v368, %v985
    %v4003 = vmul.f32 %v369, %v985
    %v4004 = vmul.f32 %v370, %v985
    %v4005 = vmul.f32 %v371, %v985
    %v4006 = vadd.f32 %v3998, %v4002
    %v4007 = vadd.f32 %v3999, %v4003
    %v4008 = vadd.f32 %v4000, %v4004
    %v4009 = vadd.f32 %v4001, %v4005
    %v4010 = vmul.f32 %v164, %v994
    %v4011 = vmul.f32 %v165, %v994
    %v4012 = vmul.f32 %v166, %v994
    %v4013 = vmul.f32 %v167, %v994
    %v4014 = vadd.f32 %v4006, %v4010
    %v4015 = vadd.f32 %v4007, %v4011
    %v4016 = vadd.f32 %v4008, %v4012
    %v4017 = vadd.f32 %v4009, %v4013
    %v4018 = vmul.f32 %v268, %v1003
    %v4019 = vmul.f32 %v269, %v1003
    %v4020 = vmul.f32 %v270, %v1003
    %v4021 = vmul.f32 %v271, %v1003
    %v4022 = vadd.f32 %v4014, %v4018
    %v4023 = vadd.f32 %v4015, %v4019
    %v4024 = vadd.f32 %v4016, %v4020
    %v4025 = vadd.f32 %v4017, %v4021
    %v4026 = vmul.f32 %v372, %v1012
    %v4027 = vmul.f32 %v373, %v1012
    %v4028 = vmul.f32 %v374, %v1012
    %v4029 = vmul.f32 %v375, %v1012
    %v4030 = vadd.f32 %v4022, %v4026
    %v4031 = vadd.f32 %v4023, %v4027
    %v4032 = vadd.f32 %v4024, %v4028
    %v4033 = vadd.f32 %v4025, %v4029
    %v4034 = vmul.f32 %v160, %v944
    %v4035 = vmul.f32 %v161, %v944
    %v4036 = vmul.f32 %v162, %v944
    %v4037 = vmul.f32 %v163, %v944
    %v4038 = vmul.f32 %v264, %v949
    %v4039 = vmul.f32 %v265, %v949
    %v4040 = vmul.f32 %v266, %v949
    %v4041 = vmul.f32 %v267, %v949
    %v4042 = vadd.f32 %v4034, %v4038
    %v4043 = vadd.f32 %v4035, %v4039
    %v4044 = vadd.f32 %v4036, %v4040
    %v4045 = vadd.f32 %v4037, %v4041
    %v4046 = vmul.f32 %v368, %v958
    %v4047 = vmul.f32 %v369, %v958
    %v4048 = vmul.f32 %v370, %v958
    %v4049 = vmul.f32 %v371, %v958
    %v4050 = vadd.f32 %v4042, %v4046
    %v4051 = vadd.f32 %v4043, %v4047
    %v4052 = vadd.f32 %v4044, %v4048
    %v4053 = vadd.f32 %v4045, %v4049
    %v4054 = vmul.f32 %v164, %v967
    %v4055 = vmul.f32 %v165, %v967
    %v4056 = vmul.f32 %v166, %v967
    %v4057 = vmul.f32 %v167, %v967
    %v4058 = vadd.f32 %v4050, %v4054
    %v4059 = vadd.f32 %v4051, %v4055
    %v4060 = vadd.f32 %v4052, %v4056
    %v4061 = vadd.f32 %v4053, %v4057
    %v4062 = vmul.f32 %v268, %v976
    %v4063 = vmul.f32 %v269, %v976
    %v4064 = vmul.f32 %v270, %v976
    %v4065 = vmul.f32 %v271, %v976
    %v4066 = vadd.f32 %v4058, %v4062
    %v4067 = vadd.f32 %v4059, %v4063
    %v4068 = vadd.f32 %v4060, %v4064
    %v4069 = vadd.f32 %v4061, %v4065
    %v4070 = vmul.f32 %v372, %v985
    %v4071 = vmul.f32 %v373, %v985
    %v4072 = vmul.f32 %v374, %v985
    %v4073 = vmul.f32 %v375, %v985
    %v4074 = vadd.f32 %v4066, %v4070
    %v4075 = vadd.f32 %v4067, %v4071
    %v4076 = vadd.f32 %v4068, %v4072
    %v4077 = vadd.f32 %v4069, %v4073
    %v4078 = vmul.f32 %v168, %v994
    %v4079 = vmul.f32 %v169, %v994
    %v4080 = vmul.f32 %v170, %v994
    %v4081 = vmul.f32 %v171, %v994
    %v4082 = vadd.f32 %v4074, %v4078
    %v4083 = vadd.f32 %v4075, %v4079
    %v4084 = vadd.f32 %v4076, %v4080
    %v4085 = vadd.f32 %v4077, %v4081
    %v4086 = vmul.f32 %v272, %v1003
    %v4087 = vmul.f32 %v273, %v1003
    %v4088 = vmul.f32 %v274, %v1003
    %v4089 = vmul.f32 %v275, %v1003
    %v4090 = vadd.f32 %v4082, %v4086
    %v4091 = vadd.f32 %v4083, %v4087
    %v4092 = vadd.f32 %v4084, %v4088
    %v4093 = vadd.f32 %v4085, %v4089
    %v4094 = vmul.f32 %v376, %v1012
    %v4095 = vmul.f32 %v377, %v1012
    %v4096 = vmul.f32 %v378, %v1012
    %v4097 = vmul.f32 %v379, %v1012
    %v4098 = vadd.f32 %v4090, %v4094
    %v4099 = vadd.f32 %v4091, %v4095
    %v4100 = vadd.f32 %v4092, %v4096
    %v4101 = vadd.f32 %v4093, %v4097
    %v4102 = vmax.f32 %v4030, %v4098
    %v4103 = vmax.f32 %v4031, %v4099
    %v4104 = vmax.f32 %v4032, %v4100
    %v4105 = vmax.f32 %v4033, %v4101
    %v4106 = vmul.f32 %v164, %v944
    %v4107 = vmul.f32 %v165, %v944
    %v4108 = vmul.f32 %v166, %v944
    %v4109 = vmul.f32 %v167, %v944
    %v4110 = vmul.f32 %v268, %v949
    %v4111 = vmul.f32 %v269, %v949
    %v4112 = vmul.f32 %v270, %v949
    %v4113 = vmul.f32 %v271, %v949
    %v4114 = vadd.f32 %v4106, %v4110
    %v4115 = vadd.f32 %v4107, %v4111
    %v4116 = vadd.f32 %v4108, %v4112
    %v4117 = vadd.f32 %v4109, %v4113
    %v4118 = vmul.f32 %v372, %v958
    %v4119 = vmul.f32 %v373, %v958
    %v4120 = vmul.f32 %v374, %v958
    %v4121 = vmul.f32 %v375, %v958
    %v4122 = vadd.f32 %v4114, %v4118
    %v4123 = vadd.f32 %v4115, %v4119
    %v4124 = vadd.f32 %v4116, %v4120
    %v4125 = vadd.f32 %v4117, %v4121
    %v4126 = vmul.f32 %v168, %v967
    %v4127 = vmul.f32 %v169, %v967
    %v4128 = vmul.f32 %v170, %v967
    %v4129 = vmul.f32 %v171, %v967
    %v4130 = vadd.f32 %v4122, %v4126
    %v4131 = vadd.f32 %v4123, %v4127
    %v4132 = vadd.f32 %v4124, %v4128
    %v4133 = vadd.f32 %v4125, %v4129
    %v4134 = vmul.f32 %v272, %v976
    %v4135 = vmul.f32 %v273, %v976
    %v4136 = vmul.f32 %v274, %v976
    %v4137 = vmul.f32 %v275, %v976
    %v4138 = vadd.f32 %v4130, %v4134
    %v4139 = vadd.f32 %v4131, %v4135
    %v4140 = vadd.f32 %v4132, %v4136
    %v4141 = vadd.f32 %v4133, %v4137
    %v4142 = vmul.f32 %v376, %v985
    %v4143 = vmul.f32 %v377, %v985
    %v4144 = vmul.f32 %v378, %v985
    %v4145 = vmul.f32 %v379, %v985
    %v4146 = vadd.f32 %v4138, %v4142
    %v4147 = vadd.f32 %v4139, %v4143
    %v4148 = vadd.f32 %v4140, %v4144
    %v4149 = vadd.f32 %v4141, %v4145
    %v4150 = vmul.f32 %v172, %v994
    %v4151 = vmul.f32 %v173, %v994
    %v4152 = vmul.f32 %v174, %v994
    %v4153 = vmul.f32 %v175, %v994
    %v4154 = vadd.f32 %v4146, %v4150
    %v4155 = vadd.f32 %v4147, %v4151
    %v4156 = vadd.f32 %v4148, %v4152
    %v4157 = vadd.f32 %v4149, %v4153
    %v4158 = vmul.f32 %v276, %v1003
    %v4159 = vmul.f32 %v277, %v1003
    %v4160 = vmul.f32 %v278, %v1003
    %v4161 = vmul.f32 %v279, %v1003
    %v4162 = vadd.f32 %v4154, %v4158
    %v4163 = vadd.f32 %v4155, %v4159
    %v4164 = vadd.f32 %v4156, %v4160
    %v4165 = vadd.f32 %v4157, %v4161
    %v4166 = vmul.f32 %v380, %v1012
    %v4167 = vmul.f32 %v381, %v1012
    %v4168 = vmul.f32 %v382, %v1012
    %v4169 = vmul.f32 %v383, %v1012
    %v4170 = vadd.f32 %v4162, %v4166
    %v4171 = vadd.f32 %v4163, %v4167
    %v4172 = vadd.f32 %v4164, %v4168
    %v4173 = vadd.f32 %v4165, %v4169
    %v4174 = vmax.f32 %v4102, %v4170
    %v4175 = vmax.f32 %v4103, %v4171
    %v4176 = vmax.f32 %v4104, %v4172
    %v4177 = vmax.f32 %v4105, %v4173
    %v4182 = vrot.slane %v4174, 1
    %v4183 = vrot.slane %v4175, 1
    %v4184 = vsel %vm645, %v4182, %v4183
    %v4185 = vrot.slane %v4176, 1
    %v4186 = vsel %vm645, %v4183, %v4185
    %v4187 = vrot.slane %v4177, 1
    %v4188 = vsel %vm645, %v4185, %v4187
    %v4192 = vmax.f32 %v4174, %v4184
    %v4193 = vmax.f32 %v4175, %v4186
    %v4194 = vmax.f32 %v4176, %v4188
    %v4195 = vrot.slane %v4174, 2
    %v4196 = vrot.slane %v4175, 2
    %v4197 = vsel %vm659, %v4195, %v4196
    %v4198 = vrot.slane %v4176, 2
    %v4199 = vsel %vm659, %v4196, %v4198
    %v4200 = vrot.slane %v4177, 2
    %v4201 = vsel %vm659, %v4198, %v4200
    %v4205 = vmax.f32 %v4192, %v4197
    %v4206 = vmax.f32 %v4193, %v4199
    %v4207 = vmax.f32 %v4194, %v4201
    %v4208 = vadd.f32 %v4205, %v1195
    %v4209 = vadd.f32 %v4206, %v1195
    %v4210 = vadd.f32 %v4207, %v1195
    %v4211 = vmax.f32 %v4208, 0.0
    %v4212 = vmax.f32 %v4209, 0.0
    %v4213 = vmax.f32 %v4210, 0.0
    %4214 = vst [vmem:[#allocation2 + $0x1e0] sm:$0xff] %v4211
    %4215 = vst [vmem:[#allocation2 + $0x1e8] sm:$0xff] %v4212
    %4216 = vst [vmem:[#allocation2 + $0x1f0] sm:$0xff] %v4213
    %v4217 = vmul.f32 %v168, %v420
    %v4218 = vmul.f32 %v169, %v420
    %v4219 = vmul.f32 %v170, %v420
    %v4220 = vmul.f32 %v171, %v420
    %v4221 = vmul.f32 %v272, %v425
    %v4222 = vmul.f32 %v273, %v425
    %v4223 = vmul.f32 %v274, %v425
    %v4224 = vmul.f32 %v275, %v425
    %v4225 = vadd.f32 %v4217, %v4221
    %v4226 = vadd.f32 %v4218, %v4222
    %v4227 = vadd.f32 %v4219, %v4223
    %v4228 = vadd.f32 %v4220, %v4224
    %v4229 = vmul.f32 %v376, %v434
    %v4230 = vmul.f32 %v377, %v434
    %v4231 = vmul.f32 %v378, %v434
    %v4232 = vmul.f32 %v379, %v434
    %v4233 = vadd.f32 %v4225, %v4229
    %v4234 = vadd.f32 %v4226, %v4230
    %v4235 = vadd.f32 %v4227, %v4231
    %v4236 = vadd.f32 %v4228, %v4232
    %v4237 = vmul.f32 %v172, %v443
    %v4238 = vmul.f32 %v173, %v443
    %v4239 = vmul.f32 %v174, %v443
    %v4240 = vmul.f32 %v175, %v443
    %v4241 = vadd.f32 %v4233, %v4237
    %v4242 = vadd.f32 %v4234, %v4238
    %v4243 = vadd.f32 %v4235, %v4239
    %v4244 = vadd.f32 %v4236, %v4240
    %v4245 = vmul.f32 %v276, %v452
    %v4246 = vmul.f32 %v277, %v452
    %v4247 = vmul.f32 %v278, %v452
    %v4248 = vmul.f32 %v279, %v452
    %v4249 = vadd.f32 %v4241, %v4245
    %v4250 = vadd.f32 %v4242, %v4246
    %v4251 = vadd.f32 %v4243, %v4247
    %v4252 = vadd.f32 %v4244, %v4248
    %v4253 = vmul.f32 %v380, %v461
    %v4254 = vmul.f32 %v381, %v461
    %v4255 = vmul.f32 %v382, %v461
    %v4256 = vmul.f32 %v383, %v461
    %v4257 = vadd.f32 %v4249, %v4253
    %v4258 = vadd.f32 %v4250, %v4254
    %v4259 = vadd.f32 %v4251, %v4255
    %v4260 = vadd.f32 %v4252, %v4256
    %v4261 = vmul.f32 %v176, %v470
    %v4262 = vmul.f32 %v177, %v470
    %v4263 = vmul.f32 %v178, %v470
    %v4264 = vmul.f32 %v179, %v470
    %v4265 = vadd.f32 %v4257, %v4261
    %v4266 = vadd.f32 %v4258, %v4262
    %v4267 = vadd.f32 %v4259, %v4263
    %v4268 = vadd.f32 %v4260, %v4264
    %v4269 = vmul.f32 %v280, %v479
    %v4270 = vmul.f32 %v281, %v479
    %v4271 = vmul.f32 %v282, %v479
    %v4272 = vmul.f32 %v283, %v479
    %v4273 = vadd.f32 %v4265, %v4269
    %v4274 = vadd.f32 %v4266, %v4270
    %v4275 = vadd.f32 %v4267, %v4271
    %v4276 = vadd.f32 %v4268, %v4272
    %v4277 = vmul.f32 %v384, %v488
    %v4278 = vmul.f32 %v385, %v488
    %v4279 = vmul.f32 %v386, %v488
    %v4280 = vmul.f32 %v387, %v488
    %v4281 = vadd.f32 %v4273, %v4277
    %v4282 = vadd.f32 %v4274, %v4278
    %v4283 = vadd.f32 %v4275, %v4279
    %v4284 = vadd.f32 %v4276, %v4280
    %v4285 = vmul.f32 %v172, %v420
    %v4286 = vmul.f32 %v173, %v420
    %v4287 = vmul.f32 %v174, %v420
    %v4288 = vmul.f32 %v175, %v420
    %v4289 = vmul.f32 %v276, %v425
    %v4290 = vmul.f32 %v277, %v425
    %v4291 = vmul.f32 %v278, %v425
    %v4292 = vmul.f32 %v279, %v425
    %v4293 = vadd.f32 %v4285, %v4289
    %v4294 = vadd.f32 %v4286, %v4290
    %v4295 = vadd.f32 %v4287, %v4291
    %v4296 = vadd.f32 %v4288, %v4292
    %v4297 = vmul.f32 %v380, %v434
    %v4298 = vmul.f32 %v381, %v434
    %v4299 = vmul.f32 %v382, %v434
    %v4300 = vmul.f32 %v383, %v434
    %v4301 = vadd.f32 %v4293, %v4297
    %v4302 = vadd.f32 %v4294, %v4298
    %v4303 = vadd.f32 %v4295, %v4299
    %v4304 = vadd.f32 %v4296, %v4300
    %v4305 = vmul.f32 %v176, %v443
    %v4306 = vmul.f32 %v177, %v443
    %v4307 = vmul.f32 %v178, %v443
    %v4308 = vmul.f32 %v179, %v443
    %v4309 = vadd.f32 %v4301, %v4305
    %v4310 = vadd.f32 %v4302, %v4306
    %v4311 = vadd.f32 %v4303, %v4307
    %v4312 = vadd.f32 %v4304, %v4308
    %v4313 = vmul.f32 %v280, %v452
    %v4314 = vmul.f32 %v281, %v452
    %v4315 = vmul.f32 %v282, %v452
    %v4316 = vmul.f32 %v283, %v452
    %v4317 = vadd.f32 %v4309, %v4313
    %v4318 = vadd.f32 %v4310, %v4314
    %v4319 = vadd.f32 %v4311, %v4315
    %v4320 = vadd.f32 %v4312, %v4316
    %v4321 = vmul.f32 %v384, %v461
    %v4322 = vmul.f32 %v385, %v461
    %v4323 = vmul.f32 %v386, %v461
    %v4324 = vmul.f32 %v387, %v461
    %v4325 = vadd.f32 %v4317, %v4321
    %v4326 = vadd.f32 %v4318, %v4322
    %v4327 = vadd.f32 %v4319, %v4323
    %v4328 = vadd.f32 %v4320, %v4324
    %v4329 = vmul.f32 %v180, %v470
    %v4330 = vmul.f32 %v181, %v470
    %v4331 = vmul.f32 %v182, %v470
    %v4332 = vmul.f32 %v183, %v470
    %v4333 = vadd.f32 %v4325, %v4329
    %v4334 = vadd.f32 %v4326, %v4330
    %v4335 = vadd.f32 %v4327, %v4331
    %v4336 = vadd.f32 %v4328, %v4332
    %v4337 = vmul.f32 %v284, %v479
    %v4338 = vmul.f32 %v285, %v479
    %v4339 = vmul.f32 %v286, %v479
    %v4340 = vmul.f32 %v287, %v479
    %v4341 = vadd.f32 %v4333, %v4337
    %v4342 = vadd.f32 %v4334, %v4338
    %v4343 = vadd.f32 %v4335, %v4339
    %v4344 = vadd.f32 %v4336, %v4340
    %v4345 = vmul.f32 %v388, %v488
    %v4346 = vmul.f32 %v389, %v488
    %v4347 = vmul.f32 %v390, %v488
    %v4348 = vmul.f32 %v391, %v488
    %v4349 = vadd.f32 %v4341, %v4345
    %v4350 = vadd.f32 %v4342, %v4346
    %v4351 = vadd.f32 %v4343, %v4347
    %v4352 = vadd.f32 %v4344, %v4348
    %v4353 = vmax.f32 %v4281, %v4349
    %v4354 = vmax.f32 %v4282, %v4350
    %v4355 = vmax.f32 %v4283, %v4351
    %v4356 = vmax.f32 %v4284, %v4352
    %v4357 = vmul.f32 %v176, %v420
    %v4358 = vmul.f32 %v177, %v420
    %v4359 = vmul.f32 %v178, %v420
    %v4360 = vmul.f32 %v179, %v420
    %v4361 = vmul.f32 %v280, %v425
    %v4362 = vmul.f32 %v281, %v425
    %v4363 = vmul.f32 %v282, %v425
    %v4364 = vmul.f32 %v283, %v425
    %v4365 = vadd.f32 %v4357, %v4361
    %v4366 = vadd.f32 %v4358, %v4362
    %v4367 = vadd.f32 %v4359, %v4363
    %v4368 = vadd.f32 %v4360, %v4364
    %v4369 = vmul.f32 %v384, %v434
    %v4370 = vmul.f32 %v385, %v434
    %v4371 = vmul.f32 %v386, %v434
    %v4372 = vmul.f32 %v387, %v434
    %v4373 = vadd.f32 %v4365, %v4369
    %v4374 = vadd.f32 %v4366, %v4370
    %v4375 = vadd.f32 %v4367, %v4371
    %v4376 = vadd.f32 %v4368, %v4372
    %v4377 = vmul.f32 %v180, %v443
    %v4378 = vmul.f32 %v181, %v443
    %v4379 = vmul.f32 %v182, %v443
    %v4380 = vmul.f32 %v183, %v443
    %v4381 = vadd.f32 %v4373, %v4377
    %v4382 = vadd.f32 %v4374, %v4378
    %v4383 = vadd.f32 %v4375, %v4379
    %v4384 = vadd.f32 %v4376, %v4380
    %v4385 = vmul.f32 %v284, %v452
    %v4386 = vmul.f32 %v285, %v452
    %v4387 = vmul.f32 %v286, %v452
    %v4388 = vmul.f32 %v287, %v452
    %v4389 = vadd.f32 %v4381, %v4385
    %v4390 = vadd.f32 %v4382, %v4386
    %v4391 = vadd.f32 %v4383, %v4387
    %v4392 = vadd.f32 %v4384, %v4388
    %v4393 = vmul.f32 %v388, %v461
    %v4394 = vmul.f32 %v389, %v461
    %v4395 = vmul.f32 %v390, %v461
    %v4396 = vmul.f32 %v391, %v461
    %v4397 = vadd.f32 %v4389, %v4393
    %v4398 = vadd.f32 %v4390, %v4394
    %v4399 = vadd.f32 %v4391, %v4395
    %v4400 = vadd.f32 %v4392, %v4396
    %v4401 = vmul.f32 %v184, %v470
    %v4402 = vmul.f32 %v185, %v470
    %v4403 = vmul.f32 %v186, %v470
    %v4404 = vmul.f32 %v187, %v470
    %v4405 = vadd.f32 %v4397, %v4401
    %v4406 = vadd.f32 %v4398, %v4402
    %v4407 = vadd.f32 %v4399, %v4403
    %v4408 = vadd.f32 %v4400, %v4404
    %v4409 = vmul.f32 %v288, %v479
    %v4410 = vmul.f32 %v289, %v479
    %v4411 = vmul.f32 %v290, %v479
    %v4412 = vmul.f32 %v291, %v479
    %v4413 = vadd.f32 %v4405, %v4409
    %v4414 = vadd.f32 %v4406, %v4410
    %v4415 = vadd.f32 %v4407, %v4411
    %v4416 = vadd.f32 %v4408, %v4412
    %v4417 = vmul.f32 %v392, %v488
    %v4418 = vmul.f32 %v393, %v488
    %v4419 = vmul.f32 %v394, %v488
    %v4420 = vmul.f32 %v395, %v488
    %v4421 = vadd.f32 %v4413, %v4417
    %v4422 = vadd.f32 %v4414, %v4418
    %v4423 = vadd.f32 %v4415, %v4419
    %v4424 = vadd.f32 %v4416, %v4420
    %v4425 = vmax.f32 %v4353, %v4421
    %v4426 = vmax.f32 %v4354, %v4422
    %v4427 = vmax.f32 %v4355, %v4423
    %v4428 = vmax.f32 %v4356, %v4424
    %v4433 = vrot.slane %v4425, 1
    %v4434 = vrot.slane %v4426, 1
    %v4435 = vsel %vm645, %v4433, %v4434
    %v4436 = vrot.slane %v4427, 1
    %v4437 = vsel %vm645, %v4434, %v4436
    %v4438 = vrot.slane %v4428, 1
    %v4439 = vsel %vm645, %v4436, %v4438
    %v4443 = vmax.f32 %v4425, %v4435
    %v4444 = vmax.f32 %v4426, %v4437
    %v4445 = vmax.f32 %v4427, %v4439
    %v4446 = vrot.slane %v4425, 2
    %v4447 = vrot.slane %v4426, 2
    %v4448 = vsel %vm659, %v4446, %v4447
    %v4449 = vrot.slane %v4427, 2
    %v4450 = vsel %vm659, %v4447, %v4449
    %v4451 = vrot.slane %v4428, 2
    %v4452 = vsel %vm659, %v4449, %v4451
    %v4456 = vmax.f32 %v4443, %v4448
    %v4457 = vmax.f32 %v4444, %v4450
    %v4458 = vmax.f32 %v4445, %v4452
    %v4459 = vadd.f32 %v4456, %v673
    %v4460 = vadd.f32 %v4457, %v673
    %v4461 = vadd.f32 %v4458, %v673
    %v4462 = vmax.f32 %v4459, 0.0
    %v4463 = vmax.f32 %v4460, 0.0
    %v4464 = vmax.f32 %v4461, 0.0
    %4465 = vst [vmem:[#allocation2 + $0x78] sm:$0xff] %v4462
    %4466 = vst [vmem:[#allocation2 + $0x80] sm:$0xff] %v4463
    %4467 = vst [vmem:[#allocation2 + $0x88] sm:$0xff] %v4464
    %v4468 = vmul.f32 %v168, %v683
    %v4469 = vmul.f32 %v169, %v683
    %v4470 = vmul.f32 %v170, %v683
    %v4471 = vmul.f32 %v171, %v683
    %v4472 = vmul.f32 %v272, %v688
    %v4473 = vmul.f32 %v273, %v688
    %v4474 = vmul.f32 %v274, %v688
    %v4475 = vmul.f32 %v275, %v688
    %v4476 = vadd.f32 %v4468, %v4472
    %v4477 = vadd.f32 %v4469, %v4473
    %v4478 = vadd.f32 %v4470, %v4474
    %v4479 = vadd.f32 %v4471, %v4475
    %v4480 = vmul.f32 %v376, %v697
    %v4481 = vmul.f32 %v377, %v697
    %v4482 = vmul.f32 %v378, %v697
    %v4483 = vmul.f32 %v379, %v697
    %v4484 = vadd.f32 %v4476, %v4480
    %v4485 = vadd.f32 %v4477, %v4481
    %v4486 = vadd.f32 %v4478, %v4482
    %v4487 = vadd.f32 %v4479, %v4483
    %v4488 = vmul.f32 %v172, %v706
    %v4489 = vmul.f32 %v173, %v706
    %v4490 = vmul.f32 %v174, %v706
    %v4491 = vmul.f32 %v175, %v706
    %v4492 = vadd.f32 %v4484, %v4488
    %v4493 = vadd.f32 %v4485, %v4489
    %v4494 = vadd.f32 %v4486, %v4490
    %v4495 = vadd.f32 %v4487, %v4491
    %v4496 = vmul.f32 %v276, %v715
    %v4497 = vmul.f32 %v277, %v715
    %v4498 = vmul.f32 %v278, %v715
    %v4499 = vmul.f32 %v279, %v715
    %v4500 = vadd.f32 %v4492, %v4496
    %v4501 = vadd.f32 %v4493, %v4497
    %v4502 = vadd.f32 %v4494, %v4498
    %v4503 = vadd.f32 %v4495, %v4499
    %v4504 = vmul.f32 %v380, %v724
    %v4505 = vmul.f32 %v381, %v724
    %v4506 = vmul.f32 %v382, %v724
    %v4507 = vmul.f32 %v383, %v724
    %v4508 = vadd.f32 %v4500, %v4504
    %v4509 = vadd.f32 %v4501, %v4505
    %v4510 = vadd.f32 %v4502, %v4506
    %v4511 = vadd.f32 %v4503, %v4507
    %v4512 = vmul.f32 %v176, %v733
    %v4513 = vmul.f32 %v177, %v733
    %v4514 = vmul.f32 %v178, %v733
    %v4515 = vmul.f32 %v179, %v733
    %v4516 = vadd.f32 %v4508, %v4512
    %v4517 = vadd.f32 %v4509, %v4513
    %v4518 = vadd.f32 %v4510, %v4514
    %v4519 = vadd.f32 %v4511, %v4515
    %v4520 = vmul.f32 %v280, %v742
    %v4521 = vmul.f32 %v281, %v742
    %v4522 = vmul.f32 %v282, %v742
    %v4523 = vmul.f32 %v283, %v742
    %v4524 = vadd.f32 %v4516, %v4520
    %v4525 = vadd.f32 %v4517, %v4521
    %v4526 = vadd.f32 %v4518, %v4522
    %v4527 = vadd.f32 %v4519, %v4523
    %v4528 = vmul.f32 %v384, %v751
    %v4529 = vmul.f32 %v385, %v751
    %v4530 = vmul.f32 %v386, %v751
    %v4531 = vmul.f32 %v387, %v751
    %v4532 = vadd.f32 %v4524, %v4528
    %v4533 = vadd.f32 %v4525, %v4529
    %v4534 = vadd.f32 %v4526, %v4530
    %v4535 = vadd.f32 %v4527, %v4531
    %v4536 = vmul.f32 %v172, %v683
    %v4537 = vmul.f32 %v173, %v683
    %v4538 = vmul.f32 %v174, %v683
    %v4539 = vmul.f32 %v175, %v683
    %v4540 = vmul.f32 %v276, %v688
    %v4541 = vmul.f32 %v277, %v688
    %v4542 = vmul.f32 %v278, %v688
    %v4543 = vmul.f32 %v279, %v688
    %v4544 = vadd.f32 %v4536, %v4540
    %v4545 = vadd.f32 %v4537, %v4541
    %v4546 = vadd.f32 %v4538, %v4542
    %v4547 = vadd.f32 %v4539, %v4543
    %v4548 = vmul.f32 %v380, %v697
    %v4549 = vmul.f32 %v381, %v697
    %v4550 = vmul.f32 %v382, %v697
    %v4551 = vmul.f32 %v383, %v697
    %v4552 = vadd.f32 %v4544, %v4548
    %v4553 = vadd.f32 %v4545, %v4549
    %v4554 = vadd.f32 %v4546, %v4550
    %v4555 = vadd.f32 %v4547, %v4551
    %v4556 = vmul.f32 %v176, %v706
    %v4557 = vmul.f32 %v177, %v706
    %v4558 = vmul.f32 %v178, %v706
    %v4559 = vmul.f32 %v179, %v706
    %v4560 = vadd.f32 %v4552, %v4556
    %v4561 = vadd.f32 %v4553, %v4557
    %v4562 = vadd.f32 %v4554, %v4558
    %v4563 = vadd.f32 %v4555, %v4559
    %v4564 = vmul.f32 %v280, %v715
    %v4565 = vmul.f32 %v281, %v715
    %v4566 = vmul.f32 %v282, %v715
    %v4567 = vmul.f32 %v283, %v715
    %v4568 = vadd.f32 %v4560, %v4564
    %v4569 = vadd.f32 %v4561, %v4565
    %v4570 = vadd.f32 %v4562, %v4566
    %v4571 = vadd.f32 %v4563, %v4567
    %v4572 = vmul.f32 %v384, %v724
    %v4573 = vmul.f32 %v385, %v724
    %v4574 = vmul.f32 %v386, %v724
    %v4575 = vmul.f32 %v387, %v724
    %v4576 = vadd.f32 %v4568, %v4572
    %v4577 = vadd.f32 %v4569, %v4573
    %v4578 = vadd.f32 %v4570, %v4574
    %v4579 = vadd.f32 %v4571, %v4575
    %v4580 = vmul.f32 %v180, %v733
    %v4581 = vmul.f32 %v181, %v733
    %v4582 = vmul.f32 %v182, %v733
    %v4583 = vmul.f32 %v183, %v733
    %v4584 = vadd.f32 %v4576, %v4580
    %v4585 = vadd.f32 %v4577, %v4581
    %v4586 = vadd.f32 %v4578, %v4582
    %v4587 = vadd.f32 %v4579, %v4583
    %v4588 = vmul.f32 %v284, %v742
    %v4589 = vmul.f32 %v285, %v742
    %v4590 = vmul.f32 %v286, %v742
    %v4591 = vmul.f32 %v287, %v742
    %v4592 = vadd.f32 %v4584, %v4588
    %v4593 = vadd.f32 %v4585, %v4589
    %v4594 = vadd.f32 %v4586, %v4590
    %v4595 = vadd.f32 %v4587, %v4591
    %v4596 = vmul.f32 %v388, %v751
    %v4597 = vmul.f32 %v389, %v751
    %v4598 = vmul.f32 %v390, %v751
    %v4599 = vmul.f32 %v391, %v751
    %v4600 = vadd.f32 %v4592, %v4596
    %v4601 = vadd.f32 %v4593, %v4597
    %v4602 = vadd.f32 %v4594, %v4598
    %v4603 = vadd.f32 %v4595, %v4599
    %v4604 = vmax.f32 %v4532, %v4600
    %v4605 = vmax.f32 %v4533, %v4601
    %v4606 = vmax.f32 %v4534, %v4602
    %v4607 = vmax.f32 %v4535, %v4603
    %v4608 = vmul.f32 %v176, %v683
    %v4609 = vmul.f32 %v177, %v683
    %v4610 = vmul.f32 %v178, %v683
    %v4611 = vmul.f32 %v179, %v683
    %v4612 = vmul.f32 %v280, %v688
    %v4613 = vmul.f32 %v281, %v688
    %v4614 = vmul.f32 %v282, %v688
    %v4615 = vmul.f32 %v283, %v688
    %v4616 = vadd.f32 %v4608, %v4612
    %v4617 = vadd.f32 %v4609, %v4613
    %v4618 = vadd.f32 %v4610, %v4614
    %v4619 = vadd.f32 %v4611, %v4615
    %v4620 = vmul.f32 %v384, %v697
    %v4621 = vmul.f32 %v385, %v697
    %v4622 = vmul.f32 %v386, %v697
    %v4623 = vmul.f32 %v387, %v697
    %v4624 = vadd.f32 %v4616, %v4620
    %v4625 = vadd.f32 %v4617, %v4621
    %v4626 = vadd.f32 %v4618, %v4622
    %v4627 = vadd.f32 %v4619, %v4623
    %v4628 = vmul.f32 %v180, %v706
    %v4629 = vmul.f32 %v181, %v706
    %v4630 = vmul.f32 %v182, %v706
    %v4631 = vmul.f32 %v183, %v706
    %v4632 = vadd.f32 %v4624, %v4628
    %v4633 = vadd.f32 %v4625, %v4629
    %v4634 = vadd.f32 %v4626, %v4630
    %v4635 = vadd.f32 %v4627, %v4631
    %v4636 = vmul.f32 %v284, %v715
    %v4637 = vmul.f32 %v285, %v715
    %v4638 = vmul.f32 %v286, %v715
    %v4639 = vmul.f32 %v287, %v715
    %v4640 = vadd.f32 %v4632, %v4636
    %v4641 = vadd.f32 %v4633, %v4637
    %v4642 = vadd.f32 %v4634, %v4638
    %v4643 = vadd.f32 %v4635, %v4639
    %v4644 = vmul.f32 %v388, %v724
    %v4645 = vmul.f32 %v389, %v724
    %v4646 = vmul.f32 %v390, %v724
    %v4647 = vmul.f32 %v391, %v724
    %v4648 = vadd.f32 %v4640, %v4644
    %v4649 = vadd.f32 %v4641, %v4645
    %v4650 = vadd.f32 %v4642, %v4646
    %v4651 = vadd.f32 %v4643, %v4647
    %v4652 = vmul.f32 %v184, %v733
    %v4653 = vmul.f32 %v185, %v733
    %v4654 = vmul.f32 %v186, %v733
    %v4655 = vmul.f32 %v187, %v733
    %v4656 = vadd.f32 %v4648, %v4652
    %v4657 = vadd.f32 %v4649, %v4653
    %v4658 = vadd.f32 %v4650, %v4654
    %v4659 = vadd.f32 %v4651, %v4655
    %v4660 = vmul.f32 %v288, %v742
    %v4661 = vmul.f32 %v289, %v742
    %v4662 = vmul.f32 %v290, %v742
    %v4663 = vmul.f32 %v291, %v742
    %v4664 = vadd.f32 %v4656, %v4660
    %v4665 = vadd.f32 %v4657, %v4661
    %v4666 = vadd.f32 %v4658, %v4662
    %v4667 = vadd.f32 %v4659, %v4663
    %v4668 = vmul.f32 %v392, %v751
    %v4669 = vmul.f32 %v393, %v751
    %v4670 = vmul.f32 %v394, %v751
    %v4671 = vmul.f32 %v395, %v751
    %v4672 = vadd.f32 %v4664, %v4668
    %v4673 = vadd.f32 %v4665, %v4669
    %v4674 = vadd.f32 %v4666, %v4670
    %v4675 = vadd.f32 %v4667, %v4671
    %v4676 = vmax.f32 %v4604, %v4672
    %v4677 = vmax.f32 %v4605, %v4673
    %v4678 = vmax.f32 %v4606, %v4674
    %v4679 = vmax.f32 %v4607, %v4675
    %v4684 = vrot.slane %v4676, 1
    %v4685 = vrot.slane %v4677, 1
    %v4686 = vsel %vm645, %v4684, %v4685
    %v4687 = vrot.slane %v4678, 1
    %v4688 = vsel %vm645, %v4685, %v4687
    %v4689 = vrot.slane %v4679, 1
    %v4690 = vsel %vm645, %v4687, %v4689
    %v4694 = vmax.f32 %v4676, %v4686
    %v4695 = vmax.f32 %v4677, %v4688
    %v4696 = vmax.f32 %v4678, %v4690
    %v4697 = vrot.slane %v4676, 2
    %v4698 = vrot.slane %v4677, 2
    %v4699 = vsel %vm659, %v4697, %v4698
    %v4700 = vrot.slane %v4678, 2
    %v4701 = vsel %vm659, %v4698, %v4700
    %v4702 = vrot.slane %v4679, 2
    %v4703 = vsel %vm659, %v4700, %v4702
    %v4707 = vmax.f32 %v4694, %v4699
    %v4708 = vmax.f32 %v4695, %v4701
    %v4709 = vmax.f32 %v4696, %v4703
    %v4710 = vadd.f32 %v4707, %v934
    %v4711 = vadd.f32 %v4708, %v934
    %v4712 = vadd.f32 %v4709, %v934
    %v4713 = vmax.f32 %v4710, 0.0
    %v4714 = vmax.f32 %v4711, 0.0
    %v4715 = vmax.f32 %v4712, 0.0
    %4716 = vst [vmem:[#allocation2 + $0x138] sm:$0xff] %v4713
    %4717 = vst [vmem:[#allocation2 + $0x140] sm:$0xff] %v4714
    %4718 = vst [vmem:[#allocation2 + $0x148] sm:$0xff] %v4715
    %v4719 = vmul.f32 %v168, %v944
    %v4720 = vmul.f32 %v169, %v944
    %v4721 = vmul.f32 %v170, %v944
    %v4722 = vmul.f32 %v171, %v944
    %v4723 = vmul.f32 %v272, %v949
    %v4724 = vmul.f32 %v273, %v949
    %v4725 = vmul.f32 %v274, %v949
    %v4726 = vmul.f32 %v275, %v949
    %v4727 = vadd.f32 %v4719, %v4723
    %v4728 = vadd.f32 %v4720, %v4724
    %v4729 = vadd.f32 %v4721, %v4725
    %v4730 = vadd.f32 %v4722, %v4726
    %v4731 = vmul.f32 %v376, %v958
    %v4732 = vmul.f32 %v377, %v958
    %v4733 = vmul.f32 %v378, %v958
    %v4734 = vmul.f32 %v379, %v958
    %v4735 = vadd.f32 %v4727, %v4731
    %v4736 = vadd.f32 %v4728, %v4732
    %v4737 = vadd.f32 %v4729, %v4733
    %v4738 = vadd.f32 %v4730, %v4734
    %v4739 = vmul.f32 %v172, %v967
    %v4740 = vmul.f32 %v173, %v967
    %v4741 = vmul.f32 %v174, %v967
    %v4742 = vmul.f32 %v175, %v967
    %v4743 = vadd.f32 %v4735, %v4739
    %v4744 = vadd.f32 %v4736, %v4740
    %v4745 = vadd.f32 %v4737, %v4741
    %v4746 = vadd.f32 %v4738, %v4742
    %v4747 = vmul.f32 %v276, %v976
    %v4748 = vmul.f32 %v277, %v976
    %v4749 = vmul.f32 %v278, %v976
    %v4750 = vmul.f32 %v279, %v976
    %v4751 = vadd.f32 %v4743, %v4747
    %v4752 = vadd.f32 %v4744, %v4748
    %v4753 = vadd.f32 %v4745, %v4749
    %v4754 = vadd.f32 %v4746, %v4750
    %v4755 = vmul.f32 %v380, %v985
    %v4756 = vmul.f32 %v381, %v985
    %v4757 = vmul.f32 %v382, %v985
    %v4758 = vmul.f32 %v383, %v985
    %v4759 = vadd.f32 %v4751, %v4755
    %v4760 = vadd.f32 %v4752, %v4756
    %v4761 = vadd.f32 %v4753, %v4757
    %v4762 = vadd.f32 %v4754, %v4758
    %v4763 = vmul.f32 %v176, %v994
    %v4764 = vmul.f32 %v177, %v994
    %v4765 = vmul.f32 %v178, %v994
    %v4766 = vmul.f32 %v179, %v994
    %v4767 = vadd.f32 %v4759, %v4763
    %v4768 = vadd.f32 %v4760, %v4764
    %v4769 = vadd.f32 %v4761, %v4765
    %v4770 = vadd.f32 %v4762, %v4766
    %v4771 = vmul.f32 %v280, %v1003
    %v4772 = vmul.f32 %v281, %v1003
    %v4773 = vmul.f32 %v282, %v1003
    %v4774 = vmul.f32 %v283, %v1003
    %v4775 = vadd.f32 %v4767, %v4771
    %v4776 = vadd.f32 %v4768, %v4772
    %v4777 = vadd.f32 %v4769, %v4773
    %v4778 = vadd.f32 %v4770, %v4774
    %v4779 = vmul.f32 %v384, %v1012
    %v4780 = vmul.f32 %v385, %v1012
    %v4781 = vmul.f32 %v386, %v1012
    %v4782 = vmul.f32 %v387, %v1012
    %v4783 = vadd.f32 %v4775, %v4779
    %v4784 = vadd.f32 %v4776, %v4780
    %v4785 = vadd.f32 %v4777, %v4781
    %v4786 = vadd.f32 %v4778, %v4782
    %v4787 = vmul.f32 %v172, %v944
    %v4788 = vmul.f32 %v173, %v944
    %v4789 = vmul.f32 %v174, %v944
    %v4790 = vmul.f32 %v175, %v944
    %v4791 = vmul.f32 %v276, %v949
    %v4792 = vmul.f32 %v277, %v949
    %v4793 = vmul.f32 %v278, %v949
    %v4794 = vmul.f32 %v279, %v949
    %v4795 = vadd.f32 %v4787, %v4791
    %v4796 = vadd.f32 %v4788, %v4792
    %v4797 = vadd.f32 %v4789, %v4793
    %v4798 = vadd.f32 %v4790, %v4794
    %v4799 = vmul.f32 %v380, %v958
    %v4800 = vmul.f32 %v381, %v958
    %v4801 = vmul.f32 %v382, %v958
    %v4802 = vmul.f32 %v383, %v958
    %v4803 = vadd.f32 %v4795, %v4799
    %v4804 = vadd.f32 %v4796, %v4800
    %v4805 = vadd.f32 %v4797, %v4801
    %v4806 = vadd.f32 %v4798, %v4802
    %v4807 = vmul.f32 %v176, %v967
    %v4808 = vmul.f32 %v177, %v967
    %v4809 = vmul.f32 %v178, %v967
    %v4810 = vmul.f32 %v179, %v967
    %v4811 = vadd.f32 %v4803, %v4807
    %v4812 = vadd.f32 %v4804, %v4808
    %v4813 = vadd.f32 %v4805, %v4809
    %v4814 = vadd.f32 %v4806, %v4810
    %v4815 = vmul.f32 %v280, %v976
    %v4816 = vmul.f32 %v281, %v976
    %v4817 = vmul.f32 %v282, %v976
    %v4818 = vmul.f32 %v283, %v976
    %v4819 = vadd.f32 %v4811, %v4815
    %v4820 = vadd.f32 %v4812, %v4816
    %v4821 = vadd.f32 %v4813, %v4817
    %v4822 = vadd.f32 %v4814, %v4818
    %v4823 = vmul.f32 %v384, %v985
    %v4824 = vmul.f32 %v385, %v985
    %v4825 = vmul.f32 %v386, %v985
    %v4826 = vmul.f32 %v387, %v985
    %v4827 = vadd.f32 %v4819, %v4823
    %v4828 = vadd.f32 %v4820, %v4824
    %v4829 = vadd.f32 %v4821, %v4825
    %v4830 = vadd.f32 %v4822, %v4826
    %v4831 = vmul.f32 %v180, %v994
    %v4832 = vmul.f32 %v181, %v994
    %v4833 = vmul.f32 %v182, %v994
    %v4834 = vmul.f32 %v183, %v994
    %v4835 = vadd.f32 %v4827, %v4831
    %v4836 = vadd.f32 %v4828, %v4832
    %v4837 = vadd.f32 %v4829, %v4833
    %v4838 = vadd.f32 %v4830, %v4834
    %v4839 = vmul.f32 %v284, %v1003
    %v4840 = vmul.f32 %v285, %v1003
    %v4841 = vmul.f32 %v286, %v1003
    %v4842 = vmul.f32 %v287, %v1003
    %v4843 = vadd.f32 %v4835, %v4839
    %v4844 = vadd.f32 %v4836, %v4840
    %v4845 = vadd.f32 %v4837, %v4841
    %v4846 = vadd.f32 %v4838, %v4842
    %v4847 = vmul.f32 %v388, %v1012
    %v4848 = vmul.f32 %v389, %v1012
    %v4849 = vmul.f32 %v390, %v1012
    %v4850 = vmul.f32 %v391, %v1012
    %v4851 = vadd.f32 %v4843, %v4847
    %v4852 = vadd.f32 %v4844, %v4848
    %v4853 = vadd.f32 %v4845, %v4849
    %v4854 = vadd.f32 %v4846, %v4850
    %v4855 = vmax.f32 %v4783, %v4851
    %v4856 = vmax.f32 %v4784, %v4852
    %v4857 = vmax.f32 %v4785, %v4853
    %v4858 = vmax.f32 %v4786, %v4854
    %v4859 = vmul.f32 %v176, %v944
    %v4860 = vmul.f32 %v177, %v944
    %v4861 = vmul.f32 %v178, %v944
    %v4862 = vmul.f32 %v179, %v944
    %v4863 = vmul.f32 %v280, %v949
    %v4864 = vmul.f32 %v281, %v949
    %v4865 = vmul.f32 %v282, %v949
    %v4866 = vmul.f32 %v283, %v949
    %v4867 = vadd.f32 %v4859, %v4863
    %v4868 = vadd.f32 %v4860, %v4864
    %v4869 = vadd.f32 %v4861, %v4865
    %v4870 = vadd.f32 %v4862, %v4866
    %v4871 = vmul.f32 %v384, %v958
    %v4872 = vmul.f32 %v385, %v958
    %v4873 = vmul.f32 %v386, %v958
    %v4874 = vmul.f32 %v387, %v958
    %v4875 = vadd.f32 %v4867, %v4871
    %v4876 = vadd.f32 %v4868, %v4872
    %v4877 = vadd.f32 %v4869, %v4873
    %v4878 = vadd.f32 %v4870, %v4874
    %v4879 = vmul.f32 %v180, %v967
    %v4880 = vmul.f32 %v181, %v967
    %v4881 = vmul.f32 %v182, %v967
    %v4882 = vmul.f32 %v183, %v967
    %v4883 = vadd.f32 %v4875, %v4879
    %v4884 = vadd.f32 %v4876, %v4880
    %v4885 = vadd.f32 %v4877, %v4881
    %v4886 = vadd.f32 %v4878, %v4882
    %v4887 = vmul.f32 %v284, %v976
    %v4888 = vmul.f32 %v285, %v976
    %v4889 = vmul.f32 %v286, %v976
    %v4890 = vmul.f32 %v287, %v976
    %v4891 = vadd.f32 %v4883, %v4887
    %v4892 = vadd.f32 %v4884, %v4888
    %v4893 = vadd.f32 %v4885, %v4889
    %v4894 = vadd.f32 %v4886, %v4890
    %v4895 = vmul.f32 %v388, %v985
    %v4896 = vmul.f32 %v389, %v985
    %v4897 = vmul.f32 %v390, %v985
    %v4898 = vmul.f32 %v391, %v985
    %v4899 = vadd.f32 %v4891, %v4895
    %v4900 = vadd.f32 %v4892, %v4896
    %v4901 = vadd.f32 %v4893, %v4897
    %v4902 = vadd.f32 %v4894, %v4898
    %v4903 = vmul.f32 %v184, %v994
    %v4904 = vmul.f32 %v185, %v994
    %v4905 = vmul.f32 %v186, %v994
    %v4906 = vmul.f32 %v187, %v994
    %v4907 = vadd.f32 %v4899, %v4903
    %v4908 = vadd.f32 %v4900, %v4904
    %v4909 = vadd.f32 %v4901, %v4905
    %v4910 = vadd.f32 %v4902, %v4906
    %v4911 = vmul.f32 %v288, %v1003
    %v4912 = vmul.f32 %v289, %v1003
    %v4913 = vmul.f32 %v290, %v1003
    %v4914 = vmul.f32 %v291, %v1003
    %v4915 = vadd.f32 %v4907, %v4911
    %v4916 = vadd.f32 %v4908, %v4912
    %v4917 = vadd.f32 %v4909, %v4913
    %v4918 = vadd.f32 %v4910, %v4914
    %v4919 = vmul.f32 %v392, %v1012
    %v4920 = vmul.f32 %v393, %v1012
    %v4921 = vmul.f32 %v394, %v1012
    %v4922 = vmul.f32 %v395, %v1012
    %v4923 = vadd.f32 %v4915, %v4919
    %v4924 = vadd.f32 %v4916, %v4920
    %v4925 = vadd.f32 %v4917, %v4921
    %v4926 = vadd.f32 %v4918, %v4922
    %v4927 = vmax.f32 %v4855, %v4923
    %v4928 = vmax.f32 %v4856, %v4924
    %v4929 = vmax.f32 %v4857, %v4925
    %v4930 = vmax.f32 %v4858, %v4926
    %v4935 = vrot.slane %v4927, 1
    %v4936 = vrot.slane %v4928, 1
    %v4937 = vsel %vm645, %v4935, %v4936
    %v4938 = vrot.slane %v4929, 1
    %v4939 = vsel %vm645, %v4936, %v4938
    %v4940 = vrot.slane %v4930, 1
    %v4941 = vsel %vm645, %v4938, %v4940
    %v4945 = vmax.f32 %v4927, %v4937
    %v4946 = vmax.f32 %v4928, %v4939
    %v4947 = vmax.f32 %v4929, %v4941
    %v4948 = vrot.slane %v4927, 2
    %v4949 = vrot.slane %v4928, 2
    %v4950 = vsel %vm659, %v4948, %v4949
    %v4951 = vrot.slane %v4929, 2
    %v4952 = vsel %vm659, %v4949, %v4951
    %v4953 = vrot.slane %v4930, 2
    %v4954 = vsel %vm659, %v4951, %v4953
    %v4958 = vmax.f32 %v4945, %v4950
    %v4959 = vmax.f32 %v4946, %v4952
    %v4960 = vmax.f32 %v4947, %v4954
    %v4961 = vadd.f32 %v4958, %v1195
    %v4962 = vadd.f32 %v4959, %v1195
    %v4963 = vadd.f32 %v4960, %v1195
    %v4964 = vmax.f32 %v4961, 0.0
    %v4965 = vmax.f32 %v4962, 0.0
    %v4966 = vmax.f32 %v4963, 0.0
    %4967 = vst [vmem:[#allocation2 + $0x1f8] sm:$0xff] %v4964
    %4968 = vst [vmem:[#allocation2 + $0x200] sm:$0xff] %v4965
    %4969 = vst [vmem:[#allocation2 + $0x208] sm:$0xff] %v4966
    %v4970 = vmul.f32 %v180, %v420
    %v4971 = vmul.f32 %v181, %v420
    %v4972 = vmul.f32 %v182, %v420
    %v4973 = vmul.f32 %v183, %v420
    %v4974 = vmul.f32 %v284, %v425
    %v4975 = vmul.f32 %v285, %v425
    %v4976 = vmul.f32 %v286, %v425
    %v4977 = vmul.f32 %v287, %v425
    %v4978 = vadd.f32 %v4970, %v4974
    %v4979 = vadd.f32 %v4971, %v4975
    %v4980 = vadd.f32 %v4972, %v4976
    %v4981 = vadd.f32 %v4973, %v4977
    %v4982 = vmul.f32 %v388, %v434
    %v4983 = vmul.f32 %v389, %v434
    %v4984 = vmul.f32 %v390, %v434
    %v4985 = vmul.f32 %v391, %v434
    %v4986 = vadd.f32 %v4978, %v4982
    %v4987 = vadd.f32 %v4979, %v4983
    %v4988 = vadd.f32 %v4980, %v4984
    %v4989 = vadd.f32 %v4981, %v4985
    %v4990 = vmul.f32 %v184, %v443
    %v4991 = vmul.f32 %v185, %v443
    %v4992 = vmul.f32 %v186, %v443
    %v4993 = vmul.f32 %v187, %v443
    %v4994 = vadd.f32 %v4986, %v4990
    %v4995 = vadd.f32 %v4987, %v4991
    %v4996 = vadd.f32 %v4988, %v4992
    %v4997 = vadd.f32 %v4989, %v4993
    %v4998 = vmul.f32 %v288, %v452
    %v4999 = vmul.f32 %v289, %v452
    %v5000 = vmul.f32 %v290, %v452
    %v5001 = vmul.f32 %v291, %v452
    %v5002 = vadd.f32 %v4994, %v4998
    %v5003 = vadd.f32 %v4995, %v4999
    %v5004 = vadd.f32 %v4996, %v5000
    %v5005 = vadd.f32 %v4997, %v5001
    %v5006 = vmul.f32 %v392, %v461
    %v5007 = vmul.f32 %v393, %v461
    %v5008 = vmul.f32 %v394, %v461
    %v5009 = vmul.f32 %v395, %v461
    %v5010 = vadd.f32 %v5002, %v5006
    %v5011 = vadd.f32 %v5003, %v5007
    %v5012 = vadd.f32 %v5004, %v5008
    %v5013 = vadd.f32 %v5005, %v5009
    %v5014 = vmul.f32 %v188, %v470
    %v5015 = vmul.f32 %v189, %v470
    %v5016 = vmul.f32 %v190, %v470
    %v5017 = vmul.f32 %v191, %v470
    %v5018 = vadd.f32 %v5010, %v5014
    %v5019 = vadd.f32 %v5011, %v5015
    %v5020 = vadd.f32 %v5012, %v5016
    %v5021 = vadd.f32 %v5013, %v5017
    %v5022 = vmul.f32 %v292, %v479
    %v5023 = vmul.f32 %v293, %v479
    %v5024 = vmul.f32 %v294, %v479
    %v5025 = vmul.f32 %v295, %v479
    %v5026 = vadd.f32 %v5018, %v5022
    %v5027 = vadd.f32 %v5019, %v5023
    %v5028 = vadd.f32 %v5020, %v5024
    %v5029 = vadd.f32 %v5021, %v5025
    %v5030 = vmul.f32 %v396, %v488
    %v5031 = vmul.f32 %v397, %v488
    %v5032 = vmul.f32 %v398, %v488
    %v5033 = vmul.f32 %v399, %v488
    %v5034 = vadd.f32 %v5026, %v5030
    %v5035 = vadd.f32 %v5027, %v5031
    %v5036 = vadd.f32 %v5028, %v5032
    %v5037 = vadd.f32 %v5029, %v5033
    %v5038 = vmul.f32 %v184, %v420
    %v5039 = vmul.f32 %v185, %v420
    %v5040 = vmul.f32 %v186, %v420
    %v5041 = vmul.f32 %v187, %v420
    %v5042 = vmul.f32 %v288, %v425
    %v5043 = vmul.f32 %v289, %v425
    %v5044 = vmul.f32 %v290, %v425
    %v5045 = vmul.f32 %v291, %v425
    %v5046 = vadd.f32 %v5038, %v5042
    %v5047 = vadd.f32 %v5039, %v5043
    %v5048 = vadd.f32 %v5040, %v5044
    %v5049 = vadd.f32 %v5041, %v5045
    %v5050 = vmul.f32 %v392, %v434
    %v5051 = vmul.f32 %v393, %v434
    %v5052 = vmul.f32 %v394, %v434
    %v5053 = vmul.f32 %v395, %v434
    %v5054 = vadd.f32 %v5046, %v5050
    %v5055 = vadd.f32 %v5047, %v5051
    %v5056 = vadd.f32 %v5048, %v5052
    %v5057 = vadd.f32 %v5049, %v5053
    %v5058 = vmul.f32 %v188, %v443
    %v5059 = vmul.f32 %v189, %v443
    %v5060 = vmul.f32 %v190, %v443
    %v5061 = vmul.f32 %v191, %v443
    %v5062 = vadd.f32 %v5054, %v5058
    %v5063 = vadd.f32 %v5055, %v5059
    %v5064 = vadd.f32 %v5056, %v5060
    %v5065 = vadd.f32 %v5057, %v5061
    %v5066 = vmul.f32 %v292, %v452
    %v5067 = vmul.f32 %v293, %v452
    %v5068 = vmul.f32 %v294, %v452
    %v5069 = vmul.f32 %v295, %v452
    %v5070 = vadd.f32 %v5062, %v5066
    %v5071 = vadd.f32 %v5063, %v5067
    %v5072 = vadd.f32 %v5064, %v5068
    %v5073 = vadd.f32 %v5065, %v5069
    %v5074 = vmul.f32 %v396, %v461
    %v5075 = vmul.f32 %v397, %v461
    %v5076 = vmul.f32 %v398, %v461
    %v5077 = vmul.f32 %v399, %v461
    %v5078 = vadd.f32 %v5070, %v5074
    %v5079 = vadd.f32 %v5071, %v5075
    %v5080 = vadd.f32 %v5072, %v5076
    %v5081 = vadd.f32 %v5073, %v5077
    %v5082 = vmul.f32 %v192, %v470
    %v5083 = vmul.f32 %v193, %v470
    %v5084 = vmul.f32 %v194, %v470
    %v5085 = vmul.f32 %v195, %v470
    %v5086 = vadd.f32 %v5078, %v5082
    %v5087 = vadd.f32 %v5079, %v5083
    %v5088 = vadd.f32 %v5080, %v5084
    %v5089 = vadd.f32 %v5081, %v5085
    %v5090 = vmul.f32 %v296, %v479
    %v5091 = vmul.f32 %v297, %v479
    %v5092 = vmul.f32 %v298, %v479
    %v5093 = vmul.f32 %v299, %v479
    %v5094 = vadd.f32 %v5086, %v5090
    %v5095 = vadd.f32 %v5087, %v5091
    %v5096 = vadd.f32 %v5088, %v5092
    %v5097 = vadd.f32 %v5089, %v5093
    %v5098 = vmul.f32 %v400, %v488
    %v5099 = vmul.f32 %v401, %v488
    %v5100 = vmul.f32 %v402, %v488
    %v5101 = vmul.f32 %v403, %v488
    %v5102 = vadd.f32 %v5094, %v5098
    %v5103 = vadd.f32 %v5095, %v5099
    %v5104 = vadd.f32 %v5096, %v5100
    %v5105 = vadd.f32 %v5097, %v5101
    %v5106 = vmax.f32 %v5034, %v5102
    %v5107 = vmax.f32 %v5035, %v5103
    %v5108 = vmax.f32 %v5036, %v5104
    %v5109 = vmax.f32 %v5037, %v5105
    %v5110 = vmul.f32 %v188, %v420
    %v5111 = vmul.f32 %v189, %v420
    %v5112 = vmul.f32 %v190, %v420
    %v5113 = vmul.f32 %v191, %v420
    %v5114 = vmul.f32 %v292, %v425
    %v5115 = vmul.f32 %v293, %v425
    %v5116 = vmul.f32 %v294, %v425
    %v5117 = vmul.f32 %v295, %v425
    %v5118 = vadd.f32 %v5110, %v5114
    %v5119 = vadd.f32 %v5111, %v5115
    %v5120 = vadd.f32 %v5112, %v5116
    %v5121 = vadd.f32 %v5113, %v5117
    %v5122 = vmul.f32 %v396, %v434
    %v5123 = vmul.f32 %v397, %v434
    %v5124 = vmul.f32 %v398, %v434
    %v5125 = vmul.f32 %v399, %v434
    %v5126 = vadd.f32 %v5118, %v5122
    %v5127 = vadd.f32 %v5119, %v5123
    %v5128 = vadd.f32 %v5120, %v5124
    %v5129 = vadd.f32 %v5121, %v5125
    %v5130 = vmul.f32 %v192, %v443
    %v5131 = vmul.f32 %v193, %v443
    %v5132 = vmul.f32 %v194, %v443
    %v5133 = vmul.f32 %v195, %v443
    %v5134 = vadd.f32 %v5126, %v5130
    %v5135 = vadd.f32 %v5127, %v5131
    %v5136 = vadd.f32 %v5128, %v5132
    %v5137 = vadd.f32 %v5129, %v5133
    %v5138 = vmul.f32 %v296, %v452
    %v5139 = vmul.f32 %v297, %v452
    %v5140 = vmul.f32 %v298, %v452
    %v5141 = vmul.f32 %v299, %v452
    %v5142 = vadd.f32 %v5134, %v5138
    %v5143 = vadd.f32 %v5135, %v5139
    %v5144 = vadd.f32 %v5136, %v5140
    %v5145 = vadd.f32 %v5137, %v5141
    %v5146 = vmul.f32 %v400, %v461
    %v5147 = vmul.f32 %v401, %v461
    %v5148 = vmul.f32 %v402, %v461
    %v5149 = vmul.f32 %v403, %v461
    %v5150 = vadd.f32 %v5142, %v5146
    %v5151 = vadd.f32 %v5143, %v5147
    %v5152 = vadd.f32 %v5144, %v5148
    %v5153 = vadd.f32 %v5145, %v5149
    %v5154 = vmul.f32 %v196, %v470
    %v5155 = vmul.f32 %v197, %v470
    %v5156 = vmul.f32 %v198, %v470
    %v5157 = vmul.f32 %v199, %v470
    %v5158 = vadd.f32 %v5150, %v5154
    %v5159 = vadd.f32 %v5151, %v5155
    %v5160 = vadd.f32 %v5152, %v5156
    %v5161 = vadd.f32 %v5153, %v5157
    %v5162 = vmul.f32 %v300, %v479
    %v5163 = vmul.f32 %v301, %v479
    %v5164 = vmul.f32 %v302, %v479
    %v5165 = vmul.f32 %v303, %v479
    %v5166 = vadd.f32 %v5158, %v5162
    %v5167 = vadd.f32 %v5159, %v5163
    %v5168 = vadd.f32 %v5160, %v5164
    %v5169 = vadd.f32 %v5161, %v5165
    %v5170 = vmul.f32 %v404, %v488
    %v5171 = vmul.f32 %v405, %v488
    %v5172 = vmul.f32 %v406, %v488
    %v5173 = vmul.f32 %v407, %v488
    %v5174 = vadd.f32 %v5166, %v5170
    %v5175 = vadd.f32 %v5167, %v5171
    %v5176 = vadd.f32 %v5168, %v5172
    %v5177 = vadd.f32 %v5169, %v5173
    %v5178 = vmax.f32 %v5106, %v5174
    %v5179 = vmax.f32 %v5107, %v5175
    %v5180 = vmax.f32 %v5108, %v5176
    %v5181 = vmax.f32 %v5109, %v5177
    %v5186 = vrot.slane %v5178, 1
    %v5187 = vrot.slane %v5179, 1
    %v5188 = vsel %vm645, %v5186, %v5187
    %v5189 = vrot.slane %v5180, 1
    %v5190 = vsel %vm645, %v5187, %v5189
    %v5191 = vrot.slane %v5181, 1
    %v5192 = vsel %vm645, %v5189, %v5191
    %v5196 = vmax.f32 %v5178, %v5188
    %v5197 = vmax.f32 %v5179, %v5190
    %v5198 = vmax.f32 %v5180, %v5192
    %v5199 = vrot.slane %v5178, 2
    %v5200 = vrot.slane %v5179, 2
    %v5201 = vsel %vm659, %v5199, %v5200
    %v5202 = vrot.slane %v5180, 2
    %v5203 = vsel %vm659, %v5200, %v5202
    %v5204 = vrot.slane %v5181, 2
    %v5205 = vsel %vm659, %v5202, %v5204
    %v5209 = vmax.f32 %v5196, %v5201
    %v5210 = vmax.f32 %v5197, %v5203
    %v5211 = vmax.f32 %v5198, %v5205
    %v5212 = vadd.f32 %v5209, %v673
    %v5213 = vadd.f32 %v5210, %v673
    %v5214 = vadd.f32 %v5211, %v673
    %v5215 = vmax.f32 %v5212, 0.0
    %v5216 = vmax.f32 %v5213, 0.0
    %v5217 = vmax.f32 %v5214, 0.0
    %5218 = vst [vmem:[#allocation2 + $0x90] sm:$0xff] %v5215
    %5219 = vst [vmem:[#allocation2 + $0x98] sm:$0xff] %v5216
    %5220 = vst [vmem:[#allocation2 + $0xa0] sm:$0xff] %v5217
    %v5221 = vmul.f32 %v180, %v683
    %v5222 = vmul.f32 %v181, %v683
    %v5223 = vmul.f32 %v182, %v683
    %v5224 = vmul.f32 %v183, %v683
    %v5225 = vmul.f32 %v284, %v688
    %v5226 = vmul.f32 %v285, %v688
    %v5227 = vmul.f32 %v286, %v688
    %v5228 = vmul.f32 %v287, %v688
    %v5229 = vadd.f32 %v5221, %v5225
    %v5230 = vadd.f32 %v5222, %v5226
    %v5231 = vadd.f32 %v5223, %v5227
    %v5232 = vadd.f32 %v5224, %v5228
    %v5233 = vmul.f32 %v388, %v697
    %v5234 = vmul.f32 %v389, %v697
    %v5235 = vmul.f32 %v390, %v697
    %v5236 = vmul.f32 %v391, %v697
    %v5237 = vadd.f32 %v5229, %v5233
    %v5238 = vadd.f32 %v5230, %v5234
    %v5239 = vadd.f32 %v5231, %v5235
    %v5240 = vadd.f32 %v5232, %v5236
    %v5241 = vmul.f32 %v184, %v706
    %v5242 = vmul.f32 %v185, %v706
    %v5243 = vmul.f32 %v186, %v706
    %v5244 = vmul.f32 %v187, %v706
    %v5245 = vadd.f32 %v5237, %v5241
    %v5246 = vadd.f32 %v5238, %v5242
    %v5247 = vadd.f32 %v5239, %v5243
    %v5248 = vadd.f32 %v5240, %v5244
    %v5249 = vmul.f32 %v288, %v715
    %v5250 = vmul.f32 %v289, %v715
    %v5251 = vmul.f32 %v290, %v715
    %v5252 = vmul.f32 %v291, %v715
    %v5253 = vadd.f32 %v5245, %v5249
    %v5254 = vadd.f32 %v5246, %v5250
    %v5255 = vadd.f32 %v5247, %v5251
    %v5256 = vadd.f32 %v5248, %v5252
    %v5257 = vmul.f32 %v392, %v724
    %v5258 = vmul.f32 %v393, %v724
    %v5259 = vmul.f32 %v394, %v724
    %v5260 = vmul.f32 %v395, %v724
    %v5261 = vadd.f32 %v5253, %v5257
    %v5262 = vadd.f32 %v5254, %v5258
    %v5263 = vadd.f32 %v5255, %v5259
    %v5264 = vadd.f32 %v5256, %v5260
    %v5265 = vmul.f32 %v188, %v733
    %v5266 = vmul.f32 %v189, %v733
    %v5267 = vmul.f32 %v190, %v733
    %v5268 = vmul.f32 %v191, %v733
    %v5269 = vadd.f32 %v5261, %v5265
    %v5270 = vadd.f32 %v5262, %v5266
    %v5271 = vadd.f32 %v5263, %v5267
    %v5272 = vadd.f32 %v5264, %v5268
    %v5273 = vmul.f32 %v292, %v742
    %v5274 = vmul.f32 %v293, %v742
    %v5275 = vmul.f32 %v294, %v742
    %v5276 = vmul.f32 %v295, %v742
    %v5277 = vadd.f32 %v5269, %v5273
    %v5278 = vadd.f32 %v5270, %v5274
    %v5279 = vadd.f32 %v5271, %v5275
    %v5280 = vadd.f32 %v5272, %v5276
    %v5281 = vmul.f32 %v396, %v751
    %v5282 = vmul.f32 %v397, %v751
    %v5283 = vmul.f32 %v398, %v751
    %v5284 = vmul.f32 %v399, %v751
    %v5285 = vadd.f32 %v5277, %v5281
    %v5286 = vadd.f32 %v5278, %v5282
    %v5287 = vadd.f32 %v5279, %v5283
    %v5288 = vadd.f32 %v5280, %v5284
    %v5289 = vmul.f32 %v184, %v683
    %v5290 = vmul.f32 %v185, %v683
    %v5291 = vmul.f32 %v186, %v683
    %v5292 = vmul.f32 %v187, %v683
    %v5293 = vmul.f32 %v288, %v688
    %v5294 = vmul.f32 %v289, %v688
    %v5295 = vmul.f32 %v290, %v688
    %v5296 = vmul.f32 %v291, %v688
    %v5297 = vadd.f32 %v5289, %v5293
    %v5298 = vadd.f32 %v5290, %v5294
    %v5299 = vadd.f32 %v5291, %v5295
    %v5300 = vadd.f32 %v5292, %v5296
    %v5301 = vmul.f32 %v392, %v697
    %v5302 = vmul.f32 %v393, %v697
    %v5303 = vmul.f32 %v394, %v697
    %v5304 = vmul.f32 %v395, %v697
    %v5305 = vadd.f32 %v5297, %v5301
    %v5306 = vadd.f32 %v5298, %v5302
    %v5307 = vadd.f32 %v5299, %v5303
    %v5308 = vadd.f32 %v5300, %v5304
    %v5309 = vmul.f32 %v188, %v706
    %v5310 = vmul.f32 %v189, %v706
    %v5311 = vmul.f32 %v190, %v706
    %v5312 = vmul.f32 %v191, %v706
    %v5313 = vadd.f32 %v5305, %v5309
    %v5314 = vadd.f32 %v5306, %v5310
    %v5315 = vadd.f32 %v5307, %v5311
    %v5316 = vadd.f32 %v5308, %v5312
    %v5317 = vmul.f32 %v292, %v715
    %v5318 = vmul.f32 %v293, %v715
    %v5319 = vmul.f32 %v294, %v715
    %v5320 = vmul.f32 %v295, %v715
    %v5321 = vadd.f32 %v5313, %v5317
    %v5322 = vadd.f32 %v5314, %v5318
    %v5323 = vadd.f32 %v5315, %v5319
    %v5324 = vadd.f32 %v5316, %v5320
    %v5325 = vmul.f32 %v396, %v724
    %v5326 = vmul.f32 %v397, %v724
    %v5327 = vmul.f32 %v398, %v724
    %v5328 = vmul.f32 %v399, %v724
    %v5329 = vadd.f32 %v5321, %v5325
    %v5330 = vadd.f32 %v5322, %v5326
    %v5331 = vadd.f32 %v5323, %v5327
    %v5332 = vadd.f32 %v5324, %v5328
    %v5333 = vmul.f32 %v192, %v733
    %v5334 = vmul.f32 %v193, %v733
    %v5335 = vmul.f32 %v194, %v733
    %v5336 = vmul.f32 %v195, %v733
    %v5337 = vadd.f32 %v5329, %v5333
    %v5338 = vadd.f32 %v5330, %v5334
    %v5339 = vadd.f32 %v5331, %v5335
    %v5340 = vadd.f32 %v5332, %v5336
    %v5341 = vmul.f32 %v296, %v742
    %v5342 = vmul.f32 %v297, %v742
    %v5343 = vmul.f32 %v298, %v742
    %v5344 = vmul.f32 %v299, %v742
    %v5345 = vadd.f32 %v5337, %v5341
    %v5346 = vadd.f32 %v5338, %v5342
    %v5347 = vadd.f32 %v5339, %v5343
    %v5348 = vadd.f32 %v5340, %v5344
    %v5349 = vmul.f32 %v400, %v751
    %v5350 = vmul.f32 %v401, %v751
    %v5351 = vmul.f32 %v402, %v751
    %v5352 = vmul.f32 %v403, %v751
    %v5353 = vadd.f32 %v5345, %v5349
    %v5354 = vadd.f32 %v5346, %v5350
    %v5355 = vadd.f32 %v5347, %v5351
    %v5356 = vadd.f32 %v5348, %v5352
    %v5357 = vmax.f32 %v5285, %v5353
    %v5358 = vmax.f32 %v5286, %v5354
    %v5359 = vmax.f32 %v5287, %v5355
    %v5360 = vmax.f32 %v5288, %v5356
    %v5361 = vmul.f32 %v188, %v683
    %v5362 = vmul.f32 %v189, %v683
    %v5363 = vmul.f32 %v190, %v683
    %v5364 = vmul.f32 %v191, %v683
    %v5365 = vmul.f32 %v292, %v688
    %v5366 = vmul.f32 %v293, %v688
    %v5367 = vmul.f32 %v294, %v688
    %v5368 = vmul.f32 %v295, %v688
    %v5369 = vadd.f32 %v5361, %v5365
    %v5370 = vadd.f32 %v5362, %v5366
    %v5371 = vadd.f32 %v5363, %v5367
    %v5372 = vadd.f32 %v5364, %v5368
    %v5373 = vmul.f32 %v396, %v697
    %v5374 = vmul.f32 %v397, %v697
    %v5375 = vmul.f32 %v398, %v697
    %v5376 = vmul.f32 %v399, %v697
    %v5377 = vadd.f32 %v5369, %v5373
    %v5378 = vadd.f32 %v5370, %v5374
    %v5379 = vadd.f32 %v5371, %v5375
    %v5380 = vadd.f32 %v5372, %v5376
    %v5381 = vmul.f32 %v192, %v706
    %v5382 = vmul.f32 %v193, %v706
    %v5383 = vmul.f32 %v194, %v706
    %v5384 = vmul.f32 %v195, %v706
    %v5385 = vadd.f32 %v5377, %v5381
    %v5386 = vadd.f32 %v5378, %v5382
    %v5387 = vadd.f32 %v5379, %v5383
    %v5388 = vadd.f32 %v5380, %v5384
    %v5389 = vmul.f32 %v296, %v715
    %v5390 = vmul.f32 %v297, %v715
    %v5391 = vmul.f32 %v298, %v715
    %v5392 = vmul.f32 %v299, %v715
    %v5393 = vadd.f32 %v5385, %v5389
    %v5394 = vadd.f32 %v5386, %v5390
    %v5395 = vadd.f32 %v5387, %v5391
    %v5396 = vadd.f32 %v5388, %v5392
    %v5397 = vmul.f32 %v400, %v724
    %v5398 = vmul.f32 %v401, %v724
    %v5399 = vmul.f32 %v402, %v724
    %v5400 = vmul.f32 %v403, %v724
    %v5401 = vadd.f32 %v5393, %v5397
    %v5402 = vadd.f32 %v5394, %v5398
    %v5403 = vadd.f32 %v5395, %v5399
    %v5404 = vadd.f32 %v5396, %v5400
    %v5405 = vmul.f32 %v196, %v733
    %v5406 = vmul.f32 %v197, %v733
    %v5407 = vmul.f32 %v198, %v733
    %v5408 = vmul.f32 %v199, %v733
    %v5409 = vadd.f32 %v5401, %v5405
    %v5410 = vadd.f32 %v5402, %v5406
    %v5411 = vadd.f32 %v5403, %v5407
    %v5412 = vadd.f32 %v5404, %v5408
    %v5413 = vmul.f32 %v300, %v742
    %v5414 = vmul.f32 %v301, %v742
    %v5415 = vmul.f32 %v302, %v742
    %v5416 = vmul.f32 %v303, %v742
    %v5417 = vadd.f32 %v5409, %v5413
    %v5418 = vadd.f32 %v5410, %v5414
    %v5419 = vadd.f32 %v5411, %v5415
    %v5420 = vadd.f32 %v5412, %v5416
    %v5421 = vmul.f32 %v404, %v751
    %v5422 = vmul.f32 %v405, %v751
    %v5423 = vmul.f32 %v406, %v751
    %v5424 = vmul.f32 %v407, %v751
    %v5425 = vadd.f32 %v5417, %v5421
    %v5426 = vadd.f32 %v5418, %v5422
    %v5427 = vadd.f32 %v5419, %v5423
    %v5428 = vadd.f32 %v5420, %v5424
    %v5429 = vmax.f32 %v5357, %v5425
    %v5430 = vmax.f32 %v5358, %v5426
    %v5431 = vmax.f32 %v5359, %v5427
    %v5432 = vmax.f32 %v5360, %v5428
    %v5437 = vrot.slane %v5429, 1
    %v5438 = vrot.slane %v5430, 1
    %v5439 = vsel %vm645, %v5437, %v5438
    %v5440 = vrot.slane %v5431, 1
    %v5441 = vsel %vm645, %v5438, %v5440
    %v5442 = vrot.slane %v5432, 1
    %v5443 = vsel %vm645, %v5440, %v5442
    %v5447 = vmax.f32 %v5429, %v5439
    %v5448 = vmax.f32 %v5430, %v5441
    %v5449 = vmax.f32 %v5431, %v5443
    %v5450 = vrot.slane %v5429, 2
    %v5451 = vrot.slane %v5430, 2
    %v5452 = vsel %vm659, %v5450, %v5451
    %v5453 = vrot.slane %v5431, 2
    %v5454 = vsel %vm659, %v5451, %v5453
    %v5455 = vrot.slane %v5432, 2
    %v5456 = vsel %vm659, %v5453, %v5455
    %v5460 = vmax.f32 %v5447, %v5452
    %v5461 = vmax.f32 %v5448, %v5454
    %v5462 = vmax.f32 %v5449, %v5456
    %v5463 = vadd.f32 %v5460, %v934
    %v5464 = vadd.f32 %v5461, %v934
    %v5465 = vadd.f32 %v5462, %v934
    %v5466 = vmax.f32 %v5463, 0.0
    %v5467 = vmax.f32 %v5464, 0.0
    %v5468 = vmax.f32 %v5465, 0.0
    %5469 = vst [vmem:[#allocation2 + $0x150] sm:$0xff] %v5466
    %5470 = vst [vmem:[#allocation2 + $0x158] sm:$0xff] %v5467
    %5471 = vst [vmem:[#allocation2 + $0x160] sm:$0xff] %v5468
    %v5472 = vmul.f32 %v180, %v944
    %v5473 = vmul.f32 %v181, %v944
    %v5474 = vmul.f32 %v182, %v944
    %v5475 = vmul.f32 %v183, %v944
    %v5476 = vmul.f32 %v284, %v949
    %v5477 = vmul.f32 %v285, %v949
    %v5478 = vmul.f32 %v286, %v949
    %v5479 = vmul.f32 %v287, %v949
    %v5480 = vadd.f32 %v5472, %v5476
    %v5481 = vadd.f32 %v5473, %v5477
    %v5482 = vadd.f32 %v5474, %v5478
    %v5483 = vadd.f32 %v5475, %v5479
    %v5484 = vmul.f32 %v388, %v958
    %v5485 = vmul.f32 %v389, %v958
    %v5486 = vmul.f32 %v390, %v958
    %v5487 = vmul.f32 %v391, %v958
    %v5488 = vadd.f32 %v5480, %v5484
    %v5489 = vadd.f32 %v5481, %v5485
    %v5490 = vadd.f32 %v5482, %v5486
    %v5491 = vadd.f32 %v5483, %v5487
    %v5492 = vmul.f32 %v184, %v967
    %v5493 = vmul.f32 %v185, %v967
    %v5494 = vmul.f32 %v186, %v967
    %v5495 = vmul.f32 %v187, %v967
    %v5496 = vadd.f32 %v5488, %v5492
    %v5497 = vadd.f32 %v5489, %v5493
    %v5498 = vadd.f32 %v5490, %v5494
    %v5499 = vadd.f32 %v5491, %v5495
    %v5500 = vmul.f32 %v288, %v976
    %v5501 = vmul.f32 %v289, %v976
    %v5502 = vmul.f32 %v290, %v976
    %v5503 = vmul.f32 %v291, %v976
    %v5504 = vadd.f32 %v5496, %v5500
    %v5505 = vadd.f32 %v5497, %v5501
    %v5506 = vadd.f32 %v5498, %v5502
    %v5507 = vadd.f32 %v5499, %v5503
    %v5508 = vmul.f32 %v392, %v985
    %v5509 = vmul.f32 %v393, %v985
    %v5510 = vmul.f32 %v394, %v985
    %v5511 = vmul.f32 %v395, %v985
    %v5512 = vadd.f32 %v5504, %v5508
    %v5513 = vadd.f32 %v5505, %v5509
    %v5514 = vadd.f32 %v5506, %v5510
    %v5515 = vadd.f32 %v5507, %v5511
    %v5516 = vmul.f32 %v188, %v994
    %v5517 = vmul.f32 %v189, %v994
    %v5518 = vmul.f32 %v190, %v994
    %v5519 = vmul.f32 %v191, %v994
    %v5520 = vadd.f32 %v5512, %v5516
    %v5521 = vadd.f32 %v5513, %v5517
    %v5522 = vadd.f32 %v5514, %v5518
    %v5523 = vadd.f32 %v5515, %v5519
    %v5524 = vmul.f32 %v292, %v1003
    %v5525 = vmul.f32 %v293, %v1003
    %v5526 = vmul.f32 %v294, %v1003
    %v5527 = vmul.f32 %v295, %v1003
    %v5528 = vadd.f32 %v5520, %v5524
    %v5529 = vadd.f32 %v5521, %v5525
    %v5530 = vadd.f32 %v5522, %v5526
    %v5531 = vadd.f32 %v5523, %v5527
    %v5532 = vmul.f32 %v396, %v1012
    %v5533 = vmul.f32 %v397, %v1012
    %v5534 = vmul.f32 %v398, %v1012
    %v5535 = vmul.f32 %v399, %v1012
    %v5536 = vadd.f32 %v5528, %v5532
    %v5537 = vadd.f32 %v5529, %v5533
    %v5538 = vadd.f32 %v5530, %v5534
    %v5539 = vadd.f32 %v5531, %v5535
    %v5540 = vmul.f32 %v184, %v944
    %v5541 = vmul.f32 %v185, %v944
    %v5542 = vmul.f32 %v186, %v944
    %v5543 = vmul.f32 %v187, %v944
    %v5544 = vmul.f32 %v288, %v949
    %v5545 = vmul.f32 %v289, %v949
    %v5546 = vmul.f32 %v290, %v949
    %v5547 = vmul.f32 %v291, %v949
    %v5548 = vadd.f32 %v5540, %v5544
    %v5549 = vadd.f32 %v5541, %v5545
    %v5550 = vadd.f32 %v5542, %v5546
    %v5551 = vadd.f32 %v5543, %v5547
    %v5552 = vmul.f32 %v392, %v958
    %v5553 = vmul.f32 %v393, %v958
    %v5554 = vmul.f32 %v394, %v958
    %v5555 = vmul.f32 %v395, %v958
    %v5556 = vadd.f32 %v5548, %v5552
    %v5557 = vadd.f32 %v5549, %v5553
    %v5558 = vadd.f32 %v5550, %v5554
    %v5559 = vadd.f32 %v5551, %v5555
    %v5560 = vmul.f32 %v188, %v967
    %v5561 = vmul.f32 %v189, %v967
    %v5562 = vmul.f32 %v190, %v967
    %v5563 = vmul.f32 %v191, %v967
    %v5564 = vadd.f32 %v5556, %v5560
    %v5565 = vadd.f32 %v5557, %v5561
    %v5566 = vadd.f32 %v5558, %v5562
    %v5567 = vadd.f32 %v5559, %v5563
    %v5568 = vmul.f32 %v292, %v976
    %v5569 = vmul.f32 %v293, %v976
    %v5570 = vmul.f32 %v294, %v976
    %v5571 = vmul.f32 %v295, %v976
    %v5572 = vadd.f32 %v5564, %v5568
    %v5573 = vadd.f32 %v5565, %v5569
    %v5574 = vadd.f32 %v5566, %v5570
    %v5575 = vadd.f32 %v5567, %v5571
    %v5576 = vmul.f32 %v396, %v985
    %v5577 = vmul.f32 %v397, %v985
    %v5578 = vmul.f32 %v398, %v985
    %v5579 = vmul.f32 %v399, %v985
    %v5580 = vadd.f32 %v5572, %v5576
    %v5581 = vadd.f32 %v5573, %v5577
    %v5582 = vadd.f32 %v5574, %v5578
    %v5583 = vadd.f32 %v5575, %v5579
    %v5584 = vmul.f32 %v192, %v994
    %v5585 = vmul.f32 %v193, %v994
    %v5586 = vmul.f32 %v194, %v994
    %v5587 = vmul.f32 %v195, %v994
    %v5588 = vadd.f32 %v5580, %v5584
    %v5589 = vadd.f32 %v5581, %v5585
    %v5590 = vadd.f32 %v5582, %v5586
    %v5591 = vadd.f32 %v5583, %v5587
    %v5592 = vmul.f32 %v296, %v1003
    %v5593 = vmul.f32 %v297, %v1003
    %v5594 = vmul.f32 %v298, %v1003
    %v5595 = vmul.f32 %v299, %v1003
    %v5596 = vadd.f32 %v5588, %v5592
    %v5597 = vadd.f32 %v5589, %v5593
    %v5598 = vadd.f32 %v5590, %v5594
    %v5599 = vadd.f32 %v5591, %v5595
    %v5600 = vmul.f32 %v400, %v1012
    %v5601 = vmul.f32 %v401, %v1012
    %v5602 = vmul.f32 %v402, %v1012
    %v5603 = vmul.f32 %v403, %v1012
    %v5604 = vadd.f32 %v5596, %v5600
    %v5605 = vadd.f32 %v5597, %v5601
    %v5606 = vadd.f32 %v5598, %v5602
    %v5607 = vadd.f32 %v5599, %v5603
    %v5608 = vmax.f32 %v5536, %v5604
    %v5609 = vmax.f32 %v5537, %v5605
    %v5610 = vmax.f32 %v5538, %v5606
    %v5611 = vmax.f32 %v5539, %v5607
    %v5612 = vmul.f32 %v188, %v944
    %v5613 = vmul.f32 %v189, %v944
    %v5614 = vmul.f32 %v190, %v944
    %v5615 = vmul.f32 %v191, %v944
    %v5616 = vmul.f32 %v292, %v949
    %v5617 = vmul.f32 %v293, %v949
    %v5618 = vmul.f32 %v294, %v949
    %v5619 = vmul.f32 %v295, %v949
    %v5620 = vadd.f32 %v5612, %v5616
    %v5621 = vadd.f32 %v5613, %v5617
    %v5622 = vadd.f32 %v5614, %v5618
    %v5623 = vadd.f32 %v5615, %v5619
    %v5624 = vmul.f32 %v396, %v958
    %v5625 = vmul.f32 %v397, %v958
    %v5626 = vmul.f32 %v398, %v958
    %v5627 = vmul.f32 %v399, %v958
    %v5628 = vadd.f32 %v5620, %v5624
    %v5629 = vadd.f32 %v5621, %v5625
    %v5630 = vadd.f32 %v5622, %v5626
    %v5631 = vadd.f32 %v5623, %v5627
    %v5632 = vmul.f32 %v192, %v967
    %v5633 = vmul.f32 %v193, %v967
    %v5634 = vmul.f32 %v194, %v967
    %v5635 = vmul.f32 %v195, %v967
    %v5636 = vadd.f32 %v5628, %v5632
    %v5637 = vadd.f32 %v5629, %v5633
    %v5638 = vadd.f32 %v5630, %v5634
    %v5639 = vadd.f32 %v5631, %v5635
    %v5640 = vmul.f32 %v296, %v976
    %v5641 = vmul.f32 %v297, %v976
    %v5642 = vmul.f32 %v298, %v976
    %v5643 = vmul.f32 %v299, %v976
    %v5644 = vadd.f32 %v5636, %v5640
    %v5645 = vadd.f32 %v5637, %v5641
    %v5646 = vadd.f32 %v5638, %v5642
    %v5647 = vadd.f32 %v5639, %v5643
    %v5648 = vmul.f32 %v400, %v985
    %v5649 = vmul.f32 %v401, %v985
    %v5650 = vmul.f32 %v402, %v985
    %v5651 = vmul.f32 %v403, %v985
    %v5652 = vadd.f32 %v5644, %v5648
    %v5653 = vadd.f32 %v5645, %v5649
    %v5654 = vadd.f32 %v5646, %v5650
    %v5655 = vadd.f32 %v5647, %v5651
    %v5656 = vmul.f32 %v196, %v994
    %v5657 = vmul.f32 %v197, %v994
    %v5658 = vmul.f32 %v198, %v994
    %v5659 = vmul.f32 %v199, %v994
    %v5660 = vadd.f32 %v5652, %v5656
    %v5661 = vadd.f32 %v5653, %v5657
    %v5662 = vadd.f32 %v5654, %v5658
    %v5663 = vadd.f32 %v5655, %v5659
    %v5664 = vmul.f32 %v300, %v1003
    %v5665 = vmul.f32 %v301, %v1003
    %v5666 = vmul.f32 %v302, %v1003
    %v5667 = vmul.f32 %v303, %v1003
    %v5668 = vadd.f32 %v5660, %v5664
    %v5669 = vadd.f32 %v5661, %v5665
    %v5670 = vadd.f32 %v5662, %v5666
    %v5671 = vadd.f32 %v5663, %v5667
    %v5672 = vmul.f32 %v404, %v1012
    %v5673 = vmul.f32 %v405, %v1012
    %v5674 = vmul.f32 %v406, %v1012
    %v5675 = vmul.f32 %v407, %v1012
    %v5676 = vadd.f32 %v5668, %v5672
    %v5677 = vadd.f32 %v5669, %v5673
    %v5678 = vadd.f32 %v5670, %v5674
    %v5679 = vadd.f32 %v5671, %v5675
    %v5680 = vmax.f32 %v5608, %v5676
    %v5681 = vmax.f32 %v5609, %v5677
    %v5682 = vmax.f32 %v5610, %v5678
    %v5683 = vmax.f32 %v5611, %v5679
    %v5688 = vrot.slane %v5680, 1
    %v5689 = vrot.slane %v5681, 1
    %v5690 = vsel %vm645, %v5688, %v5689
    %v5691 = vrot.slane %v5682, 1
    %v5692 = vsel %vm645, %v5689, %v5691
    %v5693 = vrot.slane %v5683, 1
    %v5694 = vsel %vm645, %v5691, %v5693
    %v5698 = vmax.f32 %v5680, %v5690
    %v5699 = vmax.f32 %v5681, %v5692
    %v5700 = vmax.f32 %v5682, %v5694
    %v5701 = vrot.slane %v5680, 2
    %v5702 = vrot.slane %v5681, 2
    %v5703 = vsel %vm659, %v5701, %v5702
    %v5704 = vrot.slane %v5682, 2
    %v5705 = vsel %vm659, %v5702, %v5704
    %v5706 = vrot.slane %v5683, 2
    %v5707 = vsel %vm659, %v5704, %v5706
    %v5711 = vmax.f32 %v5698, %v5703
    %v5712 = vmax.f32 %v5699, %v5705
    %v5713 = vmax.f32 %v5700, %v5707
    %v5714 = vadd.f32 %v5711, %v1195
    %v5715 = vadd.f32 %v5712, %v1195
    %v5716 = vadd.f32 %v5713, %v1195
    %v5717 = vmax.f32 %v5714, 0.0
    %v5718 = vmax.f32 %v5715, 0.0
    %v5719 = vmax.f32 %v5716, 0.0
    %5720 = vst [vmem:[#allocation2 + $0x210] sm:$0xff] %v5717
    %5721 = vst [vmem:[#allocation2 + $0x218] sm:$0xff] %v5718
    %5722 = vst [vmem:[#allocation2 + $0x220] sm:$0xff] %v5719
    %v5723 = vmul.f32 %v192, %v420
    %v5724 = vmul.f32 %v193, %v420
    %v5725 = vmul.f32 %v194, %v420
    %v5726 = vmul.f32 %v195, %v420
    %v5727 = vmul.f32 %v296, %v425
    %v5728 = vmul.f32 %v297, %v425
    %v5729 = vmul.f32 %v298, %v425
    %v5730 = vmul.f32 %v299, %v425
    %v5731 = vadd.f32 %v5723, %v5727
    %v5732 = vadd.f32 %v5724, %v5728
    %v5733 = vadd.f32 %v5725, %v5729
    %v5734 = vadd.f32 %v5726, %v5730
    %v5735 = vmul.f32 %v400, %v434
    %v5736 = vmul.f32 %v401, %v434
    %v5737 = vmul.f32 %v402, %v434
    %v5738 = vmul.f32 %v403, %v434
    %v5739 = vadd.f32 %v5731, %v5735
    %v5740 = vadd.f32 %v5732, %v5736
    %v5741 = vadd.f32 %v5733, %v5737
    %v5742 = vadd.f32 %v5734, %v5738
    %v5743 = vmul.f32 %v196, %v443
    %v5744 = vmul.f32 %v197, %v443
    %v5745 = vmul.f32 %v198, %v443
    %v5746 = vmul.f32 %v199, %v443
    %v5747 = vadd.f32 %v5739, %v5743
    %v5748 = vadd.f32 %v5740, %v5744
    %v5749 = vadd.f32 %v5741, %v5745
    %v5750 = vadd.f32 %v5742, %v5746
    %v5751 = vmul.f32 %v300, %v452
    %v5752 = vmul.f32 %v301, %v452
    %v5753 = vmul.f32 %v302, %v452
    %v5754 = vmul.f32 %v303, %v452
    %v5755 = vadd.f32 %v5747, %v5751
    %v5756 = vadd.f32 %v5748, %v5752
    %v5757 = vadd.f32 %v5749, %v5753
    %v5758 = vadd.f32 %v5750, %v5754
    %v5759 = vmul.f32 %v404, %v461
    %v5760 = vmul.f32 %v405, %v461
    %v5761 = vmul.f32 %v406, %v461
    %v5762 = vmul.f32 %v407, %v461
    %v5763 = vadd.f32 %v5755, %v5759
    %v5764 = vadd.f32 %v5756, %v5760
    %v5765 = vadd.f32 %v5757, %v5761
    %v5766 = vadd.f32 %v5758, %v5762
    %v5767 = vmul.f32 %v200, %v470
    %v5768 = vmul.f32 %v201, %v470
    %v5769 = vmul.f32 %v202, %v470
    %v5770 = vmul.f32 %v203, %v470
    %v5771 = vadd.f32 %v5763, %v5767
    %v5772 = vadd.f32 %v5764, %v5768
    %v5773 = vadd.f32 %v5765, %v5769
    %v5774 = vadd.f32 %v5766, %v5770
    %v5775 = vmul.f32 %v304, %v479
    %v5776 = vmul.f32 %v305, %v479
    %v5777 = vmul.f32 %v306, %v479
    %v5778 = vmul.f32 %v307, %v479
    %v5779 = vadd.f32 %v5771, %v5775
    %v5780 = vadd.f32 %v5772, %v5776
    %v5781 = vadd.f32 %v5773, %v5777
    %v5782 = vadd.f32 %v5774, %v5778
    %v5783 = vmul.f32 %v408, %v488
    %v5784 = vmul.f32 %v409, %v488
    %v5785 = vmul.f32 %v410, %v488
    %v5786 = vmul.f32 %v411, %v488
    %v5787 = vadd.f32 %v5779, %v5783
    %v5788 = vadd.f32 %v5780, %v5784
    %v5789 = vadd.f32 %v5781, %v5785
    %v5790 = vadd.f32 %v5782, %v5786
    %v5791 = vmul.f32 %v196, %v420
    %v5792 = vmul.f32 %v197, %v420
    %v5793 = vmul.f32 %v198, %v420
    %v5794 = vmul.f32 %v199, %v420
    %v5795 = vmul.f32 %v300, %v425
    %v5796 = vmul.f32 %v301, %v425
    %v5797 = vmul.f32 %v302, %v425
    %v5798 = vmul.f32 %v303, %v425
    %v5799 = vadd.f32 %v5791, %v5795
    %v5800 = vadd.f32 %v5792, %v5796
    %v5801 = vadd.f32 %v5793, %v5797
    %v5802 = vadd.f32 %v5794, %v5798
    %v5803 = vmul.f32 %v404, %v434
    %v5804 = vmul.f32 %v405, %v434
    %v5805 = vmul.f32 %v406, %v434
    %v5806 = vmul.f32 %v407, %v434
    %v5807 = vadd.f32 %v5799, %v5803
    %v5808 = vadd.f32 %v5800, %v5804
    %v5809 = vadd.f32 %v5801, %v5805
    %v5810 = vadd.f32 %v5802, %v5806
    %v5811 = vmul.f32 %v200, %v443
    %v5812 = vmul.f32 %v201, %v443
    %v5813 = vmul.f32 %v202, %v443
    %v5814 = vmul.f32 %v203, %v443
    %v5815 = vadd.f32 %v5807, %v5811
    %v5816 = vadd.f32 %v5808, %v5812
    %v5817 = vadd.f32 %v5809, %v5813
    %v5818 = vadd.f32 %v5810, %v5814
    %v5819 = vmul.f32 %v304, %v452
    %v5820 = vmul.f32 %v305, %v452
    %v5821 = vmul.f32 %v306, %v452
    %v5822 = vmul.f32 %v307, %v452
    %v5823 = vadd.f32 %v5815, %v5819
    %v5824 = vadd.f32 %v5816, %v5820
    %v5825 = vadd.f32 %v5817, %v5821
    %v5826 = vadd.f32 %v5818, %v5822
    %v5827 = vmul.f32 %v408, %v461
    %v5828 = vmul.f32 %v409, %v461
    %v5829 = vmul.f32 %v410, %v461
    %v5830 = vmul.f32 %v411, %v461
    %v5831 = vadd.f32 %v5823, %v5827
    %v5832 = vadd.f32 %v5824, %v5828
    %v5833 = vadd.f32 %v5825, %v5829
    %v5834 = vadd.f32 %v5826, %v5830
    %v5835 = vmul.f32 %v204, %v470
    %v5836 = vmul.f32 %v205, %v470
    %v5837 = vmul.f32 %v206, %v470
    %v5838 = vmul.f32 %v207, %v470
    %v5839 = vadd.f32 %v5831, %v5835
    %v5840 = vadd.f32 %v5832, %v5836
    %v5841 = vadd.f32 %v5833, %v5837
    %v5842 = vadd.f32 %v5834, %v5838
    %v5843 = vmul.f32 %v308, %v479
    %v5844 = vmul.f32 %v309, %v479
    %v5845 = vmul.f32 %v310, %v479
    %v5846 = vmul.f32 %v311, %v479
    %v5847 = vadd.f32 %v5839, %v5843
    %v5848 = vadd.f32 %v5840, %v5844
    %v5849 = vadd.f32 %v5841, %v5845
    %v5850 = vadd.f32 %v5842, %v5846
    %v5851 = vmul.f32 %v412, %v488
    %v5852 = vmul.f32 %v413, %v488
    %v5853 = vmul.f32 %v414, %v488
    %v5854 = vmul.f32 %v415, %v488
    %v5855 = vadd.f32 %v5847, %v5851
    %v5856 = vadd.f32 %v5848, %v5852
    %v5857 = vadd.f32 %v5849, %v5853
    %v5858 = vadd.f32 %v5850, %v5854
    %v5859 = vmax.f32 %v5787, %v5855
    %v5860 = vmax.f32 %v5788, %v5856
    %v5861 = vmax.f32 %v5789, %v5857
    %v5862 = vmax.f32 %v5790, %v5858
    %v5863 = vmul.f32 %v200, %v420
    %v5864 = vmul.f32 %v201, %v420
    %v5865 = vmul.f32 %v202, %v420
    %v5866 = vmul.f32 %v203, %v420
    %v5867 = vmul.f32 %v304, %v425
    %v5868 = vmul.f32 %v305, %v425
    %v5869 = vmul.f32 %v306, %v425
    %v5870 = vmul.f32 %v307, %v425
    %v5871 = vadd.f32 %v5863, %v5867
    %v5872 = vadd.f32 %v5864, %v5868
    %v5873 = vadd.f32 %v5865, %v5869
    %v5874 = vadd.f32 %v5866, %v5870
    %v5875 = vmul.f32 %v408, %v434
    %v5876 = vmul.f32 %v409, %v434
    %v5877 = vmul.f32 %v410, %v434
    %v5878 = vmul.f32 %v411, %v434
    %v5879 = vadd.f32 %v5871, %v5875
    %v5880 = vadd.f32 %v5872, %v5876
    %v5881 = vadd.f32 %v5873, %v5877
    %v5882 = vadd.f32 %v5874, %v5878
    %v5883 = vmul.f32 %v204, %v443
    %v5884 = vmul.f32 %v205, %v443
    %v5885 = vmul.f32 %v206, %v443
    %v5886 = vmul.f32 %v207, %v443
    %v5887 = vadd.f32 %v5879, %v5883
    %v5888 = vadd.f32 %v5880, %v5884
    %v5889 = vadd.f32 %v5881, %v5885
    %v5890 = vadd.f32 %v5882, %v5886
    %v5891 = vmul.f32 %v308, %v452
    %v5892 = vmul.f32 %v309, %v452
    %v5893 = vmul.f32 %v310, %v452
    %v5894 = vmul.f32 %v311, %v452
    %v5895 = vadd.f32 %v5887, %v5891
    %v5896 = vadd.f32 %v5888, %v5892
    %v5897 = vadd.f32 %v5889, %v5893
    %v5898 = vadd.f32 %v5890, %v5894
    %v5899 = vmul.f32 %v412, %v461
    %v5900 = vmul.f32 %v413, %v461
    %v5901 = vmul.f32 %v414, %v461
    %v5902 = vmul.f32 %v415, %v461
    %v5903 = vadd.f32 %v5895, %v5899
    %v5904 = vadd.f32 %v5896, %v5900
    %v5905 = vadd.f32 %v5897, %v5901
    %v5906 = vadd.f32 %v5898, %v5902
    %v5907 = vmul.f32 %v208, %v470
    %v5908 = vmul.f32 %v209, %v470
    %v5909 = vmul.f32 %v210, %v470
    %v5910 = vmul.f32 %v211, %v470
    %v5911 = vadd.f32 %v5903, %v5907
    %v5912 = vadd.f32 %v5904, %v5908
    %v5913 = vadd.f32 %v5905, %v5909
    %v5914 = vadd.f32 %v5906, %v5910
    %v5915 = vmul.f32 %v312, %v479
    %v5916 = vmul.f32 %v313, %v479
    %v5917 = vmul.f32 %v314, %v479
    %v5918 = vmul.f32 %v315, %v479
    %v5919 = vadd.f32 %v5911, %v5915
    %v5920 = vadd.f32 %v5912, %v5916
    %v5921 = vadd.f32 %v5913, %v5917
    %v5922 = vadd.f32 %v5914, %v5918
    %v5923 = vmul.f32 %v416, %v488
    %v5924 = vmul.f32 %v417, %v488
    %v5925 = vmul.f32 %v418, %v488
    %v5926 = vmul.f32 %v419, %v488
    %v5927 = vadd.f32 %v5919, %v5923
    %v5928 = vadd.f32 %v5920, %v5924
    %v5929 = vadd.f32 %v5921, %v5925
    %v5930 = vadd.f32 %v5922, %v5926
    %v5931 = vmax.f32 %v5859, %v5927
    %v5932 = vmax.f32 %v5860, %v5928
    %v5933 = vmax.f32 %v5861, %v5929
    %v5934 = vmax.f32 %v5862, %v5930
    %v5939 = vrot.slane %v5931, 1
    %v5940 = vrot.slane %v5932, 1
    %v5941 = vsel %vm645, %v5939, %v5940
    %v5942 = vrot.slane %v5933, 1
    %v5943 = vsel %vm645, %v5940, %v5942
    %v5944 = vrot.slane %v5934, 1
    %v5945 = vsel %vm645, %v5942, %v5944
    %v5949 = vmax.f32 %v5931, %v5941
    %v5950 = vmax.f32 %v5932, %v5943
    %v5951 = vmax.f32 %v5933, %v5945
    %v5952 = vrot.slane %v5931, 2
    %v5953 = vrot.slane %v5932, 2
    %v5954 = vsel %vm659, %v5952, %v5953
    %v5955 = vrot.slane %v5933, 2
    %v5956 = vsel %vm659, %v5953, %v5955
    %v5957 = vrot.slane %v5934, 2
    %v5958 = vsel %vm659, %v5955, %v5957
    %v5962 = vmax.f32 %v5949, %v5954
    %v5963 = vmax.f32 %v5950, %v5956
    %v5964 = vmax.f32 %v5951, %v5958
    %v5965 = vadd.f32 %v5962, %v673
    %v5966 = vadd.f32 %v5963, %v673
    %v5967 = vadd.f32 %v5964, %v673
    %v5968 = vmax.f32 %v5965, 0.0
    %v5969 = vmax.f32 %v5966, 0.0
    %v5970 = vmax.f32 %v5967, 0.0
    %5971 = vst [vmem:[#allocation2 + $0xa8] sm:$0xff] %v5968
    %5972 = vst [vmem:[#allocation2 + $0xb0] sm:$0xff] %v5969
    %5973 = vst [vmem:[#allocation2 + $0xb8] sm:$0xff] %v5970
    %v5974 = vmul.f32 %v192, %v683
    %v5975 = vmul.f32 %v193, %v683
    %v5976 = vmul.f32 %v194, %v683
    %v5977 = vmul.f32 %v195, %v683
    %v5978 = vmul.f32 %v296, %v688
    %v5979 = vmul.f32 %v297, %v688
    %v5980 = vmul.f32 %v298, %v688
    %v5981 = vmul.f32 %v299, %v688
    %v5982 = vadd.f32 %v5974, %v5978
    %v5983 = vadd.f32 %v5975, %v5979
    %v5984 = vadd.f32 %v5976, %v5980
    %v5985 = vadd.f32 %v5977, %v5981
    %v5986 = vmul.f32 %v400, %v697
    %v5987 = vmul.f32 %v401, %v697
    %v5988 = vmul.f32 %v402, %v697
    %v5989 = vmul.f32 %v403, %v697
    %v5990 = vadd.f32 %v5982, %v5986
    %v5991 = vadd.f32 %v5983, %v5987
    %v5992 = vadd.f32 %v5984, %v5988
    %v5993 = vadd.f32 %v5985, %v5989
    %v5994 = vmul.f32 %v196, %v706
    %v5995 = vmul.f32 %v197, %v706
    %v5996 = vmul.f32 %v198, %v706
    %v5997 = vmul.f32 %v199, %v706
    %v5998 = vadd.f32 %v5990, %v5994
    %v5999 = vadd.f32 %v5991, %v5995
    %v6000 = vadd.f32 %v5992, %v5996
    %v6001 = vadd.f32 %v5993, %v5997
    %v6002 = vmul.f32 %v300, %v715
    %v6003 = vmul.f32 %v301, %v715
    %v6004 = vmul.f32 %v302, %v715
    %v6005 = vmul.f32 %v303, %v715
    %v6006 = vadd.f32 %v5998, %v6002
    %v6007 = vadd.f32 %v5999, %v6003
    %v6008 = vadd.f32 %v6000, %v6004
    %v6009 = vadd.f32 %v6001, %v6005
    %v6010 = vmul.f32 %v404, %v724
    %v6011 = vmul.f32 %v405, %v724
    %v6012 = vmul.f32 %v406, %v724
    %v6013 = vmul.f32 %v407, %v724
    %v6014 = vadd.f32 %v6006, %v6010
    %v6015 = vadd.f32 %v6007, %v6011
    %v6016 = vadd.f32 %v6008, %v6012
    %v6017 = vadd.f32 %v6009, %v6013
    %v6018 = vmul.f32 %v200, %v733
    %v6019 = vmul.f32 %v201, %v733
    %v6020 = vmul.f32 %v202, %v733
    %v6021 = vmul.f32 %v203, %v733
    %v6022 = vadd.f32 %v6014, %v6018
    %v6023 = vadd.f32 %v6015, %v6019
    %v6024 = vadd.f32 %v6016, %v6020
    %v6025 = vadd.f32 %v6017, %v6021
    %v6026 = vmul.f32 %v304, %v742
    %v6027 = vmul.f32 %v305, %v742
    %v6028 = vmul.f32 %v306, %v742
    %v6029 = vmul.f32 %v307, %v742
    %v6030 = vadd.f32 %v6022, %v6026
    %v6031 = vadd.f32 %v6023, %v6027
    %v6032 = vadd.f32 %v6024, %v6028
    %v6033 = vadd.f32 %v6025, %v6029
    %v6034 = vmul.f32 %v408, %v751
    %v6035 = vmul.f32 %v409, %v751
    %v6036 = vmul.f32 %v410, %v751
    %v6037 = vmul.f32 %v411, %v751
    %v6038 = vadd.f32 %v6030, %v6034
    %v6039 = vadd.f32 %v6031, %v6035
    %v6040 = vadd.f32 %v6032, %v6036
    %v6041 = vadd.f32 %v6033, %v6037
    %v6042 = vmul.f32 %v196, %v683
    %v6043 = vmul.f32 %v197, %v683
    %v6044 = vmul.f32 %v198, %v683
    %v6045 = vmul.f32 %v199, %v683
    %v6046 = vmul.f32 %v300, %v688
    %v6047 = vmul.f32 %v301, %v688
    %v6048 = vmul.f32 %v302, %v688
    %v6049 = vmul.f32 %v303, %v688
    %v6050 = vadd.f32 %v6042, %v6046
    %v6051 = vadd.f32 %v6043, %v6047
    %v6052 = vadd.f32 %v6044, %v6048
    %v6053 = vadd.f32 %v6045, %v6049
    %v6054 = vmul.f32 %v404, %v697
    %v6055 = vmul.f32 %v405, %v697
    %v6056 = vmul.f32 %v406, %v697
    %v6057 = vmul.f32 %v407, %v697
    %v6058 = vadd.f32 %v6050, %v6054
    %v6059 = vadd.f32 %v6051, %v6055
    %v6060 = vadd.f32 %v6052, %v6056
    %v6061 = vadd.f32 %v6053, %v6057
    %v6062 = vmul.f32 %v200, %v706
    %v6063 = vmul.f32 %v201, %v706
    %v6064 = vmul.f32 %v202, %v706
    %v6065 = vmul.f32 %v203, %v706
    %v6066 = vadd.f32 %v6058, %v6062
    %v6067 = vadd.f32 %v6059, %v6063
    %v6068 = vadd.f32 %v6060, %v6064
    %v6069 = vadd.f32 %v6061, %v6065
    %v6070 = vmul.f32 %v304, %v715
    %v6071 = vmul.f32 %v305, %v715
    %v6072 = vmul.f32 %v306, %v715
    %v6073 = vmul.f32 %v307, %v715
    %v6074 = vadd.f32 %v6066, %v6070
    %v6075 = vadd.f32 %v6067, %v6071
    %v6076 = vadd.f32 %v6068, %v6072
    %v6077 = vadd.f32 %v6069, %v6073
    %v6078 = vmul.f32 %v408, %v724
    %v6079 = vmul.f32 %v409, %v724
    %v6080 = vmul.f32 %v410, %v724
    %v6081 = vmul.f32 %v411, %v724
    %v6082 = vadd.f32 %v6074, %v6078
    %v6083 = vadd.f32 %v6075, %v6079
    %v6084 = vadd.f32 %v6076, %v6080
    %v6085 = vadd.f32 %v6077, %v6081
    %v6086 = vmul.f32 %v204, %v733
    %v6087 = vmul.f32 %v205, %v733
    %v6088 = vmul.f32 %v206, %v733
    %v6089 = vmul.f32 %v207, %v733
    %v6090 = vadd.f32 %v6082, %v6086
    %v6091 = vadd.f32 %v6083, %v6087
    %v6092 = vadd.f32 %v6084, %v6088
    %v6093 = vadd.f32 %v6085, %v6089
    %v6094 = vmul.f32 %v308, %v742
    %v6095 = vmul.f32 %v309, %v742
    %v6096 = vmul.f32 %v310, %v742
    %v6097 = vmul.f32 %v311, %v742
    %v6098 = vadd.f32 %v6090, %v6094
    %v6099 = vadd.f32 %v6091, %v6095
    %v6100 = vadd.f32 %v6092, %v6096
    %v6101 = vadd.f32 %v6093, %v6097
    %v6102 = vmul.f32 %v412, %v751
    %v6103 = vmul.f32 %v413, %v751
    %v6104 = vmul.f32 %v414, %v751
    %v6105 = vmul.f32 %v415, %v751
    %v6106 = vadd.f32 %v6098, %v6102
    %v6107 = vadd.f32 %v6099, %v6103
    %v6108 = vadd.f32 %v6100, %v6104
    %v6109 = vadd.f32 %v6101, %v6105
    %v6110 = vmax.f32 %v6038, %v6106
    %v6111 = vmax.f32 %v6039, %v6107
    %v6112 = vmax.f32 %v6040, %v6108
    %v6113 = vmax.f32 %v6041, %v6109
    %v6114 = vmul.f32 %v200, %v683
    %v6115 = vmul.f32 %v201, %v683
    %v6116 = vmul.f32 %v202, %v683
    %v6117 = vmul.f32 %v203, %v683
    %v6118 = vmul.f32 %v304, %v688
    %v6119 = vmul.f32 %v305, %v688
    %v6120 = vmul.f32 %v306, %v688
    %v6121 = vmul.f32 %v307, %v688
    %v6122 = vadd.f32 %v6114, %v6118
    %v6123 = vadd.f32 %v6115, %v6119
    %v6124 = vadd.f32 %v6116, %v6120
    %v6125 = vadd.f32 %v6117, %v6121
    %v6126 = vmul.f32 %v408, %v697
    %v6127 = vmul.f32 %v409, %v697
    %v6128 = vmul.f32 %v410, %v697
    %v6129 = vmul.f32 %v411, %v697
    %v6130 = vadd.f32 %v6122, %v6126
    %v6131 = vadd.f32 %v6123, %v6127
    %v6132 = vadd.f32 %v6124, %v6128
    %v6133 = vadd.f32 %v6125, %v6129
    %v6134 = vmul.f32 %v204, %v706
    %v6135 = vmul.f32 %v205, %v706
    %v6136 = vmul.f32 %v206, %v706
    %v6137 = vmul.f32 %v207, %v706
    %v6138 = vadd.f32 %v6130, %v6134
    %v6139 = vadd.f32 %v6131, %v6135
    %v6140 = vadd.f32 %v6132, %v6136
    %v6141 = vadd.f32 %v6133, %v6137
    %v6142 = vmul.f32 %v308, %v715
    %v6143 = vmul.f32 %v309, %v715
    %v6144 = vmul.f32 %v310, %v715
    %v6145 = vmul.f32 %v311, %v715
    %v6146 = vadd.f32 %v6138, %v6142
    %v6147 = vadd.f32 %v6139, %v6143
    %v6148 = vadd.f32 %v6140, %v6144
    %v6149 = vadd.f32 %v6141, %v6145
    %v6150 = vmul.f32 %v412, %v724
    %v6151 = vmul.f32 %v413, %v724
    %v6152 = vmul.f32 %v414, %v724
    %v6153 = vmul.f32 %v415, %v724
    %v6154 = vadd.f32 %v6146, %v6150
    %v6155 = vadd.f32 %v6147, %v6151
    %v6156 = vadd.f32 %v6148, %v6152
    %v6157 = vadd.f32 %v6149, %v6153
    %v6158 = vmul.f32 %v208, %v733
    %v6159 = vmul.f32 %v209, %v733
    %v6160 = vmul.f32 %v210, %v733
    %v6161 = vmul.f32 %v211, %v733
    %v6162 = vadd.f32 %v6154, %v6158
    %v6163 = vadd.f32 %v6155, %v6159
    %v6164 = vadd.f32 %v6156, %v6160
    %v6165 = vadd.f32 %v6157, %v6161
    %v6166 = vmul.f32 %v312, %v742
    %v6167 = vmul.f32 %v313, %v742
    %v6168 = vmul.f32 %v314, %v742
    %v6169 = vmul.f32 %v315, %v742
    %v6170 = vadd.f32 %v6162, %v6166
    %v6171 = vadd.f32 %v6163, %v6167
    %v6172 = vadd.f32 %v6164, %v6168
    %v6173 = vadd.f32 %v6165, %v6169
    %v6174 = vmul.f32 %v416, %v751
    %v6175 = vmul.f32 %v417, %v751
    %v6176 = vmul.f32 %v418, %v751
    %v6177 = vmul.f32 %v419, %v751
    %v6178 = vadd.f32 %v6170, %v6174
    %v6179 = vadd.f32 %v6171, %v6175
    %v6180 = vadd.f32 %v6172, %v6176
    %v6181 = vadd.f32 %v6173, %v6177
    %v6182 = vmax.f32 %v6110, %v6178
    %v6183 = vmax.f32 %v6111, %v6179
    %v6184 = vmax.f32 %v6112, %v6180
    %v6185 = vmax.f32 %v6113, %v6181
    %v6190 = vrot.slane %v6182, 1
    %v6191 = vrot.slane %v6183, 1
    %v6192 = vsel %vm645, %v6190, %v6191
    %v6193 = vrot.slane %v6184, 1
    %v6194 = vsel %vm645, %v6191, %v6193
    %v6195 = vrot.slane %v6185, 1
    %v6196 = vsel %vm645, %v6193, %v6195
    %v6200 = vmax.f32 %v6182, %v6192
    %v6201 = vmax.f32 %v6183, %v6194
    %v6202 = vmax.f32 %v6184, %v6196
    %v6203 = vrot.slane %v6182, 2
    %v6204 = vrot.slane %v6183, 2
    %v6205 = vsel %vm659, %v6203, %v6204
    %v6206 = vrot.slane %v6184, 2
    %v6207 = vsel %vm659, %v6204, %v6206
    %v6208 = vrot.slane %v6185, 2
    %v6209 = vsel %vm659, %v6206, %v6208
    %v6213 = vmax.f32 %v6200, %v6205
    %v6214 = vmax.f32 %v6201, %v6207
    %v6215 = vmax.f32 %v6202, %v6209
    %v6216 = vadd.f32 %v6213, %v934
    %v6217 = vadd.f32 %v6214, %v934
    %v6218 = vadd.f32 %v6215, %v934
    %v6219 = vmax.f32 %v6216, 0.0
    %v6220 = vmax.f32 %v6217, 0.0
    %v6221 = vmax.f32 %v6218, 0.0
    %6222 = vst [vmem:[#allocation2 + $0x168] sm:$0xff] %v6219
    %6223 = vst [vmem:[#allocation2 + $0x170] sm:$0xff] %v6220
    %6224 = vst [vmem:[#allocation2 + $0x178] sm:$0xff] %v6221
    %v6225 = vmul.f32 %v192, %v944
    %v6226 = vmul.f32 %v193, %v944
    %v6227 = vmul.f32 %v194, %v944
    %v6228 = vmul.f32 %v195, %v944
    %v6229 = vmul.f32 %v296, %v949
    %v6230 = vmul.f32 %v297, %v949
    %v6231 = vmul.f32 %v298, %v949
    %v6232 = vmul.f32 %v299, %v949
    %v6233 = vadd.f32 %v6225, %v6229
    %v6234 = vadd.f32 %v6226, %v6230
    %v6235 = vadd.f32 %v6227, %v6231
    %v6236 = vadd.f32 %v6228, %v6232
    %v6237 = vmul.f32 %v400, %v958
    %v6238 = vmul.f32 %v401, %v958
    %v6239 = vmul.f32 %v402, %v958
    %v6240 = vmul.f32 %v403, %v958
    %v6241 = vadd.f32 %v6233, %v6237
    %v6242 = vadd.f32 %v6234, %v6238
    %v6243 = vadd.f32 %v6235, %v6239
    %v6244 = vadd.f32 %v6236, %v6240
    %v6245 = vmul.f32 %v196, %v967
    %v6246 = vmul.f32 %v197, %v967
    %v6247 = vmul.f32 %v198, %v967
    %v6248 = vmul.f32 %v199, %v967
    %v6249 = vadd.f32 %v6241, %v6245
    %v6250 = vadd.f32 %v6242, %v6246
    %v6251 = vadd.f32 %v6243, %v6247
    %v6252 = vadd.f32 %v6244, %v6248
    %v6253 = vmul.f32 %v300, %v976
    %v6254 = vmul.f32 %v301, %v976
    %v6255 = vmul.f32 %v302, %v976
    %v6256 = vmul.f32 %v303, %v976
    %v6257 = vadd.f32 %v6249, %v6253
    %v6258 = vadd.f32 %v6250, %v6254
    %v6259 = vadd.f32 %v6251, %v6255
    %v6260 = vadd.f32 %v6252, %v6256
    %v6261 = vmul.f32 %v404, %v985
    %v6262 = vmul.f32 %v405, %v985
    %v6263 = vmul.f32 %v406, %v985
    %v6264 = vmul.f32 %v407, %v985
    %v6265 = vadd.f32 %v6257, %v6261
    %v6266 = vadd.f32 %v6258, %v6262
    %v6267 = vadd.f32 %v6259, %v6263
    %v6268 = vadd.f32 %v6260, %v6264
    %v6269 = vmul.f32 %v200, %v994
    %v6270 = vmul.f32 %v201, %v994
    %v6271 = vmul.f32 %v202, %v994
    %v6272 = vmul.f32 %v203, %v994
    %v6273 = vadd.f32 %v6265, %v6269
    %v6274 = vadd.f32 %v6266, %v6270
    %v6275 = vadd.f32 %v6267, %v6271
    %v6276 = vadd.f32 %v6268, %v6272
    %v6277 = vmul.f32 %v304, %v1003
    %v6278 = vmul.f32 %v305, %v1003
    %v6279 = vmul.f32 %v306, %v1003
    %v6280 = vmul.f32 %v307, %v1003
    %v6281 = vadd.f32 %v6273, %v6277
    %v6282 = vadd.f32 %v6274, %v6278
    %v6283 = vadd.f32 %v6275, %v6279
    %v6284 = vadd.f32 %v6276, %v6280
    %v6285 = vmul.f32 %v408, %v1012
    %v6286 = vmul.f32 %v409, %v1012
    %v6287 = vmul.f32 %v410, %v1012
    %v6288 = vmul.f32 %v411, %v1012
    %v6289 = vadd.f32 %v6281, %v6285
    %v6290 = vadd.f32 %v6282, %v6286
    %v6291 = vadd.f32 %v6283, %v6287
    %v6292 = vadd.f32 %v6284, %v6288
    %v6293 = vmul.f32 %v196, %v944
    %v6294 = vmul.f32 %v197, %v944
    %v6295 = vmul.f32 %v198, %v944
    %v6296 = vmul.f32 %v199, %v944
    %v6297 = vmul.f32 %v300, %v949
    %v6298 = vmul.f32 %v301, %v949
    %v6299 = vmul.f32 %v302, %v949
    %v6300 = vmul.f32 %v303, %v949
    %v6301 = vadd.f32 %v6293, %v6297
    %v6302 = vadd.f32 %v6294, %v6298
    %v6303 = vadd.f32 %v6295, %v6299
    %v6304 = vadd.f32 %v6296, %v6300
    %v6305 = vmul.f32 %v404, %v958
    %v6306 = vmul.f32 %v405, %v958
    %v6307 = vmul.f32 %v406, %v958
    %v6308 = vmul.f32 %v407, %v958
    %v6309 = vadd.f32 %v6301, %v6305
    %v6310 = vadd.f32 %v6302, %v6306
    %v6311 = vadd.f32 %v6303, %v6307
    %v6312 = vadd.f32 %v6304, %v6308
    %v6313 = vmul.f32 %v200, %v967
    %v6314 = vmul.f32 %v201, %v967
    %v6315 = vmul.f32 %v202, %v967
    %v6316 = vmul.f32 %v203, %v967
    %v6317 = vadd.f32 %v6309, %v6313
    %v6318 = vadd.f32 %v6310, %v6314
    %v6319 = vadd.f32 %v6311, %v6315
    %v6320 = vadd.f32 %v6312, %v6316
    %v6321 = vmul.f32 %v304, %v976
    %v6322 = vmul.f32 %v305, %v976
    %v6323 = vmul.f32 %v306, %v976
    %v6324 = vmul.f32 %v307, %v976
    %v6325 = vadd.f32 %v6317, %v6321
    %v6326 = vadd.f32 %v6318, %v6322
    %v6327 = vadd.f32 %v6319, %v6323
    %v6328 = vadd.f32 %v6320, %v6324
    %v6329 = vmul.f32 %v408, %v985
    %v6330 = vmul.f32 %v409, %v985
    %v6331 = vmul.f32 %v410, %v985
    %v6332 = vmul.f32 %v411, %v985
    %v6333 = vadd.f32 %v6325, %v6329
    %v6334 = vadd.f32 %v6326, %v6330
    %v6335 = vadd.f32 %v6327, %v6331
    %v6336 = vadd.f32 %v6328, %v6332
    %v6337 = vmul.f32 %v204, %v994
    %v6338 = vmul.f32 %v205, %v994
    %v6339 = vmul.f32 %v206, %v994
    %v6340 = vmul.f32 %v207, %v994
    %v6341 = vadd.f32 %v6333, %v6337
    %v6342 = vadd.f32 %v6334, %v6338
    %v6343 = vadd.f32 %v6335, %v6339
    %v6344 = vadd.f32 %v6336, %v6340
    %v6345 = vmul.f32 %v308, %v1003
    %v6346 = vmul.f32 %v309, %v1003
    %v6347 = vmul.f32 %v310, %v1003
    %v6348 = vmul.f32 %v311, %v1003
    %v6349 = vadd.f32 %v6341, %v6345
    %v6350 = vadd.f32 %v6342, %v6346
    %v6351 = vadd.f32 %v6343, %v6347
    %v6352 = vadd.f32 %v6344, %v6348
    %v6353 = vmul.f32 %v412, %v1012
    %v6354 = vmul.f32 %v413, %v1012
    %v6355 = vmul.f32 %v414, %v1012
    %v6356 = vmul.f32 %v415, %v1012
    %v6357 = vadd.f32 %v6349, %v6353
    %v6358 = vadd.f32 %v6350, %v6354
    %v6359 = vadd.f32 %v6351, %v6355
    %v6360 = vadd.f32 %v6352, %v6356
    %v6361 = vmax.f32 %v6289, %v6357
    %v6362 = vmax.f32 %v6290, %v6358
    %v6363 = vmax.f32 %v6291, %v6359
    %v6364 = vmax.f32 %v6292, %v6360
    %v6365 = vmul.f32 %v200, %v944
    %v6366 = vmul.f32 %v201, %v944
    %v6367 = vmul.f32 %v202, %v944
    %v6368 = vmul.f32 %v203, %v944
    %v6369 = vmul.f32 %v304, %v949
    %v6370 = vmul.f32 %v305, %v949
    %v6371 = vmul.f32 %v306, %v949
    %v6372 = vmul.f32 %v307, %v949
    %v6373 = vadd.f32 %v6365, %v6369
    %v6374 = vadd.f32 %v6366, %v6370
    %v6375 = vadd.f32 %v6367, %v6371
    %v6376 = vadd.f32 %v6368, %v6372
    %v6377 = vmul.f32 %v408, %v958
    %v6378 = vmul.f32 %v409, %v958
    %v6379 = vmul.f32 %v410, %v958
    %v6380 = vmul.f32 %v411, %v958
    %v6381 = vadd.f32 %v6373, %v6377
    %v6382 = vadd.f32 %v6374, %v6378
    %v6383 = vadd.f32 %v6375, %v6379
    %v6384 = vadd.f32 %v6376, %v6380
    %v6385 = vmul.f32 %v204, %v967
    %v6386 = vmul.f32 %v205, %v967
    %v6387 = vmul.f32 %v206, %v967
    %v6388 = vmul.f32 %v207, %v967
    %v6389 = vadd.f32 %v6381, %v6385
    %v6390 = vadd.f32 %v6382, %v6386
    %v6391 = vadd.f32 %v6383, %v6387
    %v6392 = vadd.f32 %v6384, %v6388
    %v6393 = vmul.f32 %v308, %v976
    %v6394 = vmul.f32 %v309, %v976
    %v6395 = vmul.f32 %v310, %v976
    %v6396 = vmul.f32 %v311, %v976
    %v6397 = vadd.f32 %v6389, %v6393
    %v6398 = vadd.f32 %v6390, %v6394
    %v6399 = vadd.f32 %v6391, %v6395
    %v6400 = vadd.f32 %v6392, %v6396
    %v6401 = vmul.f32 %v412, %v985
    %v6402 = vmul.f32 %v413, %v985
    %v6403 = vmul.f32 %v414, %v985
    %v6404 = vmul.f32 %v415, %v985
    %v6405 = vadd.f32 %v6397, %v6401
    %v6406 = vadd.f32 %v6398, %v6402
    %v6407 = vadd.f32 %v6399, %v6403
    %v6408 = vadd.f32 %v6400, %v6404
    %v6409 = vmul.f32 %v208, %v994
    %v6410 = vmul.f32 %v209, %v994
    %v6411 = vmul.f32 %v210, %v994
    %v6412 = vmul.f32 %v211, %v994
    %v6413 = vadd.f32 %v6405, %v6409
    %v6414 = vadd.f32 %v6406, %v6410
    %v6415 = vadd.f32 %v6407, %v6411
    %v6416 = vadd.f32 %v6408, %v6412
    %v6417 = vmul.f32 %v312, %v1003
    %v6418 = vmul.f32 %v313, %v1003
    %v6419 = vmul.f32 %v314, %v1003
    %v6420 = vmul.f32 %v315, %v1003
    %v6421 = vadd.f32 %v6413, %v6417
    %v6422 = vadd.f32 %v6414, %v6418
    %v6423 = vadd.f32 %v6415, %v6419
    %v6424 = vadd.f32 %v6416, %v6420
    %v6425 = vmul.f32 %v416, %v1012
    %v6426 = vmul.f32 %v417, %v1012
    %v6427 = vmul.f32 %v418, %v1012
    %v6428 = vmul.f32 %v419, %v1012
    %v6429 = vadd.f32 %v6421, %v6425
    %v6430 = vadd.f32 %v6422, %v6426
    %v6431 = vadd.f32 %v6423, %v6427
    %v6432 = vadd.f32 %v6424, %v6428
    %v6433 = vmax.f32 %v6361, %v6429
    %v6434 = vmax.f32 %v6362, %v6430
    %v6435 = vmax.f32 %v6363, %v6431
    %v6436 = vmax.f32 %v6364, %v6432
    %v6441 = vrot.slane %v6433, 1
    %v6442 = vrot.slane %v6434, 1
    %v6443 = vsel %vm645, %v6441, %v6442
    %v6444 = vrot.slane %v6435, 1
    %v6445 = vsel %vm645, %v6442, %v6444
    %v6446 = vrot.slane %v6436, 1
    %v6447 = vsel %vm645, %v6444, %v6446
    %v6451 = vmax.f32 %v6433, %v6443
    %v6452 = vmax.f32 %v6434, %v6445
    %v6453 = vmax.f32 %v6435, %v6447
    %v6454 = vrot.slane %v6433, 2
    %v6455 = vrot.slane %v6434, 2
    %v6456 = vsel %vm659, %v6454, %v6455
    %v6457 = vrot.slane %v6435, 2
    %v6458 = vsel %vm659, %v6455, %v6457
    %v6459 = vrot.slane %v6436, 2
    %v6460 = vsel %vm659, %v6457, %v6459
    %v6464 = vmax.f32 %v6451, %v6456
    %v6465 = vmax.f32 %v6452, %v6458
    %v6466 = vmax.f32 %v6453, %v6460
    %v6467 = vadd.f32 %v6464, %v1195
    %v6468 = vadd.f32 %v6465, %v1195
    %v6469 = vadd.f32 %v6466, %v1195
    %v6470 = vmax.f32 %v6467, 0.0
    %v6471 = vmax.f32 %v6468, 0.0
    %v6472 = vmax.f32 %v6469, 0.0
    %6473 = vst [vmem:[#allocation2 + $0x228] sm:$0xff] %v6470
    %6474 = vst [vmem:[#allocation2 + $0x230] sm:$0xff] %v6471
    %6475 = vst [vmem:[#allocation2 + $0x238] sm:$0xff] %v6472
    %v6476 = vld [vmem:[#allocation10] sm:$0xff]
    %v6477 = vld [vmem:[#allocation10 + $0x8] sm:$0xff]
    %v6478 = vld [vmem:[#allocation10 + $0x10] sm:$0xff]
    %v6479 = vld [vmem:[#allocation10 + $0x18] sm:$0xff]
    %v6480 = vld [vmem:[#allocation10 + $0x20] sm:$0xff]
    %v6481 = vld [vmem:[#allocation10 + $0x28] sm:$0x3]
    %v6482 = vld [vmem:[#allocation10 + $0x30] sm:$0x3]
    %v6483 = vld [vmem:[#allocation10 + $0x38] sm:$0x3]
    %v6484 = vld [vmem:[#allocation10 + $0x40] sm:$0x3]
    %v6485 = vld [vmem:[#allocation10 + $0x48] sm:$0x3]
    %v6486 = vld [vmem:[#allocation2] sm:$0xff]
    %v6487 = vld [vmem:[#allocation2 + $0x8] sm:$0xff]
    %v6488 = vld [vmem:[#allocation2 + $0x10] sm:$0xff]
    %v6489 = vld [vmem:[#allocation2 + $0x18] sm:$0xff]
    %v6490 = vld [vmem:[#allocation2 + $0x20] sm:$0xff]
    %v6491 = vld [vmem:[#allocation2 + $0x28] sm:$0xff]
    %v6492 = vld [vmem:[#allocation2 + $0x30] sm:$0xff]
    %v6493 = vld [vmem:[#allocation2 + $0x38] sm:$0xff]
    %v6494 = vld [vmem:[#allocation2 + $0x40] sm:$0xff]
    %v6495 = vld [vmem:[#allocation2 + $0x48] sm:$0xff]
    %v6496 = vld [vmem:[#allocation2 + $0x50] sm:$0xff]
    %v6497 = vld [vmem:[#allocation2 + $0x58] sm:$0xff]
    %v6498 = vld [vmem:[#allocation2 + $0x60] sm:$0xff]
    %v6499 = vld [vmem:[#allocation2 + $0x68] sm:$0xff]
    %v6500 = vld [vmem:[#allocation2 + $0x70] sm:$0xff]
    %v6501 = vld [vmem:[#allocation2 + $0x78] sm:$0xff]
    %v6502 = vld [vmem:[#allocation2 + $0x80] sm:$0xff]
    %v6503 = vld [vmem:[#allocation2 + $0x88] sm:$0xff]
    %v6504 = vld [vmem:[#allocation2 + $0x90] sm:$0xff]
    %v6505 = vld [vmem:[#allocation2 + $0x98] sm:$0xff]
    %v6506 = vld [vmem:[#allocation2 + $0xa0] sm:$0xff]
    %v6507 = vld [vmem:[#allocation2 + $0xa8] sm:$0xff]
    %v6508 = vld [vmem:[#allocation2 + $0xb0] sm:$0xff]
    %v6509 = vld [vmem:[#allocation2 + $0xb8] sm:$0xff]
    %v6510 = vld [vmem:[#allocation2 + $0xc0] sm:$0xff]
    %v6511 = vld [vmem:[#allocation2 + $0xc8] sm:$0xff]
    %v6512 = vld [vmem:[#allocation2 + $0xd0] sm:$0xff]
    %v6513 = vld [vmem:[#allocation2 + $0xd8] sm:$0xff]
    %v6514 = vld [vmem:[#allocation2 + $0xe0] sm:$0xff]
    %v6515 = vld [vmem:[#allocation2 + $0xe8] sm:$0xff]
    %v6516 = vld [vmem:[#allocation2 + $0xf0] sm:$0xff]
    %v6517 = vld [vmem:[#allocation2 + $0xf8] sm:$0xff]
    %v6518 = vld [vmem:[#allocation2 + $0x100] sm:$0xff]
    %v6519 = vld [vmem:[#allocation2 + $0x108] sm:$0xff]
    %v6520 = vld [vmem:[#allocation2 + $0x110] sm:$0xff]
    %v6521 = vld [vmem:[#allocation2 + $0x118] sm:$0xff]
    %v6522 = vld [vmem:[#allocation2 + $0x120] sm:$0xff]
    %v6523 = vld [vmem:[#allocation2 + $0x128] sm:$0xff]
    %v6524 = vld [vmem:[#allocation2 + $0x130] sm:$0xff]
    %v6525 = vld [vmem:[#allocation2 + $0x138] sm:$0xff]
    %v6526 = vld [vmem:[#allocation2 + $0x140] sm:$0xff]
    %v6527 = vld [vmem:[#allocation2 + $0x148] sm:$0xff]
    %v6528 = vld [vmem:[#allocation2 + $0x150] sm:$0xff]
    %v6529 = vld [vmem:[#allocation2 + $0x158] sm:$0xff]
    %v6530 = vld [vmem:[#allocation2 + $0x160] sm:$0xff]
    %v6531 = vld [vmem:[#allocation2 + $0x168] sm:$0xff]
    %v6532 = vld [vmem:[#allocation2 + $0x170] sm:$0xff]
    %v6533 = vld [vmem:[#allocation2 + $0x178] sm:$0xff]
    %v6534 = vld [vmem:[#allocation2 + $0x180] sm:$0xff]
    %v6535 = vld [vmem:[#allocation2 + $0x188] sm:$0xff]
    %v6536 = vld [vmem:[#allocation2 + $0x190] sm:$0xff]
    %v6537 = vld [vmem:[#allocation2 + $0x198] sm:$0xff]
    %v6538 = vld [vmem:[#allocation2 + $0x1a0] sm:$0xff]
    %v6539 = vld [vmem:[#allocation2 + $0x1a8] sm:$0xff]
    %v6540 = vld [vmem:[#allocation2 + $0x1b0] sm:$0xff]
    %v6541 = vld [vmem:[#allocation2 + $0x1b8] sm:$0xff]
    %v6542 = vld [vmem:[#allocation2 + $0x1c0] sm:$0xff]
    %v6543 = vld [vmem:[#allocation2 + $0x1c8] sm:$0xff]
    %v6544 = vld [vmem:[#allocation2 + $0x1d0] sm:$0xff]
    %v6545 = vld [vmem:[#allocation2 + $0x1d8] sm:$0xff]
    %v6546 = vld [vmem:[#allocation2 + $0x1e0] sm:$0xff]
    %v6547 = vld [vmem:[#allocation2 + $0x1e8] sm:$0xff]
    %v6548 = vld [vmem:[#allocation2 + $0x1f0] sm:$0xff]
    %v6549 = vld [vmem:[#allocation2 + $0x1f8] sm:$0xff]
    %v6550 = vld [vmem:[#allocation2 + $0x200] sm:$0xff]
    %v6551 = vld [vmem:[#allocation2 + $0x208] sm:$0xff]
    %v6552 = vld [vmem:[#allocation2 + $0x210] sm:$0xff]
    %v6553 = vld [vmem:[#allocation2 + $0x218] sm:$0xff]
    %v6554 = vld [vmem:[#allocation2 + $0x220] sm:$0xff]
    %v6555 = vld [vmem:[#allocation2 + $0x228] sm:$0xff]
    %v6556 = vld [vmem:[#allocation2 + $0x230] sm:$0xff]
    %v6557 = vld [vmem:[#allocation2 + $0x238] sm:$0xff]
    %v6558 = vld [vmem:[%s4] sm:$0xff]
    %v6559 = vld [vmem:[%s4 + $0x8] sm:$0x3]
    %6561 = vset.pattern.permute.xlu0 0
    %6562 = vperm.xlu0 %6561, %v6558
    %v6563 = vpop.permute.xlu0 %6562
    %6566 = vset.pattern.permute.xlu0 0
    %6567 = vperm.xlu0 %6566, %v6559
    %v6568 = vpop.permute.xlu0 %6567
    %vm6570 = vcmask 523264
    %v6572 = vsel %vm6570, %v6480, 0
    %v6575 = vsel %vm6570, %v6485, 0
    %6577 = vmatpush.msra.mxu0 %v6501
    %6578 = vmatpush.msra.mxu0 %v6500
    %6579 = vmatpush.msra.mxu0 %v6499
    %6580 = vmatpush.msra.mxu0 %v6498
    %6581 = vmatpush.msra.mxu0 %v6497
    %6582 = vmatpush.msra.mxu0 %v6496
    %6583 = vmatpush.msra.mxu0 %v6495
    %6584 = vmatpush.msra.mxu0 %v6494
    %6585 = vmatpush.msra.mxu0 %v6493
    %6586 = vmatpush.msra.mxu0 %v6492
    %6587 = vmatpush.msra.mxu0 %v6491
    %6588 = vmatpush.msra.mxu0 %v6490
    %6589 = vmatpush.msra.mxu0 %v6489
    %6590 = vmatpush.msra.mxu0 %v6488
    %6591 = vmatpush.msra.mxu0 %v6487
    %6592 = vmatpush.msra.mxu0 %v6486
    %6593 = vmatmul.f32.gmra.mxu0 %v6476
    %v6594 = vpop.f32.mrf.mxu0
    %v6595 = vadd.f32 %v6563, %v6594
    %6596 = vmatmul.f32.gmra.mxu0 %v6481
    %v6597 = vpop.f32.mrf.mxu0
    %v6598 = vadd.f32 %v6568, %v6597
    %6599 = vdwg.mxu0
    %6600 = vmatpush.msra.mxu0 %v6517
    %6601 = vmatpush.msra.mxu0 %v6516
    %6602 = vmatpush.msra.mxu0 %v6515
    %6603 = vmatpush.msra.mxu0 %v6514
    %6604 = vmatpush.msra.mxu0 %v6513
    %6605 = vmatpush.msra.mxu0 %v6512
    %6606 = vmatpush.msra.mxu0 %v6511
    %6607 = vmatpush.msra.mxu0 %v6510
    %6608 = vmatpush.msra.mxu0 %v6509
    %6609 = vmatpush.msra.mxu0 %v6508
    %6610 = vmatpush.msra.mxu0 %v6507
    %6611 = vmatpush.msra.mxu0 %v6506
    %6612 = vmatpush.msra.mxu0 %v6505
    %6613 = vmatpush.msra.mxu0 %v6504
    %6614 = vmatpush.msra.mxu0 %v6503
    %6615 = vmatpush.msra.mxu0 %v6502
    %6616 = vmatmul.f32.gmra.mxu0 %v6477
    %v6617 = vpop.f32.mrf.mxu0
    %v6618 = vadd.f32 %v6595, %v6617
    %6619 = vmatmul.f32.gmra.mxu0 %v6482
    %v6620 = vpop.f32.mrf.mxu0
    %v6621 = vadd.f32 %v6598, %v6620
    %6622 = vdwg.mxu0
    %6623 = vmatpush.msra.mxu0 %v6533
    %6624 = vmatpush.msra.mxu0 %v6532
    %6625 = vmatpush.msra.mxu0 %v6531
    %6626 = vmatpush.msra.mxu0 %v6530
    %6627 = vmatpush.msra.mxu0 %v6529
    %6628 = vmatpush.msra.mxu0 %v6528
    %6629 = vmatpush.msra.mxu0 %v6527
    %6630 = vmatpush.msra.mxu0 %v6526
    %6631 = vmatpush.msra.mxu0 %v6525
    %6632 = vmatpush.msra.mxu0 %v6524
    %6633 = vmatpush.msra.mxu0 %v6523
    %6634 = vmatpush.msra.mxu0 %v6522
    %6635 = vmatpush.msra.mxu0 %v6521
    %6636 = vmatpush.msra.mxu0 %v6520
    %6637 = vmatpush.msra.mxu0 %v6519
    %6638 = vmatpush.msra.mxu0 %v6518
    %6639 = vmatmul.f32.gmra.mxu0 %v6478
    %v6640 = vpop.f32.mrf.mxu0
    %v6641 = vadd.f32 %v6618, %v6640
    %6642 = vmatmul.f32.gmra.mxu0 %v6483
    %v6643 = vpop.f32.mrf.mxu0
    %v6644 = vadd.f32 %v6621, %v6643
    %6645 = vdwg.mxu0
    %6646 = vmatpush.msra.mxu0 %v6549
    %6647 = vmatpush.msra.mxu0 %v6548
    %6648 = vmatpush.msra.mxu0 %v6547
    %6649 = vmatpush.msra.mxu0 %v6546
    %6650 = vmatpush.msra.mxu0 %v6545
    %6651 = vmatpush.msra.mxu0 %v6544
    %6652 = vmatpush.msra.mxu0 %v6543
    %6653 = vmatpush.msra.mxu0 %v6542
    %6654 = vmatpush.msra.mxu0 %v6541
    %6655 = vmatpush.msra.mxu0 %v6540
    %6656 = vmatpush.msra.mxu0 %v6539
    %6657 = vmatpush.msra.mxu0 %v6538
    %6658 = vmatpush.msra.mxu0 %v6537
    %6659 = vmatpush.msra.mxu0 %v6536
    %6660 = vmatpush.msra.mxu0 %v6535
    %6661 = vmatpush.msra.mxu0 %v6534
    %6662 = vmatmul.f32.gmra.mxu0 %v6479
    %v6663 = vpop.f32.mrf.mxu0
    %v6664 = vadd.f32 %v6641, %v6663
    %6665 = vmatmul.f32.gmra.mxu0 %v6484
    %v6666 = vpop.f32.mrf.mxu0
    %v6667 = vadd.f32 %v6644, %v6666
    %6668 = vdwg.mxu0
    %6669 = vmatpush.msra.mxu0 0.0
    %6670 = vmatpush.msra.mxu0 0.0
    %6671 = vmatpush.msra.mxu0 0.0
    %6672 = vmatpush.msra.mxu0 0.0
    %6673 = vmatpush.msra.mxu0 0.0
    %6674 = vmatpush.msra.mxu0 0.0
    %6675 = vmatpush.msra.mxu0 0.0
    %6676 = vmatpush.msra.mxu0 0.0
    %6677 = vmatpush.msra.mxu0 %v6557
    %6678 = vmatpush.msra.mxu0 %v6556
    %6679 = vmatpush.msra.mxu0 %v6555
    %6680 = vmatpush.msra.mxu0 %v6554
    %6681 = vmatpush.msra.mxu0 %v6553
    %6682 = vmatpush.msra.mxu0 %v6552
    %6683 = vmatpush.msra.mxu0 %v6551
    %6684 = vmatpush.msra.mxu0 %v6550
    %6685 = vmatmul.f32.gmra.mxu0 %v6572
    %v6686 = vpop.f32.mrf.mxu0
    %v6687 = vadd.f32 %v6664, %v6686
    %6688 = vmatmul.f32.gmra.mxu0 %v6575
    %v6689 = vpop.f32.mrf.mxu0
    %v6690 = vadd.f32 %v6667, %v6689
    %6691 = vdwg.mxu0
    %vm6692 = vcmask 1041408
    %v6693 = vsel %vm6692, %v6690, -inf
    %v6694 = vmax.f32 %v6687, %v6693
    %v6695 = vrot.slane %v6694, 4
    %v6696 = vmax.f32 %v6694, %v6695
    %v6697 = vrot.slane %v6696, 2
    %v6698 = vmax.f32 %v6696, %v6697
    %v6699 = vrot.slane %v6698, 1
    %v6700 = vmax.f32 %v6698, %v6699
    %v6701 = vsub.f32 %v6687, %v6700
    %v6702 = vsub.f32 %v6690, %v6700
    %v6703 = vmul.f32 %v6701, 1.442695
    %v6704 = vpow.pop %v6703
    %v6705 = vmul.f32 %v6702, 1.442695
    %v6706 = vpow.pop %v6705
    %v6707 = vsel %vm6692, %v6706, 0.0
    %v6708 = vadd.f32 %v6704, %v6707
    %v6709 = vrot.slane %v6708, 4
    %v6710 = vadd.f32 %v6708, %v6709
    %v6711 = vrot.slane %v6710, 2
    %v6712 = vadd.f32 %v6710, %v6711
    %v6713 = vrot.slane %v6712, 1
    %v6714 = vadd.f32 %v6712, %v6713
    %v6715 = vlog2.pop %v6714
    %v6716 = vmul.f32 %v6715, 0.6931472
    %v6717 = vsub.f32 %v6701, %v6716
    %v6718 = vsub.f32 %v6702, %v6716
    %6719 = vst [vmem:[#allocation12] sm:$0xff] %v6717
    %6720 = vst [vmem:[#allocation12 + $0x8] sm:$0x3] %v6718
    // Predicated region
    $region38: #{tpu_custom_call.1} parent=1 // pred_check
      _
    $region39: #{tpu_custom_call.1} parent=1 // pred_check_branch
      %6722 = sbr.rel (0) target = $region41
    $region40: #{tpu_custom_call.1} parent=1 // pred_region
      %6724 = vsyncadd [#allocation5], 0
      %s6725 = sshll.u32 [#allocation12], 4
      %s6726 = int_to_ptr.vmem [resolvable:$true] %s6725
      %s6727 = sshll.u32 %s5, 4
      %s6728 = int_to_ptr.hbm [resolvable:$true] %s6727
      %6733 = dma.vmem_to_hbm [thread:$0]  %s6726, 256, %s6728, [#allocation5], 128, 128, 8
    $region41: #{tpu_custom_call.1} parent=1 // pred_fallthru
      _
    // Predicated region
    $region42: #{tpu_custom_call.1} parent=1 // pred_check
      _
    $region43: #{tpu_custom_call.1} parent=1 // pred_check_branch
      %6735 = sbr.rel (0) target = $region45
    $region44: #{tpu_custom_call.1} parent=1 // pred_region
      %6737 = dma.done [#allocation5], 256
    $region45: #{tpu_custom_call.1} parent=1 // pred_fallthru
      _
    %6738 = vsyncpa [#allocation4], 1
    %6739 = vsyncpa [#allocation11], 1
    %6740 = vsyncpa [#allocation5], 1
    %6741 = vsyncpa [#allocation6], 1
    %6742 = vsyncpa [#allocation9], 1

</llo_original>
